<compile_context>
chip_gen: v5e
topology: v5e:2x2
jax: 0.10.0
libtpu: 0.0.40
codegen_flags: <defaults>
</compile_context>

<pallas_src>
import functools

import jax
import jax.numpy as jnp
from jax.experimental import pallas as pl
from jax.experimental.pallas import tpu as pltpu


# ----------------------------------------------------------------------------
# Pallas kernel
# ----------------------------------------------------------------------------
def _predinet_kernel(obj_ref, objf_ref, wq_ref, wk_ref, wse_ref, out_ref, *,
                     n_heads, key_dim, n_relations):
    obj = obj_ref[...]             # [Bt, N, D]   (temporal tag already appended)
    objf = objf_ref[...]           # [Bt, N*D]
    wq = wq_ref[...]               # [N*D, 2H*kd]   ([W_q1 | W_q2])
    wk = wk_ref[...]               # [D, kd]
    wse = wse_ref[...]             # [D, R+2]       ([W_s | onehot(D-1) | onehot(D-1)])

    Bt, N, D = obj.shape
    H = n_heads
    H2 = 2 * n_heads
    kd = key_dim
    R = n_relations

    # (1) fused query projection for both query sets / all heads: one MXU matmul.
    q = jnp.dot(objf, wq, preferred_element_type=jnp.float32)          # [Bt, 2H*kd]

    # (2) move the (query, head) structure off the lane axis onto sublanes.
    #     Rows stay batch-major, so every later reshape is an 8-aligned
    #     leading-dim no-op.  This is the only real relayout in the kernel
    #     (~Bt vregs of shuffle; cheap next to the Bt batched matmuls below).
    q3 = jnp.concatenate(
        [q[:, r * kd:(r + 1) * kd][:, None, :] for r in range(H2)],
        axis=1)                                                        # [Bt, 2H, kd]

    # (3) key projection on flat rows (Bt*N is a multiple of 8 -> layout no-op).
    k_flat = jnp.dot(obj.reshape(Bt * N, D), wk,
                     preferred_element_type=jnp.float32)               # [Bt*N, kd]
    k3 = k_flat.reshape(Bt, N, kd)                                     # [Bt, N, kd]

    # (4) attention logits as a batched MXU matmul (exactly the reference's
    #     sum over key_dim; replaces the 2H-replicated VPU product + XLU
    #     lane reductions of the previous version).
    logits = jnp.einsum('brk,bnk->brn', q3, k3,
                        preferred_element_type=jnp.float32)            # [Bt, 2H, N]

    # (5) softmax over the object axis (last axis here).
    m = jnp.max(logits, axis=-1, keepdims=True)
    w = jnp.exp(logits - m)
    attn = w / jnp.sum(w, axis=-1, keepdims=True)                      # [Bt, 2H, N]

    # (6) attended objects: batched MXU matmul (no obj replication).
    e3 = jnp.einsum('brn,bnd->brd', attn, obj,
                    preferred_element_type=jnp.float32)                # [Bt, 2H, D]

    # (7) relation + temporal-tag projection: a single matmul with the extended
    #     W_s (last two columns are one-hot selectors of feature D-1).
    rel = jnp.dot(e3.reshape(Bt * H2, D), wse,
                  preferred_element_type=jnp.float32)                  # [Bt*2H, R+2]
    rel3 = rel.reshape(Bt, H2, R + 2)                                  # [Bt, 2H, R+2]

    # (8) combine the two query sets:
    #       cols < R  -> Ws(E1) - Ws(E2)
    #       col == R  -> E1[..., -1]
    #       col == R+1-> E2[..., -1]
    top = rel3[:, :H, :]                                               # [Bt, H, R+2]
    bot = rel3[:, H:, :]                                               # [Bt, H, R+2]
    col = jax.lax.broadcasted_iota(jnp.int32, (1, 1, R + 2), 2)
    top_coef = jnp.where(col == R + 1, 0.0, 1.0)
    bot_coef = jnp.where(col < R, -1.0, jnp.where(col == R + 1, 1.0, 0.0))
    out_ref[...] = top * top_coef + bot * bot_coef                     # [Bt, H, R+2]


# ----------------------------------------------------------------------------
# Wrapper: temporal tag, flatten, weight fusion, batch-tiled grid
# ----------------------------------------------------------------------------
def predinet_pallas(obj_seq, wk, wq1, wq2, ws, *, n_heads, key_dim,
                    n_relations, batch_tile=None):
    B, N, _ = obj_seq.shape
    obj_seq = obj_seq.astype(jnp.float32)

    # add_temp_tag = True : append arange(N) as an extra feature.
    temp_tag = jnp.broadcast_to(
        jnp.arange(N, dtype=jnp.float32)[None, :, None], (B, N, 1))
    obj = jnp.concatenate([obj_seq, temp_tag], axis=2)                 # [B, N, D]
    D = obj.shape[2]
    # obj / objf carry the same data (~1 KiB/sample); the duplicate input is
    # accepted so the kernel never needs a lane<->sublane reshape of obj.
    objf = obj.reshape(B, N * D)                                       # [B, N*D]

    wq = jnp.concatenate([wq1, wq2], axis=1)                           # [N*D, 2H*kd]
    # Extended W_s: two one-hot(D-1) columns so the temporal-tag passthrough
    # rides the same matmul as the relation projection.
    # TODO(synk): with non-finite features, 0*Inf in this matmul would pollute
    # the tag columns, unlike the reference's direct slice of E[..., -1].
    tag_col = jax.nn.one_hot(D - 1, D, dtype=jnp.float32)[:, None]     # [D, 1]
    wse = jnp.concatenate([ws, tag_col, tag_col], axis=1)              # [D, R+2]

    # --- batch tiling ------------------------------------------------------
    if batch_tile is None:
        if B <= 128:
            batch_tile = B                      # small batch: one big block
        else:
            batch_tile = B
            for cand in (256, 128, 64, 32, 16, 8):
                if B % cand == 0:
                    batch_tile = cand
                    break
    assert B % batch_tile == 0, "batch must be divisible by batch_tile"
    assert batch_tile == B or batch_tile % 8 == 0, \
        "batch_tile must equal B or be a multiple of 8"
    num_blocks = B // batch_tile

    kernel = functools.partial(
        _predinet_kernel, n_heads=n_heads, key_dim=key_dim,
        n_relations=n_relations)

    grid_spec = pltpu.PrefetchScalarGridSpec(
        num_scalar_prefetch=0,
        grid=(num_blocks,),
        in_specs=[
            pl.BlockSpec((batch_tile, N, D), lambda i: (i, 0, 0)),     # obj
            pl.BlockSpec((batch_tile, N * D), lambda i: (i, 0)),       # objf
            pl.BlockSpec(wq.shape, lambda i: (0, 0)),                  # fused W_q
            pl.BlockSpec(wk.shape, lambda i: (0, 0)),                  # W_k
            pl.BlockSpec(wse.shape, lambda i: (0, 0)),                 # extended W_s
        ],
        out_specs=pl.BlockSpec((batch_tile, n_heads, n_relations + 2),
                               lambda i: (i, 0, 0)),
    )

    out3 = pl.pallas_call(
        kernel,
        out_shape=jax.ShapeDtypeStruct((B, n_heads, n_relations + 2),
                                       jnp.float32),
        grid_spec=grid_spec,
        compiler_params=pltpu.CompilerParams(
            dimension_semantics=("parallel",),       # shard batch blocks on v7x
            vmem_limit_bytes=48 * 1024 * 1024),      # headroom under v7x's 64 MiB
    )(obj, objf, wq, wk, wse)

    # Final (head, relation) flatten: near-free layout plumbing in the wrapper.
    return out3.reshape(B, n_heads * (n_relations + 2))


# ----------------------------------------------------------------------------
# Pure-JAX reference (mirrors the PyTorch forward exactly)
# ----------------------------------------------------------------------------
def predinet_ref(obj_seq, wk, wq1, wq2, ws, *, n_heads, key_dim, n_relations):
    B, N, _ = obj_seq.shape
    temp_tag = jnp.broadcast_to(
        jnp.arange(N, dtype=jnp.float32)[None, :, None], (B, N, 1))
    obj = jnp.concatenate([obj_seq.astype(jnp.float32), temp_tag], axis=2)
    objf = obj.reshape(B, -1)
    Q1 = objf @ wq1
    Q2 = objf @ wq2
    K = jnp.einsum('bnd,dk->bnk', obj, wk)
    Q1r = Q1.reshape(B, n_heads, key_dim)
    Q2r = Q2.reshape(B, n_heads, key_dim)
    A1 = jax.nn.softmax(jnp.sum(Q1r[:, None] * K[:, :, None], axis=3), axis=1)
    A2 = jax.nn.softmax(jnp.sum(Q2r[:, None] * K[:, :, None], axis=3), axis=1)
    E1 = jnp.sum(A1[..., None] * obj[:, :, None, :], axis=1)   # [B, H, D]
    E2 = jnp.sum(A2[..., None] * obj[:, :, None, :], axis=1)
    Dr = E1 @ ws - E2 @ ws                                      # [B, H, R]
    Dr = jnp.concatenate([Dr, E1[:, :, -1:], E2[:, :, -1:]], axis=2)
    return Dr.reshape(B, -1)


# ----------------------------------------------------------------------------
# Main
# ----------------------------------------------------------------------------
if __name__ == "__main__":
    B = 128          # batch (2 blocks of 64 -> exercises the parallel grid)
    n_objects = 8    # N
    d_model = 32     # raw object feature dim (before temp tag)
    n_heads = 4
    n_relations = 4
    key_dim = d_model // n_heads        # 8 (computed before temp tag, as in __init__)
    D = d_model + 1                     # 33 (add_temp_tag=True)

    key = jax.random.PRNGKey(0)
    k_x, k_wk, k_wq1, k_wq2, k_ws = jax.random.split(key, 5)

    obj_seq = jax.random.normal(k_x, (B, n_objects, d_model), dtype=jnp.float32)

    # deterministic weights, input-major layout (y = x @ W), fan-in scaled
    wk = jax.random.normal(k_wk, (D, key_dim), jnp.float32) / jnp.sqrt(D)
    wq1 = jax.random.normal(k_wq1, (n_objects * D, n_heads * key_dim),
                            jnp.float32) / jnp.sqrt(n_objects * D)
    wq2 = jax.random.normal(k_wq2, (n_objects * D, n_heads * key_dim),
                            jnp.float32) / jnp.sqrt(n_objects * D)
    ws = jax.random.normal(k_ws, (D, n_relations), jnp.float32) / jnp.sqrt(D)

    out = predinet_pallas(obj_seq, wk, wq1, wq2, ws, n_heads=n_heads,
                          key_dim=key_dim, n_relations=n_relations,
                          batch_tile=B // 2)
    out = jax.block_until_ready(out)

    ref = predinet_ref(obj_seq, wk, wq1, wq2, ws, n_heads=n_heads,
                       key_dim=key_dim, n_relations=n_relations)
    ref = jax.block_until_ready(ref)

    assert out.shape == (B, n_heads * (n_relations + 2)), out.shape
    if not jnp.allclose(out, ref, rtol=1e-4, atol=1e-4):
        max_err = float(jnp.max(jnp.abs(out - ref)))
        raise AssertionError(f"Pallas kernel mismatch, max abs err = {max_err}")

    print("KERNEL_OK")
</pallas_src>

<mosaic_0001>
module attributes {stable_mosaic.version = 11 : i64} {
  func.func @_predinet_kernel(%arg0: i32, %arg1: memref<64x8x33xf32, #tpu.memory_space<vmem>>, %arg2: memref<64x264xf32, #tpu.memory_space<vmem>>, %arg3: memref<264x64xf32, #tpu.memory_space<vmem>>, %arg4: memref<33x8xf32, #tpu.memory_space<vmem>>, %arg5: memref<33x6xf32, #tpu.memory_space<vmem>>, %arg6: memref<64x4x6xf32, #tpu.memory_space<vmem>>) attributes {dimension_semantics = [#tpu.dimension_semantics<parallel>], iteration_bounds = array<i64: 2>, scalar_prefetch = 0 : i64, scratch_operands = 0 : i64, tpu.core_type = #tpu.core_type<tc>, window_params = [{transform_indices = @transform_0, window_bounds = array<i64: 64, 8, 33>}, {transform_indices = @transform_1, window_bounds = array<i64: 64, 264>}, {pipeline_mode = #tpu.pipeline_mode<synchronous>, transform_indices = @transform_2, window_bounds = array<i64: 264, 64>}, {pipeline_mode = #tpu.pipeline_mode<synchronous>, transform_indices = @transform_3, window_bounds = array<i64: 33, 8>}, {pipeline_mode = #tpu.pipeline_mode<synchronous>, transform_indices = @transform_4, window_bounds = array<i64: 33, 6>}, {transform_indices = @transform_5, window_bounds = array<i64: 64, 4, 6>}]} {
    %c0 = arith.constant 0 : index
    %c0_0 = arith.constant 0 : index
    %c0_1 = arith.constant 0 : index
    %0 = vector.load %arg1[%c0, %c0_0, %c0_1] : memref<64x8x33xf32, #tpu.memory_space<vmem>>, vector<64x8x33xf32>
    %c0_2 = arith.constant 0 : index
    %c0_3 = arith.constant 0 : index
    %1 = vector.load %arg2[%c0_2, %c0_3] : memref<64x264xf32, #tpu.memory_space<vmem>>, vector<64x264xf32>
    %c0_4 = arith.constant 0 : index
    %c0_5 = arith.constant 0 : index
    %2 = vector.load %arg3[%c0_4, %c0_5] : memref<264x64xf32, #tpu.memory_space<vmem>>, vector<264x64xf32>
    %c0_6 = arith.constant 0 : index
    %c0_7 = arith.constant 0 : index
    %3 = vector.load %arg4[%c0_6, %c0_7] : memref<33x8xf32, #tpu.memory_space<vmem>>, vector<33x8xf32>
    %c0_8 = arith.constant 0 : index
    %c0_9 = arith.constant 0 : index
    %4 = vector.load %arg5[%c0_8, %c0_9] : memref<33x6xf32, #tpu.memory_space<vmem>>, vector<33x6xf32>
    %cst = arith.constant dense<0.000000e+00> : vector<64x64xf32>
    %5 = tpu.matmul %1, %2, %cst {dimension_numbers = #tpu.dot_dimension_numbers<[1], [0], [0], [1], [0, 0, 1, 1], [], []>} : vector<64x264xf32>, vector<264x64xf32>, vector<64x64xf32> -> vector<64x64xf32>
    %6 = vector.extract_strided_slice %5 {offsets = [0, 0], sizes = [64, 8], strides = [1, 1]} : vector<64x64xf32> to vector<64x8xf32>
    %7 = vector.shape_cast %6 : vector<64x8xf32> to vector<64x1x8xf32>
    %8 = vector.extract_strided_slice %5 {offsets = [0, 8], sizes = [64, 8], strides = [1, 1]} : vector<64x64xf32> to vector<64x8xf32>
    %9 = vector.shape_cast %8 : vector<64x8xf32> to vector<64x1x8xf32>
    %10 = vector.extract_strided_slice %5 {offsets = [0, 16], sizes = [64, 8], strides = [1, 1]} : vector<64x64xf32> to vector<64x8xf32>
    %11 = vector.shape_cast %10 : vector<64x8xf32> to vector<64x1x8xf32>
    %12 = vector.extract_strided_slice %5 {offsets = [0, 24], sizes = [64, 8], strides = [1, 1]} : vector<64x64xf32> to vector<64x8xf32>
    %13 = vector.shape_cast %12 : vector<64x8xf32> to vector<64x1x8xf32>
    %14 = vector.extract_strided_slice %5 {offsets = [0, 32], sizes = [64, 8], strides = [1, 1]} : vector<64x64xf32> to vector<64x8xf32>
    %15 = vector.shape_cast %14 : vector<64x8xf32> to vector<64x1x8xf32>
    %16 = vector.extract_strided_slice %5 {offsets = [0, 40], sizes = [64, 8], strides = [1, 1]} : vector<64x64xf32> to vector<64x8xf32>
    %17 = vector.shape_cast %16 : vector<64x8xf32> to vector<64x1x8xf32>
    %18 = vector.extract_strided_slice %5 {offsets = [0, 48], sizes = [64, 8], strides = [1, 1]} : vector<64x64xf32> to vector<64x8xf32>
    %19 = vector.shape_cast %18 : vector<64x8xf32> to vector<64x1x8xf32>
    %20 = vector.extract_strided_slice %5 {offsets = [0, 56], sizes = [64, 8], strides = [1, 1]} : vector<64x64xf32> to vector<64x8xf32>
    %21 = vector.shape_cast %20 : vector<64x8xf32> to vector<64x1x8xf32>
    %22 = tpu.concatenate %7, %9, %11, %13, %15, %17, %19, %21 in 1 : vector<64x1x8xf32>, vector<64x1x8xf32>, vector<64x1x8xf32>, vector<64x1x8xf32>, vector<64x1x8xf32>, vector<64x1x8xf32>, vector<64x1x8xf32>, vector<64x1x8xf32> -> vector<64x8x8xf32>
    %23 = vector.shape_cast %0 : vector<64x8x33xf32> to vector<512x33xf32>
    %cst_10 = arith.constant dense<0.000000e+00> : vector<512x8xf32>
    %24 = tpu.matmul %23, %3, %cst_10 {dimension_numbers = #tpu.dot_dimension_numbers<[1], [0], [0], [1], [0, 0, 1, 1], [], []>} : vector<512x33xf32>, vector<33x8xf32>, vector<512x8xf32> -> vector<512x8xf32>
    %25 = vector.shape_cast %24 : vector<512x8xf32> to vector<64x8x8xf32>
    "tpu.trace_start"() <{level = 10 : i32, message = "brk,bnk->brn"}> : () -> ()
    %cst_11 = arith.constant dense<0.000000e+00> : vector<64x8x8xf32>
    %26 = tpu.matmul %22, %25, %cst_11 {dimension_numbers = #tpu.dot_dimension_numbers<[2], [2], [1], [1], [0, 0, 0, 1, 1, 1], [0], [0]>} : vector<64x8x8xf32>, vector<64x8x8xf32>, vector<64x8x8xf32> -> vector<64x8x8xf32>
    "tpu.trace_stop"() : () -> ()
    %cst_12 = arith.constant dense<0xFF800000> : vector<64x8xf32>
    %27 = vector.multi_reduction <maximumf>, %26, %cst_12 [2] : vector<64x8x8xf32> to vector<64x8xf32>
    %28 = vector.shape_cast %27 : vector<64x8xf32> to vector<64x8x1xf32>
    %29 = vector.broadcast %28 : vector<64x8x1xf32> to vector<64x8x8xf32>
    %30 = arith.subf %26, %29 : vector<64x8x8xf32>
    %31 = math.exp %30 : vector<64x8x8xf32>
    %cst_13 = arith.constant dense<0.000000e+00> : vector<64x8xf32>
    %32 = vector.multi_reduction <add>, %31, %cst_13 [2] : vector<64x8x8xf32> to vector<64x8xf32>
    %33 = vector.shape_cast %32 : vector<64x8xf32> to vector<64x8x1xf32>
    %34 = vector.broadcast %33 : vector<64x8x1xf32> to vector<64x8x8xf32>
    %35 = arith.divf %31, %34 : vector<64x8x8xf32>
    "tpu.trace_start"() <{level = 10 : i32, message = "brn,bnd->brd"}> : () -> ()
    %cst_14 = arith.constant dense<0.000000e+00> : vector<64x8x33xf32>
    %36 = tpu.matmul %35, %0, %cst_14 {dimension_numbers = #tpu.dot_dimension_numbers<[2], [1], [1], [2], [0, 0, 0, 1, 1, 2], [0], [0]>} : vector<64x8x8xf32>, vector<64x8x33xf32>, vector<64x8x33xf32> -> vector<64x8x33xf32>
    "tpu.trace_stop"() : () -> ()
    %37 = vector.shape_cast %36 : vector<64x8x33xf32> to vector<512x33xf32>
    %cst_15 = arith.constant dense<0.000000e+00> : vector<512x6xf32>
    %38 = tpu.matmul %37, %4, %cst_15 {dimension_numbers = #tpu.dot_dimension_numbers<[1], [0], [0], [1], [0, 0, 1, 1], [], []>} : vector<512x33xf32>, vector<33x6xf32>, vector<512x6xf32> -> vector<512x6xf32>
    %39 = vector.shape_cast %38 : vector<512x6xf32> to vector<64x8x6xf32>
    %40 = vector.extract_strided_slice %39 {offsets = [0, 0, 0], sizes = [64, 4, 6], strides = [1, 1, 1]} : vector<64x8x6xf32> to vector<64x4x6xf32>
    %41 = vector.extract_strided_slice %39 {offsets = [0, 4, 0], sizes = [64, 4, 6], strides = [1, 1, 1]} : vector<64x8x6xf32> to vector<64x4x6xf32>
    %42 = tpu.iota {dimensions = array<i32: 2>} : vector<1x1x6xi32>
    %c5_i32 = arith.constant 5 : i32
    %43 = vector.broadcast %c5_i32 : i32 to vector<1x1x6xi32>
    %44 = arith.cmpi eq, %42, %43 : vector<1x1x6xi32>
    %cst_16 = arith.constant 0.000000e+00 : f32
    %cst_17 = arith.constant 1.000000e+00 : f32
    %45 = vector.broadcast %cst_16 : f32 to vector<1x1x6xf32>
    %46 = vector.broadcast %cst_17 : f32 to vector<1x1x6xf32>
    %47 = arith.select %44, %45, %46 : vector<1x1x6xi1>, vector<1x1x6xf32>
    %c4_i32 = arith.constant 4 : i32
    %48 = vector.broadcast %c4_i32 : i32 to vector<1x1x6xi32>
    %49 = arith.cmpi slt, %42, %48 : vector<1x1x6xi32>
    %c5_i32_18 = arith.constant 5 : i32
    %50 = vector.broadcast %c5_i32_18 : i32 to vector<1x1x6xi32>
    %51 = arith.cmpi eq, %42, %50 : vector<1x1x6xi32>
    %cst_19 = arith.constant 1.000000e+00 : f32
    %cst_20 = arith.constant 0.000000e+00 : f32
    %52 = vector.broadcast %cst_19 : f32 to vector<1x1x6xf32>
    %53 = vector.broadcast %cst_20 : f32 to vector<1x1x6xf32>
    %54 = arith.select %51, %52, %53 : vector<1x1x6xi1>, vector<1x1x6xf32>
    %cst_21 = arith.constant -1.000000e+00 : f32
    %55 = vector.broadcast %cst_21 : f32 to vector<1x1x6xf32>
    %56 = arith.select %49, %55, %54 : vector<1x1x6xi1>, vector<1x1x6xf32>
    %57 = vector.broadcast %47 : vector<1x1x6xf32> to vector<64x4x6xf32>
    %58 = arith.mulf %40, %57 : vector<64x4x6xf32>
    %59 = vector.broadcast %56 : vector<1x1x6xf32> to vector<64x4x6xf32>
    %60 = arith.mulf %41, %59 : vector<64x4x6xf32>
    %61 = arith.addf %58, %60 : vector<64x4x6xf32>
    %c0_22 = arith.constant 0 : index
    %c0_23 = arith.constant 0 : index
    %c0_24 = arith.constant 0 : index
    %62 = vector.load %arg6[%c0_22, %c0_23, %c0_24] : memref<64x4x6xf32, #tpu.memory_space<vmem>>, vector<64x4x6xf32>
    tpu.vector_store %arg6[%c0_22, %c0_23, %c0_24], %61 {strides = array<i32>} : memref<64x4x6xf32, #tpu.memory_space<vmem>>, vector<64x4x6xf32>,
    return
  }
  func.func @transform_0(%arg0: i32) -> (i32, i32, i32) {
    %c0_i32 = arith.constant 0 : i32
    %c0_i32_0 = arith.constant 0 : i32
    %c0_i32_1 = arith.constant 0 : i32
    return %arg0, %c0_i32, %c0_i32_0 : i32, i32, i32
  }
  func.func @transform_1(%arg0: i32) -> (i32, i32) {
    %c0_i32 = arith.constant 0 : i32
    %c0_i32_0 = arith.constant 0 : i32
    return %arg0, %c0_i32 : i32, i32
  }
  func.func @transform_2(%arg0: i32) -> (i32, i32) {
    %c0_i32 = arith.constant 0 : i32
    %c0_i32_0 = arith.constant 0 : i32
    %c0_i32_1 = arith.constant 0 : i32
    return %c0_i32, %c0_i32_0 : i32, i32
  }
  func.func @transform_3(%arg0: i32) -> (i32, i32) {
    %c0_i32 = arith.constant 0 : i32
    %c0_i32_0 = arith.constant 0 : i32
    %c0_i32_1 = arith.constant 0 : i32
    return %c0_i32, %c0_i32_0 : i32, i32
  }
  func.func @transform_4(%arg0: i32) -> (i32, i32) {
    %c0_i32 = arith.constant 0 : i32
    %c0_i32_0 = arith.constant 0 : i32
    %c0_i32_1 = arith.constant 0 : i32
    return %c0_i32, %c0_i32_0 : i32, i32
  }
  func.func @transform_5(%arg0: i32) -> (i32, i32, i32) {
    %c0_i32 = arith.constant 0 : i32
    %c0_i32_0 = arith.constant 0 : i32
    %c0_i32_1 = arith.constant 0 : i32
    return %arg0, %c0_i32, %c0_i32_0 : i32, i32, i32
  }
}

</mosaic_0001>

<llo_original>
// kernel: tpu_custom_call.1
$region0: #{tpu_custom_call.1}
  #allocation0 [shape = 'u32[]', space=smem, size = 0x4, offset = 0x4, fixed_abs, tag = 'smem constant byte address 0x4 - core index']
  #allocation1 [shape = 'u32[72,128]{1,0:T(1,128)}', space=vmem, size = 0x9000, scoped, tag = 'internal scratch']
  %s0 = inlined_call_operand.vmem [shape: f32[128,8,33], index: 0, kind: input, shape index: {}]
  %s1 = inlined_call_operand.vmem [shape: f32[128,264], index: 1, kind: input, shape index: {}]
  %s2 = inlined_call_operand.vmem [shape: f32[264,64], index: 2, kind: input, shape index: {}]
  %s3 = inlined_call_operand.vmem [shape: f32[33,8], index: 3, kind: input, shape index: {}]
  %s4 = inlined_call_operand.vmem [shape: f32[33,6], index: 4, kind: input, shape index: {}]
  %s5 = inlined_call_operand.vmem [shape: f32[128,4,6], index: 5, kind: output, shape index: {}]
  %s6 = sld [smem:[#allocation0]]
  $region53: #{tpu_custom_call.1} parent=0
    _
  %s8 = ssub.s32 1, %s6
  %s9 = scalar_select 0, %s8, %s6
  loop: start=0, step=1, limit=4
  $region2: #{tpu_custom_call.1} parent=0 // loop_pre_header
    _
  $region3: #{tpu_custom_call.1} parent=0 // loop_header
    %s11 = sphi 0, %s15
    %p12 = scmp.ge.s32.totalorder %s11, 4
    %s21 = sphi 0, %s23
    %s24 = sphi 0, %s21
    %s25 = sphi 0, %s24
    %s41 = sphi 0, %s25
    %s47 = sphi 0, %s49
    %s50 = sphi 0, %s47
    %s51 = sphi 0, %s50
    %s67 = sphi 0, %s51
    %s71 = sphi 0, %s71
    %s73 = sphi 0, %s71
    %s74 = sphi 0, %s73
    %s88 = sphi 0, %s74
    %s92 = sphi 0, %s92
    %s94 = sphi 0, %s92
    %s95 = sphi 0, %s94
    %s109 = sphi 0, %s95
    %s113 = sphi 0, %s113
    %s115 = sphi 0, %s113
    %s116 = sphi 0, %s115
    %s130 = sphi 0, %s116
    %s136 = sphi 0, %s138
    %s139 = sphi 0, %s136
    %s140 = sphi 0, %s139
    %s156 = sphi 0, %s140
  $region4: #{tpu_custom_call.1} parent=0 // loop_header_branch
    %14 = sbr.rel (%p12) target = $region8
  $region5: #{tpu_custom_call.1} parent=0 // loop_body
    %s16 = ssub.s32 %s11, 1
    %s17 = ssub.s32 %s11, 2
    %s18 = sadd.s32 %s11, 1
    %s19 = ssub.s32 %s11, %s18
    %p20 = scmp.eq.s32.totalorder %s19, 0
    %s22 = sadd.s32 %s21, 1
    %s23 = scalar_select %p20, %s21, %s22
    %p26 = pneg %p20
    %p27 = scmp.eq.s32.totalorder %s11, 1
    %p28 = por %p26, %p27
    %p29 = scmp.ne.s32.totalorder %s21, %s24
    %p30 = scmp.eq.s32.totalorder %s11, 0
    %p31 = por %p29, %p30
    %p32 = scmp.ne.s32.totalorder %s21, %s24
    %p33 = scmp.eq.s32.totalorder %s16, 1
    %p34 = por %p32, %p33
    %p35 = scmp.ne.s32.totalorder %s24, %s25
    %p36 = scmp.eq.s32.totalorder %s16, 0
    %p37 = por %p35, %p36
    %p38 = scmp.ne.s32.totalorder %s24, %s25
    %p39 = scmp.eq.s32.totalorder %s17, 1
    %p40 = por %p38, %p39
    %p42 = scmp.ne.s32.totalorder %s25, %s41
    %p43 = scmp.eq.s32.totalorder %s17, 0
    %p44 = por %p42, %p43
    %s45 = ssub.s32 %s11, %s18
    %p46 = scmp.eq.s32.totalorder %s45, 0
    %s48 = sadd.s32 %s47, 1
    %s49 = scalar_select %p46, %s47, %s48
    %p52 = pneg %p46
    %p53 = scmp.eq.s32.totalorder %s11, 1
    %p54 = por %p52, %p53
    %p55 = scmp.ne.s32.totalorder %s47, %s50
    %p56 = scmp.eq.s32.totalorder %s11, 0
    %p57 = por %p55, %p56
    %p58 = scmp.ne.s32.totalorder %s47, %s50
    %p59 = scmp.eq.s32.totalorder %s16, 1
    %p60 = por %p58, %p59
    %p61 = scmp.ne.s32.totalorder %s50, %s51
    %p62 = scmp.eq.s32.totalorder %s16, 0
    %p63 = por %p61, %p62
    %p64 = scmp.ne.s32.totalorder %s50, %s51
    %p65 = scmp.eq.s32.totalorder %s17, 1
    %p66 = por %p64, %p65
    %p68 = scmp.ne.s32.totalorder %s51, %s67
    %p69 = scmp.eq.s32.totalorder %s17, 0
    %p70 = por %p68, %p69
    %s72 = sadd.s32 %s71, 1
    %p75 = scmp.eq.s32.totalorder %s11, 1
    %p76 = scmp.ne.s32.totalorder %s71, %s73
    %p77 = scmp.eq.s32.totalorder %s11, 0
    %p78 = por %p76, %p77
    %p79 = scmp.ne.s32.totalorder %s71, %s73
    %p80 = scmp.eq.s32.totalorder %s16, 1
    %p81 = por %p79, %p80
    %p82 = scmp.ne.s32.totalorder %s73, %s74
    %p83 = scmp.eq.s32.totalorder %s16, 0
    %p84 = por %p82, %p83
    %p85 = scmp.ne.s32.totalorder %s73, %s74
    %p86 = scmp.eq.s32.totalorder %s17, 1
    %p87 = por %p85, %p86
    %p89 = scmp.ne.s32.totalorder %s74, %s88
    %p90 = scmp.eq.s32.totalorder %s17, 0
    %p91 = por %p89, %p90
    %s93 = sadd.s32 %s92, 1
    %p96 = scmp.eq.s32.totalorder %s11, 1
    %p97 = scmp.ne.s32.totalorder %s92, %s94
    %p98 = scmp.eq.s32.totalorder %s11, 0
    %p99 = por %p97, %p98
    %p100 = scmp.ne.s32.totalorder %s92, %s94
    %p101 = scmp.eq.s32.totalorder %s16, 1
    %p102 = por %p100, %p101
    %p103 = scmp.ne.s32.totalorder %s94, %s95
    %p104 = scmp.eq.s32.totalorder %s16, 0
    %p105 = por %p103, %p104
    %p106 = scmp.ne.s32.totalorder %s94, %s95
    %p107 = scmp.eq.s32.totalorder %s17, 1
    %p108 = por %p106, %p107
    %p110 = scmp.ne.s32.totalorder %s95, %s109
    %p111 = scmp.eq.s32.totalorder %s17, 0
    %p112 = por %p110, %p111
    %s114 = sadd.s32 %s113, 1
    %p117 = scmp.eq.s32.totalorder %s11, 1
    %p118 = scmp.ne.s32.totalorder %s113, %s115
    %p119 = scmp.eq.s32.totalorder %s11, 0
    %p120 = por %p118, %p119
    %p121 = scmp.ne.s32.totalorder %s113, %s115
    %p122 = scmp.eq.s32.totalorder %s16, 1
    %p123 = por %p121, %p122
    %p124 = scmp.ne.s32.totalorder %s115, %s116
    %p125 = scmp.eq.s32.totalorder %s16, 0
    %p126 = por %p124, %p125
    %p127 = scmp.ne.s32.totalorder %s115, %s116
    %p128 = scmp.eq.s32.totalorder %s17, 1
    %p129 = por %p127, %p128
    %p131 = scmp.ne.s32.totalorder %s116, %s130
    %p132 = scmp.eq.s32.totalorder %s17, 0
    %p133 = por %p131, %p132
    %s134 = ssub.s32 %s11, %s18
    %p135 = scmp.eq.s32.totalorder %s134, 0
    %s137 = sadd.s32 %s136, 1
    %s138 = scalar_select %p135, %s136, %s137
    %p141 = pneg %p135
    %p142 = scmp.eq.s32.totalorder %s11, 1
    %p143 = por %p141, %p142
    %p144 = scmp.ne.s32.totalorder %s136, %s139
    %p145 = scmp.eq.s32.totalorder %s11, 0
    %p146 = por %p144, %p145
    %p147 = scmp.ne.s32.totalorder %s136, %s139
    %p148 = scmp.eq.s32.totalorder %s16, 1
    %p149 = por %p147, %p148
    %p150 = scmp.ne.s32.totalorder %s139, %s140
    %p151 = scmp.eq.s32.totalorder %s16, 0
    %p152 = por %p150, %p151
    %p153 = scmp.ne.s32.totalorder %s139, %s140
    %p154 = scmp.eq.s32.totalorder %s17, 1
    %p155 = por %p153, %p154
    %p157 = scmp.ne.s32.totalorder %s140, %s156
    %p158 = scmp.eq.s32.totalorder %s17, 0
    %p159 = por %p157, %p158
    %p160 = scmp.le.s32.totalorder 1, %s11
    %p161 = scmp.lt.s32.totalorder %s11, 3
    %p162 = pnand %p160, %p161
    %p163 = pneg %p162
    // Predicated region
    $region9: #{tpu_custom_call.1} parent=5 // pred_check
      _
    $region10: #{tpu_custom_call.1} parent=5 // pred_check_branch
      %165 = sbr.rel (%p162) target = $region12
    $region11: #{tpu_custom_call.1} parent=5 // pred_region
      %s166 = ssub.s32 %s11, 1
      // Predicated region
      $region13: #{tpu_custom_call.1} parent=11 // pred_check
        %p167 = pneg %p84
      $region14: #{tpu_custom_call.1} parent=11 // pred_check_branch
        %169 = sbr.rel (%p167) target = $region16
      $region15: #{tpu_custom_call.1} parent=11 // pred_region
        _
      $region16: #{tpu_custom_call.1} parent=11 // pred_fallthru
        _
      // Predicated region
      $region17: #{tpu_custom_call.1} parent=11 // pred_check
        %p170 = pneg %p105
      $region18: #{tpu_custom_call.1} parent=11 // pred_check_branch
        %172 = sbr.rel (%p170) target = $region20
      $region19: #{tpu_custom_call.1} parent=11 // pred_region
        _
      $region20: #{tpu_custom_call.1} parent=11 // pred_fallthru
        _
      // Predicated region
      $region21: #{tpu_custom_call.1} parent=11 // pred_check
        %p173 = pneg %p126
      $region22: #{tpu_custom_call.1} parent=11 // pred_check_branch
        %175 = sbr.rel (%p173) target = $region24
      $region23: #{tpu_custom_call.1} parent=11 // pred_region
        _
      $region24: #{tpu_custom_call.1} parent=11 // pred_fallthru
        _
    $region12: #{tpu_custom_call.1} parent=5 // pred_fallthru
      _
    %p176 = scmp.lt.s32.totalorder %s11, 2
    // Predicated region
    $region25: #{tpu_custom_call.1} parent=5 // pred_check
      %p177 = pneg %p176
    $region26: #{tpu_custom_call.1} parent=5 // pred_check_branch
      %179 = sbr.rel (%p177) target = $region28
    $region27: #{tpu_custom_call.1} parent=5 // pred_region
      // Predicated region
      $region29: #{tpu_custom_call.1} parent=27 // pred_check
        %p180 = pneg %p31
      $region30: #{tpu_custom_call.1} parent=27 // pred_check_branch
        %182 = sbr.rel (%p180) target = $region32
      $region31: #{tpu_custom_call.1} parent=27 // pred_region
        %s183 = smul.u32 64, %s11
        %p184 = scmp.lt.s32.totalorder %s183, 127
        %s185 = scalar_select %p184, %s183, 127
        %s186 = smul.addr %s185, 8
        %s187 = scalar_lea.vmem %s0, %s186
        %s188 = smul.u32 64, %s11
      $region32: #{tpu_custom_call.1} parent=27 // pred_fallthru
        _
      // Predicated region
      $region33: #{tpu_custom_call.1} parent=27 // pred_check
        %p189 = pneg %p57
      $region34: #{tpu_custom_call.1} parent=27 // pred_check_branch
        %191 = sbr.rel (%p189) target = $region36
      $region35: #{tpu_custom_call.1} parent=27 // pred_region
        %s192 = smul.u32 8, %s11
        %p193 = scmp.lt.s32.totalorder %s192, 15
        %s194 = scalar_select %p193, %s192, 15
        %s195 = smul.addr %s194, 3
        %s196 = smul.addr %s195, 8
        %s197 = scalar_lea.vmem %s1, %s196
        %s198 = smul.u32 8, %s11
      $region36: #{tpu_custom_call.1} parent=27 // pred_fallthru
        _
    $region28: #{tpu_custom_call.1} parent=5 // pred_fallthru
      _
    %p199 = scmp.le.s32.totalorder 1, %s11
    %p200 = scmp.lt.s32.totalorder %s11, 3
    %p201 = pnand %p199, %p200
    %p202 = pneg %p201
    // Predicated region
    $region37: #{tpu_custom_call.1} parent=5 // pred_check
      _
    $region38: #{tpu_custom_call.1} parent=5 // pred_check_branch
      %204 = sbr.rel (%p201) target = $region40
    $region39: #{tpu_custom_call.1} parent=5 // pred_region
      %s205 = ssub.s32 %s11, 1
      %s206 = smul.u32 64, %s16
      %p207 = scmp.lt.s32.totalorder %s206, 127
      %s208 = scalar_select %p207, %s206, 127
      %s209 = smul.addr %s208, 8
      %s210 = scalar_lea.vmem %s0, %s209
      %p211 = pneg %p37
      %p212 = pneg %p34
      %s213 = smul.u32 8, %s16
      %p214 = scmp.lt.s32.totalorder %s213, 15
      %s215 = scalar_select %p214, %s213, 15
      %s216 = smul.addr %s215, 3
      %s217 = smul.addr %s216, 8
      %s218 = scalar_lea.vmem %s1, %s217
      %p219 = pneg %p63
      %p220 = pneg %p60
      %p221 = pneg %p84
      %p222 = pneg %p81
      %p223 = pneg %p105
      %p224 = pneg %p102
      %p225 = pneg %p126
      %p226 = pneg %p123
      %p227 = pneg %p152
      %p228 = pneg %p149
      %s229 = smul.u32 64, %s16
      %p230 = scmp.lt.s32.totalorder %s229, 127
      %s231 = scalar_select %p230, %s229, 127
      %s232 = smul.addr %s231, 4
      %s233 = scalar_lea.vmem %s5, %s232
      %s234 = smul.u32 64, %s16
      %p235 = scmp.lt.s32.totalorder %s234, 127
      %s236 = scalar_select %p235, %s234, 127
      %s237 = smul.addr %s236, 8
      %s238 = scalar_lea.vmem %s0, %s237
      %s239 = smul.u32 64, %s16
      %s240 = smul.u32 8, %s16
      %p241 = scmp.lt.s32.totalorder %s240, 15
      %s242 = scalar_select %p241, %s240, 15
      %s243 = smul.addr %s242, 3
      %s244 = smul.addr %s243, 8
      %s245 = scalar_lea.vmem %s1, %s244
      %s246 = smul.u32 8, %s16
      %s247 = smul.u32 64, %s16
      %p248 = scmp.lt.s32.totalorder %s247, 127
      %s249 = scalar_select %p248, %s247, 127
      %s250 = smul.addr %s249, 4
      %s251 = scalar_lea.vmem %s5, %s250
      %s252 = smul.u32 64, %s16
      %v253 = vld [vmem:[%s238] sm:$0xff]
      %v254 = vld [vmem:[%s238 + $0x8] sm:$0xff]
      %v255 = vld [vmem:[%s238 + $0x10] sm:$0xff]
      %v256 = vld [vmem:[%s238 + $0x18] sm:$0xff]
      %v257 = vld [vmem:[%s238 + $0x20] sm:$0xff]
      %v258 = vld [vmem:[%s238 + $0x28] sm:$0xff]
      %v259 = vld [vmem:[%s238 + $0x30] sm:$0xff]
      %v260 = vld [vmem:[%s238 + $0x38] sm:$0xff]
      %v261 = vld [vmem:[%s238 + $0x40] sm:$0xff]
      %v262 = vld [vmem:[%s238 + $0x48] sm:$0xff]
      %v263 = vld [vmem:[%s238 + $0x50] sm:$0xff]
      %v264 = vld [vmem:[%s238 + $0x58] sm:$0xff]
      %v265 = vld [vmem:[%s238 + $0x60] sm:$0xff]
      %v266 = vld [vmem:[%s238 + $0x68] sm:$0xff]
      %v267 = vld [vmem:[%s238 + $0x70] sm:$0xff]
      %v268 = vld [vmem:[%s238 + $0x78] sm:$0xff]
      %v269 = vld [vmem:[%s238 + $0x80] sm:$0xff]
      %v270 = vld [vmem:[%s238 + $0x88] sm:$0xff]
      %v271 = vld [vmem:[%s238 + $0x90] sm:$0xff]
      %v272 = vld [vmem:[%s238 + $0x98] sm:$0xff]
      %v273 = vld [vmem:[%s238 + $0xa0] sm:$0xff]
      %v274 = vld [vmem:[%s238 + $0xa8] sm:$0xff]
      %v275 = vld [vmem:[%s238 + $0xb0] sm:$0xff]
      %v276 = vld [vmem:[%s238 + $0xb8] sm:$0xff]
      %v277 = vld [vmem:[%s238 + $0xc0] sm:$0xff]
      %v278 = vld [vmem:[%s238 + $0xc8] sm:$0xff]
      %v279 = vld [vmem:[%s238 + $0xd0] sm:$0xff]
      %v280 = vld [vmem:[%s238 + $0xd8] sm:$0xff]
      %v281 = vld [vmem:[%s238 + $0xe0] sm:$0xff]
      %v282 = vld [vmem:[%s238 + $0xe8] sm:$0xff]
      %v283 = vld [vmem:[%s238 + $0xf0] sm:$0xff]
      %v284 = vld [vmem:[%s238 + $0xf8] sm:$0xff]
      %v285 = vld [vmem:[%s238 + $0x100] sm:$0xff]
      %v286 = vld [vmem:[%s238 + $0x108] sm:$0xff]
      %v287 = vld [vmem:[%s238 + $0x110] sm:$0xff]
      %v288 = vld [vmem:[%s238 + $0x118] sm:$0xff]
      %v289 = vld [vmem:[%s238 + $0x120] sm:$0xff]
      %v290 = vld [vmem:[%s238 + $0x128] sm:$0xff]
      %v291 = vld [vmem:[%s238 + $0x130] sm:$0xff]
      %v292 = vld [vmem:[%s238 + $0x138] sm:$0xff]
      %v293 = vld [vmem:[%s238 + $0x140] sm:$0xff]
      %v294 = vld [vmem:[%s238 + $0x148] sm:$0xff]
      %v295 = vld [vmem:[%s238 + $0x150] sm:$0xff]
      %v296 = vld [vmem:[%s238 + $0x158] sm:$0xff]
      %v297 = vld [vmem:[%s238 + $0x160] sm:$0xff]
      %v298 = vld [vmem:[%s238 + $0x168] sm:$0xff]
      %v299 = vld [vmem:[%s238 + $0x170] sm:$0xff]
      %v300 = vld [vmem:[%s238 + $0x178] sm:$0xff]
      %v301 = vld [vmem:[%s238 + $0x180] sm:$0xff]
      %v302 = vld [vmem:[%s238 + $0x188] sm:$0xff]
      %v303 = vld [vmem:[%s238 + $0x190] sm:$0xff]
      %v304 = vld [vmem:[%s238 + $0x198] sm:$0xff]
      %v305 = vld [vmem:[%s238 + $0x1a0] sm:$0xff]
      %v306 = vld [vmem:[%s238 + $0x1a8] sm:$0xff]
      %v307 = vld [vmem:[%s238 + $0x1b0] sm:$0xff]
      %v308 = vld [vmem:[%s238 + $0x1b8] sm:$0xff]
      %v309 = vld [vmem:[%s238 + $0x1c0] sm:$0xff]
      %v310 = vld [vmem:[%s238 + $0x1c8] sm:$0xff]
      %v311 = vld [vmem:[%s238 + $0x1d0] sm:$0xff]
      %v312 = vld [vmem:[%s238 + $0x1d8] sm:$0xff]
      %v313 = vld [vmem:[%s238 + $0x1e0] sm:$0xff]
      %v314 = vld [vmem:[%s238 + $0x1e8] sm:$0xff]
      %v315 = vld [vmem:[%s238 + $0x1f0] sm:$0xff]
      %v316 = vld [vmem:[%s238 + $0x1f8] sm:$0xff]
      %v317 = vld [vmem:[%s245] sm:$0xff]
      %v318 = vld [vmem:[%s245 + $0x8] sm:$0xff]
      %v319 = vld [vmem:[%s245 + $0x10] sm:$0xff]
      %v320 = vld [vmem:[%s245 + $0x18] sm:$0xff]
      %v321 = vld [vmem:[%s245 + $0x20] sm:$0xff]
      %v322 = vld [vmem:[%s245 + $0x28] sm:$0xff]
      %v323 = vld [vmem:[%s245 + $0x30] sm:$0xff]
      %v324 = vld [vmem:[%s245 + $0x38] sm:$0xff]
      %v325 = vld [vmem:[%s245 + $0x40] sm:$0xff]
      %v326 = vld [vmem:[%s245 + $0x48] sm:$0xff]
      %v327 = vld [vmem:[%s245 + $0x50] sm:$0xff]
      %v328 = vld [vmem:[%s245 + $0x58] sm:$0xff]
      %v329 = vld [vmem:[%s245 + $0x60] sm:$0xff]
      %v330 = vld [vmem:[%s245 + $0x68] sm:$0xff]
      %v331 = vld [vmem:[%s245 + $0x70] sm:$0xff]
      %v332 = vld [vmem:[%s245 + $0x78] sm:$0xff]
      %v333 = vld [vmem:[%s245 + $0x80] sm:$0xff]
      %v334 = vld [vmem:[%s245 + $0x88] sm:$0xff]
      %v335 = vld [vmem:[%s245 + $0x90] sm:$0xff]
      %v336 = vld [vmem:[%s245 + $0x98] sm:$0xff]
      %v337 = vld [vmem:[%s245 + $0xa0] sm:$0xff]
      %v338 = vld [vmem:[%s245 + $0xa8] sm:$0xff]
      %v339 = vld [vmem:[%s245 + $0xb0] sm:$0xff]
      %v340 = vld [vmem:[%s245 + $0xb8] sm:$0xff]
      %v341 = vld [vmem:[%s2] sm:$0xff]
      %v342 = vld [vmem:[%s2 + $0x8] sm:$0xff]
      %v343 = vld [vmem:[%s2 + $0x10] sm:$0xff]
      %v344 = vld [vmem:[%s2 + $0x18] sm:$0xff]
      %v345 = vld [vmem:[%s2 + $0x20] sm:$0xff]
      %v346 = vld [vmem:[%s2 + $0x28] sm:$0xff]
      %v347 = vld [vmem:[%s2 + $0x30] sm:$0xff]
      %v348 = vld [vmem:[%s2 + $0x38] sm:$0xff]
      %v349 = vld [vmem:[%s2 + $0x40] sm:$0xff]
      %v350 = vld [vmem:[%s2 + $0x48] sm:$0xff]
      %v351 = vld [vmem:[%s2 + $0x50] sm:$0xff]
      %v352 = vld [vmem:[%s2 + $0x58] sm:$0xff]
      %v353 = vld [vmem:[%s2 + $0x60] sm:$0xff]
      %v354 = vld [vmem:[%s2 + $0x68] sm:$0xff]
      %v355 = vld [vmem:[%s2 + $0x70] sm:$0xff]
      %v356 = vld [vmem:[%s2 + $0x78] sm:$0xff]
      %v357 = vld [vmem:[%s2 + $0x80] sm:$0xff]
      %v358 = vld [vmem:[%s2 + $0x88] sm:$0xff]
      %v359 = vld [vmem:[%s2 + $0x90] sm:$0xff]
      %v360 = vld [vmem:[%s2 + $0x98] sm:$0xff]
      %v361 = vld [vmem:[%s2 + $0xa0] sm:$0xff]
      %v362 = vld [vmem:[%s2 + $0xa8] sm:$0xff]
      %v363 = vld [vmem:[%s2 + $0xb0] sm:$0xff]
      %v364 = vld [vmem:[%s2 + $0xb8] sm:$0xff]
      %v365 = vld [vmem:[%s2 + $0xc0] sm:$0xff]
      %v366 = vld [vmem:[%s2 + $0xc8] sm:$0xff]
      %v367 = vld [vmem:[%s2 + $0xd0] sm:$0xff]
      %v368 = vld [vmem:[%s2 + $0xd8] sm:$0xff]
      %v369 = vld [vmem:[%s2 + $0xe0] sm:$0xff]
      %v370 = vld [vmem:[%s2 + $0xe8] sm:$0xff]
      %v371 = vld [vmem:[%s2 + $0xf0] sm:$0xff]
      %v372 = vld [vmem:[%s2 + $0xf8] sm:$0xff]
      %v373 = vld [vmem:[%s2 + $0x100] sm:$0xff]
      %v374 = vld [vmem:[%s3] sm:$0xff]
      %v375 = vld [vmem:[%s3 + $0x8] sm:$0xff]
      %v376 = vld [vmem:[%s3 + $0x10] sm:$0xff]
      %v377 = vld [vmem:[%s3 + $0x18] sm:$0xff]
      %v378 = vld [vmem:[%s3 + $0x20] sm:$0x1]
      %v379 = vld [vmem:[%s4] sm:$0xff]
      %v380 = vld [vmem:[%s4 + $0x8] sm:$0xff]
      %v381 = vld [vmem:[%s4 + $0x10] sm:$0xff]
      %v382 = vld [vmem:[%s4 + $0x18] sm:$0xff]
      %v383 = vld [vmem:[%s4 + $0x20] sm:$0x1]
      %vm384 = vcmask 64512
      %v386 = vsel %vm384, %v319, 0
      %v389 = vsel %vm384, %v322, 0
      %v392 = vsel %vm384, %v325, 0
      %v395 = vsel %vm384, %v328, 0
      %v398 = vsel %vm384, %v331, 0
      %v401 = vsel %vm384, %v334, 0
      %v404 = vsel %vm384, %v337, 0
      %v407 = vsel %vm384, %v340, 0
      %409 = vmatpush.msra.mxu0 %v356
      %410 = vmatpush.msra.mxu0 %v355
      %411 = vmatpush.msra.mxu0 %v354
      %412 = vmatpush.msra.mxu0 %v353
      %413 = vmatpush.msra.mxu0 %v352
      %414 = vmatpush.msra.mxu0 %v351
      %415 = vmatpush.msra.mxu0 %v350
      %416 = vmatpush.msra.mxu0 %v349
      %417 = vmatpush.msra.mxu0 %v348
      %418 = vmatpush.msra.mxu0 %v347
      %419 = vmatpush.msra.mxu0 %v346
      %420 = vmatpush.msra.mxu0 %v345
      %421 = vmatpush.msra.mxu0 %v344
      %422 = vmatpush.msra.mxu0 %v343
      %423 = vmatpush.msra.mxu0 %v342
      %424 = vmatpush.msra.mxu0 %v341
      %425 = vmatmul.f32.gmra.mxu0 %v317
      %v426 = vpop.f32.mrf.mxu0
      %v427 = vadd.f32 0.0, %v426
      %428 = vmatmul.f32.gmra.mxu0 %v320
      %v429 = vpop.f32.mrf.mxu0
      %v430 = vadd.f32 0.0, %v429
      %431 = vmatmul.f32.gmra.mxu0 %v323
      %v432 = vpop.f32.mrf.mxu0
      %v433 = vadd.f32 0.0, %v432
      %434 = vmatmul.f32.gmra.mxu0 %v326
      %v435 = vpop.f32.mrf.mxu0
      %v436 = vadd.f32 0.0, %v435
      %437 = vmatmul.f32.gmra.mxu0 %v329
      %v438 = vpop.f32.mrf.mxu0
      %v439 = vadd.f32 0.0, %v438
      %440 = vmatmul.f32.gmra.mxu0 %v332
      %v441 = vpop.f32.mrf.mxu0
      %v442 = vadd.f32 0.0, %v441
      %443 = vmatmul.f32.gmra.mxu0 %v335
      %v444 = vpop.f32.mrf.mxu0
      %v445 = vadd.f32 0.0, %v444
      %446 = vmatmul.f32.gmra.mxu0 %v338
      %v447 = vpop.f32.mrf.mxu0
      %v448 = vadd.f32 0.0, %v447
      %449 = vdwg.mxu0
      %450 = vmatpush.msra.mxu0 %v372
      %451 = vmatpush.msra.mxu0 %v371
      %452 = vmatpush.msra.mxu0 %v370
      %453 = vmatpush.msra.mxu0 %v369
      %454 = vmatpush.msra.mxu0 %v368
      %455 = vmatpush.msra.mxu0 %v367
      %456 = vmatpush.msra.mxu0 %v366
      %457 = vmatpush.msra.mxu0 %v365
      %458 = vmatpush.msra.mxu0 %v364
      %459 = vmatpush.msra.mxu0 %v363
      %460 = vmatpush.msra.mxu0 %v362
      %461 = vmatpush.msra.mxu0 %v361
      %462 = vmatpush.msra.mxu0 %v360
      %463 = vmatpush.msra.mxu0 %v359
      %464 = vmatpush.msra.mxu0 %v358
      %465 = vmatpush.msra.mxu0 %v357
      %466 = vmatmul.f32.gmra.mxu0 %v318
      %v467 = vpop.f32.mrf.mxu0
      %v468 = vadd.f32 %v427, %v467
      %469 = vmatmul.f32.gmra.mxu0 %v321
      %v470 = vpop.f32.mrf.mxu0
      %v471 = vadd.f32 %v430, %v470
      %472 = vmatmul.f32.gmra.mxu0 %v324
      %v473 = vpop.f32.mrf.mxu0
      %v474 = vadd.f32 %v433, %v473
      %475 = vmatmul.f32.gmra.mxu0 %v327
      %v476 = vpop.f32.mrf.mxu0
      %v477 = vadd.f32 %v436, %v476
      %478 = vmatmul.f32.gmra.mxu0 %v330
      %v479 = vpop.f32.mrf.mxu0
      %v480 = vadd.f32 %v439, %v479
      %481 = vmatmul.f32.gmra.mxu0 %v333
      %v482 = vpop.f32.mrf.mxu0
      %v483 = vadd.f32 %v442, %v482
      %484 = vmatmul.f32.gmra.mxu0 %v336
      %v485 = vpop.f32.mrf.mxu0
      %v486 = vadd.f32 %v445, %v485
      %487 = vmatmul.f32.gmra.mxu0 %v339
      %v488 = vpop.f32.mrf.mxu0
      %v489 = vadd.f32 %v448, %v488
      %490 = vdwg.mxu0
      %491 = vmatpush.msra.mxu0 0.0
      %492 = vmatpush.msra.mxu0 0.0
      %493 = vmatpush.msra.mxu0 0.0
      %494 = vmatpush.msra.mxu0 0.0
      %495 = vmatpush.msra.mxu0 0.0
      %496 = vmatpush.msra.mxu0 0.0
      %497 = vmatpush.msra.mxu0 0.0
      %498 = vmatpush.msra.mxu0 0.0
      %499 = vmatpush.msra.mxu0 0.0
      %500 = vmatpush.msra.mxu0 0.0
      %501 = vmatpush.msra.mxu0 0.0
      %502 = vmatpush.msra.mxu0 0.0
      %503 = vmatpush.msra.mxu0 0.0
      %504 = vmatpush.msra.mxu0 0.0
      %505 = vmatpush.msra.mxu0 0.0
      %506 = vmatpush.msra.mxu0 %v373
      %507 = vmatmul.f32.gmra.mxu0 %v386
      %v508 = vpop.f32.mrf.mxu0
      %v509 = vadd.f32 %v468, %v508
      %510 = vmatmul.f32.gmra.mxu0 %v389
      %v511 = vpop.f32.mrf.mxu0
      %v512 = vadd.f32 %v471, %v511
      %513 = vmatmul.f32.gmra.mxu0 %v392
      %v514 = vpop.f32.mrf.mxu0
      %v515 = vadd.f32 %v474, %v514
      %516 = vmatmul.f32.gmra.mxu0 %v395
      %v517 = vpop.f32.mrf.mxu0
      %v518 = vadd.f32 %v477, %v517
      %519 = vmatmul.f32.gmra.mxu0 %v398
      %v520 = vpop.f32.mrf.mxu0
      %v521 = vadd.f32 %v480, %v520
      %522 = vmatmul.f32.gmra.mxu0 %v401
      %v523 = vpop.f32.mrf.mxu0
      %v524 = vadd.f32 %v483, %v523
      %525 = vmatmul.f32.gmra.mxu0 %v404
      %v526 = vpop.f32.mrf.mxu0
      %v527 = vadd.f32 %v486, %v526
      %528 = vmatmul.f32.gmra.mxu0 %v407
      %v529 = vpop.f32.mrf.mxu0
      %v530 = vadd.f32 %v489, %v529
      %531 = vdwg.mxu0
      %v540 = vrot.slane %v509, 1
      %v541 = vrot.slane %v509, 2
      %v542 = vrot.slane %v509, 3
      %v543 = vrot.slane %v509, 4
      %v544 = vrot.slane %v509, 5
      %v545 = vrot.slane %v509, 6
      %v546 = vrot.slane %v509, 7
      %v547 = vrot.slane %v512, 1
      %v548 = vrot.slane %v512, 2
      %v549 = vrot.slane %v512, 3
      %v550 = vrot.slane %v512, 4
      %v551 = vrot.slane %v512, 5
      %v552 = vrot.slane %v512, 6
      %v553 = vrot.slane %v512, 7
      %v554 = vrot.slane %v515, 1
      %v555 = vrot.slane %v515, 2
      %v556 = vrot.slane %v515, 3
      %v557 = vrot.slane %v515, 4
      %v558 = vrot.slane %v515, 5
      %v559 = vrot.slane %v515, 6
      %v560 = vrot.slane %v515, 7
      %v561 = vrot.slane %v518, 1
      %v562 = vrot.slane %v518, 2
      %v563 = vrot.slane %v518, 3
      %v564 = vrot.slane %v518, 4
      %v565 = vrot.slane %v518, 5
      %v566 = vrot.slane %v518, 6
      %v567 = vrot.slane %v518, 7
      %v568 = vrot.slane %v521, 1
      %v569 = vrot.slane %v521, 2
      %v570 = vrot.slane %v521, 3
      %v571 = vrot.slane %v521, 4
      %v572 = vrot.slane %v521, 5
      %v573 = vrot.slane %v521, 6
      %v574 = vrot.slane %v521, 7
      %v575 = vrot.slane %v524, 1
      %v576 = vrot.slane %v524, 2
      %v577 = vrot.slane %v524, 3
      %v578 = vrot.slane %v524, 4
      %v579 = vrot.slane %v524, 5
      %v580 = vrot.slane %v524, 6
      %v581 = vrot.slane %v524, 7
      %v582 = vrot.slane %v527, 1
      %v583 = vrot.slane %v527, 2
      %v584 = vrot.slane %v527, 3
      %v585 = vrot.slane %v527, 4
      %v586 = vrot.slane %v527, 5
      %v587 = vrot.slane %v527, 6
      %v588 = vrot.slane %v527, 7
      %v589 = vrot.slane %v530, 1
      %v590 = vrot.slane %v530, 2
      %v591 = vrot.slane %v530, 3
      %v592 = vrot.slane %v530, 4
      %v593 = vrot.slane %v530, 5
      %v594 = vrot.slane %v530, 6
      %v595 = vrot.slane %v530, 7
      %v652 = vperm.slane %v509, 0
      %v653 = vperm.slane %v540, 0
      %v654 = vperm.slane %v541, 0
      %v655 = vperm.slane %v542, 0
      %v656 = vperm.slane %v543, 0
      %v657 = vperm.slane %v544, 0
      %v658 = vperm.slane %v545, 0
      %v659 = vperm.slane %v546, 0
      %v660 = vperm.slane %v512, 0
      %v661 = vperm.slane %v547, 0
      %v662 = vperm.slane %v548, 0
      %v663 = vperm.slane %v549, 0
      %v664 = vperm.slane %v550, 0
      %v665 = vperm.slane %v551, 0
      %v666 = vperm.slane %v552, 0
      %v667 = vperm.slane %v553, 0
      %v668 = vperm.slane %v515, 0
      %v669 = vperm.slane %v554, 0
      %v670 = vperm.slane %v555, 0
      %v671 = vperm.slane %v556, 0
      %v672 = vperm.slane %v557, 0
      %v673 = vperm.slane %v558, 0
      %v674 = vperm.slane %v559, 0
      %v675 = vperm.slane %v560, 0
      %v676 = vperm.slane %v518, 0
      %v677 = vperm.slane %v561, 0
      %v678 = vperm.slane %v562, 0
      %v679 = vperm.slane %v563, 0
      %v680 = vperm.slane %v564, 0
      %v681 = vperm.slane %v565, 0
      %v682 = vperm.slane %v566, 0
      %v683 = vperm.slane %v567, 0
      %v684 = vperm.slane %v521, 0
      %v685 = vperm.slane %v568, 0
      %v686 = vperm.slane %v569, 0
      %v687 = vperm.slane %v570, 0
      %v688 = vperm.slane %v571, 0
      %v689 = vperm.slane %v572, 0
      %v690 = vperm.slane %v573, 0
      %v691 = vperm.slane %v574, 0
      %v692 = vperm.slane %v524, 0
      %v693 = vperm.slane %v575, 0
      %v694 = vperm.slane %v576, 0
      %v695 = vperm.slane %v577, 0
      %v696 = vperm.slane %v578, 0
      %v697 = vperm.slane %v579, 0
      %v698 = vperm.slane %v580, 0
      %v699 = vperm.slane %v581, 0
      %v700 = vperm.slane %v527, 0
      %v701 = vperm.slane %v582, 0
      %v702 = vperm.slane %v583, 0
      %v703 = vperm.slane %v584, 0
      %v704 = vperm.slane %v585, 0
      %v705 = vperm.slane %v586, 0
      %v706 = vperm.slane %v587, 0
      %v707 = vperm.slane %v588, 0
      %v708 = vperm.slane %v530, 0
      %v709 = vperm.slane %v589, 0
      %v710 = vperm.slane %v590, 0
      %v711 = vperm.slane %v591, 0
      %v712 = vperm.slane %v592, 0
      %v713 = vperm.slane %v593, 0
      %v714 = vperm.slane %v594, 0
      %v715 = vperm.slane %v595, 0
      %716 = vrot.lane.b32.xlu0 %v652, 120
      %v717 = vpop.permute.xlu0 %716
      %718 = vrot.lane.b32.xlu0 %v653, 120
      %v719 = vpop.permute.xlu0 %718
      %720 = vrot.lane.b32.xlu0 %v654, 120
      %v721 = vpop.permute.xlu0 %720
      %722 = vrot.lane.b32.xlu0 %v655, 120
      %v723 = vpop.permute.xlu0 %722
      %724 = vrot.lane.b32.xlu0 %v656, 120
      %v725 = vpop.permute.xlu0 %724
      %726 = vrot.lane.b32.xlu0 %v657, 120
      %v727 = vpop.permute.xlu0 %726
      %728 = vrot.lane.b32.xlu0 %v658, 120
      %v729 = vpop.permute.xlu0 %728
      %730 = vrot.lane.b32.xlu0 %v659, 120
      %v731 = vpop.permute.xlu0 %730
      %732 = vrot.lane.b32.xlu0 %v660, 120
      %v733 = vpop.permute.xlu0 %732
      %734 = vrot.lane.b32.xlu0 %v661, 120
      %v735 = vpop.permute.xlu0 %734
      %736 = vrot.lane.b32.xlu0 %v662, 120
      %v737 = vpop.permute.xlu0 %736
      %738 = vrot.lane.b32.xlu0 %v663, 120
      %v739 = vpop.permute.xlu0 %738
      %740 = vrot.lane.b32.xlu0 %v664, 120
      %v741 = vpop.permute.xlu0 %740
      %742 = vrot.lane.b32.xlu0 %v665, 120
      %v743 = vpop.permute.xlu0 %742
      %744 = vrot.lane.b32.xlu0 %v666, 120
      %v745 = vpop.permute.xlu0 %744
      %746 = vrot.lane.b32.xlu0 %v667, 120
      %v747 = vpop.permute.xlu0 %746
      %748 = vrot.lane.b32.xlu0 %v668, 120
      %v749 = vpop.permute.xlu0 %748
      %750 = vrot.lane.b32.xlu0 %v669, 120
      %v751 = vpop.permute.xlu0 %750
      %752 = vrot.lane.b32.xlu0 %v670, 120
      %v753 = vpop.permute.xlu0 %752
      %754 = vrot.lane.b32.xlu0 %v671, 120
      %v755 = vpop.permute.xlu0 %754
      %756 = vrot.lane.b32.xlu0 %v672, 120
      %v757 = vpop.permute.xlu0 %756
      %758 = vrot.lane.b32.xlu0 %v673, 120
      %v759 = vpop.permute.xlu0 %758
      %760 = vrot.lane.b32.xlu0 %v674, 120
      %v761 = vpop.permute.xlu0 %760
      %762 = vrot.lane.b32.xlu0 %v675, 120
      %v763 = vpop.permute.xlu0 %762
      %764 = vrot.lane.b32.xlu0 %v676, 120
      %v765 = vpop.permute.xlu0 %764
      %766 = vrot.lane.b32.xlu0 %v677, 120
      %v767 = vpop.permute.xlu0 %766
      %768 = vrot.lane.b32.xlu0 %v678, 120
      %v769 = vpop.permute.xlu0 %768
      %770 = vrot.lane.b32.xlu0 %v679, 120
      %v771 = vpop.permute.xlu0 %770
      %772 = vrot.lane.b32.xlu0 %v680, 120
      %v773 = vpop.permute.xlu0 %772
      %774 = vrot.lane.b32.xlu0 %v681, 120
      %v775 = vpop.permute.xlu0 %774
      %776 = vrot.lane.b32.xlu0 %v682, 120
      %v777 = vpop.permute.xlu0 %776
      %778 = vrot.lane.b32.xlu0 %v683, 120
      %v779 = vpop.permute.xlu0 %778
      %780 = vrot.lane.b32.xlu0 %v684, 120
      %v781 = vpop.permute.xlu0 %780
      %782 = vrot.lane.b32.xlu0 %v685, 120
      %v783 = vpop.permute.xlu0 %782
      %784 = vrot.lane.b32.xlu0 %v686, 120
      %v785 = vpop.permute.xlu0 %784
      %786 = vrot.lane.b32.xlu0 %v687, 120
      %v787 = vpop.permute.xlu0 %786
      %788 = vrot.lane.b32.xlu0 %v688, 120
      %v789 = vpop.permute.xlu0 %788
      %790 = vrot.lane.b32.xlu0 %v689, 120
      %v791 = vpop.permute.xlu0 %790
      %792 = vrot.lane.b32.xlu0 %v690, 120
      %v793 = vpop.permute.xlu0 %792
      %794 = vrot.lane.b32.xlu0 %v691, 120
      %v795 = vpop.permute.xlu0 %794
      %796 = vrot.lane.b32.xlu0 %v692, 120
      %v797 = vpop.permute.xlu0 %796
      %798 = vrot.lane.b32.xlu0 %v693, 120
      %v799 = vpop.permute.xlu0 %798
      %800 = vrot.lane.b32.xlu0 %v694, 120
      %v801 = vpop.permute.xlu0 %800
      %802 = vrot.lane.b32.xlu0 %v695, 120
      %v803 = vpop.permute.xlu0 %802
      %804 = vrot.lane.b32.xlu0 %v696, 120
      %v805 = vpop.permute.xlu0 %804
      %806 = vrot.lane.b32.xlu0 %v697, 120
      %v807 = vpop.permute.xlu0 %806
      %808 = vrot.lane.b32.xlu0 %v698, 120
      %v809 = vpop.permute.xlu0 %808
      %810 = vrot.lane.b32.xlu0 %v699, 120
      %v811 = vpop.permute.xlu0 %810
      %812 = vrot.lane.b32.xlu0 %v700, 120
      %v813 = vpop.permute.xlu0 %812
      %814 = vrot.lane.b32.xlu0 %v701, 120
      %v815 = vpop.permute.xlu0 %814
      %816 = vrot.lane.b32.xlu0 %v702, 120
      %v817 = vpop.permute.xlu0 %816
      %818 = vrot.lane.b32.xlu0 %v703, 120
      %v819 = vpop.permute.xlu0 %818
      %820 = vrot.lane.b32.xlu0 %v704, 120
      %v821 = vpop.permute.xlu0 %820
      %822 = vrot.lane.b32.xlu0 %v705, 120
      %v823 = vpop.permute.xlu0 %822
      %824 = vrot.lane.b32.xlu0 %v706, 120
      %v825 = vpop.permute.xlu0 %824
      %826 = vrot.lane.b32.xlu0 %v707, 120
      %v827 = vpop.permute.xlu0 %826
      %828 = vrot.lane.b32.xlu0 %v708, 120
      %v829 = vpop.permute.xlu0 %828
      %830 = vrot.lane.b32.xlu0 %v709, 120
      %v831 = vpop.permute.xlu0 %830
      %832 = vrot.lane.b32.xlu0 %v710, 120
      %v833 = vpop.permute.xlu0 %832
      %834 = vrot.lane.b32.xlu0 %v711, 120
      %v835 = vpop.permute.xlu0 %834
      %836 = vrot.lane.b32.xlu0 %v712, 120
      %v837 = vpop.permute.xlu0 %836
      %838 = vrot.lane.b32.xlu0 %v713, 120
      %v839 = vpop.permute.xlu0 %838
      %840 = vrot.lane.b32.xlu0 %v714, 120
      %v841 = vpop.permute.xlu0 %840
      %842 = vrot.lane.b32.xlu0 %v715, 120
      %v843 = vpop.permute.xlu0 %842
      %908 = vrot.lane.b32.xlu0 %v652, 112
      %v909 = vpop.permute.xlu0 %908
      %910 = vrot.lane.b32.xlu0 %v653, 112
      %v911 = vpop.permute.xlu0 %910
      %912 = vrot.lane.b32.xlu0 %v654, 112
      %v913 = vpop.permute.xlu0 %912
      %914 = vrot.lane.b32.xlu0 %v655, 112
      %v915 = vpop.permute.xlu0 %914
      %916 = vrot.lane.b32.xlu0 %v656, 112
      %v917 = vpop.permute.xlu0 %916
      %918 = vrot.lane.b32.xlu0 %v657, 112
      %v919 = vpop.permute.xlu0 %918
      %920 = vrot.lane.b32.xlu0 %v658, 112
      %v921 = vpop.permute.xlu0 %920
      %922 = vrot.lane.b32.xlu0 %v659, 112
      %v923 = vpop.permute.xlu0 %922
      %924 = vrot.lane.b32.xlu0 %v660, 112
      %v925 = vpop.permute.xlu0 %924
      %926 = vrot.lane.b32.xlu0 %v661, 112
      %v927 = vpop.permute.xlu0 %926
      %928 = vrot.lane.b32.xlu0 %v662, 112
      %v929 = vpop.permute.xlu0 %928
      %930 = vrot.lane.b32.xlu0 %v663, 112
      %v931 = vpop.permute.xlu0 %930
      %932 = vrot.lane.b32.xlu0 %v664, 112
      %v933 = vpop.permute.xlu0 %932
      %934 = vrot.lane.b32.xlu0 %v665, 112
      %v935 = vpop.permute.xlu0 %934
      %936 = vrot.lane.b32.xlu0 %v666, 112
      %v937 = vpop.permute.xlu0 %936
      %938 = vrot.lane.b32.xlu0 %v667, 112
      %v939 = vpop.permute.xlu0 %938
      %940 = vrot.lane.b32.xlu0 %v668, 112
      %v941 = vpop.permute.xlu0 %940
      %942 = vrot.lane.b32.xlu0 %v669, 112
      %v943 = vpop.permute.xlu0 %942
      %944 = vrot.lane.b32.xlu0 %v670, 112
      %v945 = vpop.permute.xlu0 %944
      %946 = vrot.lane.b32.xlu0 %v671, 112
      %v947 = vpop.permute.xlu0 %946
      %948 = vrot.lane.b32.xlu0 %v672, 112
      %v949 = vpop.permute.xlu0 %948
      %950 = vrot.lane.b32.xlu0 %v673, 112
      %v951 = vpop.permute.xlu0 %950
      %952 = vrot.lane.b32.xlu0 %v674, 112
      %v953 = vpop.permute.xlu0 %952
      %954 = vrot.lane.b32.xlu0 %v675, 112
      %v955 = vpop.permute.xlu0 %954
      %956 = vrot.lane.b32.xlu0 %v676, 112
      %v957 = vpop.permute.xlu0 %956
      %958 = vrot.lane.b32.xlu0 %v677, 112
      %v959 = vpop.permute.xlu0 %958
      %960 = vrot.lane.b32.xlu0 %v678, 112
      %v961 = vpop.permute.xlu0 %960
      %962 = vrot.lane.b32.xlu0 %v679, 112
      %v963 = vpop.permute.xlu0 %962
      %964 = vrot.lane.b32.xlu0 %v680, 112
      %v965 = vpop.permute.xlu0 %964
      %966 = vrot.lane.b32.xlu0 %v681, 112
      %v967 = vpop.permute.xlu0 %966
      %968 = vrot.lane.b32.xlu0 %v682, 112
      %v969 = vpop.permute.xlu0 %968
      %970 = vrot.lane.b32.xlu0 %v683, 112
      %v971 = vpop.permute.xlu0 %970
      %972 = vrot.lane.b32.xlu0 %v684, 112
      %v973 = vpop.permute.xlu0 %972
      %974 = vrot.lane.b32.xlu0 %v685, 112
      %v975 = vpop.permute.xlu0 %974
      %976 = vrot.lane.b32.xlu0 %v686, 112
      %v977 = vpop.permute.xlu0 %976
      %978 = vrot.lane.b32.xlu0 %v687, 112
      %v979 = vpop.permute.xlu0 %978
      %980 = vrot.lane.b32.xlu0 %v688, 112
      %v981 = vpop.permute.xlu0 %980
      %982 = vrot.lane.b32.xlu0 %v689, 112
      %v983 = vpop.permute.xlu0 %982
      %984 = vrot.lane.b32.xlu0 %v690, 112
      %v985 = vpop.permute.xlu0 %984
      %986 = vrot.lane.b32.xlu0 %v691, 112
      %v987 = vpop.permute.xlu0 %986
      %988 = vrot.lane.b32.xlu0 %v692, 112
      %v989 = vpop.permute.xlu0 %988
      %990 = vrot.lane.b32.xlu0 %v693, 112
      %v991 = vpop.permute.xlu0 %990
      %992 = vrot.lane.b32.xlu0 %v694, 112
      %v993 = vpop.permute.xlu0 %992
      %994 = vrot.lane.b32.xlu0 %v695, 112
      %v995 = vpop.permute.xlu0 %994
      %996 = vrot.lane.b32.xlu0 %v696, 112
      %v997 = vpop.permute.xlu0 %996
      %998 = vrot.lane.b32.xlu0 %v697, 112
      %v999 = vpop.permute.xlu0 %998
      %1000 = vrot.lane.b32.xlu0 %v698, 112
      %v1001 = vpop.permute.xlu0 %1000
      %1002 = vrot.lane.b32.xlu0 %v699, 112
      %v1003 = vpop.permute.xlu0 %1002
      %1004 = vrot.lane.b32.xlu0 %v700, 112
      %v1005 = vpop.permute.xlu0 %1004
      %1006 = vrot.lane.b32.xlu0 %v701, 112
      %v1007 = vpop.permute.xlu0 %1006
      %1008 = vrot.lane.b32.xlu0 %v702, 112
      %v1009 = vpop.permute.xlu0 %1008
      %1010 = vrot.lane.b32.xlu0 %v703, 112
      %v1011 = vpop.permute.xlu0 %1010
      %1012 = vrot.lane.b32.xlu0 %v704, 112
      %v1013 = vpop.permute.xlu0 %1012
      %1014 = vrot.lane.b32.xlu0 %v705, 112
      %v1015 = vpop.permute.xlu0 %1014
      %1016 = vrot.lane.b32.xlu0 %v706, 112
      %v1017 = vpop.permute.xlu0 %1016
      %1018 = vrot.lane.b32.xlu0 %v707, 112
      %v1019 = vpop.permute.xlu0 %1018
      %1020 = vrot.lane.b32.xlu0 %v708, 112
      %v1021 = vpop.permute.xlu0 %1020
      %1022 = vrot.lane.b32.xlu0 %v709, 112
      %v1023 = vpop.permute.xlu0 %1022
      %1024 = vrot.lane.b32.xlu0 %v710, 112
      %v1025 = vpop.permute.xlu0 %1024
      %1026 = vrot.lane.b32.xlu0 %v711, 112
      %v1027 = vpop.permute.xlu0 %1026
      %1028 = vrot.lane.b32.xlu0 %v712, 112
      %v1029 = vpop.permute.xlu0 %1028
      %1030 = vrot.lane.b32.xlu0 %v713, 112
      %v1031 = vpop.permute.xlu0 %1030
      %1032 = vrot.lane.b32.xlu0 %v714, 112
      %v1033 = vpop.permute.xlu0 %1032
      %1034 = vrot.lane.b32.xlu0 %v715, 112
      %v1035 = vpop.permute.xlu0 %1034
      %1100 = vrot.lane.b32.xlu0 %v652, 104
      %v1101 = vpop.permute.xlu0 %1100
      %1102 = vrot.lane.b32.xlu0 %v653, 104
      %v1103 = vpop.permute.xlu0 %1102
      %1104 = vrot.lane.b32.xlu0 %v654, 104
      %v1105 = vpop.permute.xlu0 %1104
      %1106 = vrot.lane.b32.xlu0 %v655, 104
      %v1107 = vpop.permute.xlu0 %1106
      %1108 = vrot.lane.b32.xlu0 %v656, 104
      %v1109 = vpop.permute.xlu0 %1108
      %1110 = vrot.lane.b32.xlu0 %v657, 104
      %v1111 = vpop.permute.xlu0 %1110
      %1112 = vrot.lane.b32.xlu0 %v658, 104
      %v1113 = vpop.permute.xlu0 %1112
      %1114 = vrot.lane.b32.xlu0 %v659, 104
      %v1115 = vpop.permute.xlu0 %1114
      %1116 = vrot.lane.b32.xlu0 %v660, 104
      %v1117 = vpop.permute.xlu0 %1116
      %1118 = vrot.lane.b32.xlu0 %v661, 104
      %v1119 = vpop.permute.xlu0 %1118
      %1120 = vrot.lane.b32.xlu0 %v662, 104
      %v1121 = vpop.permute.xlu0 %1120
      %1122 = vrot.lane.b32.xlu0 %v663, 104
      %v1123 = vpop.permute.xlu0 %1122
      %1124 = vrot.lane.b32.xlu0 %v664, 104
      %v1125 = vpop.permute.xlu0 %1124
      %1126 = vrot.lane.b32.xlu0 %v665, 104
      %v1127 = vpop.permute.xlu0 %1126
      %1128 = vrot.lane.b32.xlu0 %v666, 104
      %v1129 = vpop.permute.xlu0 %1128
      %1130 = vrot.lane.b32.xlu0 %v667, 104
      %v1131 = vpop.permute.xlu0 %1130
      %1132 = vrot.lane.b32.xlu0 %v668, 104
      %v1133 = vpop.permute.xlu0 %1132
      %1134 = vrot.lane.b32.xlu0 %v669, 104
      %v1135 = vpop.permute.xlu0 %1134
      %1136 = vrot.lane.b32.xlu0 %v670, 104
      %v1137 = vpop.permute.xlu0 %1136
      %1138 = vrot.lane.b32.xlu0 %v671, 104
      %v1139 = vpop.permute.xlu0 %1138
      %1140 = vrot.lane.b32.xlu0 %v672, 104
      %v1141 = vpop.permute.xlu0 %1140
      %1142 = vrot.lane.b32.xlu0 %v673, 104
      %v1143 = vpop.permute.xlu0 %1142
      %1144 = vrot.lane.b32.xlu0 %v674, 104
      %v1145 = vpop.permute.xlu0 %1144
      %1146 = vrot.lane.b32.xlu0 %v675, 104
      %v1147 = vpop.permute.xlu0 %1146
      %1148 = vrot.lane.b32.xlu0 %v676, 104
      %v1149 = vpop.permute.xlu0 %1148
      %1150 = vrot.lane.b32.xlu0 %v677, 104
      %v1151 = vpop.permute.xlu0 %1150
      %1152 = vrot.lane.b32.xlu0 %v678, 104
      %v1153 = vpop.permute.xlu0 %1152
      %1154 = vrot.lane.b32.xlu0 %v679, 104
      %v1155 = vpop.permute.xlu0 %1154
      %1156 = vrot.lane.b32.xlu0 %v680, 104
      %v1157 = vpop.permute.xlu0 %1156
      %1158 = vrot.lane.b32.xlu0 %v681, 104
      %v1159 = vpop.permute.xlu0 %1158
      %1160 = vrot.lane.b32.xlu0 %v682, 104
      %v1161 = vpop.permute.xlu0 %1160
      %1162 = vrot.lane.b32.xlu0 %v683, 104
      %v1163 = vpop.permute.xlu0 %1162
      %1164 = vrot.lane.b32.xlu0 %v684, 104
      %v1165 = vpop.permute.xlu0 %1164
      %1166 = vrot.lane.b32.xlu0 %v685, 104
      %v1167 = vpop.permute.xlu0 %1166
      %1168 = vrot.lane.b32.xlu0 %v686, 104
      %v1169 = vpop.permute.xlu0 %1168
      %1170 = vrot.lane.b32.xlu0 %v687, 104
      %v1171 = vpop.permute.xlu0 %1170
      %1172 = vrot.lane.b32.xlu0 %v688, 104
      %v1173 = vpop.permute.xlu0 %1172
      %1174 = vrot.lane.b32.xlu0 %v689, 104
      %v1175 = vpop.permute.xlu0 %1174
      %1176 = vrot.lane.b32.xlu0 %v690, 104
      %v1177 = vpop.permute.xlu0 %1176
      %1178 = vrot.lane.b32.xlu0 %v691, 104
      %v1179 = vpop.permute.xlu0 %1178
      %1180 = vrot.lane.b32.xlu0 %v692, 104
      %v1181 = vpop.permute.xlu0 %1180
      %1182 = vrot.lane.b32.xlu0 %v693, 104
      %v1183 = vpop.permute.xlu0 %1182
      %1184 = vrot.lane.b32.xlu0 %v694, 104
      %v1185 = vpop.permute.xlu0 %1184
      %1186 = vrot.lane.b32.xlu0 %v695, 104
      %v1187 = vpop.permute.xlu0 %1186
      %1188 = vrot.lane.b32.xlu0 %v696, 104
      %v1189 = vpop.permute.xlu0 %1188
      %1190 = vrot.lane.b32.xlu0 %v697, 104
      %v1191 = vpop.permute.xlu0 %1190
      %1192 = vrot.lane.b32.xlu0 %v698, 104
      %v1193 = vpop.permute.xlu0 %1192
      %1194 = vrot.lane.b32.xlu0 %v699, 104
      %v1195 = vpop.permute.xlu0 %1194
      %1196 = vrot.lane.b32.xlu0 %v700, 104
      %v1197 = vpop.permute.xlu0 %1196
      %1198 = vrot.lane.b32.xlu0 %v701, 104
      %v1199 = vpop.permute.xlu0 %1198
      %1200 = vrot.lane.b32.xlu0 %v702, 104
      %v1201 = vpop.permute.xlu0 %1200
      %1202 = vrot.lane.b32.xlu0 %v703, 104
      %v1203 = vpop.permute.xlu0 %1202
      %1204 = vrot.lane.b32.xlu0 %v704, 104
      %v1205 = vpop.permute.xlu0 %1204
      %1206 = vrot.lane.b32.xlu0 %v705, 104
      %v1207 = vpop.permute.xlu0 %1206
      %1208 = vrot.lane.b32.xlu0 %v706, 104
      %v1209 = vpop.permute.xlu0 %1208
      %1210 = vrot.lane.b32.xlu0 %v707, 104
      %v1211 = vpop.permute.xlu0 %1210
      %1212 = vrot.lane.b32.xlu0 %v708, 104
      %v1213 = vpop.permute.xlu0 %1212
      %1214 = vrot.lane.b32.xlu0 %v709, 104
      %v1215 = vpop.permute.xlu0 %1214
      %1216 = vrot.lane.b32.xlu0 %v710, 104
      %v1217 = vpop.permute.xlu0 %1216
      %1218 = vrot.lane.b32.xlu0 %v711, 104
      %v1219 = vpop.permute.xlu0 %1218
      %1220 = vrot.lane.b32.xlu0 %v712, 104
      %v1221 = vpop.permute.xlu0 %1220
      %1222 = vrot.lane.b32.xlu0 %v713, 104
      %v1223 = vpop.permute.xlu0 %1222
      %1224 = vrot.lane.b32.xlu0 %v714, 104
      %v1225 = vpop.permute.xlu0 %1224
      %1226 = vrot.lane.b32.xlu0 %v715, 104
      %v1227 = vpop.permute.xlu0 %1226
      %1292 = vrot.lane.b32.xlu0 %v652, 96
      %v1293 = vpop.permute.xlu0 %1292
      %1294 = vrot.lane.b32.xlu0 %v653, 96
      %v1295 = vpop.permute.xlu0 %1294
      %1296 = vrot.lane.b32.xlu0 %v654, 96
      %v1297 = vpop.permute.xlu0 %1296
      %1298 = vrot.lane.b32.xlu0 %v655, 96
      %v1299 = vpop.permute.xlu0 %1298
      %1300 = vrot.lane.b32.xlu0 %v656, 96
      %v1301 = vpop.permute.xlu0 %1300
      %1302 = vrot.lane.b32.xlu0 %v657, 96
      %v1303 = vpop.permute.xlu0 %1302
      %1304 = vrot.lane.b32.xlu0 %v658, 96
      %v1305 = vpop.permute.xlu0 %1304
      %1306 = vrot.lane.b32.xlu0 %v659, 96
      %v1307 = vpop.permute.xlu0 %1306
      %1308 = vrot.lane.b32.xlu0 %v660, 96
      %v1309 = vpop.permute.xlu0 %1308
      %1310 = vrot.lane.b32.xlu0 %v661, 96
      %v1311 = vpop.permute.xlu0 %1310
      %1312 = vrot.lane.b32.xlu0 %v662, 96
      %v1313 = vpop.permute.xlu0 %1312
      %1314 = vrot.lane.b32.xlu0 %v663, 96
      %v1315 = vpop.permute.xlu0 %1314
      %1316 = vrot.lane.b32.xlu0 %v664, 96
      %v1317 = vpop.permute.xlu0 %1316
      %1318 = vrot.lane.b32.xlu0 %v665, 96
      %v1319 = vpop.permute.xlu0 %1318
      %1320 = vrot.lane.b32.xlu0 %v666, 96
      %v1321 = vpop.permute.xlu0 %1320
      %1322 = vrot.lane.b32.xlu0 %v667, 96
      %v1323 = vpop.permute.xlu0 %1322
      %1324 = vrot.lane.b32.xlu0 %v668, 96
      %v1325 = vpop.permute.xlu0 %1324
      %1326 = vrot.lane.b32.xlu0 %v669, 96
      %v1327 = vpop.permute.xlu0 %1326
      %1328 = vrot.lane.b32.xlu0 %v670, 96
      %v1329 = vpop.permute.xlu0 %1328
      %1330 = vrot.lane.b32.xlu0 %v671, 96
      %v1331 = vpop.permute.xlu0 %1330
      %1332 = vrot.lane.b32.xlu0 %v672, 96
      %v1333 = vpop.permute.xlu0 %1332
      %1334 = vrot.lane.b32.xlu0 %v673, 96
      %v1335 = vpop.permute.xlu0 %1334
      %1336 = vrot.lane.b32.xlu0 %v674, 96
      %v1337 = vpop.permute.xlu0 %1336
      %1338 = vrot.lane.b32.xlu0 %v675, 96
      %v1339 = vpop.permute.xlu0 %1338
      %1340 = vrot.lane.b32.xlu0 %v676, 96
      %v1341 = vpop.permute.xlu0 %1340
      %1342 = vrot.lane.b32.xlu0 %v677, 96
      %v1343 = vpop.permute.xlu0 %1342
      %1344 = vrot.lane.b32.xlu0 %v678, 96
      %v1345 = vpop.permute.xlu0 %1344
      %1346 = vrot.lane.b32.xlu0 %v679, 96
      %v1347 = vpop.permute.xlu0 %1346
      %1348 = vrot.lane.b32.xlu0 %v680, 96
      %v1349 = vpop.permute.xlu0 %1348
      %1350 = vrot.lane.b32.xlu0 %v681, 96
      %v1351 = vpop.permute.xlu0 %1350
      %1352 = vrot.lane.b32.xlu0 %v682, 96
      %v1353 = vpop.permute.xlu0 %1352
      %1354 = vrot.lane.b32.xlu0 %v683, 96
      %v1355 = vpop.permute.xlu0 %1354
      %1356 = vrot.lane.b32.xlu0 %v684, 96
      %v1357 = vpop.permute.xlu0 %1356
      %1358 = vrot.lane.b32.xlu0 %v685, 96
      %v1359 = vpop.permute.xlu0 %1358
      %1360 = vrot.lane.b32.xlu0 %v686, 96
      %v1361 = vpop.permute.xlu0 %1360
      %1362 = vrot.lane.b32.xlu0 %v687, 96
      %v1363 = vpop.permute.xlu0 %1362
      %1364 = vrot.lane.b32.xlu0 %v688, 96
      %v1365 = vpop.permute.xlu0 %1364
      %1366 = vrot.lane.b32.xlu0 %v689, 96
      %v1367 = vpop.permute.xlu0 %1366
      %1368 = vrot.lane.b32.xlu0 %v690, 96
      %v1369 = vpop.permute.xlu0 %1368
      %1370 = vrot.lane.b32.xlu0 %v691, 96
      %v1371 = vpop.permute.xlu0 %1370
      %1372 = vrot.lane.b32.xlu0 %v692, 96
      %v1373 = vpop.permute.xlu0 %1372
      %1374 = vrot.lane.b32.xlu0 %v693, 96
      %v1375 = vpop.permute.xlu0 %1374
      %1376 = vrot.lane.b32.xlu0 %v694, 96
      %v1377 = vpop.permute.xlu0 %1376
      %1378 = vrot.lane.b32.xlu0 %v695, 96
      %v1379 = vpop.permute.xlu0 %1378
      %1380 = vrot.lane.b32.xlu0 %v696, 96
      %v1381 = vpop.permute.xlu0 %1380
      %1382 = vrot.lane.b32.xlu0 %v697, 96
      %v1383 = vpop.permute.xlu0 %1382
      %1384 = vrot.lane.b32.xlu0 %v698, 96
      %v1385 = vpop.permute.xlu0 %1384
      %1386 = vrot.lane.b32.xlu0 %v699, 96
      %v1387 = vpop.permute.xlu0 %1386
      %1388 = vrot.lane.b32.xlu0 %v700, 96
      %v1389 = vpop.permute.xlu0 %1388
      %1390 = vrot.lane.b32.xlu0 %v701, 96
      %v1391 = vpop.permute.xlu0 %1390
      %1392 = vrot.lane.b32.xlu0 %v702, 96
      %v1393 = vpop.permute.xlu0 %1392
      %1394 = vrot.lane.b32.xlu0 %v703, 96
      %v1395 = vpop.permute.xlu0 %1394
      %1396 = vrot.lane.b32.xlu0 %v704, 96
      %v1397 = vpop.permute.xlu0 %1396
      %1398 = vrot.lane.b32.xlu0 %v705, 96
      %v1399 = vpop.permute.xlu0 %1398
      %1400 = vrot.lane.b32.xlu0 %v706, 96
      %v1401 = vpop.permute.xlu0 %1400
      %1402 = vrot.lane.b32.xlu0 %v707, 96
      %v1403 = vpop.permute.xlu0 %1402
      %1404 = vrot.lane.b32.xlu0 %v708, 96
      %v1405 = vpop.permute.xlu0 %1404
      %1406 = vrot.lane.b32.xlu0 %v709, 96
      %v1407 = vpop.permute.xlu0 %1406
      %1408 = vrot.lane.b32.xlu0 %v710, 96
      %v1409 = vpop.permute.xlu0 %1408
      %1410 = vrot.lane.b32.xlu0 %v711, 96
      %v1411 = vpop.permute.xlu0 %1410
      %1412 = vrot.lane.b32.xlu0 %v712, 96
      %v1413 = vpop.permute.xlu0 %1412
      %1414 = vrot.lane.b32.xlu0 %v713, 96
      %v1415 = vpop.permute.xlu0 %1414
      %1416 = vrot.lane.b32.xlu0 %v714, 96
      %v1417 = vpop.permute.xlu0 %1416
      %1418 = vrot.lane.b32.xlu0 %v715, 96
      %v1419 = vpop.permute.xlu0 %1418
      %1484 = vrot.lane.b32.xlu0 %v652, 88
      %v1485 = vpop.permute.xlu0 %1484
      %1486 = vrot.lane.b32.xlu0 %v653, 88
      %v1487 = vpop.permute.xlu0 %1486
      %1488 = vrot.lane.b32.xlu0 %v654, 88
      %v1489 = vpop.permute.xlu0 %1488
      %1490 = vrot.lane.b32.xlu0 %v655, 88
      %v1491 = vpop.permute.xlu0 %1490
      %1492 = vrot.lane.b32.xlu0 %v656, 88
      %v1493 = vpop.permute.xlu0 %1492
      %1494 = vrot.lane.b32.xlu0 %v657, 88
      %v1495 = vpop.permute.xlu0 %1494
      %1496 = vrot.lane.b32.xlu0 %v658, 88
      %v1497 = vpop.permute.xlu0 %1496
      %1498 = vrot.lane.b32.xlu0 %v659, 88
      %v1499 = vpop.permute.xlu0 %1498
      %1500 = vrot.lane.b32.xlu0 %v660, 88
      %v1501 = vpop.permute.xlu0 %1500
      %1502 = vrot.lane.b32.xlu0 %v661, 88
      %v1503 = vpop.permute.xlu0 %1502
      %1504 = vrot.lane.b32.xlu0 %v662, 88
      %v1505 = vpop.permute.xlu0 %1504
      %1506 = vrot.lane.b32.xlu0 %v663, 88
      %v1507 = vpop.permute.xlu0 %1506
      %1508 = vrot.lane.b32.xlu0 %v664, 88
      %v1509 = vpop.permute.xlu0 %1508
      %1510 = vrot.lane.b32.xlu0 %v665, 88
      %v1511 = vpop.permute.xlu0 %1510
      %1512 = vrot.lane.b32.xlu0 %v666, 88
      %v1513 = vpop.permute.xlu0 %1512
      %1514 = vrot.lane.b32.xlu0 %v667, 88
      %v1515 = vpop.permute.xlu0 %1514
      %1516 = vrot.lane.b32.xlu0 %v668, 88
      %v1517 = vpop.permute.xlu0 %1516
      %1518 = vrot.lane.b32.xlu0 %v669, 88
      %v1519 = vpop.permute.xlu0 %1518
      %1520 = vrot.lane.b32.xlu0 %v670, 88
      %v1521 = vpop.permute.xlu0 %1520
      %1522 = vrot.lane.b32.xlu0 %v671, 88
      %v1523 = vpop.permute.xlu0 %1522
      %1524 = vrot.lane.b32.xlu0 %v672, 88
      %v1525 = vpop.permute.xlu0 %1524
      %1526 = vrot.lane.b32.xlu0 %v673, 88
      %v1527 = vpop.permute.xlu0 %1526
      %1528 = vrot.lane.b32.xlu0 %v674, 88
      %v1529 = vpop.permute.xlu0 %1528
      %1530 = vrot.lane.b32.xlu0 %v675, 88
      %v1531 = vpop.permute.xlu0 %1530
      %1532 = vrot.lane.b32.xlu0 %v676, 88
      %v1533 = vpop.permute.xlu0 %1532
      %1534 = vrot.lane.b32.xlu0 %v677, 88
      %v1535 = vpop.permute.xlu0 %1534
      %1536 = vrot.lane.b32.xlu0 %v678, 88
      %v1537 = vpop.permute.xlu0 %1536
      %1538 = vrot.lane.b32.xlu0 %v679, 88
      %v1539 = vpop.permute.xlu0 %1538
      %1540 = vrot.lane.b32.xlu0 %v680, 88
      %v1541 = vpop.permute.xlu0 %1540
      %1542 = vrot.lane.b32.xlu0 %v681, 88
      %v1543 = vpop.permute.xlu0 %1542
      %1544 = vrot.lane.b32.xlu0 %v682, 88
      %v1545 = vpop.permute.xlu0 %1544
      %1546 = vrot.lane.b32.xlu0 %v683, 88
      %v1547 = vpop.permute.xlu0 %1546
      %1548 = vrot.lane.b32.xlu0 %v684, 88
      %v1549 = vpop.permute.xlu0 %1548
      %1550 = vrot.lane.b32.xlu0 %v685, 88
      %v1551 = vpop.permute.xlu0 %1550
      %1552 = vrot.lane.b32.xlu0 %v686, 88
      %v1553 = vpop.permute.xlu0 %1552
      %1554 = vrot.lane.b32.xlu0 %v687, 88
      %v1555 = vpop.permute.xlu0 %1554
      %1556 = vrot.lane.b32.xlu0 %v688, 88
      %v1557 = vpop.permute.xlu0 %1556
      %1558 = vrot.lane.b32.xlu0 %v689, 88
      %v1559 = vpop.permute.xlu0 %1558
      %1560 = vrot.lane.b32.xlu0 %v690, 88
      %v1561 = vpop.permute.xlu0 %1560
      %1562 = vrot.lane.b32.xlu0 %v691, 88
      %v1563 = vpop.permute.xlu0 %1562
      %1564 = vrot.lane.b32.xlu0 %v692, 88
      %v1565 = vpop.permute.xlu0 %1564
      %1566 = vrot.lane.b32.xlu0 %v693, 88
      %v1567 = vpop.permute.xlu0 %1566
      %1568 = vrot.lane.b32.xlu0 %v694, 88
      %v1569 = vpop.permute.xlu0 %1568
      %1570 = vrot.lane.b32.xlu0 %v695, 88
      %v1571 = vpop.permute.xlu0 %1570
      %1572 = vrot.lane.b32.xlu0 %v696, 88
      %v1573 = vpop.permute.xlu0 %1572
      %1574 = vrot.lane.b32.xlu0 %v697, 88
      %v1575 = vpop.permute.xlu0 %1574
      %1576 = vrot.lane.b32.xlu0 %v698, 88
      %v1577 = vpop.permute.xlu0 %1576
      %1578 = vrot.lane.b32.xlu0 %v699, 88
      %v1579 = vpop.permute.xlu0 %1578
      %1580 = vrot.lane.b32.xlu0 %v700, 88
      %v1581 = vpop.permute.xlu0 %1580
      %1582 = vrot.lane.b32.xlu0 %v701, 88
      %v1583 = vpop.permute.xlu0 %1582
      %1584 = vrot.lane.b32.xlu0 %v702, 88
      %v1585 = vpop.permute.xlu0 %1584
      %1586 = vrot.lane.b32.xlu0 %v703, 88
      %v1587 = vpop.permute.xlu0 %1586
      %1588 = vrot.lane.b32.xlu0 %v704, 88
      %v1589 = vpop.permute.xlu0 %1588
      %1590 = vrot.lane.b32.xlu0 %v705, 88
      %v1591 = vpop.permute.xlu0 %1590
      %1592 = vrot.lane.b32.xlu0 %v706, 88
      %v1593 = vpop.permute.xlu0 %1592
      %1594 = vrot.lane.b32.xlu0 %v707, 88
      %v1595 = vpop.permute.xlu0 %1594
      %1596 = vrot.lane.b32.xlu0 %v708, 88
      %v1597 = vpop.permute.xlu0 %1596
      %1598 = vrot.lane.b32.xlu0 %v709, 88
      %v1599 = vpop.permute.xlu0 %1598
      %1600 = vrot.lane.b32.xlu0 %v710, 88
      %v1601 = vpop.permute.xlu0 %1600
      %1602 = vrot.lane.b32.xlu0 %v711, 88
      %v1603 = vpop.permute.xlu0 %1602
      %1604 = vrot.lane.b32.xlu0 %v712, 88
      %v1605 = vpop.permute.xlu0 %1604
      %1606 = vrot.lane.b32.xlu0 %v713, 88
      %v1607 = vpop.permute.xlu0 %1606
      %1608 = vrot.lane.b32.xlu0 %v714, 88
      %v1609 = vpop.permute.xlu0 %1608
      %1610 = vrot.lane.b32.xlu0 %v715, 88
      %v1611 = vpop.permute.xlu0 %1610
      %1676 = vrot.lane.b32.xlu0 %v652, 80
      %v1677 = vpop.permute.xlu0 %1676
      %1678 = vrot.lane.b32.xlu0 %v653, 80
      %v1679 = vpop.permute.xlu0 %1678
      %1680 = vrot.lane.b32.xlu0 %v654, 80
      %v1681 = vpop.permute.xlu0 %1680
      %1682 = vrot.lane.b32.xlu0 %v655, 80
      %v1683 = vpop.permute.xlu0 %1682
      %1684 = vrot.lane.b32.xlu0 %v656, 80
      %v1685 = vpop.permute.xlu0 %1684
      %1686 = vrot.lane.b32.xlu0 %v657, 80
      %v1687 = vpop.permute.xlu0 %1686
      %1688 = vrot.lane.b32.xlu0 %v658, 80
      %v1689 = vpop.permute.xlu0 %1688
      %1690 = vrot.lane.b32.xlu0 %v659, 80
      %v1691 = vpop.permute.xlu0 %1690
      %1692 = vrot.lane.b32.xlu0 %v660, 80
      %v1693 = vpop.permute.xlu0 %1692
      %1694 = vrot.lane.b32.xlu0 %v661, 80
      %v1695 = vpop.permute.xlu0 %1694
      %1696 = vrot.lane.b32.xlu0 %v662, 80
      %v1697 = vpop.permute.xlu0 %1696
      %1698 = vrot.lane.b32.xlu0 %v663, 80
      %v1699 = vpop.permute.xlu0 %1698
      %1700 = vrot.lane.b32.xlu0 %v664, 80
      %v1701 = vpop.permute.xlu0 %1700
      %1702 = vrot.lane.b32.xlu0 %v665, 80
      %v1703 = vpop.permute.xlu0 %1702
      %1704 = vrot.lane.b32.xlu0 %v666, 80
      %v1705 = vpop.permute.xlu0 %1704
      %1706 = vrot.lane.b32.xlu0 %v667, 80
      %v1707 = vpop.permute.xlu0 %1706
      %1708 = vrot.lane.b32.xlu0 %v668, 80
      %v1709 = vpop.permute.xlu0 %1708
      %1710 = vrot.lane.b32.xlu0 %v669, 80
      %v1711 = vpop.permute.xlu0 %1710
      %1712 = vrot.lane.b32.xlu0 %v670, 80
      %v1713 = vpop.permute.xlu0 %1712
      %1714 = vrot.lane.b32.xlu0 %v671, 80
      %v1715 = vpop.permute.xlu0 %1714
      %1716 = vrot.lane.b32.xlu0 %v672, 80
      %v1717 = vpop.permute.xlu0 %1716
      %1718 = vrot.lane.b32.xlu0 %v673, 80
      %v1719 = vpop.permute.xlu0 %1718
      %1720 = vrot.lane.b32.xlu0 %v674, 80
      %v1721 = vpop.permute.xlu0 %1720
      %1722 = vrot.lane.b32.xlu0 %v675, 80
      %v1723 = vpop.permute.xlu0 %1722
      %1724 = vrot.lane.b32.xlu0 %v676, 80
      %v1725 = vpop.permute.xlu0 %1724
      %1726 = vrot.lane.b32.xlu0 %v677, 80
      %v1727 = vpop.permute.xlu0 %1726
      %1728 = vrot.lane.b32.xlu0 %v678, 80
      %v1729 = vpop.permute.xlu0 %1728
      %1730 = vrot.lane.b32.xlu0 %v679, 80
      %v1731 = vpop.permute.xlu0 %1730
      %1732 = vrot.lane.b32.xlu0 %v680, 80
      %v1733 = vpop.permute.xlu0 %1732
      %1734 = vrot.lane.b32.xlu0 %v681, 80
      %v1735 = vpop.permute.xlu0 %1734
      %1736 = vrot.lane.b32.xlu0 %v682, 80
      %v1737 = vpop.permute.xlu0 %1736
      %1738 = vrot.lane.b32.xlu0 %v683, 80
      %v1739 = vpop.permute.xlu0 %1738
      %1740 = vrot.lane.b32.xlu0 %v684, 80
      %v1741 = vpop.permute.xlu0 %1740
      %1742 = vrot.lane.b32.xlu0 %v685, 80
      %v1743 = vpop.permute.xlu0 %1742
      %1744 = vrot.lane.b32.xlu0 %v686, 80
      %v1745 = vpop.permute.xlu0 %1744
      %1746 = vrot.lane.b32.xlu0 %v687, 80
      %v1747 = vpop.permute.xlu0 %1746
      %1748 = vrot.lane.b32.xlu0 %v688, 80
      %v1749 = vpop.permute.xlu0 %1748
      %1750 = vrot.lane.b32.xlu0 %v689, 80
      %v1751 = vpop.permute.xlu0 %1750
      %1752 = vrot.lane.b32.xlu0 %v690, 80
      %v1753 = vpop.permute.xlu0 %1752
      %1754 = vrot.lane.b32.xlu0 %v691, 80
      %v1755 = vpop.permute.xlu0 %1754
      %1756 = vrot.lane.b32.xlu0 %v692, 80
      %v1757 = vpop.permute.xlu0 %1756
      %1758 = vrot.lane.b32.xlu0 %v693, 80
      %v1759 = vpop.permute.xlu0 %1758
      %1760 = vrot.lane.b32.xlu0 %v694, 80
      %v1761 = vpop.permute.xlu0 %1760
      %1762 = vrot.lane.b32.xlu0 %v695, 80
      %v1763 = vpop.permute.xlu0 %1762
      %1764 = vrot.lane.b32.xlu0 %v696, 80
      %v1765 = vpop.permute.xlu0 %1764
      %1766 = vrot.lane.b32.xlu0 %v697, 80
      %v1767 = vpop.permute.xlu0 %1766
      %1768 = vrot.lane.b32.xlu0 %v698, 80
      %v1769 = vpop.permute.xlu0 %1768
      %1770 = vrot.lane.b32.xlu0 %v699, 80
      %v1771 = vpop.permute.xlu0 %1770
      %1772 = vrot.lane.b32.xlu0 %v700, 80
      %v1773 = vpop.permute.xlu0 %1772
      %1774 = vrot.lane.b32.xlu0 %v701, 80
      %v1775 = vpop.permute.xlu0 %1774
      %1776 = vrot.lane.b32.xlu0 %v702, 80
      %v1777 = vpop.permute.xlu0 %1776
      %1778 = vrot.lane.b32.xlu0 %v703, 80
      %v1779 = vpop.permute.xlu0 %1778
      %1780 = vrot.lane.b32.xlu0 %v704, 80
      %v1781 = vpop.permute.xlu0 %1780
      %1782 = vrot.lane.b32.xlu0 %v705, 80
      %v1783 = vpop.permute.xlu0 %1782
      %1784 = vrot.lane.b32.xlu0 %v706, 80
      %v1785 = vpop.permute.xlu0 %1784
      %1786 = vrot.lane.b32.xlu0 %v707, 80
      %v1787 = vpop.permute.xlu0 %1786
      %1788 = vrot.lane.b32.xlu0 %v708, 80
      %v1789 = vpop.permute.xlu0 %1788
      %1790 = vrot.lane.b32.xlu0 %v709, 80
      %v1791 = vpop.permute.xlu0 %1790
      %1792 = vrot.lane.b32.xlu0 %v710, 80
      %v1793 = vpop.permute.xlu0 %1792
      %1794 = vrot.lane.b32.xlu0 %v711, 80
      %v1795 = vpop.permute.xlu0 %1794
      %1796 = vrot.lane.b32.xlu0 %v712, 80
      %v1797 = vpop.permute.xlu0 %1796
      %1798 = vrot.lane.b32.xlu0 %v713, 80
      %v1799 = vpop.permute.xlu0 %1798
      %1800 = vrot.lane.b32.xlu0 %v714, 80
      %v1801 = vpop.permute.xlu0 %1800
      %1802 = vrot.lane.b32.xlu0 %v715, 80
      %v1803 = vpop.permute.xlu0 %1802
      %1868 = vrot.lane.b32.xlu0 %v652, 72
      %v1869 = vpop.permute.xlu0 %1868
      %1870 = vrot.lane.b32.xlu0 %v653, 72
      %v1871 = vpop.permute.xlu0 %1870
      %1872 = vrot.lane.b32.xlu0 %v654, 72
      %v1873 = vpop.permute.xlu0 %1872
      %1874 = vrot.lane.b32.xlu0 %v655, 72
      %v1875 = vpop.permute.xlu0 %1874
      %1876 = vrot.lane.b32.xlu0 %v656, 72
      %v1877 = vpop.permute.xlu0 %1876
      %1878 = vrot.lane.b32.xlu0 %v657, 72
      %v1879 = vpop.permute.xlu0 %1878
      %1880 = vrot.lane.b32.xlu0 %v658, 72
      %v1881 = vpop.permute.xlu0 %1880
      %1882 = vrot.lane.b32.xlu0 %v659, 72
      %v1883 = vpop.permute.xlu0 %1882
      %1884 = vrot.lane.b32.xlu0 %v660, 72
      %v1885 = vpop.permute.xlu0 %1884
      %1886 = vrot.lane.b32.xlu0 %v661, 72
      %v1887 = vpop.permute.xlu0 %1886
      %1888 = vrot.lane.b32.xlu0 %v662, 72
      %v1889 = vpop.permute.xlu0 %1888
      %1890 = vrot.lane.b32.xlu0 %v663, 72
      %v1891 = vpop.permute.xlu0 %1890
      %1892 = vrot.lane.b32.xlu0 %v664, 72
      %v1893 = vpop.permute.xlu0 %1892
      %1894 = vrot.lane.b32.xlu0 %v665, 72
      %v1895 = vpop.permute.xlu0 %1894
      %1896 = vrot.lane.b32.xlu0 %v666, 72
      %v1897 = vpop.permute.xlu0 %1896
      %1898 = vrot.lane.b32.xlu0 %v667, 72
      %v1899 = vpop.permute.xlu0 %1898
      %1900 = vrot.lane.b32.xlu0 %v668, 72
      %v1901 = vpop.permute.xlu0 %1900
      %1902 = vrot.lane.b32.xlu0 %v669, 72
      %v1903 = vpop.permute.xlu0 %1902
      %1904 = vrot.lane.b32.xlu0 %v670, 72
      %v1905 = vpop.permute.xlu0 %1904
      %1906 = vrot.lane.b32.xlu0 %v671, 72
      %v1907 = vpop.permute.xlu0 %1906
      %1908 = vrot.lane.b32.xlu0 %v672, 72
      %v1909 = vpop.permute.xlu0 %1908
      %1910 = vrot.lane.b32.xlu0 %v673, 72
      %v1911 = vpop.permute.xlu0 %1910
      %1912 = vrot.lane.b32.xlu0 %v674, 72
      %v1913 = vpop.permute.xlu0 %1912
      %1914 = vrot.lane.b32.xlu0 %v675, 72
      %v1915 = vpop.permute.xlu0 %1914
      %1916 = vrot.lane.b32.xlu0 %v676, 72
      %v1917 = vpop.permute.xlu0 %1916
      %1918 = vrot.lane.b32.xlu0 %v677, 72
      %v1919 = vpop.permute.xlu0 %1918
      %1920 = vrot.lane.b32.xlu0 %v678, 72
      %v1921 = vpop.permute.xlu0 %1920
      %1922 = vrot.lane.b32.xlu0 %v679, 72
      %v1923 = vpop.permute.xlu0 %1922
      %1924 = vrot.lane.b32.xlu0 %v680, 72
      %v1925 = vpop.permute.xlu0 %1924
      %1926 = vrot.lane.b32.xlu0 %v681, 72
      %v1927 = vpop.permute.xlu0 %1926
      %1928 = vrot.lane.b32.xlu0 %v682, 72
      %v1929 = vpop.permute.xlu0 %1928
      %1930 = vrot.lane.b32.xlu0 %v683, 72
      %v1931 = vpop.permute.xlu0 %1930
      %1932 = vrot.lane.b32.xlu0 %v684, 72
      %v1933 = vpop.permute.xlu0 %1932
      %1934 = vrot.lane.b32.xlu0 %v685, 72
      %v1935 = vpop.permute.xlu0 %1934
      %1936 = vrot.lane.b32.xlu0 %v686, 72
      %v1937 = vpop.permute.xlu0 %1936
      %1938 = vrot.lane.b32.xlu0 %v687, 72
      %v1939 = vpop.permute.xlu0 %1938
      %1940 = vrot.lane.b32.xlu0 %v688, 72
      %v1941 = vpop.permute.xlu0 %1940
      %1942 = vrot.lane.b32.xlu0 %v689, 72
      %v1943 = vpop.permute.xlu0 %1942
      %1944 = vrot.lane.b32.xlu0 %v690, 72
      %v1945 = vpop.permute.xlu0 %1944
      %1946 = vrot.lane.b32.xlu0 %v691, 72
      %v1947 = vpop.permute.xlu0 %1946
      %1948 = vrot.lane.b32.xlu0 %v692, 72
      %v1949 = vpop.permute.xlu0 %1948
      %1950 = vrot.lane.b32.xlu0 %v693, 72
      %v1951 = vpop.permute.xlu0 %1950
      %1952 = vrot.lane.b32.xlu0 %v694, 72
      %v1953 = vpop.permute.xlu0 %1952
      %1954 = vrot.lane.b32.xlu0 %v695, 72
      %v1955 = vpop.permute.xlu0 %1954
      %1956 = vrot.lane.b32.xlu0 %v696, 72
      %v1957 = vpop.permute.xlu0 %1956
      %1958 = vrot.lane.b32.xlu0 %v697, 72
      %v1959 = vpop.permute.xlu0 %1958
      %1960 = vrot.lane.b32.xlu0 %v698, 72
      %v1961 = vpop.permute.xlu0 %1960
      %1962 = vrot.lane.b32.xlu0 %v699, 72
      %v1963 = vpop.permute.xlu0 %1962
      %1964 = vrot.lane.b32.xlu0 %v700, 72
      %v1965 = vpop.permute.xlu0 %1964
      %1966 = vrot.lane.b32.xlu0 %v701, 72
      %v1967 = vpop.permute.xlu0 %1966
      %1968 = vrot.lane.b32.xlu0 %v702, 72
      %v1969 = vpop.permute.xlu0 %1968
      %1970 = vrot.lane.b32.xlu0 %v703, 72
      %v1971 = vpop.permute.xlu0 %1970
      %1972 = vrot.lane.b32.xlu0 %v704, 72
      %v1973 = vpop.permute.xlu0 %1972
      %1974 = vrot.lane.b32.xlu0 %v705, 72
      %v1975 = vpop.permute.xlu0 %1974
      %1976 = vrot.lane.b32.xlu0 %v706, 72
      %v1977 = vpop.permute.xlu0 %1976
      %1978 = vrot.lane.b32.xlu0 %v707, 72
      %v1979 = vpop.permute.xlu0 %1978
      %1980 = vrot.lane.b32.xlu0 %v708, 72
      %v1981 = vpop.permute.xlu0 %1980
      %1982 = vrot.lane.b32.xlu0 %v709, 72
      %v1983 = vpop.permute.xlu0 %1982
      %1984 = vrot.lane.b32.xlu0 %v710, 72
      %v1985 = vpop.permute.xlu0 %1984
      %1986 = vrot.lane.b32.xlu0 %v711, 72
      %v1987 = vpop.permute.xlu0 %1986
      %1988 = vrot.lane.b32.xlu0 %v712, 72
      %v1989 = vpop.permute.xlu0 %1988
      %1990 = vrot.lane.b32.xlu0 %v713, 72
      %v1991 = vpop.permute.xlu0 %1990
      %1992 = vrot.lane.b32.xlu0 %v714, 72
      %v1993 = vpop.permute.xlu0 %1992
      %1994 = vrot.lane.b32.xlu0 %v715, 72
      %v1995 = vpop.permute.xlu0 %1994
      %vm2060 = vcmask 1040384
      %v2061 = vsel %vm2060, %v509, %v717
      %v2062 = vsel %vm2060, %v540, %v719
      %v2063 = vsel %vm2060, %v541, %v721
      %v2064 = vsel %vm2060, %v542, %v723
      %v2065 = vsel %vm2060, %v543, %v725
      %v2066 = vsel %vm2060, %v544, %v727
      %v2067 = vsel %vm2060, %v545, %v729
      %v2068 = vsel %vm2060, %v546, %v731
      %v2069 = vsel %vm2060, %v512, %v733
      %v2070 = vsel %vm2060, %v547, %v735
      %v2071 = vsel %vm2060, %v548, %v737
      %v2072 = vsel %vm2060, %v549, %v739
      %v2073 = vsel %vm2060, %v550, %v741
      %v2074 = vsel %vm2060, %v551, %v743
      %v2075 = vsel %vm2060, %v552, %v745
      %v2076 = vsel %vm2060, %v553, %v747
      %v2077 = vsel %vm2060, %v515, %v749
      %v2078 = vsel %vm2060, %v554, %v751
      %v2079 = vsel %vm2060, %v555, %v753
      %v2080 = vsel %vm2060, %v556, %v755
      %v2081 = vsel %vm2060, %v557, %v757
      %v2082 = vsel %vm2060, %v558, %v759
      %v2083 = vsel %vm2060, %v559, %v761
      %v2084 = vsel %vm2060, %v560, %v763
      %v2085 = vsel %vm2060, %v518, %v765
      %v2086 = vsel %vm2060, %v561, %v767
      %v2087 = vsel %vm2060, %v562, %v769
      %v2088 = vsel %vm2060, %v563, %v771
      %v2089 = vsel %vm2060, %v564, %v773
      %v2090 = vsel %vm2060, %v565, %v775
      %v2091 = vsel %vm2060, %v566, %v777
      %v2092 = vsel %vm2060, %v567, %v779
      %v2093 = vsel %vm2060, %v521, %v781
      %v2094 = vsel %vm2060, %v568, %v783
      %v2095 = vsel %vm2060, %v569, %v785
      %v2096 = vsel %vm2060, %v570, %v787
      %v2097 = vsel %vm2060, %v571, %v789
      %v2098 = vsel %vm2060, %v572, %v791
      %v2099 = vsel %vm2060, %v573, %v793
      %v2100 = vsel %vm2060, %v574, %v795
      %v2101 = vsel %vm2060, %v524, %v797
      %v2102 = vsel %vm2060, %v575, %v799
      %v2103 = vsel %vm2060, %v576, %v801
      %v2104 = vsel %vm2060, %v577, %v803
      %v2105 = vsel %vm2060, %v578, %v805
      %v2106 = vsel %vm2060, %v579, %v807
      %v2107 = vsel %vm2060, %v580, %v809
      %v2108 = vsel %vm2060, %v581, %v811
      %v2109 = vsel %vm2060, %v527, %v813
      %v2110 = vsel %vm2060, %v582, %v815
      %v2111 = vsel %vm2060, %v583, %v817
      %v2112 = vsel %vm2060, %v584, %v819
      %v2113 = vsel %vm2060, %v585, %v821
      %v2114 = vsel %vm2060, %v586, %v823
      %v2115 = vsel %vm2060, %v587, %v825
      %v2116 = vsel %vm2060, %v588, %v827
      %v2117 = vsel %vm2060, %v530, %v829
      %v2118 = vsel %vm2060, %v589, %v831
      %v2119 = vsel %vm2060, %v590, %v833
      %v2120 = vsel %vm2060, %v591, %v835
      %v2121 = vsel %vm2060, %v592, %v837
      %v2122 = vsel %vm2060, %v593, %v839
      %v2123 = vsel %vm2060, %v594, %v841
      %v2124 = vsel %vm2060, %v595, %v843
      %vm2125 = vcmask 1041408
      %v2126 = vsel %vm2125, %v2061, %v909
      %v2127 = vsel %vm2125, %v2062, %v911
      %v2128 = vsel %vm2125, %v2063, %v913
      %v2129 = vsel %vm2125, %v2064, %v915
      %v2130 = vsel %vm2125, %v2065, %v917
      %v2131 = vsel %vm2125, %v2066, %v919
      %v2132 = vsel %vm2125, %v2067, %v921
      %v2133 = vsel %vm2125, %v2068, %v923
      %v2134 = vsel %vm2125, %v2069, %v925
      %v2135 = vsel %vm2125, %v2070, %v927
      %v2136 = vsel %vm2125, %v2071, %v929
      %v2137 = vsel %vm2125, %v2072, %v931
      %v2138 = vsel %vm2125, %v2073, %v933
      %v2139 = vsel %vm2125, %v2074, %v935
      %v2140 = vsel %vm2125, %v2075, %v937
      %v2141 = vsel %vm2125, %v2076, %v939
      %v2142 = vsel %vm2125, %v2077, %v941
      %v2143 = vsel %vm2125, %v2078, %v943
      %v2144 = vsel %vm2125, %v2079, %v945
      %v2145 = vsel %vm2125, %v2080, %v947
      %v2146 = vsel %vm2125, %v2081, %v949
      %v2147 = vsel %vm2125, %v2082, %v951
      %v2148 = vsel %vm2125, %v2083, %v953
      %v2149 = vsel %vm2125, %v2084, %v955
      %v2150 = vsel %vm2125, %v2085, %v957
      %v2151 = vsel %vm2125, %v2086, %v959
      %v2152 = vsel %vm2125, %v2087, %v961
      %v2153 = vsel %vm2125, %v2088, %v963
      %v2154 = vsel %vm2125, %v2089, %v965
      %v2155 = vsel %vm2125, %v2090, %v967
      %v2156 = vsel %vm2125, %v2091, %v969
      %v2157 = vsel %vm2125, %v2092, %v971
      %v2158 = vsel %vm2125, %v2093, %v973
      %v2159 = vsel %vm2125, %v2094, %v975
      %v2160 = vsel %vm2125, %v2095, %v977
      %v2161 = vsel %vm2125, %v2096, %v979
      %v2162 = vsel %vm2125, %v2097, %v981
      %v2163 = vsel %vm2125, %v2098, %v983
      %v2164 = vsel %vm2125, %v2099, %v985
      %v2165 = vsel %vm2125, %v2100, %v987
      %v2166 = vsel %vm2125, %v2101, %v989
      %v2167 = vsel %vm2125, %v2102, %v991
      %v2168 = vsel %vm2125, %v2103, %v993
      %v2169 = vsel %vm2125, %v2104, %v995
      %v2170 = vsel %vm2125, %v2105, %v997
      %v2171 = vsel %vm2125, %v2106, %v999
      %v2172 = vsel %vm2125, %v2107, %v1001
      %v2173 = vsel %vm2125, %v2108, %v1003
      %v2174 = vsel %vm2125, %v2109, %v1005
      %v2175 = vsel %vm2125, %v2110, %v1007
      %v2176 = vsel %vm2125, %v2111, %v1009
      %v2177 = vsel %vm2125, %v2112, %v1011
      %v2178 = vsel %vm2125, %v2113, %v1013
      %v2179 = vsel %vm2125, %v2114, %v1015
      %v2180 = vsel %vm2125, %v2115, %v1017
      %v2181 = vsel %vm2125, %v2116, %v1019
      %v2182 = vsel %vm2125, %v2117, %v1021
      %v2183 = vsel %vm2125, %v2118, %v1023
      %v2184 = vsel %vm2125, %v2119, %v1025
      %v2185 = vsel %vm2125, %v2120, %v1027
      %v2186 = vsel %vm2125, %v2121, %v1029
      %v2187 = vsel %vm2125, %v2122, %v1031
      %v2188 = vsel %vm2125, %v2123, %v1033
      %v2189 = vsel %vm2125, %v2124, %v1035
      %vm2190 = vcmask 1042432
      %v2191 = vsel %vm2190, %v2126, %v1101
      %v2192 = vsel %vm2190, %v2127, %v1103
      %v2193 = vsel %vm2190, %v2128, %v1105
      %v2194 = vsel %vm2190, %v2129, %v1107
      %v2195 = vsel %vm2190, %v2130, %v1109
      %v2196 = vsel %vm2190, %v2131, %v1111
      %v2197 = vsel %vm2190, %v2132, %v1113
      %v2198 = vsel %vm2190, %v2133, %v1115
      %v2199 = vsel %vm2190, %v2134, %v1117
      %v2200 = vsel %vm2190, %v2135, %v1119
      %v2201 = vsel %vm2190, %v2136, %v1121
      %v2202 = vsel %vm2190, %v2137, %v1123
      %v2203 = vsel %vm2190, %v2138, %v1125
      %v2204 = vsel %vm2190, %v2139, %v1127
      %v2205 = vsel %vm2190, %v2140, %v1129
      %v2206 = vsel %vm2190, %v2141, %v1131
      %v2207 = vsel %vm2190, %v2142, %v1133
      %v2208 = vsel %vm2190, %v2143, %v1135
      %v2209 = vsel %vm2190, %v2144, %v1137
      %v2210 = vsel %vm2190, %v2145, %v1139
      %v2211 = vsel %vm2190, %v2146, %v1141
      %v2212 = vsel %vm2190, %v2147, %v1143
      %v2213 = vsel %vm2190, %v2148, %v1145
      %v2214 = vsel %vm2190, %v2149, %v1147
      %v2215 = vsel %vm2190, %v2150, %v1149
      %v2216 = vsel %vm2190, %v2151, %v1151
      %v2217 = vsel %vm2190, %v2152, %v1153
      %v2218 = vsel %vm2190, %v2153, %v1155
      %v2219 = vsel %vm2190, %v2154, %v1157
      %v2220 = vsel %vm2190, %v2155, %v1159
      %v2221 = vsel %vm2190, %v2156, %v1161
      %v2222 = vsel %vm2190, %v2157, %v1163
      %v2223 = vsel %vm2190, %v2158, %v1165
      %v2224 = vsel %vm2190, %v2159, %v1167
      %v2225 = vsel %vm2190, %v2160, %v1169
      %v2226 = vsel %vm2190, %v2161, %v1171
      %v2227 = vsel %vm2190, %v2162, %v1173
      %v2228 = vsel %vm2190, %v2163, %v1175
      %v2229 = vsel %vm2190, %v2164, %v1177
      %v2230 = vsel %vm2190, %v2165, %v1179
      %v2231 = vsel %vm2190, %v2166, %v1181
      %v2232 = vsel %vm2190, %v2167, %v1183
      %v2233 = vsel %vm2190, %v2168, %v1185
      %v2234 = vsel %vm2190, %v2169, %v1187
      %v2235 = vsel %vm2190, %v2170, %v1189
      %v2236 = vsel %vm2190, %v2171, %v1191
      %v2237 = vsel %vm2190, %v2172, %v1193
      %v2238 = vsel %vm2190, %v2173, %v1195
      %v2239 = vsel %vm2190, %v2174, %v1197
      %v2240 = vsel %vm2190, %v2175, %v1199
      %v2241 = vsel %vm2190, %v2176, %v1201
      %v2242 = vsel %vm2190, %v2177, %v1203
      %v2243 = vsel %vm2190, %v2178, %v1205
      %v2244 = vsel %vm2190, %v2179, %v1207
      %v2245 = vsel %vm2190, %v2180, %v1209
      %v2246 = vsel %vm2190, %v2181, %v1211
      %v2247 = vsel %vm2190, %v2182, %v1213
      %v2248 = vsel %vm2190, %v2183, %v1215
      %v2249 = vsel %vm2190, %v2184, %v1217
      %v2250 = vsel %vm2190, %v2185, %v1219
      %v2251 = vsel %vm2190, %v2186, %v1221
      %v2252 = vsel %vm2190, %v2187, %v1223
      %v2253 = vsel %vm2190, %v2188, %v1225
      %v2254 = vsel %vm2190, %v2189, %v1227
      %vm2255 = vcmask 1043456
      %v2256 = vsel %vm2255, %v2191, %v1293
      %v2257 = vsel %vm2255, %v2192, %v1295
      %v2258 = vsel %vm2255, %v2193, %v1297
      %v2259 = vsel %vm2255, %v2194, %v1299
      %v2260 = vsel %vm2255, %v2195, %v1301
      %v2261 = vsel %vm2255, %v2196, %v1303
      %v2262 = vsel %vm2255, %v2197, %v1305
      %v2263 = vsel %vm2255, %v2198, %v1307
      %v2264 = vsel %vm2255, %v2199, %v1309
      %v2265 = vsel %vm2255, %v2200, %v1311
      %v2266 = vsel %vm2255, %v2201, %v1313
      %v2267 = vsel %vm2255, %v2202, %v1315
      %v2268 = vsel %vm2255, %v2203, %v1317
      %v2269 = vsel %vm2255, %v2204, %v1319
      %v2270 = vsel %vm2255, %v2205, %v1321
      %v2271 = vsel %vm2255, %v2206, %v1323
      %v2272 = vsel %vm2255, %v2207, %v1325
      %v2273 = vsel %vm2255, %v2208, %v1327
      %v2274 = vsel %vm2255, %v2209, %v1329
      %v2275 = vsel %vm2255, %v2210, %v1331
      %v2276 = vsel %vm2255, %v2211, %v1333
      %v2277 = vsel %vm2255, %v2212, %v1335
      %v2278 = vsel %vm2255, %v2213, %v1337
      %v2279 = vsel %vm2255, %v2214, %v1339
      %v2280 = vsel %vm2255, %v2215, %v1341
      %v2281 = vsel %vm2255, %v2216, %v1343
      %v2282 = vsel %vm2255, %v2217, %v1345
      %v2283 = vsel %vm2255, %v2218, %v1347
      %v2284 = vsel %vm2255, %v2219, %v1349
      %v2285 = vsel %vm2255, %v2220, %v1351
      %v2286 = vsel %vm2255, %v2221, %v1353
      %v2287 = vsel %vm2255, %v2222, %v1355
      %v2288 = vsel %vm2255, %v2223, %v1357
      %v2289 = vsel %vm2255, %v2224, %v1359
      %v2290 = vsel %vm2255, %v2225, %v1361
      %v2291 = vsel %vm2255, %v2226, %v1363
      %v2292 = vsel %vm2255, %v2227, %v1365
      %v2293 = vsel %vm2255, %v2228, %v1367
      %v2294 = vsel %vm2255, %v2229, %v1369
      %v2295 = vsel %vm2255, %v2230, %v1371
      %v2296 = vsel %vm2255, %v2231, %v1373
      %v2297 = vsel %vm2255, %v2232, %v1375
      %v2298 = vsel %vm2255, %v2233, %v1377
      %v2299 = vsel %vm2255, %v2234, %v1379
      %v2300 = vsel %vm2255, %v2235, %v1381
      %v2301 = vsel %vm2255, %v2236, %v1383
      %v2302 = vsel %vm2255, %v2237, %v1385
      %v2303 = vsel %vm2255, %v2238, %v1387
      %v2304 = vsel %vm2255, %v2239, %v1389
      %v2305 = vsel %vm2255, %v2240, %v1391
      %v2306 = vsel %vm2255, %v2241, %v1393
      %v2307 = vsel %vm2255, %v2242, %v1395
      %v2308 = vsel %vm2255, %v2243, %v1397
      %v2309 = vsel %vm2255, %v2244, %v1399
      %v2310 = vsel %vm2255, %v2245, %v1401
      %v2311 = vsel %vm2255, %v2246, %v1403
      %v2312 = vsel %vm2255, %v2247, %v1405
      %v2313 = vsel %vm2255, %v2248, %v1407
      %v2314 = vsel %vm2255, %v2249, %v1409
      %v2315 = vsel %vm2255, %v2250, %v1411
      %v2316 = vsel %vm2255, %v2251, %v1413
      %v2317 = vsel %vm2255, %v2252, %v1415
      %v2318 = vsel %vm2255, %v2253, %v1417
      %v2319 = vsel %vm2255, %v2254, %v1419
      %vm2320 = vcmask 1044480
      %v2321 = vsel %vm2320, %v2256, %v1485
      %v2322 = vsel %vm2320, %v2257, %v1487
      %v2323 = vsel %vm2320, %v2258, %v1489
      %v2324 = vsel %vm2320, %v2259, %v1491
      %v2325 = vsel %vm2320, %v2260, %v1493
      %v2326 = vsel %vm2320, %v2261, %v1495
      %v2327 = vsel %vm2320, %v2262, %v1497
      %v2328 = vsel %vm2320, %v2263, %v1499
      %v2329 = vsel %vm2320, %v2264, %v1501
      %v2330 = vsel %vm2320, %v2265, %v1503
      %v2331 = vsel %vm2320, %v2266, %v1505
      %v2332 = vsel %vm2320, %v2267, %v1507
      %v2333 = vsel %vm2320, %v2268, %v1509
      %v2334 = vsel %vm2320, %v2269, %v1511
      %v2335 = vsel %vm2320, %v2270, %v1513
      %v2336 = vsel %vm2320, %v2271, %v1515
      %v2337 = vsel %vm2320, %v2272, %v1517
      %v2338 = vsel %vm2320, %v2273, %v1519
      %v2339 = vsel %vm2320, %v2274, %v1521
      %v2340 = vsel %vm2320, %v2275, %v1523
      %v2341 = vsel %vm2320, %v2276, %v1525
      %v2342 = vsel %vm2320, %v2277, %v1527
      %v2343 = vsel %vm2320, %v2278, %v1529
      %v2344 = vsel %vm2320, %v2279, %v1531
      %v2345 = vsel %vm2320, %v2280, %v1533
      %v2346 = vsel %vm2320, %v2281, %v1535
      %v2347 = vsel %vm2320, %v2282, %v1537
      %v2348 = vsel %vm2320, %v2283, %v1539
      %v2349 = vsel %vm2320, %v2284, %v1541
      %v2350 = vsel %vm2320, %v2285, %v1543
      %v2351 = vsel %vm2320, %v2286, %v1545
      %v2352 = vsel %vm2320, %v2287, %v1547
      %v2353 = vsel %vm2320, %v2288, %v1549
      %v2354 = vsel %vm2320, %v2289, %v1551
      %v2355 = vsel %vm2320, %v2290, %v1553
      %v2356 = vsel %vm2320, %v2291, %v1555
      %v2357 = vsel %vm2320, %v2292, %v1557
      %v2358 = vsel %vm2320, %v2293, %v1559
      %v2359 = vsel %vm2320, %v2294, %v1561
      %v2360 = vsel %vm2320, %v2295, %v1563
      %v2361 = vsel %vm2320, %v2296, %v1565
      %v2362 = vsel %vm2320, %v2297, %v1567
      %v2363 = vsel %vm2320, %v2298, %v1569
      %v2364 = vsel %vm2320, %v2299, %v1571
      %v2365 = vsel %vm2320, %v2300, %v1573
      %v2366 = vsel %vm2320, %v2301, %v1575
      %v2367 = vsel %vm2320, %v2302, %v1577
      %v2368 = vsel %vm2320, %v2303, %v1579
      %v2369 = vsel %vm2320, %v2304, %v1581
      %v2370 = vsel %vm2320, %v2305, %v1583
      %v2371 = vsel %vm2320, %v2306, %v1585
      %v2372 = vsel %vm2320, %v2307, %v1587
      %v2373 = vsel %vm2320, %v2308, %v1589
      %v2374 = vsel %vm2320, %v2309, %v1591
      %v2375 = vsel %vm2320, %v2310, %v1593
      %v2376 = vsel %vm2320, %v2311, %v1595
      %v2377 = vsel %vm2320, %v2312, %v1597
      %v2378 = vsel %vm2320, %v2313, %v1599
      %v2379 = vsel %vm2320, %v2314, %v1601
      %v2380 = vsel %vm2320, %v2315, %v1603
      %v2381 = vsel %vm2320, %v2316, %v1605
      %v2382 = vsel %vm2320, %v2317, %v1607
      %v2383 = vsel %vm2320, %v2318, %v1609
      %v2384 = vsel %vm2320, %v2319, %v1611
      %vm2385 = vcmask 1045504
      %v2386 = vsel %vm2385, %v2321, %v1677
      %v2387 = vsel %vm2385, %v2322, %v1679
      %v2388 = vsel %vm2385, %v2323, %v1681
      %v2389 = vsel %vm2385, %v2324, %v1683
      %v2390 = vsel %vm2385, %v2325, %v1685
      %v2391 = vsel %vm2385, %v2326, %v1687
      %v2392 = vsel %vm2385, %v2327, %v1689
      %v2393 = vsel %vm2385, %v2328, %v1691
      %v2394 = vsel %vm2385, %v2329, %v1693
      %v2395 = vsel %vm2385, %v2330, %v1695
      %v2396 = vsel %vm2385, %v2331, %v1697
      %v2397 = vsel %vm2385, %v2332, %v1699
      %v2398 = vsel %vm2385, %v2333, %v1701
      %v2399 = vsel %vm2385, %v2334, %v1703
      %v2400 = vsel %vm2385, %v2335, %v1705
      %v2401 = vsel %vm2385, %v2336, %v1707
      %v2402 = vsel %vm2385, %v2337, %v1709
      %v2403 = vsel %vm2385, %v2338, %v1711
      %v2404 = vsel %vm2385, %v2339, %v1713
      %v2405 = vsel %vm2385, %v2340, %v1715
      %v2406 = vsel %vm2385, %v2341, %v1717
      %v2407 = vsel %vm2385, %v2342, %v1719
      %v2408 = vsel %vm2385, %v2343, %v1721
      %v2409 = vsel %vm2385, %v2344, %v1723
      %v2410 = vsel %vm2385, %v2345, %v1725
      %v2411 = vsel %vm2385, %v2346, %v1727
      %v2412 = vsel %vm2385, %v2347, %v1729
      %v2413 = vsel %vm2385, %v2348, %v1731
      %v2414 = vsel %vm2385, %v2349, %v1733
      %v2415 = vsel %vm2385, %v2350, %v1735
      %v2416 = vsel %vm2385, %v2351, %v1737
      %v2417 = vsel %vm2385, %v2352, %v1739
      %v2418 = vsel %vm2385, %v2353, %v1741
      %v2419 = vsel %vm2385, %v2354, %v1743
      %v2420 = vsel %vm2385, %v2355, %v1745
      %v2421 = vsel %vm2385, %v2356, %v1747
      %v2422 = vsel %vm2385, %v2357, %v1749
      %v2423 = vsel %vm2385, %v2358, %v1751
      %v2424 = vsel %vm2385, %v2359, %v1753
      %v2425 = vsel %vm2385, %v2360, %v1755
      %v2426 = vsel %vm2385, %v2361, %v1757
      %v2427 = vsel %vm2385, %v2362, %v1759
      %v2428 = vsel %vm2385, %v2363, %v1761
      %v2429 = vsel %vm2385, %v2364, %v1763
      %v2430 = vsel %vm2385, %v2365, %v1765
      %v2431 = vsel %vm2385, %v2366, %v1767
      %v2432 = vsel %vm2385, %v2367, %v1769
      %v2433 = vsel %vm2385, %v2368, %v1771
      %v2434 = vsel %vm2385, %v2369, %v1773
      %v2435 = vsel %vm2385, %v2370, %v1775
      %v2436 = vsel %vm2385, %v2371, %v1777
      %v2437 = vsel %vm2385, %v2372, %v1779
      %v2438 = vsel %vm2385, %v2373, %v1781
      %v2439 = vsel %vm2385, %v2374, %v1783
      %v2440 = vsel %vm2385, %v2375, %v1785
      %v2441 = vsel %vm2385, %v2376, %v1787
      %v2442 = vsel %vm2385, %v2377, %v1789
      %v2443 = vsel %vm2385, %v2378, %v1791
      %v2444 = vsel %vm2385, %v2379, %v1793
      %v2445 = vsel %vm2385, %v2380, %v1795
      %v2446 = vsel %vm2385, %v2381, %v1797
      %v2447 = vsel %vm2385, %v2382, %v1799
      %v2448 = vsel %vm2385, %v2383, %v1801
      %v2449 = vsel %vm2385, %v2384, %v1803
      %vm2450 = vcmask 1046528
      %v2451 = vsel %vm2450, %v2386, %v1869
      %v2452 = vsel %vm2450, %v2387, %v1871
      %v2453 = vsel %vm2450, %v2388, %v1873
      %v2454 = vsel %vm2450, %v2389, %v1875
      %v2455 = vsel %vm2450, %v2390, %v1877
      %v2456 = vsel %vm2450, %v2391, %v1879
      %v2457 = vsel %vm2450, %v2392, %v1881
      %v2458 = vsel %vm2450, %v2393, %v1883
      %v2459 = vsel %vm2450, %v2394, %v1885
      %v2460 = vsel %vm2450, %v2395, %v1887
      %v2461 = vsel %vm2450, %v2396, %v1889
      %v2462 = vsel %vm2450, %v2397, %v1891
      %v2463 = vsel %vm2450, %v2398, %v1893
      %v2464 = vsel %vm2450, %v2399, %v1895
      %v2465 = vsel %vm2450, %v2400, %v1897
      %v2466 = vsel %vm2450, %v2401, %v1899
      %v2467 = vsel %vm2450, %v2402, %v1901
      %v2468 = vsel %vm2450, %v2403, %v1903
      %v2469 = vsel %vm2450, %v2404, %v1905
      %v2470 = vsel %vm2450, %v2405, %v1907
      %v2471 = vsel %vm2450, %v2406, %v1909
      %v2472 = vsel %vm2450, %v2407, %v1911
      %v2473 = vsel %vm2450, %v2408, %v1913
      %v2474 = vsel %vm2450, %v2409, %v1915
      %v2475 = vsel %vm2450, %v2410, %v1917
      %v2476 = vsel %vm2450, %v2411, %v1919
      %v2477 = vsel %vm2450, %v2412, %v1921
      %v2478 = vsel %vm2450, %v2413, %v1923
      %v2479 = vsel %vm2450, %v2414, %v1925
      %v2480 = vsel %vm2450, %v2415, %v1927
      %v2481 = vsel %vm2450, %v2416, %v1929
      %v2482 = vsel %vm2450, %v2417, %v1931
      %v2483 = vsel %vm2450, %v2418, %v1933
      %v2484 = vsel %vm2450, %v2419, %v1935
      %v2485 = vsel %vm2450, %v2420, %v1937
      %v2486 = vsel %vm2450, %v2421, %v1939
      %v2487 = vsel %vm2450, %v2422, %v1941
      %v2488 = vsel %vm2450, %v2423, %v1943
      %v2489 = vsel %vm2450, %v2424, %v1945
      %v2490 = vsel %vm2450, %v2425, %v1947
      %v2491 = vsel %vm2450, %v2426, %v1949
      %v2492 = vsel %vm2450, %v2427, %v1951
      %v2493 = vsel %vm2450, %v2428, %v1953
      %v2494 = vsel %vm2450, %v2429, %v1955
      %v2495 = vsel %vm2450, %v2430, %v1957
      %v2496 = vsel %vm2450, %v2431, %v1959
      %v2497 = vsel %vm2450, %v2432, %v1961
      %v2498 = vsel %vm2450, %v2433, %v1963
      %v2499 = vsel %vm2450, %v2434, %v1965
      %v2500 = vsel %vm2450, %v2435, %v1967
      %v2501 = vsel %vm2450, %v2436, %v1969
      %v2502 = vsel %vm2450, %v2437, %v1971
      %v2503 = vsel %vm2450, %v2438, %v1973
      %v2504 = vsel %vm2450, %v2439, %v1975
      %v2505 = vsel %vm2450, %v2440, %v1977
      %v2506 = vsel %vm2450, %v2441, %v1979
      %v2507 = vsel %vm2450, %v2442, %v1981
      %v2508 = vsel %vm2450, %v2443, %v1983
      %v2509 = vsel %vm2450, %v2444, %v1985
      %v2510 = vsel %vm2450, %v2445, %v1987
      %v2511 = vsel %vm2450, %v2446, %v1989
      %v2512 = vsel %vm2450, %v2447, %v1991
      %v2513 = vsel %vm2450, %v2448, %v1993
      %v2514 = vsel %vm2450, %v2449, %v1995
      %vm2515 = vcmask 269312
      %v2517 = vsel %vm2515, %v253, 0
      %v2520 = vsel %vm2515, %v254, 0
      %v2523 = vsel %vm2515, %v255, 0
      %v2526 = vsel %vm2515, %v256, 0
      %v2529 = vsel %vm2515, %v257, 0
      %v2532 = vsel %vm2515, %v258, 0
      %v2535 = vsel %vm2515, %v259, 0
      %v2538 = vsel %vm2515, %v260, 0
      %v2541 = vsel %vm2515, %v261, 0
      %v2544 = vsel %vm2515, %v262, 0
      %v2547 = vsel %vm2515, %v263, 0
      %v2550 = vsel %vm2515, %v264, 0
      %v2553 = vsel %vm2515, %v265, 0
      %v2556 = vsel %vm2515, %v266, 0
      %v2559 = vsel %vm2515, %v267, 0
      %v2562 = vsel %vm2515, %v268, 0
      %v2565 = vsel %vm2515, %v269, 0
      %v2568 = vsel %vm2515, %v270, 0
      %v2571 = vsel %vm2515, %v271, 0
      %v2574 = vsel %vm2515, %v272, 0
      %v2577 = vsel %vm2515, %v273, 0
      %v2580 = vsel %vm2515, %v274, 0
      %v2583 = vsel %vm2515, %v275, 0
      %v2586 = vsel %vm2515, %v276, 0
      %v2589 = vsel %vm2515, %v277, 0
      %v2592 = vsel %vm2515, %v278, 0
      %v2595 = vsel %vm2515, %v279, 0
      %v2598 = vsel %vm2515, %v280, 0
      %v2601 = vsel %vm2515, %v281, 0
      %v2604 = vsel %vm2515, %v282, 0
      %v2607 = vsel %vm2515, %v283, 0
      %v2610 = vsel %vm2515, %v284, 0
      %v2613 = vsel %vm2515, %v285, 0
      %v2616 = vsel %vm2515, %v286, 0
      %v2619 = vsel %vm2515, %v287, 0
      %v2622 = vsel %vm2515, %v288, 0
      %v2625 = vsel %vm2515, %v289, 0
      %v2628 = vsel %vm2515, %v290, 0
      %v2631 = vsel %vm2515, %v291, 0
      %v2634 = vsel %vm2515, %v292, 0
      %v2637 = vsel %vm2515, %v293, 0
      %v2640 = vsel %vm2515, %v294, 0
      %v2643 = vsel %vm2515, %v295, 0
      %v2646 = vsel %vm2515, %v296, 0
      %v2649 = vsel %vm2515, %v297, 0
      %v2652 = vsel %vm2515, %v298, 0
      %v2655 = vsel %vm2515, %v299, 0
      %v2658 = vsel %vm2515, %v300, 0
      %v2661 = vsel %vm2515, %v301, 0
      %v2664 = vsel %vm2515, %v302, 0
      %v2667 = vsel %vm2515, %v303, 0
      %v2670 = vsel %vm2515, %v304, 0
      %v2673 = vsel %vm2515, %v305, 0
      %v2676 = vsel %vm2515, %v306, 0
      %v2679 = vsel %vm2515, %v307, 0
      %v2682 = vsel %vm2515, %v308, 0
      %v2685 = vsel %vm2515, %v309, 0
      %v2688 = vsel %vm2515, %v310, 0
      %v2691 = vsel %vm2515, %v311, 0
      %v2694 = vsel %vm2515, %v312, 0
      %v2697 = vsel %vm2515, %v313, 0
      %v2700 = vsel %vm2515, %v314, 0
      %v2703 = vsel %vm2515, %v315, 0
      %v2706 = vsel %vm2515, %v316, 0
      %v2709 = vsel %vm2060, %v378, 0
      %2711 = vmatpush.msra.mxu0 0.0
      %2712 = vmatpush.msra.mxu0 0.0
      %2713 = vmatpush.msra.mxu0 0.0
      %2714 = vmatpush.msra.mxu0 0.0
      %2715 = vmatpush.msra.mxu0 0.0
      %2716 = vmatpush.msra.mxu0 0.0
      %2717 = vmatpush.msra.mxu0 0.0
      %2718 = vmatpush.msra.mxu0 0.0
      %2719 = vmatpush.msra.mxu0 0.0
      %2720 = vmatpush.msra.mxu0 0.0
      %2721 = vmatpush.msra.mxu0 0.0
      %2722 = vmatpush.msra.mxu0 %v2709
      %2723 = vmatpush.msra.mxu0 %v377
      %2724 = vmatpush.msra.mxu0 %v376
      %2725 = vmatpush.msra.mxu0 %v375
      %2726 = vmatpush.msra.mxu0 %v374
      %2727 = vmatmul.f32.gmra.mxu0 %v2517
      %v2728 = vpop.f32.mrf.mxu0
      %v2729 = vadd.f32 0.0, %v2728
      %2730 = vmatmul.f32.gmra.mxu0 %v2520
      %v2731 = vpop.f32.mrf.mxu0
      %v2732 = vadd.f32 0.0, %v2731
      %2733 = vmatmul.f32.gmra.mxu0 %v2523
      %v2734 = vpop.f32.mrf.mxu0
      %v2735 = vadd.f32 0.0, %v2734
      %2736 = vmatmul.f32.gmra.mxu0 %v2526
      %v2737 = vpop.f32.mrf.mxu0
      %v2738 = vadd.f32 0.0, %v2737
      %2739 = vmatmul.f32.gmra.mxu0 %v2529
      %v2740 = vpop.f32.mrf.mxu0
      %v2741 = vadd.f32 0.0, %v2740
      %2742 = vmatmul.f32.gmra.mxu0 %v2532
      %v2743 = vpop.f32.mrf.mxu0
      %v2744 = vadd.f32 0.0, %v2743
      %2745 = vmatmul.f32.gmra.mxu0 %v2535
      %v2746 = vpop.f32.mrf.mxu0
      %v2747 = vadd.f32 0.0, %v2746
      %2748 = vmatmul.f32.gmra.mxu0 %v2538
      %v2749 = vpop.f32.mrf.mxu0
      %v2750 = vadd.f32 0.0, %v2749
      %2751 = vmatmul.f32.gmra.mxu0 %v2541
      %v2752 = vpop.f32.mrf.mxu0
      %v2753 = vadd.f32 0.0, %v2752
      %2754 = vmatmul.f32.gmra.mxu0 %v2544
      %v2755 = vpop.f32.mrf.mxu0
      %v2756 = vadd.f32 0.0, %v2755
      %2757 = vmatmul.f32.gmra.mxu0 %v2547
      %v2758 = vpop.f32.mrf.mxu0
      %v2759 = vadd.f32 0.0, %v2758
      %2760 = vmatmul.f32.gmra.mxu0 %v2550
      %v2761 = vpop.f32.mrf.mxu0
      %v2762 = vadd.f32 0.0, %v2761
      %2763 = vmatmul.f32.gmra.mxu0 %v2553
      %v2764 = vpop.f32.mrf.mxu0
      %v2765 = vadd.f32 0.0, %v2764
      %2766 = vmatmul.f32.gmra.mxu0 %v2556
      %v2767 = vpop.f32.mrf.mxu0
      %v2768 = vadd.f32 0.0, %v2767
      %2769 = vmatmul.f32.gmra.mxu0 %v2559
      %v2770 = vpop.f32.mrf.mxu0
      %v2771 = vadd.f32 0.0, %v2770
      %2772 = vmatmul.f32.gmra.mxu0 %v2562
      %v2773 = vpop.f32.mrf.mxu0
      %v2774 = vadd.f32 0.0, %v2773
      %2775 = vmatmul.f32.gmra.mxu0 %v2565
      %v2776 = vpop.f32.mrf.mxu0
      %v2777 = vadd.f32 0.0, %v2776
      %2778 = vmatmul.f32.gmra.mxu0 %v2568
      %v2779 = vpop.f32.mrf.mxu0
      %v2780 = vadd.f32 0.0, %v2779
      %2781 = vmatmul.f32.gmra.mxu0 %v2571
      %v2782 = vpop.f32.mrf.mxu0
      %v2783 = vadd.f32 0.0, %v2782
      %2784 = vmatmul.f32.gmra.mxu0 %v2574
      %v2785 = vpop.f32.mrf.mxu0
      %v2786 = vadd.f32 0.0, %v2785
      %2787 = vmatmul.f32.gmra.mxu0 %v2577
      %v2788 = vpop.f32.mrf.mxu0
      %v2789 = vadd.f32 0.0, %v2788
      %2790 = vmatmul.f32.gmra.mxu0 %v2580
      %v2791 = vpop.f32.mrf.mxu0
      %v2792 = vadd.f32 0.0, %v2791
      %2793 = vmatmul.f32.gmra.mxu0 %v2583
      %v2794 = vpop.f32.mrf.mxu0
      %v2795 = vadd.f32 0.0, %v2794
      %2796 = vmatmul.f32.gmra.mxu0 %v2586
      %v2797 = vpop.f32.mrf.mxu0
      %v2798 = vadd.f32 0.0, %v2797
      %2799 = vmatmul.f32.gmra.mxu0 %v2589
      %v2800 = vpop.f32.mrf.mxu0
      %v2801 = vadd.f32 0.0, %v2800
      %2802 = vmatmul.f32.gmra.mxu0 %v2592
      %v2803 = vpop.f32.mrf.mxu0
      %v2804 = vadd.f32 0.0, %v2803
      %2805 = vmatmul.f32.gmra.mxu0 %v2595
      %v2806 = vpop.f32.mrf.mxu0
      %v2807 = vadd.f32 0.0, %v2806
      %2808 = vmatmul.f32.gmra.mxu0 %v2598
      %v2809 = vpop.f32.mrf.mxu0
      %v2810 = vadd.f32 0.0, %v2809
      %2811 = vmatmul.f32.gmra.mxu0 %v2601
      %v2812 = vpop.f32.mrf.mxu0
      %v2813 = vadd.f32 0.0, %v2812
      %2814 = vmatmul.f32.gmra.mxu0 %v2604
      %v2815 = vpop.f32.mrf.mxu0
      %v2816 = vadd.f32 0.0, %v2815
      %2817 = vmatmul.f32.gmra.mxu0 %v2607
      %v2818 = vpop.f32.mrf.mxu0
      %v2819 = vadd.f32 0.0, %v2818
      %2820 = vmatmul.f32.gmra.mxu0 %v2610
      %v2821 = vpop.f32.mrf.mxu0
      %v2822 = vadd.f32 0.0, %v2821
      %2823 = vmatmul.f32.gmra.mxu0 %v2613
      %v2824 = vpop.f32.mrf.mxu0
      %v2825 = vadd.f32 0.0, %v2824
      %2826 = vmatmul.f32.gmra.mxu0 %v2616
      %v2827 = vpop.f32.mrf.mxu0
      %v2828 = vadd.f32 0.0, %v2827
      %2829 = vmatmul.f32.gmra.mxu0 %v2619
      %v2830 = vpop.f32.mrf.mxu0
      %v2831 = vadd.f32 0.0, %v2830
      %2832 = vmatmul.f32.gmra.mxu0 %v2622
      %v2833 = vpop.f32.mrf.mxu0
      %v2834 = vadd.f32 0.0, %v2833
      %2835 = vmatmul.f32.gmra.mxu0 %v2625
      %v2836 = vpop.f32.mrf.mxu0
      %v2837 = vadd.f32 0.0, %v2836
      %2838 = vmatmul.f32.gmra.mxu0 %v2628
      %v2839 = vpop.f32.mrf.mxu0
      %v2840 = vadd.f32 0.0, %v2839
      %2841 = vmatmul.f32.gmra.mxu0 %v2631
      %v2842 = vpop.f32.mrf.mxu0
      %v2843 = vadd.f32 0.0, %v2842
      %2844 = vmatmul.f32.gmra.mxu0 %v2634
      %v2845 = vpop.f32.mrf.mxu0
      %v2846 = vadd.f32 0.0, %v2845
      %2847 = vmatmul.f32.gmra.mxu0 %v2637
      %v2848 = vpop.f32.mrf.mxu0
      %v2849 = vadd.f32 0.0, %v2848
      %2850 = vmatmul.f32.gmra.mxu0 %v2640
      %v2851 = vpop.f32.mrf.mxu0
      %v2852 = vadd.f32 0.0, %v2851
      %2853 = vmatmul.f32.gmra.mxu0 %v2643
      %v2854 = vpop.f32.mrf.mxu0
      %v2855 = vadd.f32 0.0, %v2854
      %2856 = vmatmul.f32.gmra.mxu0 %v2646
      %v2857 = vpop.f32.mrf.mxu0
      %v2858 = vadd.f32 0.0, %v2857
      %2859 = vmatmul.f32.gmra.mxu0 %v2649
      %v2860 = vpop.f32.mrf.mxu0
      %v2861 = vadd.f32 0.0, %v2860
      %2862 = vmatmul.f32.gmra.mxu0 %v2652
      %v2863 = vpop.f32.mrf.mxu0
      %v2864 = vadd.f32 0.0, %v2863
      %2865 = vmatmul.f32.gmra.mxu0 %v2655
      %v2866 = vpop.f32.mrf.mxu0
      %v2867 = vadd.f32 0.0, %v2866
      %2868 = vmatmul.f32.gmra.mxu0 %v2658
      %v2869 = vpop.f32.mrf.mxu0
      %v2870 = vadd.f32 0.0, %v2869
      %2871 = vmatmul.f32.gmra.mxu0 %v2661
      %v2872 = vpop.f32.mrf.mxu0
      %v2873 = vadd.f32 0.0, %v2872
      %2874 = vmatmul.f32.gmra.mxu0 %v2664
      %v2875 = vpop.f32.mrf.mxu0
      %v2876 = vadd.f32 0.0, %v2875
      %2877 = vmatmul.f32.gmra.mxu0 %v2667
      %v2878 = vpop.f32.mrf.mxu0
      %v2879 = vadd.f32 0.0, %v2878
      %2880 = vmatmul.f32.gmra.mxu0 %v2670
      %v2881 = vpop.f32.mrf.mxu0
      %v2882 = vadd.f32 0.0, %v2881
      %2883 = vmatmul.f32.gmra.mxu0 %v2673
      %v2884 = vpop.f32.mrf.mxu0
      %v2885 = vadd.f32 0.0, %v2884
      %2886 = vmatmul.f32.gmra.mxu0 %v2676
      %v2887 = vpop.f32.mrf.mxu0
      %v2888 = vadd.f32 0.0, %v2887
      %2889 = vmatmul.f32.gmra.mxu0 %v2679
      %v2890 = vpop.f32.mrf.mxu0
      %v2891 = vadd.f32 0.0, %v2890
      %2892 = vmatmul.f32.gmra.mxu0 %v2682
      %v2893 = vpop.f32.mrf.mxu0
      %v2894 = vadd.f32 0.0, %v2893
      %2895 = vmatmul.f32.gmra.mxu0 %v2685
      %v2896 = vpop.f32.mrf.mxu0
      %v2897 = vadd.f32 0.0, %v2896
      %2898 = vmatmul.f32.gmra.mxu0 %v2688
      %v2899 = vpop.f32.mrf.mxu0
      %v2900 = vadd.f32 0.0, %v2899
      %2901 = vmatmul.f32.gmra.mxu0 %v2691
      %v2902 = vpop.f32.mrf.mxu0
      %v2903 = vadd.f32 0.0, %v2902
      %2904 = vmatmul.f32.gmra.mxu0 %v2694
      %v2905 = vpop.f32.mrf.mxu0
      %v2906 = vadd.f32 0.0, %v2905
      %2907 = vmatmul.f32.gmra.mxu0 %v2697
      %v2908 = vpop.f32.mrf.mxu0
      %v2909 = vadd.f32 0.0, %v2908
      %2910 = vmatmul.f32.gmra.mxu0 %v2700
      %v2911 = vpop.f32.mrf.mxu0
      %v2912 = vadd.f32 0.0, %v2911
      %2913 = vmatmul.f32.gmra.mxu0 %v2703
      %v2914 = vpop.f32.mrf.mxu0
      %v2915 = vadd.f32 0.0, %v2914
      %2916 = vmatmul.f32.gmra.mxu0 %v2706
      %v2917 = vpop.f32.mrf.mxu0
      %v2918 = vadd.f32 0.0, %v2917
      %2919 = vdwg.mxu0
      %v2921 = vsel %vm384, %v2451, 0
      %v2924 = vsel %vm384, %v2729, 0
      %2926 = vmatpush.xpose.msra.mxu0 0.0
      %2927 = vmatpush.xpose.msra.mxu0 0.0
      %2928 = vmatpush.xpose.msra.mxu0 0.0
      %2929 = vmatpush.xpose.msra.mxu0 0.0
      %2930 = vmatpush.xpose.msra.mxu0 0.0
      %2931 = vmatpush.xpose.msra.mxu0 0.0
      %2932 = vmatpush.xpose.msra.mxu0 0.0
      %2933 = vmatpush.xpose.msra.mxu0 0.0
      %2934 = vmatpush.xpose.msra.mxu0 0.0
      %2935 = vmatpush.xpose.msra.mxu0 0.0
      %2936 = vmatpush.xpose.msra.mxu0 0.0
      %2937 = vmatpush.xpose.msra.mxu0 0.0
      %2938 = vmatpush.xpose.msra.mxu0 0.0
      %2939 = vmatpush.xpose.msra.mxu0 0.0
      %2940 = vmatpush.xpose.msra.mxu0 0.0
      %2941 = vmatpush.xpose.msra.mxu0 %v2924
      %2942 = vmatmul.f32.gmra.mxu0 %v2921
      %v2943 = vpop.f32.mrf.mxu0
      %v2944 = vadd.f32 0.0, %v2943
      %2945 = vdwg.mxu0
      %v2947 = vsel %vm384, %v2452, 0
      %v2950 = vsel %vm384, %v2732, 0
      %2952 = vmatpush.xpose.msra.mxu0 0.0
      %2953 = vmatpush.xpose.msra.mxu0 0.0
      %2954 = vmatpush.xpose.msra.mxu0 0.0
      %2955 = vmatpush.xpose.msra.mxu0 0.0
      %2956 = vmatpush.xpose.msra.mxu0 0.0
      %2957 = vmatpush.xpose.msra.mxu0 0.0
      %2958 = vmatpush.xpose.msra.mxu0 0.0
      %2959 = vmatpush.xpose.msra.mxu0 0.0
      %2960 = vmatpush.xpose.msra.mxu0 0.0
      %2961 = vmatpush.xpose.msra.mxu0 0.0
      %2962 = vmatpush.xpose.msra.mxu0 0.0
      %2963 = vmatpush.xpose.msra.mxu0 0.0
      %2964 = vmatpush.xpose.msra.mxu0 0.0
      %2965 = vmatpush.xpose.msra.mxu0 0.0
      %2966 = vmatpush.xpose.msra.mxu0 0.0
      %2967 = vmatpush.xpose.msra.mxu0 %v2950
      %2968 = vmatmul.f32.gmra.mxu0 %v2947
      %v2969 = vpop.f32.mrf.mxu0
      %v2970 = vadd.f32 0.0, %v2969
      %2971 = vdwg.mxu0
      %v2973 = vsel %vm384, %v2453, 0
      %v2976 = vsel %vm384, %v2735, 0
      %2978 = vmatpush.xpose.msra.mxu0 0.0
      %2979 = vmatpush.xpose.msra.mxu0 0.0
      %2980 = vmatpush.xpose.msra.mxu0 0.0
      %2981 = vmatpush.xpose.msra.mxu0 0.0
      %2982 = vmatpush.xpose.msra.mxu0 0.0
      %2983 = vmatpush.xpose.msra.mxu0 0.0
      %2984 = vmatpush.xpose.msra.mxu0 0.0
      %2985 = vmatpush.xpose.msra.mxu0 0.0
      %2986 = vmatpush.xpose.msra.mxu0 0.0
      %2987 = vmatpush.xpose.msra.mxu0 0.0
      %2988 = vmatpush.xpose.msra.mxu0 0.0
      %2989 = vmatpush.xpose.msra.mxu0 0.0
      %2990 = vmatpush.xpose.msra.mxu0 0.0
      %2991 = vmatpush.xpose.msra.mxu0 0.0
      %2992 = vmatpush.xpose.msra.mxu0 0.0
      %2993 = vmatpush.xpose.msra.mxu0 %v2976
      %2994 = vmatmul.f32.gmra.mxu0 %v2973
      %v2995 = vpop.f32.mrf.mxu0
      %v2996 = vadd.f32 0.0, %v2995
      %2997 = vdwg.mxu0
      %v2999 = vsel %vm384, %v2454, 0
      %v3002 = vsel %vm384, %v2738, 0
      %3004 = vmatpush.xpose.msra.mxu0 0.0
      %3005 = vmatpush.xpose.msra.mxu0 0.0
      %3006 = vmatpush.xpose.msra.mxu0 0.0
      %3007 = vmatpush.xpose.msra.mxu0 0.0
      %3008 = vmatpush.xpose.msra.mxu0 0.0
      %3009 = vmatpush.xpose.msra.mxu0 0.0
      %3010 = vmatpush.xpose.msra.mxu0 0.0
      %3011 = vmatpush.xpose.msra.mxu0 0.0
      %3012 = vmatpush.xpose.msra.mxu0 0.0
      %3013 = vmatpush.xpose.msra.mxu0 0.0
      %3014 = vmatpush.xpose.msra.mxu0 0.0
      %3015 = vmatpush.xpose.msra.mxu0 0.0
      %3016 = vmatpush.xpose.msra.mxu0 0.0
      %3017 = vmatpush.xpose.msra.mxu0 0.0
      %3018 = vmatpush.xpose.msra.mxu0 0.0
      %3019 = vmatpush.xpose.msra.mxu0 %v3002
      %3020 = vmatmul.f32.gmra.mxu0 %v2999
      %v3021 = vpop.f32.mrf.mxu0
      %v3022 = vadd.f32 0.0, %v3021
      %3023 = vdwg.mxu0
      %v3025 = vsel %vm384, %v2455, 0
      %v3028 = vsel %vm384, %v2741, 0
      %3030 = vmatpush.xpose.msra.mxu0 0.0
      %3031 = vmatpush.xpose.msra.mxu0 0.0
      %3032 = vmatpush.xpose.msra.mxu0 0.0
      %3033 = vmatpush.xpose.msra.mxu0 0.0
      %3034 = vmatpush.xpose.msra.mxu0 0.0
      %3035 = vmatpush.xpose.msra.mxu0 0.0
      %3036 = vmatpush.xpose.msra.mxu0 0.0
      %3037 = vmatpush.xpose.msra.mxu0 0.0
      %3038 = vmatpush.xpose.msra.mxu0 0.0
      %3039 = vmatpush.xpose.msra.mxu0 0.0
      %3040 = vmatpush.xpose.msra.mxu0 0.0
      %3041 = vmatpush.xpose.msra.mxu0 0.0
      %3042 = vmatpush.xpose.msra.mxu0 0.0
      %3043 = vmatpush.xpose.msra.mxu0 0.0
      %3044 = vmatpush.xpose.msra.mxu0 0.0
      %3045 = vmatpush.xpose.msra.mxu0 %v3028
      %3046 = vmatmul.f32.gmra.mxu0 %v3025
      %v3047 = vpop.f32.mrf.mxu0
      %v3048 = vadd.f32 0.0, %v3047
      %3049 = vdwg.mxu0
      %v3051 = vsel %vm384, %v2456, 0
      %v3054 = vsel %vm384, %v2744, 0
      %3056 = vmatpush.xpose.msra.mxu0 0.0
      %3057 = vmatpush.xpose.msra.mxu0 0.0
      %3058 = vmatpush.xpose.msra.mxu0 0.0
      %3059 = vmatpush.xpose.msra.mxu0 0.0
      %3060 = vmatpush.xpose.msra.mxu0 0.0
      %3061 = vmatpush.xpose.msra.mxu0 0.0
      %3062 = vmatpush.xpose.msra.mxu0 0.0
      %3063 = vmatpush.xpose.msra.mxu0 0.0
      %3064 = vmatpush.xpose.msra.mxu0 0.0
      %3065 = vmatpush.xpose.msra.mxu0 0.0
      %3066 = vmatpush.xpose.msra.mxu0 0.0
      %3067 = vmatpush.xpose.msra.mxu0 0.0
      %3068 = vmatpush.xpose.msra.mxu0 0.0
      %3069 = vmatpush.xpose.msra.mxu0 0.0
      %3070 = vmatpush.xpose.msra.mxu0 0.0
      %3071 = vmatpush.xpose.msra.mxu0 %v3054
      %3072 = vmatmul.f32.gmra.mxu0 %v3051
      %v3073 = vpop.f32.mrf.mxu0
      %v3074 = vadd.f32 0.0, %v3073
      %3075 = vdwg.mxu0
      %v3077 = vsel %vm384, %v2457, 0
      %v3080 = vsel %vm384, %v2747, 0
      %3082 = vmatpush.xpose.msra.mxu0 0.0
      %3083 = vmatpush.xpose.msra.mxu0 0.0
      %3084 = vmatpush.xpose.msra.mxu0 0.0
      %3085 = vmatpush.xpose.msra.mxu0 0.0
      %3086 = vmatpush.xpose.msra.mxu0 0.0
      %3087 = vmatpush.xpose.msra.mxu0 0.0
      %3088 = vmatpush.xpose.msra.mxu0 0.0
      %3089 = vmatpush.xpose.msra.mxu0 0.0
      %3090 = vmatpush.xpose.msra.mxu0 0.0
      %3091 = vmatpush.xpose.msra.mxu0 0.0
      %3092 = vmatpush.xpose.msra.mxu0 0.0
      %3093 = vmatpush.xpose.msra.mxu0 0.0
      %3094 = vmatpush.xpose.msra.mxu0 0.0
      %3095 = vmatpush.xpose.msra.mxu0 0.0
      %3096 = vmatpush.xpose.msra.mxu0 0.0
      %3097 = vmatpush.xpose.msra.mxu0 %v3080
      %3098 = vmatmul.f32.gmra.mxu0 %v3077
      %v3099 = vpop.f32.mrf.mxu0
      %v3100 = vadd.f32 0.0, %v3099
      %3101 = vdwg.mxu0
      %v3103 = vsel %vm384, %v2458, 0
      %v3106 = vsel %vm384, %v2750, 0
      %3108 = vmatpush.xpose.msra.mxu0 0.0
      %3109 = vmatpush.xpose.msra.mxu0 0.0
      %3110 = vmatpush.xpose.msra.mxu0 0.0
      %3111 = vmatpush.xpose.msra.mxu0 0.0
      %3112 = vmatpush.xpose.msra.mxu0 0.0
      %3113 = vmatpush.xpose.msra.mxu0 0.0
      %3114 = vmatpush.xpose.msra.mxu0 0.0
      %3115 = vmatpush.xpose.msra.mxu0 0.0
      %3116 = vmatpush.xpose.msra.mxu0 0.0
      %3117 = vmatpush.xpose.msra.mxu0 0.0
      %3118 = vmatpush.xpose.msra.mxu0 0.0
      %3119 = vmatpush.xpose.msra.mxu0 0.0
      %3120 = vmatpush.xpose.msra.mxu0 0.0
      %3121 = vmatpush.xpose.msra.mxu0 0.0
      %3122 = vmatpush.xpose.msra.mxu0 0.0
      %3123 = vmatpush.xpose.msra.mxu0 %v3106
      %3124 = vmatmul.f32.gmra.mxu0 %v3103
      %v3125 = vpop.f32.mrf.mxu0
      %v3126 = vadd.f32 0.0, %v3125
      %3127 = vdwg.mxu0
      %v3129 = vsel %vm384, %v2459, 0
      %v3132 = vsel %vm384, %v2753, 0
      %3134 = vmatpush.xpose.msra.mxu0 0.0
      %3135 = vmatpush.xpose.msra.mxu0 0.0
      %3136 = vmatpush.xpose.msra.mxu0 0.0
      %3137 = vmatpush.xpose.msra.mxu0 0.0
      %3138 = vmatpush.xpose.msra.mxu0 0.0
      %3139 = vmatpush.xpose.msra.mxu0 0.0
      %3140 = vmatpush.xpose.msra.mxu0 0.0
      %3141 = vmatpush.xpose.msra.mxu0 0.0
      %3142 = vmatpush.xpose.msra.mxu0 0.0
      %3143 = vmatpush.xpose.msra.mxu0 0.0
      %3144 = vmatpush.xpose.msra.mxu0 0.0
      %3145 = vmatpush.xpose.msra.mxu0 0.0
      %3146 = vmatpush.xpose.msra.mxu0 0.0
      %3147 = vmatpush.xpose.msra.mxu0 0.0
      %3148 = vmatpush.xpose.msra.mxu0 0.0
      %3149 = vmatpush.xpose.msra.mxu0 %v3132
      %3150 = vmatmul.f32.gmra.mxu0 %v3129
      %v3151 = vpop.f32.mrf.mxu0
      %v3152 = vadd.f32 0.0, %v3151
      %3153 = vdwg.mxu0
      %v3155 = vsel %vm384, %v2460, 0
      %v3158 = vsel %vm384, %v2756, 0
      %3160 = vmatpush.xpose.msra.mxu0 0.0
      %3161 = vmatpush.xpose.msra.mxu0 0.0
      %3162 = vmatpush.xpose.msra.mxu0 0.0
      %3163 = vmatpush.xpose.msra.mxu0 0.0
      %3164 = vmatpush.xpose.msra.mxu0 0.0
      %3165 = vmatpush.xpose.msra.mxu0 0.0
      %3166 = vmatpush.xpose.msra.mxu0 0.0
      %3167 = vmatpush.xpose.msra.mxu0 0.0
      %3168 = vmatpush.xpose.msra.mxu0 0.0
      %3169 = vmatpush.xpose.msra.mxu0 0.0
      %3170 = vmatpush.xpose.msra.mxu0 0.0
      %3171 = vmatpush.xpose.msra.mxu0 0.0
      %3172 = vmatpush.xpose.msra.mxu0 0.0
      %3173 = vmatpush.xpose.msra.mxu0 0.0
      %3174 = vmatpush.xpose.msra.mxu0 0.0
      %3175 = vmatpush.xpose.msra.mxu0 %v3158
      %3176 = vmatmul.f32.gmra.mxu0 %v3155
      %v3177 = vpop.f32.mrf.mxu0
      %v3178 = vadd.f32 0.0, %v3177
      %3179 = vdwg.mxu0
      %v3181 = vsel %vm384, %v2461, 0
      %v3184 = vsel %vm384, %v2759, 0
      %3186 = vmatpush.xpose.msra.mxu0 0.0
      %3187 = vmatpush.xpose.msra.mxu0 0.0
      %3188 = vmatpush.xpose.msra.mxu0 0.0
      %3189 = vmatpush.xpose.msra.mxu0 0.0
      %3190 = vmatpush.xpose.msra.mxu0 0.0
      %3191 = vmatpush.xpose.msra.mxu0 0.0
      %3192 = vmatpush.xpose.msra.mxu0 0.0
      %3193 = vmatpush.xpose.msra.mxu0 0.0
      %3194 = vmatpush.xpose.msra.mxu0 0.0
      %3195 = vmatpush.xpose.msra.mxu0 0.0
      %3196 = vmatpush.xpose.msra.mxu0 0.0
      %3197 = vmatpush.xpose.msra.mxu0 0.0
      %3198 = vmatpush.xpose.msra.mxu0 0.0
      %3199 = vmatpush.xpose.msra.mxu0 0.0
      %3200 = vmatpush.xpose.msra.mxu0 0.0
      %3201 = vmatpush.xpose.msra.mxu0 %v3184
      %3202 = vmatmul.f32.gmra.mxu0 %v3181
      %v3203 = vpop.f32.mrf.mxu0
      %v3204 = vadd.f32 0.0, %v3203
      %3205 = vdwg.mxu0
      %v3207 = vsel %vm384, %v2462, 0
      %v3210 = vsel %vm384, %v2762, 0
      %3212 = vmatpush.xpose.msra.mxu0 0.0
      %3213 = vmatpush.xpose.msra.mxu0 0.0
      %3214 = vmatpush.xpose.msra.mxu0 0.0
      %3215 = vmatpush.xpose.msra.mxu0 0.0
      %3216 = vmatpush.xpose.msra.mxu0 0.0
      %3217 = vmatpush.xpose.msra.mxu0 0.0
      %3218 = vmatpush.xpose.msra.mxu0 0.0
      %3219 = vmatpush.xpose.msra.mxu0 0.0
      %3220 = vmatpush.xpose.msra.mxu0 0.0
      %3221 = vmatpush.xpose.msra.mxu0 0.0
      %3222 = vmatpush.xpose.msra.mxu0 0.0
      %3223 = vmatpush.xpose.msra.mxu0 0.0
      %3224 = vmatpush.xpose.msra.mxu0 0.0
      %3225 = vmatpush.xpose.msra.mxu0 0.0
      %3226 = vmatpush.xpose.msra.mxu0 0.0
      %3227 = vmatpush.xpose.msra.mxu0 %v3210
      %3228 = vmatmul.f32.gmra.mxu0 %v3207
      %v3229 = vpop.f32.mrf.mxu0
      %v3230 = vadd.f32 0.0, %v3229
      %3231 = vdwg.mxu0
      %v3233 = vsel %vm384, %v2463, 0
      %v3236 = vsel %vm384, %v2765, 0
      %3238 = vmatpush.xpose.msra.mxu0 0.0
      %3239 = vmatpush.xpose.msra.mxu0 0.0
      %3240 = vmatpush.xpose.msra.mxu0 0.0
      %3241 = vmatpush.xpose.msra.mxu0 0.0
      %3242 = vmatpush.xpose.msra.mxu0 0.0
      %3243 = vmatpush.xpose.msra.mxu0 0.0
      %3244 = vmatpush.xpose.msra.mxu0 0.0
      %3245 = vmatpush.xpose.msra.mxu0 0.0
      %3246 = vmatpush.xpose.msra.mxu0 0.0
      %3247 = vmatpush.xpose.msra.mxu0 0.0
      %3248 = vmatpush.xpose.msra.mxu0 0.0
      %3249 = vmatpush.xpose.msra.mxu0 0.0
      %3250 = vmatpush.xpose.msra.mxu0 0.0
      %3251 = vmatpush.xpose.msra.mxu0 0.0
      %3252 = vmatpush.xpose.msra.mxu0 0.0
      %3253 = vmatpush.xpose.msra.mxu0 %v3236
      %3254 = vmatmul.f32.gmra.mxu0 %v3233
      %v3255 = vpop.f32.mrf.mxu0
      %v3256 = vadd.f32 0.0, %v3255
      %3257 = vdwg.mxu0
      %v3259 = vsel %vm384, %v2464, 0
      %v3262 = vsel %vm384, %v2768, 0
      %3264 = vmatpush.xpose.msra.mxu0 0.0
      %3265 = vmatpush.xpose.msra.mxu0 0.0
      %3266 = vmatpush.xpose.msra.mxu0 0.0
      %3267 = vmatpush.xpose.msra.mxu0 0.0
      %3268 = vmatpush.xpose.msra.mxu0 0.0
      %3269 = vmatpush.xpose.msra.mxu0 0.0
      %3270 = vmatpush.xpose.msra.mxu0 0.0
      %3271 = vmatpush.xpose.msra.mxu0 0.0
      %3272 = vmatpush.xpose.msra.mxu0 0.0
      %3273 = vmatpush.xpose.msra.mxu0 0.0
      %3274 = vmatpush.xpose.msra.mxu0 0.0
      %3275 = vmatpush.xpose.msra.mxu0 0.0
      %3276 = vmatpush.xpose.msra.mxu0 0.0
      %3277 = vmatpush.xpose.msra.mxu0 0.0
      %3278 = vmatpush.xpose.msra.mxu0 0.0
      %3279 = vmatpush.xpose.msra.mxu0 %v3262
      %3280 = vmatmul.f32.gmra.mxu0 %v3259
      %v3281 = vpop.f32.mrf.mxu0
      %v3282 = vadd.f32 0.0, %v3281
      %3283 = vdwg.mxu0
      %v3285 = vsel %vm384, %v2465, 0
      %v3288 = vsel %vm384, %v2771, 0
      %3290 = vmatpush.xpose.msra.mxu0 0.0
      %3291 = vmatpush.xpose.msra.mxu0 0.0
      %3292 = vmatpush.xpose.msra.mxu0 0.0
      %3293 = vmatpush.xpose.msra.mxu0 0.0
      %3294 = vmatpush.xpose.msra.mxu0 0.0
      %3295 = vmatpush.xpose.msra.mxu0 0.0
      %3296 = vmatpush.xpose.msra.mxu0 0.0
      %3297 = vmatpush.xpose.msra.mxu0 0.0
      %3298 = vmatpush.xpose.msra.mxu0 0.0
      %3299 = vmatpush.xpose.msra.mxu0 0.0
      %3300 = vmatpush.xpose.msra.mxu0 0.0
      %3301 = vmatpush.xpose.msra.mxu0 0.0
      %3302 = vmatpush.xpose.msra.mxu0 0.0
      %3303 = vmatpush.xpose.msra.mxu0 0.0
      %3304 = vmatpush.xpose.msra.mxu0 0.0
      %3305 = vmatpush.xpose.msra.mxu0 %v3288
      %3306 = vmatmul.f32.gmra.mxu0 %v3285
      %v3307 = vpop.f32.mrf.mxu0
      %v3308 = vadd.f32 0.0, %v3307
      %3309 = vdwg.mxu0
      %v3311 = vsel %vm384, %v2466, 0
      %v3314 = vsel %vm384, %v2774, 0
      %3316 = vmatpush.xpose.msra.mxu0 0.0
      %3317 = vmatpush.xpose.msra.mxu0 0.0
      %3318 = vmatpush.xpose.msra.mxu0 0.0
      %3319 = vmatpush.xpose.msra.mxu0 0.0
      %3320 = vmatpush.xpose.msra.mxu0 0.0
      %3321 = vmatpush.xpose.msra.mxu0 0.0
      %3322 = vmatpush.xpose.msra.mxu0 0.0
      %3323 = vmatpush.xpose.msra.mxu0 0.0
      %3324 = vmatpush.xpose.msra.mxu0 0.0
      %3325 = vmatpush.xpose.msra.mxu0 0.0
      %3326 = vmatpush.xpose.msra.mxu0 0.0
      %3327 = vmatpush.xpose.msra.mxu0 0.0
      %3328 = vmatpush.xpose.msra.mxu0 0.0
      %3329 = vmatpush.xpose.msra.mxu0 0.0
      %3330 = vmatpush.xpose.msra.mxu0 0.0
      %3331 = vmatpush.xpose.msra.mxu0 %v3314
      %3332 = vmatmul.f32.gmra.mxu0 %v3311
      %v3333 = vpop.f32.mrf.mxu0
      %v3334 = vadd.f32 0.0, %v3333
      %3335 = vdwg.mxu0
      %v3337 = vsel %vm384, %v2467, 0
      %v3340 = vsel %vm384, %v2777, 0
      %3342 = vmatpush.xpose.msra.mxu0 0.0
      %3343 = vmatpush.xpose.msra.mxu0 0.0
      %3344 = vmatpush.xpose.msra.mxu0 0.0
      %3345 = vmatpush.xpose.msra.mxu0 0.0
      %3346 = vmatpush.xpose.msra.mxu0 0.0
      %3347 = vmatpush.xpose.msra.mxu0 0.0
      %3348 = vmatpush.xpose.msra.mxu0 0.0
      %3349 = vmatpush.xpose.msra.mxu0 0.0
      %3350 = vmatpush.xpose.msra.mxu0 0.0
      %3351 = vmatpush.xpose.msra.mxu0 0.0
      %3352 = vmatpush.xpose.msra.mxu0 0.0
      %3353 = vmatpush.xpose.msra.mxu0 0.0
      %3354 = vmatpush.xpose.msra.mxu0 0.0
      %3355 = vmatpush.xpose.msra.mxu0 0.0
      %3356 = vmatpush.xpose.msra.mxu0 0.0
      %3357 = vmatpush.xpose.msra.mxu0 %v3340
      %3358 = vmatmul.f32.gmra.mxu0 %v3337
      %v3359 = vpop.f32.mrf.mxu0
      %v3360 = vadd.f32 0.0, %v3359
      %3361 = vdwg.mxu0
      %v3363 = vsel %vm384, %v2468, 0
      %v3366 = vsel %vm384, %v2780, 0
      %3368 = vmatpush.xpose.msra.mxu0 0.0
      %3369 = vmatpush.xpose.msra.mxu0 0.0
      %3370 = vmatpush.xpose.msra.mxu0 0.0
      %3371 = vmatpush.xpose.msra.mxu0 0.0
      %3372 = vmatpush.xpose.msra.mxu0 0.0
      %3373 = vmatpush.xpose.msra.mxu0 0.0
      %3374 = vmatpush.xpose.msra.mxu0 0.0
      %3375 = vmatpush.xpose.msra.mxu0 0.0
      %3376 = vmatpush.xpose.msra.mxu0 0.0
      %3377 = vmatpush.xpose.msra.mxu0 0.0
      %3378 = vmatpush.xpose.msra.mxu0 0.0
      %3379 = vmatpush.xpose.msra.mxu0 0.0
      %3380 = vmatpush.xpose.msra.mxu0 0.0
      %3381 = vmatpush.xpose.msra.mxu0 0.0
      %3382 = vmatpush.xpose.msra.mxu0 0.0
      %3383 = vmatpush.xpose.msra.mxu0 %v3366
      %3384 = vmatmul.f32.gmra.mxu0 %v3363
      %v3385 = vpop.f32.mrf.mxu0
      %v3386 = vadd.f32 0.0, %v3385
      %3387 = vdwg.mxu0
      %v3389 = vsel %vm384, %v2469, 0
      %v3392 = vsel %vm384, %v2783, 0
      %3394 = vmatpush.xpose.msra.mxu0 0.0
      %3395 = vmatpush.xpose.msra.mxu0 0.0
      %3396 = vmatpush.xpose.msra.mxu0 0.0
      %3397 = vmatpush.xpose.msra.mxu0 0.0
      %3398 = vmatpush.xpose.msra.mxu0 0.0
      %3399 = vmatpush.xpose.msra.mxu0 0.0
      %3400 = vmatpush.xpose.msra.mxu0 0.0
      %3401 = vmatpush.xpose.msra.mxu0 0.0
      %3402 = vmatpush.xpose.msra.mxu0 0.0
      %3403 = vmatpush.xpose.msra.mxu0 0.0
      %3404 = vmatpush.xpose.msra.mxu0 0.0
      %3405 = vmatpush.xpose.msra.mxu0 0.0
      %3406 = vmatpush.xpose.msra.mxu0 0.0
      %3407 = vmatpush.xpose.msra.mxu0 0.0
      %3408 = vmatpush.xpose.msra.mxu0 0.0
      %3409 = vmatpush.xpose.msra.mxu0 %v3392
      %3410 = vmatmul.f32.gmra.mxu0 %v3389
      %v3411 = vpop.f32.mrf.mxu0
      %v3412 = vadd.f32 0.0, %v3411
      %3413 = vdwg.mxu0
      %v3415 = vsel %vm384, %v2470, 0
      %v3418 = vsel %vm384, %v2786, 0
      %3420 = vmatpush.xpose.msra.mxu0 0.0
      %3421 = vmatpush.xpose.msra.mxu0 0.0
      %3422 = vmatpush.xpose.msra.mxu0 0.0
      %3423 = vmatpush.xpose.msra.mxu0 0.0
      %3424 = vmatpush.xpose.msra.mxu0 0.0
      %3425 = vmatpush.xpose.msra.mxu0 0.0
      %3426 = vmatpush.xpose.msra.mxu0 0.0
      %3427 = vmatpush.xpose.msra.mxu0 0.0
      %3428 = vmatpush.xpose.msra.mxu0 0.0
      %3429 = vmatpush.xpose.msra.mxu0 0.0
      %3430 = vmatpush.xpose.msra.mxu0 0.0
      %3431 = vmatpush.xpose.msra.mxu0 0.0
      %3432 = vmatpush.xpose.msra.mxu0 0.0
      %3433 = vmatpush.xpose.msra.mxu0 0.0
      %3434 = vmatpush.xpose.msra.mxu0 0.0
      %3435 = vmatpush.xpose.msra.mxu0 %v3418
      %3436 = vmatmul.f32.gmra.mxu0 %v3415
      %v3437 = vpop.f32.mrf.mxu0
      %v3438 = vadd.f32 0.0, %v3437
      %3439 = vdwg.mxu0
      %v3441 = vsel %vm384, %v2471, 0
      %v3444 = vsel %vm384, %v2789, 0
      %3446 = vmatpush.xpose.msra.mxu0 0.0
      %3447 = vmatpush.xpose.msra.mxu0 0.0
      %3448 = vmatpush.xpose.msra.mxu0 0.0
      %3449 = vmatpush.xpose.msra.mxu0 0.0
      %3450 = vmatpush.xpose.msra.mxu0 0.0
      %3451 = vmatpush.xpose.msra.mxu0 0.0
      %3452 = vmatpush.xpose.msra.mxu0 0.0
      %3453 = vmatpush.xpose.msra.mxu0 0.0
      %3454 = vmatpush.xpose.msra.mxu0 0.0
      %3455 = vmatpush.xpose.msra.mxu0 0.0
      %3456 = vmatpush.xpose.msra.mxu0 0.0
      %3457 = vmatpush.xpose.msra.mxu0 0.0
      %3458 = vmatpush.xpose.msra.mxu0 0.0
      %3459 = vmatpush.xpose.msra.mxu0 0.0
      %3460 = vmatpush.xpose.msra.mxu0 0.0
      %3461 = vmatpush.xpose.msra.mxu0 %v3444
      %3462 = vmatmul.f32.gmra.mxu0 %v3441
      %v3463 = vpop.f32.mrf.mxu0
      %v3464 = vadd.f32 0.0, %v3463
      %3465 = vdwg.mxu0
      %v3467 = vsel %vm384, %v2472, 0
      %v3470 = vsel %vm384, %v2792, 0
      %3472 = vmatpush.xpose.msra.mxu0 0.0
      %3473 = vmatpush.xpose.msra.mxu0 0.0
      %3474 = vmatpush.xpose.msra.mxu0 0.0
      %3475 = vmatpush.xpose.msra.mxu0 0.0
      %3476 = vmatpush.xpose.msra.mxu0 0.0
      %3477 = vmatpush.xpose.msra.mxu0 0.0
      %3478 = vmatpush.xpose.msra.mxu0 0.0
      %3479 = vmatpush.xpose.msra.mxu0 0.0
      %3480 = vmatpush.xpose.msra.mxu0 0.0
      %3481 = vmatpush.xpose.msra.mxu0 0.0
      %3482 = vmatpush.xpose.msra.mxu0 0.0
      %3483 = vmatpush.xpose.msra.mxu0 0.0
      %3484 = vmatpush.xpose.msra.mxu0 0.0
      %3485 = vmatpush.xpose.msra.mxu0 0.0
      %3486 = vmatpush.xpose.msra.mxu0 0.0
      %3487 = vmatpush.xpose.msra.mxu0 %v3470
      %3488 = vmatmul.f32.gmra.mxu0 %v3467
      %v3489 = vpop.f32.mrf.mxu0
      %v3490 = vadd.f32 0.0, %v3489
      %3491 = vdwg.mxu0
      %v3493 = vsel %vm384, %v2473, 0
      %v3496 = vsel %vm384, %v2795, 0
      %3498 = vmatpush.xpose.msra.mxu0 0.0
      %3499 = vmatpush.xpose.msra.mxu0 0.0
      %3500 = vmatpush.xpose.msra.mxu0 0.0
      %3501 = vmatpush.xpose.msra.mxu0 0.0
      %3502 = vmatpush.xpose.msra.mxu0 0.0
      %3503 = vmatpush.xpose.msra.mxu0 0.0
      %3504 = vmatpush.xpose.msra.mxu0 0.0
      %3505 = vmatpush.xpose.msra.mxu0 0.0
      %3506 = vmatpush.xpose.msra.mxu0 0.0
      %3507 = vmatpush.xpose.msra.mxu0 0.0
      %3508 = vmatpush.xpose.msra.mxu0 0.0
      %3509 = vmatpush.xpose.msra.mxu0 0.0
      %3510 = vmatpush.xpose.msra.mxu0 0.0
      %3511 = vmatpush.xpose.msra.mxu0 0.0
      %3512 = vmatpush.xpose.msra.mxu0 0.0
      %3513 = vmatpush.xpose.msra.mxu0 %v3496
      %3514 = vmatmul.f32.gmra.mxu0 %v3493
      %v3515 = vpop.f32.mrf.mxu0
      %v3516 = vadd.f32 0.0, %v3515
      %3517 = vdwg.mxu0
      %v3519 = vsel %vm384, %v2474, 0
      %v3522 = vsel %vm384, %v2798, 0
      %3524 = vmatpush.xpose.msra.mxu0 0.0
      %3525 = vmatpush.xpose.msra.mxu0 0.0
      %3526 = vmatpush.xpose.msra.mxu0 0.0
      %3527 = vmatpush.xpose.msra.mxu0 0.0
      %3528 = vmatpush.xpose.msra.mxu0 0.0
      %3529 = vmatpush.xpose.msra.mxu0 0.0
      %3530 = vmatpush.xpose.msra.mxu0 0.0
      %3531 = vmatpush.xpose.msra.mxu0 0.0
      %3532 = vmatpush.xpose.msra.mxu0 0.0
      %3533 = vmatpush.xpose.msra.mxu0 0.0
      %3534 = vmatpush.xpose.msra.mxu0 0.0
      %3535 = vmatpush.xpose.msra.mxu0 0.0
      %3536 = vmatpush.xpose.msra.mxu0 0.0
      %3537 = vmatpush.xpose.msra.mxu0 0.0
      %3538 = vmatpush.xpose.msra.mxu0 0.0
      %3539 = vmatpush.xpose.msra.mxu0 %v3522
      %3540 = vmatmul.f32.gmra.mxu0 %v3519
      %v3541 = vpop.f32.mrf.mxu0
      %v3542 = vadd.f32 0.0, %v3541
      %3543 = vdwg.mxu0
      %v3545 = vsel %vm384, %v2475, 0
      %v3548 = vsel %vm384, %v2801, 0
      %3550 = vmatpush.xpose.msra.mxu0 0.0
      %3551 = vmatpush.xpose.msra.mxu0 0.0
      %3552 = vmatpush.xpose.msra.mxu0 0.0
      %3553 = vmatpush.xpose.msra.mxu0 0.0
      %3554 = vmatpush.xpose.msra.mxu0 0.0
      %3555 = vmatpush.xpose.msra.mxu0 0.0
      %3556 = vmatpush.xpose.msra.mxu0 0.0
      %3557 = vmatpush.xpose.msra.mxu0 0.0
      %3558 = vmatpush.xpose.msra.mxu0 0.0
      %3559 = vmatpush.xpose.msra.mxu0 0.0
      %3560 = vmatpush.xpose.msra.mxu0 0.0
      %3561 = vmatpush.xpose.msra.mxu0 0.0
      %3562 = vmatpush.xpose.msra.mxu0 0.0
      %3563 = vmatpush.xpose.msra.mxu0 0.0
      %3564 = vmatpush.xpose.msra.mxu0 0.0
      %3565 = vmatpush.xpose.msra.mxu0 %v3548
      %3566 = vmatmul.f32.gmra.mxu0 %v3545
      %v3567 = vpop.f32.mrf.mxu0
      %v3568 = vadd.f32 0.0, %v3567
      %3569 = vdwg.mxu0
      %v3571 = vsel %vm384, %v2476, 0
      %v3574 = vsel %vm384, %v2804, 0
      %3576 = vmatpush.xpose.msra.mxu0 0.0
      %3577 = vmatpush.xpose.msra.mxu0 0.0
      %3578 = vmatpush.xpose.msra.mxu0 0.0
      %3579 = vmatpush.xpose.msra.mxu0 0.0
      %3580 = vmatpush.xpose.msra.mxu0 0.0
      %3581 = vmatpush.xpose.msra.mxu0 0.0
      %3582 = vmatpush.xpose.msra.mxu0 0.0
      %3583 = vmatpush.xpose.msra.mxu0 0.0
      %3584 = vmatpush.xpose.msra.mxu0 0.0
      %3585 = vmatpush.xpose.msra.mxu0 0.0
      %3586 = vmatpush.xpose.msra.mxu0 0.0
      %3587 = vmatpush.xpose.msra.mxu0 0.0
      %3588 = vmatpush.xpose.msra.mxu0 0.0
      %3589 = vmatpush.xpose.msra.mxu0 0.0
      %3590 = vmatpush.xpose.msra.mxu0 0.0
      %3591 = vmatpush.xpose.msra.mxu0 %v3574
      %3592 = vmatmul.f32.gmra.mxu0 %v3571
      %v3593 = vpop.f32.mrf.mxu0
      %v3594 = vadd.f32 0.0, %v3593
      %3595 = vdwg.mxu0
      %v3597 = vsel %vm384, %v2477, 0
      %v3600 = vsel %vm384, %v2807, 0
      %3602 = vmatpush.xpose.msra.mxu0 0.0
      %3603 = vmatpush.xpose.msra.mxu0 0.0
      %3604 = vmatpush.xpose.msra.mxu0 0.0
      %3605 = vmatpush.xpose.msra.mxu0 0.0
      %3606 = vmatpush.xpose.msra.mxu0 0.0
      %3607 = vmatpush.xpose.msra.mxu0 0.0
      %3608 = vmatpush.xpose.msra.mxu0 0.0
      %3609 = vmatpush.xpose.msra.mxu0 0.0
      %3610 = vmatpush.xpose.msra.mxu0 0.0
      %3611 = vmatpush.xpose.msra.mxu0 0.0
      %3612 = vmatpush.xpose.msra.mxu0 0.0
      %3613 = vmatpush.xpose.msra.mxu0 0.0
      %3614 = vmatpush.xpose.msra.mxu0 0.0
      %3615 = vmatpush.xpose.msra.mxu0 0.0
      %3616 = vmatpush.xpose.msra.mxu0 0.0
      %3617 = vmatpush.xpose.msra.mxu0 %v3600
      %3618 = vmatmul.f32.gmra.mxu0 %v3597
      %v3619 = vpop.f32.mrf.mxu0
      %v3620 = vadd.f32 0.0, %v3619
      %3621 = vdwg.mxu0
      %v3623 = vsel %vm384, %v2478, 0
      %v3626 = vsel %vm384, %v2810, 0
      %3628 = vmatpush.xpose.msra.mxu0 0.0
      %3629 = vmatpush.xpose.msra.mxu0 0.0
      %3630 = vmatpush.xpose.msra.mxu0 0.0
      %3631 = vmatpush.xpose.msra.mxu0 0.0
      %3632 = vmatpush.xpose.msra.mxu0 0.0
      %3633 = vmatpush.xpose.msra.mxu0 0.0
      %3634 = vmatpush.xpose.msra.mxu0 0.0
      %3635 = vmatpush.xpose.msra.mxu0 0.0
      %3636 = vmatpush.xpose.msra.mxu0 0.0
      %3637 = vmatpush.xpose.msra.mxu0 0.0
      %3638 = vmatpush.xpose.msra.mxu0 0.0
      %3639 = vmatpush.xpose.msra.mxu0 0.0
      %3640 = vmatpush.xpose.msra.mxu0 0.0
      %3641 = vmatpush.xpose.msra.mxu0 0.0
      %3642 = vmatpush.xpose.msra.mxu0 0.0
      %3643 = vmatpush.xpose.msra.mxu0 %v3626
      %3644 = vmatmul.f32.gmra.mxu0 %v3623
      %v3645 = vpop.f32.mrf.mxu0
      %v3646 = vadd.f32 0.0, %v3645
      %3647 = vdwg.mxu0
      %v3649 = vsel %vm384, %v2479, 0
      %v3652 = vsel %vm384, %v2813, 0
      %3654 = vmatpush.xpose.msra.mxu0 0.0
      %3655 = vmatpush.xpose.msra.mxu0 0.0
      %3656 = vmatpush.xpose.msra.mxu0 0.0
      %3657 = vmatpush.xpose.msra.mxu0 0.0
      %3658 = vmatpush.xpose.msra.mxu0 0.0
      %3659 = vmatpush.xpose.msra.mxu0 0.0
      %3660 = vmatpush.xpose.msra.mxu0 0.0
      %3661 = vmatpush.xpose.msra.mxu0 0.0
      %3662 = vmatpush.xpose.msra.mxu0 0.0
      %3663 = vmatpush.xpose.msra.mxu0 0.0
      %3664 = vmatpush.xpose.msra.mxu0 0.0
      %3665 = vmatpush.xpose.msra.mxu0 0.0
      %3666 = vmatpush.xpose.msra.mxu0 0.0
      %3667 = vmatpush.xpose.msra.mxu0 0.0
      %3668 = vmatpush.xpose.msra.mxu0 0.0
      %3669 = vmatpush.xpose.msra.mxu0 %v3652
      %3670 = vmatmul.f32.gmra.mxu0 %v3649
      %v3671 = vpop.f32.mrf.mxu0
      %v3672 = vadd.f32 0.0, %v3671
      %3673 = vdwg.mxu0
      %v3675 = vsel %vm384, %v2480, 0
      %v3678 = vsel %vm384, %v2816, 0
      %3680 = vmatpush.xpose.msra.mxu0 0.0
      %3681 = vmatpush.xpose.msra.mxu0 0.0
      %3682 = vmatpush.xpose.msra.mxu0 0.0
      %3683 = vmatpush.xpose.msra.mxu0 0.0
      %3684 = vmatpush.xpose.msra.mxu0 0.0
      %3685 = vmatpush.xpose.msra.mxu0 0.0
      %3686 = vmatpush.xpose.msra.mxu0 0.0
      %3687 = vmatpush.xpose.msra.mxu0 0.0
      %3688 = vmatpush.xpose.msra.mxu0 0.0
      %3689 = vmatpush.xpose.msra.mxu0 0.0
      %3690 = vmatpush.xpose.msra.mxu0 0.0
      %3691 = vmatpush.xpose.msra.mxu0 0.0
      %3692 = vmatpush.xpose.msra.mxu0 0.0
      %3693 = vmatpush.xpose.msra.mxu0 0.0
      %3694 = vmatpush.xpose.msra.mxu0 0.0
      %3695 = vmatpush.xpose.msra.mxu0 %v3678
      %3696 = vmatmul.f32.gmra.mxu0 %v3675
      %v3697 = vpop.f32.mrf.mxu0
      %v3698 = vadd.f32 0.0, %v3697
      %3699 = vdwg.mxu0
      %v3701 = vsel %vm384, %v2481, 0
      %v3704 = vsel %vm384, %v2819, 0
      %3706 = vmatpush.xpose.msra.mxu0 0.0
      %3707 = vmatpush.xpose.msra.mxu0 0.0
      %3708 = vmatpush.xpose.msra.mxu0 0.0
      %3709 = vmatpush.xpose.msra.mxu0 0.0
      %3710 = vmatpush.xpose.msra.mxu0 0.0
      %3711 = vmatpush.xpose.msra.mxu0 0.0
      %3712 = vmatpush.xpose.msra.mxu0 0.0
      %3713 = vmatpush.xpose.msra.mxu0 0.0
      %3714 = vmatpush.xpose.msra.mxu0 0.0
      %3715 = vmatpush.xpose.msra.mxu0 0.0
      %3716 = vmatpush.xpose.msra.mxu0 0.0
      %3717 = vmatpush.xpose.msra.mxu0 0.0
      %3718 = vmatpush.xpose.msra.mxu0 0.0
      %3719 = vmatpush.xpose.msra.mxu0 0.0
      %3720 = vmatpush.xpose.msra.mxu0 0.0
      %3721 = vmatpush.xpose.msra.mxu0 %v3704
      %3722 = vmatmul.f32.gmra.mxu0 %v3701
      %v3723 = vpop.f32.mrf.mxu0
      %v3724 = vadd.f32 0.0, %v3723
      %3725 = vdwg.mxu0
      %v3727 = vsel %vm384, %v2482, 0
      %v3730 = vsel %vm384, %v2822, 0
      %3732 = vmatpush.xpose.msra.mxu0 0.0
      %3733 = vmatpush.xpose.msra.mxu0 0.0
      %3734 = vmatpush.xpose.msra.mxu0 0.0
      %3735 = vmatpush.xpose.msra.mxu0 0.0
      %3736 = vmatpush.xpose.msra.mxu0 0.0
      %3737 = vmatpush.xpose.msra.mxu0 0.0
      %3738 = vmatpush.xpose.msra.mxu0 0.0
      %3739 = vmatpush.xpose.msra.mxu0 0.0
      %3740 = vmatpush.xpose.msra.mxu0 0.0
      %3741 = vmatpush.xpose.msra.mxu0 0.0
      %3742 = vmatpush.xpose.msra.mxu0 0.0
      %3743 = vmatpush.xpose.msra.mxu0 0.0
      %3744 = vmatpush.xpose.msra.mxu0 0.0
      %3745 = vmatpush.xpose.msra.mxu0 0.0
      %3746 = vmatpush.xpose.msra.mxu0 0.0
      %3747 = vmatpush.xpose.msra.mxu0 %v3730
      %3748 = vmatmul.f32.gmra.mxu0 %v3727
      %v3749 = vpop.f32.mrf.mxu0
      %v3750 = vadd.f32 0.0, %v3749
      %3751 = vdwg.mxu0
      %v3753 = vsel %vm384, %v2483, 0
      %v3756 = vsel %vm384, %v2825, 0
      %3758 = vmatpush.xpose.msra.mxu0 0.0
      %3759 = vmatpush.xpose.msra.mxu0 0.0
      %3760 = vmatpush.xpose.msra.mxu0 0.0
      %3761 = vmatpush.xpose.msra.mxu0 0.0
      %3762 = vmatpush.xpose.msra.mxu0 0.0
      %3763 = vmatpush.xpose.msra.mxu0 0.0
      %3764 = vmatpush.xpose.msra.mxu0 0.0
      %3765 = vmatpush.xpose.msra.mxu0 0.0
      %3766 = vmatpush.xpose.msra.mxu0 0.0
      %3767 = vmatpush.xpose.msra.mxu0 0.0
      %3768 = vmatpush.xpose.msra.mxu0 0.0
      %3769 = vmatpush.xpose.msra.mxu0 0.0
      %3770 = vmatpush.xpose.msra.mxu0 0.0
      %3771 = vmatpush.xpose.msra.mxu0 0.0
      %3772 = vmatpush.xpose.msra.mxu0 0.0
      %3773 = vmatpush.xpose.msra.mxu0 %v3756
      %3774 = vmatmul.f32.gmra.mxu0 %v3753
      %v3775 = vpop.f32.mrf.mxu0
      %v3776 = vadd.f32 0.0, %v3775
      %3777 = vdwg.mxu0
      %v3779 = vsel %vm384, %v2484, 0
      %v3782 = vsel %vm384, %v2828, 0
      %3784 = vmatpush.xpose.msra.mxu0 0.0
      %3785 = vmatpush.xpose.msra.mxu0 0.0
      %3786 = vmatpush.xpose.msra.mxu0 0.0
      %3787 = vmatpush.xpose.msra.mxu0 0.0
      %3788 = vmatpush.xpose.msra.mxu0 0.0
      %3789 = vmatpush.xpose.msra.mxu0 0.0
      %3790 = vmatpush.xpose.msra.mxu0 0.0
      %3791 = vmatpush.xpose.msra.mxu0 0.0
      %3792 = vmatpush.xpose.msra.mxu0 0.0
      %3793 = vmatpush.xpose.msra.mxu0 0.0
      %3794 = vmatpush.xpose.msra.mxu0 0.0
      %3795 = vmatpush.xpose.msra.mxu0 0.0
      %3796 = vmatpush.xpose.msra.mxu0 0.0
      %3797 = vmatpush.xpose.msra.mxu0 0.0
      %3798 = vmatpush.xpose.msra.mxu0 0.0
      %3799 = vmatpush.xpose.msra.mxu0 %v3782
      %3800 = vmatmul.f32.gmra.mxu0 %v3779
      %v3801 = vpop.f32.mrf.mxu0
      %v3802 = vadd.f32 0.0, %v3801
      %3803 = vdwg.mxu0
      %v3805 = vsel %vm384, %v2485, 0
      %v3808 = vsel %vm384, %v2831, 0
      %3810 = vmatpush.xpose.msra.mxu0 0.0
      %3811 = vmatpush.xpose.msra.mxu0 0.0
      %3812 = vmatpush.xpose.msra.mxu0 0.0
      %3813 = vmatpush.xpose.msra.mxu0 0.0
      %3814 = vmatpush.xpose.msra.mxu0 0.0
      %3815 = vmatpush.xpose.msra.mxu0 0.0
      %3816 = vmatpush.xpose.msra.mxu0 0.0
      %3817 = vmatpush.xpose.msra.mxu0 0.0
      %3818 = vmatpush.xpose.msra.mxu0 0.0
      %3819 = vmatpush.xpose.msra.mxu0 0.0
      %3820 = vmatpush.xpose.msra.mxu0 0.0
      %3821 = vmatpush.xpose.msra.mxu0 0.0
      %3822 = vmatpush.xpose.msra.mxu0 0.0
      %3823 = vmatpush.xpose.msra.mxu0 0.0
      %3824 = vmatpush.xpose.msra.mxu0 0.0
      %3825 = vmatpush.xpose.msra.mxu0 %v3808
      %3826 = vmatmul.f32.gmra.mxu0 %v3805
      %v3827 = vpop.f32.mrf.mxu0
      %v3828 = vadd.f32 0.0, %v3827
      %3829 = vdwg.mxu0
      %v3831 = vsel %vm384, %v2486, 0
      %v3834 = vsel %vm384, %v2834, 0
      %3836 = vmatpush.xpose.msra.mxu0 0.0
      %3837 = vmatpush.xpose.msra.mxu0 0.0
      %3838 = vmatpush.xpose.msra.mxu0 0.0
      %3839 = vmatpush.xpose.msra.mxu0 0.0
      %3840 = vmatpush.xpose.msra.mxu0 0.0
      %3841 = vmatpush.xpose.msra.mxu0 0.0
      %3842 = vmatpush.xpose.msra.mxu0 0.0
      %3843 = vmatpush.xpose.msra.mxu0 0.0
      %3844 = vmatpush.xpose.msra.mxu0 0.0
      %3845 = vmatpush.xpose.msra.mxu0 0.0
      %3846 = vmatpush.xpose.msra.mxu0 0.0
      %3847 = vmatpush.xpose.msra.mxu0 0.0
      %3848 = vmatpush.xpose.msra.mxu0 0.0
      %3849 = vmatpush.xpose.msra.mxu0 0.0
      %3850 = vmatpush.xpose.msra.mxu0 0.0
      %3851 = vmatpush.xpose.msra.mxu0 %v3834
      %3852 = vmatmul.f32.gmra.mxu0 %v3831
      %v3853 = vpop.f32.mrf.mxu0
      %v3854 = vadd.f32 0.0, %v3853
      %3855 = vdwg.mxu0
      %v3857 = vsel %vm384, %v2487, 0
      %v3860 = vsel %vm384, %v2837, 0
      %3862 = vmatpush.xpose.msra.mxu0 0.0
      %3863 = vmatpush.xpose.msra.mxu0 0.0
      %3864 = vmatpush.xpose.msra.mxu0 0.0
      %3865 = vmatpush.xpose.msra.mxu0 0.0
      %3866 = vmatpush.xpose.msra.mxu0 0.0
      %3867 = vmatpush.xpose.msra.mxu0 0.0
      %3868 = vmatpush.xpose.msra.mxu0 0.0
      %3869 = vmatpush.xpose.msra.mxu0 0.0
      %3870 = vmatpush.xpose.msra.mxu0 0.0
      %3871 = vmatpush.xpose.msra.mxu0 0.0
      %3872 = vmatpush.xpose.msra.mxu0 0.0
      %3873 = vmatpush.xpose.msra.mxu0 0.0
      %3874 = vmatpush.xpose.msra.mxu0 0.0
      %3875 = vmatpush.xpose.msra.mxu0 0.0
      %3876 = vmatpush.xpose.msra.mxu0 0.0
      %3877 = vmatpush.xpose.msra.mxu0 %v3860
      %3878 = vmatmul.f32.gmra.mxu0 %v3857
      %v3879 = vpop.f32.mrf.mxu0
      %v3880 = vadd.f32 0.0, %v3879
      %3881 = vdwg.mxu0
      %v3883 = vsel %vm384, %v2488, 0
      %v3886 = vsel %vm384, %v2840, 0
      %3888 = vmatpush.xpose.msra.mxu0 0.0
      %3889 = vmatpush.xpose.msra.mxu0 0.0
      %3890 = vmatpush.xpose.msra.mxu0 0.0
      %3891 = vmatpush.xpose.msra.mxu0 0.0
      %3892 = vmatpush.xpose.msra.mxu0 0.0
      %3893 = vmatpush.xpose.msra.mxu0 0.0
      %3894 = vmatpush.xpose.msra.mxu0 0.0
      %3895 = vmatpush.xpose.msra.mxu0 0.0
      %3896 = vmatpush.xpose.msra.mxu0 0.0
      %3897 = vmatpush.xpose.msra.mxu0 0.0
      %3898 = vmatpush.xpose.msra.mxu0 0.0
      %3899 = vmatpush.xpose.msra.mxu0 0.0
      %3900 = vmatpush.xpose.msra.mxu0 0.0
      %3901 = vmatpush.xpose.msra.mxu0 0.0
      %3902 = vmatpush.xpose.msra.mxu0 0.0
      %3903 = vmatpush.xpose.msra.mxu0 %v3886
      %3904 = vmatmul.f32.gmra.mxu0 %v3883
      %v3905 = vpop.f32.mrf.mxu0
      %v3906 = vadd.f32 0.0, %v3905
      %3907 = vdwg.mxu0
      %v3909 = vsel %vm384, %v2489, 0
      %v3912 = vsel %vm384, %v2843, 0
      %3914 = vmatpush.xpose.msra.mxu0 0.0
      %3915 = vmatpush.xpose.msra.mxu0 0.0
      %3916 = vmatpush.xpose.msra.mxu0 0.0
      %3917 = vmatpush.xpose.msra.mxu0 0.0
      %3918 = vmatpush.xpose.msra.mxu0 0.0
      %3919 = vmatpush.xpose.msra.mxu0 0.0
      %3920 = vmatpush.xpose.msra.mxu0 0.0
      %3921 = vmatpush.xpose.msra.mxu0 0.0
      %3922 = vmatpush.xpose.msra.mxu0 0.0
      %3923 = vmatpush.xpose.msra.mxu0 0.0
      %3924 = vmatpush.xpose.msra.mxu0 0.0
      %3925 = vmatpush.xpose.msra.mxu0 0.0
      %3926 = vmatpush.xpose.msra.mxu0 0.0
      %3927 = vmatpush.xpose.msra.mxu0 0.0
      %3928 = vmatpush.xpose.msra.mxu0 0.0
      %3929 = vmatpush.xpose.msra.mxu0 %v3912
      %3930 = vmatmul.f32.gmra.mxu0 %v3909
      %v3931 = vpop.f32.mrf.mxu0
      %v3932 = vadd.f32 0.0, %v3931
      %3933 = vdwg.mxu0
      %v3935 = vsel %vm384, %v2490, 0
      %v3938 = vsel %vm384, %v2846, 0
      %3940 = vmatpush.xpose.msra.mxu0 0.0
      %3941 = vmatpush.xpose.msra.mxu0 0.0
      %3942 = vmatpush.xpose.msra.mxu0 0.0
      %3943 = vmatpush.xpose.msra.mxu0 0.0
      %3944 = vmatpush.xpose.msra.mxu0 0.0
      %3945 = vmatpush.xpose.msra.mxu0 0.0
      %3946 = vmatpush.xpose.msra.mxu0 0.0
      %3947 = vmatpush.xpose.msra.mxu0 0.0
      %3948 = vmatpush.xpose.msra.mxu0 0.0
      %3949 = vmatpush.xpose.msra.mxu0 0.0
      %3950 = vmatpush.xpose.msra.mxu0 0.0
      %3951 = vmatpush.xpose.msra.mxu0 0.0
      %3952 = vmatpush.xpose.msra.mxu0 0.0
      %3953 = vmatpush.xpose.msra.mxu0 0.0
      %3954 = vmatpush.xpose.msra.mxu0 0.0
      %3955 = vmatpush.xpose.msra.mxu0 %v3938
      %3956 = vmatmul.f32.gmra.mxu0 %v3935
      %v3957 = vpop.f32.mrf.mxu0
      %v3958 = vadd.f32 0.0, %v3957
      %3959 = vdwg.mxu0
      %v3961 = vsel %vm384, %v2491, 0
      %v3964 = vsel %vm384, %v2849, 0
      %3966 = vmatpush.xpose.msra.mxu0 0.0
      %3967 = vmatpush.xpose.msra.mxu0 0.0
      %3968 = vmatpush.xpose.msra.mxu0 0.0
      %3969 = vmatpush.xpose.msra.mxu0 0.0
      %3970 = vmatpush.xpose.msra.mxu0 0.0
      %3971 = vmatpush.xpose.msra.mxu0 0.0
      %3972 = vmatpush.xpose.msra.mxu0 0.0
      %3973 = vmatpush.xpose.msra.mxu0 0.0
      %3974 = vmatpush.xpose.msra.mxu0 0.0
      %3975 = vmatpush.xpose.msra.mxu0 0.0
      %3976 = vmatpush.xpose.msra.mxu0 0.0
      %3977 = vmatpush.xpose.msra.mxu0 0.0
      %3978 = vmatpush.xpose.msra.mxu0 0.0
      %3979 = vmatpush.xpose.msra.mxu0 0.0
      %3980 = vmatpush.xpose.msra.mxu0 0.0
      %3981 = vmatpush.xpose.msra.mxu0 %v3964
      %3982 = vmatmul.f32.gmra.mxu0 %v3961
      %v3983 = vpop.f32.mrf.mxu0
      %v3984 = vadd.f32 0.0, %v3983
      %3985 = vdwg.mxu0
      %v3987 = vsel %vm384, %v2492, 0
      %v3990 = vsel %vm384, %v2852, 0
      %3992 = vmatpush.xpose.msra.mxu0 0.0
      %3993 = vmatpush.xpose.msra.mxu0 0.0
      %3994 = vmatpush.xpose.msra.mxu0 0.0
      %3995 = vmatpush.xpose.msra.mxu0 0.0
      %3996 = vmatpush.xpose.msra.mxu0 0.0
      %3997 = vmatpush.xpose.msra.mxu0 0.0
      %3998 = vmatpush.xpose.msra.mxu0 0.0
      %3999 = vmatpush.xpose.msra.mxu0 0.0
      %4000 = vmatpush.xpose.msra.mxu0 0.0
      %4001 = vmatpush.xpose.msra.mxu0 0.0
      %4002 = vmatpush.xpose.msra.mxu0 0.0
      %4003 = vmatpush.xpose.msra.mxu0 0.0
      %4004 = vmatpush.xpose.msra.mxu0 0.0
      %4005 = vmatpush.xpose.msra.mxu0 0.0
      %4006 = vmatpush.xpose.msra.mxu0 0.0
      %4007 = vmatpush.xpose.msra.mxu0 %v3990
      %4008 = vmatmul.f32.gmra.mxu0 %v3987
      %v4009 = vpop.f32.mrf.mxu0
      %v4010 = vadd.f32 0.0, %v4009
      %4011 = vdwg.mxu0
      %v4013 = vsel %vm384, %v2493, 0
      %v4016 = vsel %vm384, %v2855, 0
      %4018 = vmatpush.xpose.msra.mxu0 0.0
      %4019 = vmatpush.xpose.msra.mxu0 0.0
      %4020 = vmatpush.xpose.msra.mxu0 0.0
      %4021 = vmatpush.xpose.msra.mxu0 0.0
      %4022 = vmatpush.xpose.msra.mxu0 0.0
      %4023 = vmatpush.xpose.msra.mxu0 0.0
      %4024 = vmatpush.xpose.msra.mxu0 0.0
      %4025 = vmatpush.xpose.msra.mxu0 0.0
      %4026 = vmatpush.xpose.msra.mxu0 0.0
      %4027 = vmatpush.xpose.msra.mxu0 0.0
      %4028 = vmatpush.xpose.msra.mxu0 0.0
      %4029 = vmatpush.xpose.msra.mxu0 0.0
      %4030 = vmatpush.xpose.msra.mxu0 0.0
      %4031 = vmatpush.xpose.msra.mxu0 0.0
      %4032 = vmatpush.xpose.msra.mxu0 0.0
      %4033 = vmatpush.xpose.msra.mxu0 %v4016
      %4034 = vmatmul.f32.gmra.mxu0 %v4013
      %v4035 = vpop.f32.mrf.mxu0
      %v4036 = vadd.f32 0.0, %v4035
      %4037 = vdwg.mxu0
      %v4039 = vsel %vm384, %v2494, 0
      %v4042 = vsel %vm384, %v2858, 0
      %4044 = vmatpush.xpose.msra.mxu0 0.0
      %4045 = vmatpush.xpose.msra.mxu0 0.0
      %4046 = vmatpush.xpose.msra.mxu0 0.0
      %4047 = vmatpush.xpose.msra.mxu0 0.0
      %4048 = vmatpush.xpose.msra.mxu0 0.0
      %4049 = vmatpush.xpose.msra.mxu0 0.0
      %4050 = vmatpush.xpose.msra.mxu0 0.0
      %4051 = vmatpush.xpose.msra.mxu0 0.0
      %4052 = vmatpush.xpose.msra.mxu0 0.0
      %4053 = vmatpush.xpose.msra.mxu0 0.0
      %4054 = vmatpush.xpose.msra.mxu0 0.0
      %4055 = vmatpush.xpose.msra.mxu0 0.0
      %4056 = vmatpush.xpose.msra.mxu0 0.0
      %4057 = vmatpush.xpose.msra.mxu0 0.0
      %4058 = vmatpush.xpose.msra.mxu0 0.0
      %4059 = vmatpush.xpose.msra.mxu0 %v4042
      %4060 = vmatmul.f32.gmra.mxu0 %v4039
      %v4061 = vpop.f32.mrf.mxu0
      %v4062 = vadd.f32 0.0, %v4061
      %4063 = vdwg.mxu0
      %v4065 = vsel %vm384, %v2495, 0
      %v4068 = vsel %vm384, %v2861, 0
      %4070 = vmatpush.xpose.msra.mxu0 0.0
      %4071 = vmatpush.xpose.msra.mxu0 0.0
      %4072 = vmatpush.xpose.msra.mxu0 0.0
      %4073 = vmatpush.xpose.msra.mxu0 0.0
      %4074 = vmatpush.xpose.msra.mxu0 0.0
      %4075 = vmatpush.xpose.msra.mxu0 0.0
      %4076 = vmatpush.xpose.msra.mxu0 0.0
      %4077 = vmatpush.xpose.msra.mxu0 0.0
      %4078 = vmatpush.xpose.msra.mxu0 0.0
      %4079 = vmatpush.xpose.msra.mxu0 0.0
      %4080 = vmatpush.xpose.msra.mxu0 0.0
      %4081 = vmatpush.xpose.msra.mxu0 0.0
      %4082 = vmatpush.xpose.msra.mxu0 0.0
      %4083 = vmatpush.xpose.msra.mxu0 0.0
      %4084 = vmatpush.xpose.msra.mxu0 0.0
      %4085 = vmatpush.xpose.msra.mxu0 %v4068
      %4086 = vmatmul.f32.gmra.mxu0 %v4065
      %v4087 = vpop.f32.mrf.mxu0
      %v4088 = vadd.f32 0.0, %v4087
      %4089 = vdwg.mxu0
      %v4091 = vsel %vm384, %v2496, 0
      %v4094 = vsel %vm384, %v2864, 0
      %4096 = vmatpush.xpose.msra.mxu0 0.0
      %4097 = vmatpush.xpose.msra.mxu0 0.0
      %4098 = vmatpush.xpose.msra.mxu0 0.0
      %4099 = vmatpush.xpose.msra.mxu0 0.0
      %4100 = vmatpush.xpose.msra.mxu0 0.0
      %4101 = vmatpush.xpose.msra.mxu0 0.0
      %4102 = vmatpush.xpose.msra.mxu0 0.0
      %4103 = vmatpush.xpose.msra.mxu0 0.0
      %4104 = vmatpush.xpose.msra.mxu0 0.0
      %4105 = vmatpush.xpose.msra.mxu0 0.0
      %4106 = vmatpush.xpose.msra.mxu0 0.0
      %4107 = vmatpush.xpose.msra.mxu0 0.0
      %4108 = vmatpush.xpose.msra.mxu0 0.0
      %4109 = vmatpush.xpose.msra.mxu0 0.0
      %4110 = vmatpush.xpose.msra.mxu0 0.0
      %4111 = vmatpush.xpose.msra.mxu0 %v4094
      %4112 = vmatmul.f32.gmra.mxu0 %v4091
      %v4113 = vpop.f32.mrf.mxu0
      %v4114 = vadd.f32 0.0, %v4113
      %4115 = vdwg.mxu0
      %v4117 = vsel %vm384, %v2497, 0
      %v4120 = vsel %vm384, %v2867, 0
      %4122 = vmatpush.xpose.msra.mxu0 0.0
      %4123 = vmatpush.xpose.msra.mxu0 0.0
      %4124 = vmatpush.xpose.msra.mxu0 0.0
      %4125 = vmatpush.xpose.msra.mxu0 0.0
      %4126 = vmatpush.xpose.msra.mxu0 0.0
      %4127 = vmatpush.xpose.msra.mxu0 0.0
      %4128 = vmatpush.xpose.msra.mxu0 0.0
      %4129 = vmatpush.xpose.msra.mxu0 0.0
      %4130 = vmatpush.xpose.msra.mxu0 0.0
      %4131 = vmatpush.xpose.msra.mxu0 0.0
      %4132 = vmatpush.xpose.msra.mxu0 0.0
      %4133 = vmatpush.xpose.msra.mxu0 0.0
      %4134 = vmatpush.xpose.msra.mxu0 0.0
      %4135 = vmatpush.xpose.msra.mxu0 0.0
      %4136 = vmatpush.xpose.msra.mxu0 0.0
      %4137 = vmatpush.xpose.msra.mxu0 %v4120
      %4138 = vmatmul.f32.gmra.mxu0 %v4117
      %v4139 = vpop.f32.mrf.mxu0
      %v4140 = vadd.f32 0.0, %v4139
      %4141 = vdwg.mxu0
      %v4143 = vsel %vm384, %v2498, 0
      %v4146 = vsel %vm384, %v2870, 0
      %4148 = vmatpush.xpose.msra.mxu0 0.0
      %4149 = vmatpush.xpose.msra.mxu0 0.0
      %4150 = vmatpush.xpose.msra.mxu0 0.0
      %4151 = vmatpush.xpose.msra.mxu0 0.0
      %4152 = vmatpush.xpose.msra.mxu0 0.0
      %4153 = vmatpush.xpose.msra.mxu0 0.0
      %4154 = vmatpush.xpose.msra.mxu0 0.0
      %4155 = vmatpush.xpose.msra.mxu0 0.0
      %4156 = vmatpush.xpose.msra.mxu0 0.0
      %4157 = vmatpush.xpose.msra.mxu0 0.0
      %4158 = vmatpush.xpose.msra.mxu0 0.0
      %4159 = vmatpush.xpose.msra.mxu0 0.0
      %4160 = vmatpush.xpose.msra.mxu0 0.0
      %4161 = vmatpush.xpose.msra.mxu0 0.0
      %4162 = vmatpush.xpose.msra.mxu0 0.0
      %4163 = vmatpush.xpose.msra.mxu0 %v4146
      %4164 = vmatmul.f32.gmra.mxu0 %v4143
      %v4165 = vpop.f32.mrf.mxu0
      %v4166 = vadd.f32 0.0, %v4165
      %4167 = vdwg.mxu0
      %v4169 = vsel %vm384, %v2499, 0
      %v4172 = vsel %vm384, %v2873, 0
      %4174 = vmatpush.xpose.msra.mxu0 0.0
      %4175 = vmatpush.xpose.msra.mxu0 0.0
      %4176 = vmatpush.xpose.msra.mxu0 0.0
      %4177 = vmatpush.xpose.msra.mxu0 0.0
      %4178 = vmatpush.xpose.msra.mxu0 0.0
      %4179 = vmatpush.xpose.msra.mxu0 0.0
      %4180 = vmatpush.xpose.msra.mxu0 0.0
      %4181 = vmatpush.xpose.msra.mxu0 0.0
      %4182 = vmatpush.xpose.msra.mxu0 0.0
      %4183 = vmatpush.xpose.msra.mxu0 0.0
      %4184 = vmatpush.xpose.msra.mxu0 0.0
      %4185 = vmatpush.xpose.msra.mxu0 0.0
      %4186 = vmatpush.xpose.msra.mxu0 0.0
      %4187 = vmatpush.xpose.msra.mxu0 0.0
      %4188 = vmatpush.xpose.msra.mxu0 0.0
      %4189 = vmatpush.xpose.msra.mxu0 %v4172
      %4190 = vmatmul.f32.gmra.mxu0 %v4169
      %v4191 = vpop.f32.mrf.mxu0
      %v4192 = vadd.f32 0.0, %v4191
      %4193 = vdwg.mxu0
      %v4195 = vsel %vm384, %v2500, 0
      %v4198 = vsel %vm384, %v2876, 0
      %4200 = vmatpush.xpose.msra.mxu0 0.0
      %4201 = vmatpush.xpose.msra.mxu0 0.0
      %4202 = vmatpush.xpose.msra.mxu0 0.0
      %4203 = vmatpush.xpose.msra.mxu0 0.0
      %4204 = vmatpush.xpose.msra.mxu0 0.0
      %4205 = vmatpush.xpose.msra.mxu0 0.0
      %4206 = vmatpush.xpose.msra.mxu0 0.0
      %4207 = vmatpush.xpose.msra.mxu0 0.0
      %4208 = vmatpush.xpose.msra.mxu0 0.0
      %4209 = vmatpush.xpose.msra.mxu0 0.0
      %4210 = vmatpush.xpose.msra.mxu0 0.0
      %4211 = vmatpush.xpose.msra.mxu0 0.0
      %4212 = vmatpush.xpose.msra.mxu0 0.0
      %4213 = vmatpush.xpose.msra.mxu0 0.0
      %4214 = vmatpush.xpose.msra.mxu0 0.0
      %4215 = vmatpush.xpose.msra.mxu0 %v4198
      %4216 = vmatmul.f32.gmra.mxu0 %v4195
      %v4217 = vpop.f32.mrf.mxu0
      %v4218 = vadd.f32 0.0, %v4217
      %4219 = vdwg.mxu0
      %v4221 = vsel %vm384, %v2501, 0
      %v4224 = vsel %vm384, %v2879, 0
      %4226 = vmatpush.xpose.msra.mxu0 0.0
      %4227 = vmatpush.xpose.msra.mxu0 0.0
      %4228 = vmatpush.xpose.msra.mxu0 0.0
      %4229 = vmatpush.xpose.msra.mxu0 0.0
      %4230 = vmatpush.xpose.msra.mxu0 0.0
      %4231 = vmatpush.xpose.msra.mxu0 0.0
      %4232 = vmatpush.xpose.msra.mxu0 0.0
      %4233 = vmatpush.xpose.msra.mxu0 0.0
      %4234 = vmatpush.xpose.msra.mxu0 0.0
      %4235 = vmatpush.xpose.msra.mxu0 0.0
      %4236 = vmatpush.xpose.msra.mxu0 0.0
      %4237 = vmatpush.xpose.msra.mxu0 0.0
      %4238 = vmatpush.xpose.msra.mxu0 0.0
      %4239 = vmatpush.xpose.msra.mxu0 0.0
      %4240 = vmatpush.xpose.msra.mxu0 0.0
      %4241 = vmatpush.xpose.msra.mxu0 %v4224
      %4242 = vmatmul.f32.gmra.mxu0 %v4221
      %v4243 = vpop.f32.mrf.mxu0
      %v4244 = vadd.f32 0.0, %v4243
      %4245 = vdwg.mxu0
      %v4247 = vsel %vm384, %v2502, 0
      %v4250 = vsel %vm384, %v2882, 0
      %4252 = vmatpush.xpose.msra.mxu0 0.0
      %4253 = vmatpush.xpose.msra.mxu0 0.0
      %4254 = vmatpush.xpose.msra.mxu0 0.0
      %4255 = vmatpush.xpose.msra.mxu0 0.0
      %4256 = vmatpush.xpose.msra.mxu0 0.0
      %4257 = vmatpush.xpose.msra.mxu0 0.0
      %4258 = vmatpush.xpose.msra.mxu0 0.0
      %4259 = vmatpush.xpose.msra.mxu0 0.0
      %4260 = vmatpush.xpose.msra.mxu0 0.0
      %4261 = vmatpush.xpose.msra.mxu0 0.0
      %4262 = vmatpush.xpose.msra.mxu0 0.0
      %4263 = vmatpush.xpose.msra.mxu0 0.0
      %4264 = vmatpush.xpose.msra.mxu0 0.0
      %4265 = vmatpush.xpose.msra.mxu0 0.0
      %4266 = vmatpush.xpose.msra.mxu0 0.0
      %4267 = vmatpush.xpose.msra.mxu0 %v4250
      %4268 = vmatmul.f32.gmra.mxu0 %v4247
      %v4269 = vpop.f32.mrf.mxu0
      %v4270 = vadd.f32 0.0, %v4269
      %4271 = vdwg.mxu0
      %v4273 = vsel %vm384, %v2503, 0
      %v4276 = vsel %vm384, %v2885, 0
      %4278 = vmatpush.xpose.msra.mxu0 0.0
      %4279 = vmatpush.xpose.msra.mxu0 0.0
      %4280 = vmatpush.xpose.msra.mxu0 0.0
      %4281 = vmatpush.xpose.msra.mxu0 0.0
      %4282 = vmatpush.xpose.msra.mxu0 0.0
      %4283 = vmatpush.xpose.msra.mxu0 0.0
      %4284 = vmatpush.xpose.msra.mxu0 0.0
      %4285 = vmatpush.xpose.msra.mxu0 0.0
      %4286 = vmatpush.xpose.msra.mxu0 0.0
      %4287 = vmatpush.xpose.msra.mxu0 0.0
      %4288 = vmatpush.xpose.msra.mxu0 0.0
      %4289 = vmatpush.xpose.msra.mxu0 0.0
      %4290 = vmatpush.xpose.msra.mxu0 0.0
      %4291 = vmatpush.xpose.msra.mxu0 0.0
      %4292 = vmatpush.xpose.msra.mxu0 0.0
      %4293 = vmatpush.xpose.msra.mxu0 %v4276
      %4294 = vmatmul.f32.gmra.mxu0 %v4273
      %v4295 = vpop.f32.mrf.mxu0
      %v4296 = vadd.f32 0.0, %v4295
      %4297 = vdwg.mxu0
      %v4299 = vsel %vm384, %v2504, 0
      %v4302 = vsel %vm384, %v2888, 0
      %4304 = vmatpush.xpose.msra.mxu0 0.0
      %4305 = vmatpush.xpose.msra.mxu0 0.0
      %4306 = vmatpush.xpose.msra.mxu0 0.0
      %4307 = vmatpush.xpose.msra.mxu0 0.0
      %4308 = vmatpush.xpose.msra.mxu0 0.0
      %4309 = vmatpush.xpose.msra.mxu0 0.0
      %4310 = vmatpush.xpose.msra.mxu0 0.0
      %4311 = vmatpush.xpose.msra.mxu0 0.0
      %4312 = vmatpush.xpose.msra.mxu0 0.0
      %4313 = vmatpush.xpose.msra.mxu0 0.0
      %4314 = vmatpush.xpose.msra.mxu0 0.0
      %4315 = vmatpush.xpose.msra.mxu0 0.0
      %4316 = vmatpush.xpose.msra.mxu0 0.0
      %4317 = vmatpush.xpose.msra.mxu0 0.0
      %4318 = vmatpush.xpose.msra.mxu0 0.0
      %4319 = vmatpush.xpose.msra.mxu0 %v4302
      %4320 = vmatmul.f32.gmra.mxu0 %v4299
      %v4321 = vpop.f32.mrf.mxu0
      %v4322 = vadd.f32 0.0, %v4321
      %4323 = vdwg.mxu0
      %v4325 = vsel %vm384, %v2505, 0
      %v4328 = vsel %vm384, %v2891, 0
      %4330 = vmatpush.xpose.msra.mxu0 0.0
      %4331 = vmatpush.xpose.msra.mxu0 0.0
      %4332 = vmatpush.xpose.msra.mxu0 0.0
      %4333 = vmatpush.xpose.msra.mxu0 0.0
      %4334 = vmatpush.xpose.msra.mxu0 0.0
      %4335 = vmatpush.xpose.msra.mxu0 0.0
      %4336 = vmatpush.xpose.msra.mxu0 0.0
      %4337 = vmatpush.xpose.msra.mxu0 0.0
      %4338 = vmatpush.xpose.msra.mxu0 0.0
      %4339 = vmatpush.xpose.msra.mxu0 0.0
      %4340 = vmatpush.xpose.msra.mxu0 0.0
      %4341 = vmatpush.xpose.msra.mxu0 0.0
      %4342 = vmatpush.xpose.msra.mxu0 0.0
      %4343 = vmatpush.xpose.msra.mxu0 0.0
      %4344 = vmatpush.xpose.msra.mxu0 0.0
      %4345 = vmatpush.xpose.msra.mxu0 %v4328
      %4346 = vmatmul.f32.gmra.mxu0 %v4325
      %v4347 = vpop.f32.mrf.mxu0
      %v4348 = vadd.f32 0.0, %v4347
      %4349 = vdwg.mxu0
      %v4351 = vsel %vm384, %v2506, 0
      %v4354 = vsel %vm384, %v2894, 0
      %4356 = vmatpush.xpose.msra.mxu0 0.0
      %4357 = vmatpush.xpose.msra.mxu0 0.0
      %4358 = vmatpush.xpose.msra.mxu0 0.0
      %4359 = vmatpush.xpose.msra.mxu0 0.0
      %4360 = vmatpush.xpose.msra.mxu0 0.0
      %4361 = vmatpush.xpose.msra.mxu0 0.0
      %4362 = vmatpush.xpose.msra.mxu0 0.0
      %4363 = vmatpush.xpose.msra.mxu0 0.0
      %4364 = vmatpush.xpose.msra.mxu0 0.0
      %4365 = vmatpush.xpose.msra.mxu0 0.0
      %4366 = vmatpush.xpose.msra.mxu0 0.0
      %4367 = vmatpush.xpose.msra.mxu0 0.0
      %4368 = vmatpush.xpose.msra.mxu0 0.0
      %4369 = vmatpush.xpose.msra.mxu0 0.0
      %4370 = vmatpush.xpose.msra.mxu0 0.0
      %4371 = vmatpush.xpose.msra.mxu0 %v4354
      %4372 = vmatmul.f32.gmra.mxu0 %v4351
      %v4373 = vpop.f32.mrf.mxu0
      %v4374 = vadd.f32 0.0, %v4373
      %4375 = vdwg.mxu0
      %v4377 = vsel %vm384, %v2507, 0
      %v4380 = vsel %vm384, %v2897, 0
      %4382 = vmatpush.xpose.msra.mxu0 0.0
      %4383 = vmatpush.xpose.msra.mxu0 0.0
      %4384 = vmatpush.xpose.msra.mxu0 0.0
      %4385 = vmatpush.xpose.msra.mxu0 0.0
      %4386 = vmatpush.xpose.msra.mxu0 0.0
      %4387 = vmatpush.xpose.msra.mxu0 0.0
      %4388 = vmatpush.xpose.msra.mxu0 0.0
      %4389 = vmatpush.xpose.msra.mxu0 0.0
      %4390 = vmatpush.xpose.msra.mxu0 0.0
      %4391 = vmatpush.xpose.msra.mxu0 0.0
      %4392 = vmatpush.xpose.msra.mxu0 0.0
      %4393 = vmatpush.xpose.msra.mxu0 0.0
      %4394 = vmatpush.xpose.msra.mxu0 0.0
      %4395 = vmatpush.xpose.msra.mxu0 0.0
      %4396 = vmatpush.xpose.msra.mxu0 0.0
      %4397 = vmatpush.xpose.msra.mxu0 %v4380
      %4398 = vmatmul.f32.gmra.mxu0 %v4377
      %v4399 = vpop.f32.mrf.mxu0
      %v4400 = vadd.f32 0.0, %v4399
      %4401 = vdwg.mxu0
      %v4403 = vsel %vm384, %v2508, 0
      %v4406 = vsel %vm384, %v2900, 0
      %4408 = vmatpush.xpose.msra.mxu0 0.0
      %4409 = vmatpush.xpose.msra.mxu0 0.0
      %4410 = vmatpush.xpose.msra.mxu0 0.0
      %4411 = vmatpush.xpose.msra.mxu0 0.0
      %4412 = vmatpush.xpose.msra.mxu0 0.0
      %4413 = vmatpush.xpose.msra.mxu0 0.0
      %4414 = vmatpush.xpose.msra.mxu0 0.0
      %4415 = vmatpush.xpose.msra.mxu0 0.0
      %4416 = vmatpush.xpose.msra.mxu0 0.0
      %4417 = vmatpush.xpose.msra.mxu0 0.0
      %4418 = vmatpush.xpose.msra.mxu0 0.0
      %4419 = vmatpush.xpose.msra.mxu0 0.0
      %4420 = vmatpush.xpose.msra.mxu0 0.0
      %4421 = vmatpush.xpose.msra.mxu0 0.0
      %4422 = vmatpush.xpose.msra.mxu0 0.0
      %4423 = vmatpush.xpose.msra.mxu0 %v4406
      %4424 = vmatmul.f32.gmra.mxu0 %v4403
      %v4425 = vpop.f32.mrf.mxu0
      %v4426 = vadd.f32 0.0, %v4425
      %4427 = vdwg.mxu0
      %v4429 = vsel %vm384, %v2509, 0
      %v4432 = vsel %vm384, %v2903, 0
      %4434 = vmatpush.xpose.msra.mxu0 0.0
      %4435 = vmatpush.xpose.msra.mxu0 0.0
      %4436 = vmatpush.xpose.msra.mxu0 0.0
      %4437 = vmatpush.xpose.msra.mxu0 0.0
      %4438 = vmatpush.xpose.msra.mxu0 0.0
      %4439 = vmatpush.xpose.msra.mxu0 0.0
      %4440 = vmatpush.xpose.msra.mxu0 0.0
      %4441 = vmatpush.xpose.msra.mxu0 0.0
      %4442 = vmatpush.xpose.msra.mxu0 0.0
      %4443 = vmatpush.xpose.msra.mxu0 0.0
      %4444 = vmatpush.xpose.msra.mxu0 0.0
      %4445 = vmatpush.xpose.msra.mxu0 0.0
      %4446 = vmatpush.xpose.msra.mxu0 0.0
      %4447 = vmatpush.xpose.msra.mxu0 0.0
      %4448 = vmatpush.xpose.msra.mxu0 0.0
      %4449 = vmatpush.xpose.msra.mxu0 %v4432
      %4450 = vmatmul.f32.gmra.mxu0 %v4429
      %v4451 = vpop.f32.mrf.mxu0
      %v4452 = vadd.f32 0.0, %v4451
      %4453 = vdwg.mxu0
      %v4455 = vsel %vm384, %v2510, 0
      %v4458 = vsel %vm384, %v2906, 0
      %4460 = vmatpush.xpose.msra.mxu0 0.0
      %4461 = vmatpush.xpose.msra.mxu0 0.0
      %4462 = vmatpush.xpose.msra.mxu0 0.0
      %4463 = vmatpush.xpose.msra.mxu0 0.0
      %4464 = vmatpush.xpose.msra.mxu0 0.0
      %4465 = vmatpush.xpose.msra.mxu0 0.0
      %4466 = vmatpush.xpose.msra.mxu0 0.0
      %4467 = vmatpush.xpose.msra.mxu0 0.0
      %4468 = vmatpush.xpose.msra.mxu0 0.0
      %4469 = vmatpush.xpose.msra.mxu0 0.0
      %4470 = vmatpush.xpose.msra.mxu0 0.0
      %4471 = vmatpush.xpose.msra.mxu0 0.0
      %4472 = vmatpush.xpose.msra.mxu0 0.0
      %4473 = vmatpush.xpose.msra.mxu0 0.0
      %4474 = vmatpush.xpose.msra.mxu0 0.0
      %4475 = vmatpush.xpose.msra.mxu0 %v4458
      %4476 = vmatmul.f32.gmra.mxu0 %v4455
      %v4477 = vpop.f32.mrf.mxu0
      %v4478 = vadd.f32 0.0, %v4477
      %4479 = vdwg.mxu0
      %v4481 = vsel %vm384, %v2511, 0
      %v4484 = vsel %vm384, %v2909, 0
      %4486 = vmatpush.xpose.msra.mxu0 0.0
      %4487 = vmatpush.xpose.msra.mxu0 0.0
      %4488 = vmatpush.xpose.msra.mxu0 0.0
      %4489 = vmatpush.xpose.msra.mxu0 0.0
      %4490 = vmatpush.xpose.msra.mxu0 0.0
      %4491 = vmatpush.xpose.msra.mxu0 0.0
      %4492 = vmatpush.xpose.msra.mxu0 0.0
      %4493 = vmatpush.xpose.msra.mxu0 0.0
      %4494 = vmatpush.xpose.msra.mxu0 0.0
      %4495 = vmatpush.xpose.msra.mxu0 0.0
      %4496 = vmatpush.xpose.msra.mxu0 0.0
      %4497 = vmatpush.xpose.msra.mxu0 0.0
      %4498 = vmatpush.xpose.msra.mxu0 0.0
      %4499 = vmatpush.xpose.msra.mxu0 0.0
      %4500 = vmatpush.xpose.msra.mxu0 0.0
      %4501 = vmatpush.xpose.msra.mxu0 %v4484
      %4502 = vmatmul.f32.gmra.mxu0 %v4481
      %v4503 = vpop.f32.mrf.mxu0
      %v4504 = vadd.f32 0.0, %v4503
      %4505 = vdwg.mxu0
      %v4507 = vsel %vm384, %v2512, 0
      %v4510 = vsel %vm384, %v2912, 0
      %4512 = vmatpush.xpose.msra.mxu0 0.0
      %4513 = vmatpush.xpose.msra.mxu0 0.0
      %4514 = vmatpush.xpose.msra.mxu0 0.0
      %4515 = vmatpush.xpose.msra.mxu0 0.0
      %4516 = vmatpush.xpose.msra.mxu0 0.0
      %4517 = vmatpush.xpose.msra.mxu0 0.0
      %4518 = vmatpush.xpose.msra.mxu0 0.0
      %4519 = vmatpush.xpose.msra.mxu0 0.0
      %4520 = vmatpush.xpose.msra.mxu0 0.0
      %4521 = vmatpush.xpose.msra.mxu0 0.0
      %4522 = vmatpush.xpose.msra.mxu0 0.0
      %4523 = vmatpush.xpose.msra.mxu0 0.0
      %4524 = vmatpush.xpose.msra.mxu0 0.0
      %4525 = vmatpush.xpose.msra.mxu0 0.0
      %4526 = vmatpush.xpose.msra.mxu0 0.0
      %4527 = vmatpush.xpose.msra.mxu0 %v4510
      %4528 = vmatmul.f32.gmra.mxu0 %v4507
      %v4529 = vpop.f32.mrf.mxu0
      %v4530 = vadd.f32 0.0, %v4529
      %4531 = vdwg.mxu0
      %v4533 = vsel %vm384, %v2513, 0
      %v4536 = vsel %vm384, %v2915, 0
      %4538 = vmatpush.xpose.msra.mxu0 0.0
      %4539 = vmatpush.xpose.msra.mxu0 0.0
      %4540 = vmatpush.xpose.msra.mxu0 0.0
      %4541 = vmatpush.xpose.msra.mxu0 0.0
      %4542 = vmatpush.xpose.msra.mxu0 0.0
      %4543 = vmatpush.xpose.msra.mxu0 0.0
      %4544 = vmatpush.xpose.msra.mxu0 0.0
      %4545 = vmatpush.xpose.msra.mxu0 0.0
      %4546 = vmatpush.xpose.msra.mxu0 0.0
      %4547 = vmatpush.xpose.msra.mxu0 0.0
      %4548 = vmatpush.xpose.msra.mxu0 0.0
      %4549 = vmatpush.xpose.msra.mxu0 0.0
      %4550 = vmatpush.xpose.msra.mxu0 0.0
      %4551 = vmatpush.xpose.msra.mxu0 0.0
      %4552 = vmatpush.xpose.msra.mxu0 0.0
      %4553 = vmatpush.xpose.msra.mxu0 %v4536
      %4554 = vmatmul.f32.gmra.mxu0 %v4533
      %v4555 = vpop.f32.mrf.mxu0
      %v4556 = vadd.f32 0.0, %v4555
      %4557 = vdwg.mxu0
      %v4559 = vsel %vm384, %v2514, 0
      %v4562 = vsel %vm384, %v2918, 0
      %4564 = vmatpush.xpose.msra.mxu0 0.0
      %4565 = vmatpush.xpose.msra.mxu0 0.0
      %4566 = vmatpush.xpose.msra.mxu0 0.0
      %4567 = vmatpush.xpose.msra.mxu0 0.0
      %4568 = vmatpush.xpose.msra.mxu0 0.0
      %4569 = vmatpush.xpose.msra.mxu0 0.0
      %4570 = vmatpush.xpose.msra.mxu0 0.0
      %4571 = vmatpush.xpose.msra.mxu0 0.0
      %4572 = vmatpush.xpose.msra.mxu0 0.0
      %4573 = vmatpush.xpose.msra.mxu0 0.0
      %4574 = vmatpush.xpose.msra.mxu0 0.0
      %4575 = vmatpush.xpose.msra.mxu0 0.0
      %4576 = vmatpush.xpose.msra.mxu0 0.0
      %4577 = vmatpush.xpose.msra.mxu0 0.0
      %4578 = vmatpush.xpose.msra.mxu0 0.0
      %4579 = vmatpush.xpose.msra.mxu0 %v4562
      %4580 = vmatmul.f32.gmra.mxu0 %v4559
      %v4581 = vpop.f32.mrf.mxu0
      %v4582 = vadd.f32 0.0, %v4581
      %4583 = vdwg.mxu0
      %v4584 = vsel %vm384, %v2944, -inf
      %4585 = vmax.xlane.f32.xlu0 %v4584
      %v4586 = vpop.xlane.xlu0 %4585
      %v4587 = vsel %vm384, %v2970, -inf
      %4588 = vmax.xlane.f32.xlu0 %v4587
      %v4589 = vpop.xlane.xlu0 %4588
      %v4590 = vsel %vm384, %v2996, -inf
      %4591 = vmax.xlane.f32.xlu0 %v4590
      %v4592 = vpop.xlane.xlu0 %4591
      %v4593 = vsel %vm384, %v3022, -inf
      %4594 = vmax.xlane.f32.xlu0 %v4593
      %v4595 = vpop.xlane.xlu0 %4594
      %v4596 = vsel %vm384, %v3048, -inf
      %4597 = vmax.xlane.f32.xlu0 %v4596
      %v4598 = vpop.xlane.xlu0 %4597
      %v4599 = vsel %vm384, %v3074, -inf
      %4600 = vmax.xlane.f32.xlu0 %v4599
      %v4601 = vpop.xlane.xlu0 %4600
      %v4602 = vsel %vm384, %v3100, -inf
      %4603 = vmax.xlane.f32.xlu0 %v4602
      %v4604 = vpop.xlane.xlu0 %4603
      %v4605 = vsel %vm384, %v3126, -inf
      %4606 = vmax.xlane.f32.xlu0 %v4605
      %v4607 = vpop.xlane.xlu0 %4606
      %v4608 = vsel %vm384, %v3152, -inf
      %4609 = vmax.xlane.f32.xlu0 %v4608
      %v4610 = vpop.xlane.xlu0 %4609
      %v4611 = vsel %vm384, %v3178, -inf
      %4612 = vmax.xlane.f32.xlu0 %v4611
      %v4613 = vpop.xlane.xlu0 %4612
      %v4614 = vsel %vm384, %v3204, -inf
      %4615 = vmax.xlane.f32.xlu0 %v4614
      %v4616 = vpop.xlane.xlu0 %4615
      %v4617 = vsel %vm384, %v3230, -inf
      %4618 = vmax.xlane.f32.xlu0 %v4617
      %v4619 = vpop.xlane.xlu0 %4618
      %v4620 = vsel %vm384, %v3256, -inf
      %4621 = vmax.xlane.f32.xlu0 %v4620
      %v4622 = vpop.xlane.xlu0 %4621
      %v4623 = vsel %vm384, %v3282, -inf
      %4624 = vmax.xlane.f32.xlu0 %v4623
      %v4625 = vpop.xlane.xlu0 %4624
      %v4626 = vsel %vm384, %v3308, -inf
      %4627 = vmax.xlane.f32.xlu0 %v4626
      %v4628 = vpop.xlane.xlu0 %4627
      %v4629 = vsel %vm384, %v3334, -inf
      %4630 = vmax.xlane.f32.xlu0 %v4629
      %v4631 = vpop.xlane.xlu0 %4630
      %v4632 = vsel %vm384, %v3360, -inf
      %4633 = vmax.xlane.f32.xlu0 %v4632
      %v4634 = vpop.xlane.xlu0 %4633
      %v4635 = vsel %vm384, %v3386, -inf
      %4636 = vmax.xlane.f32.xlu0 %v4635
      %v4637 = vpop.xlane.xlu0 %4636
      %v4638 = vsel %vm384, %v3412, -inf
      %4639 = vmax.xlane.f32.xlu0 %v4638
      %v4640 = vpop.xlane.xlu0 %4639
      %v4641 = vsel %vm384, %v3438, -inf
      %4642 = vmax.xlane.f32.xlu0 %v4641
      %v4643 = vpop.xlane.xlu0 %4642
      %v4644 = vsel %vm384, %v3464, -inf
      %4645 = vmax.xlane.f32.xlu0 %v4644
      %v4646 = vpop.xlane.xlu0 %4645
      %v4647 = vsel %vm384, %v3490, -inf
      %4648 = vmax.xlane.f32.xlu0 %v4647
      %v4649 = vpop.xlane.xlu0 %4648
      %v4650 = vsel %vm384, %v3516, -inf
      %4651 = vmax.xlane.f32.xlu0 %v4650
      %v4652 = vpop.xlane.xlu0 %4651
      %v4653 = vsel %vm384, %v3542, -inf
      %4654 = vmax.xlane.f32.xlu0 %v4653
      %v4655 = vpop.xlane.xlu0 %4654
      %v4656 = vsel %vm384, %v3568, -inf
      %4657 = vmax.xlane.f32.xlu0 %v4656
      %v4658 = vpop.xlane.xlu0 %4657
      %v4659 = vsel %vm384, %v3594, -inf
      %4660 = vmax.xlane.f32.xlu0 %v4659
      %v4661 = vpop.xlane.xlu0 %4660
      %v4662 = vsel %vm384, %v3620, -inf
      %4663 = vmax.xlane.f32.xlu0 %v4662
      %v4664 = vpop.xlane.xlu0 %4663
      %v4665 = vsel %vm384, %v3646, -inf
      %4666 = vmax.xlane.f32.xlu0 %v4665
      %v4667 = vpop.xlane.xlu0 %4666
      %v4668 = vsel %vm384, %v3672, -inf
      %4669 = vmax.xlane.f32.xlu0 %v4668
      %v4670 = vpop.xlane.xlu0 %4669
      %v4671 = vsel %vm384, %v3698, -inf
      %4672 = vmax.xlane.f32.xlu0 %v4671
      %v4673 = vpop.xlane.xlu0 %4672
      %v4674 = vsel %vm384, %v3724, -inf
      %4675 = vmax.xlane.f32.xlu0 %v4674
      %v4676 = vpop.xlane.xlu0 %4675
      %v4677 = vsel %vm384, %v3750, -inf
      %4678 = vmax.xlane.f32.xlu0 %v4677
      %v4679 = vpop.xlane.xlu0 %4678
      %v4680 = vsel %vm384, %v3776, -inf
      %4681 = vmax.xlane.f32.xlu0 %v4680
      %v4682 = vpop.xlane.xlu0 %4681
      %v4683 = vsel %vm384, %v3802, -inf
      %4684 = vmax.xlane.f32.xlu0 %v4683
      %v4685 = vpop.xlane.xlu0 %4684
      %v4686 = vsel %vm384, %v3828, -inf
      %4687 = vmax.xlane.f32.xlu0 %v4686
      %v4688 = vpop.xlane.xlu0 %4687
      %v4689 = vsel %vm384, %v3854, -inf
      %4690 = vmax.xlane.f32.xlu0 %v4689
      %v4691 = vpop.xlane.xlu0 %4690
      %v4692 = vsel %vm384, %v3880, -inf
      %4693 = vmax.xlane.f32.xlu0 %v4692
      %v4694 = vpop.xlane.xlu0 %4693
      %v4695 = vsel %vm384, %v3906, -inf
      %4696 = vmax.xlane.f32.xlu0 %v4695
      %v4697 = vpop.xlane.xlu0 %4696
      %v4698 = vsel %vm384, %v3932, -inf
      %4699 = vmax.xlane.f32.xlu0 %v4698
      %v4700 = vpop.xlane.xlu0 %4699
      %v4701 = vsel %vm384, %v3958, -inf
      %4702 = vmax.xlane.f32.xlu0 %v4701
      %v4703 = vpop.xlane.xlu0 %4702
      %v4704 = vsel %vm384, %v3984, -inf
      %4705 = vmax.xlane.f32.xlu0 %v4704
      %v4706 = vpop.xlane.xlu0 %4705
      %v4707 = vsel %vm384, %v4010, -inf
      %4708 = vmax.xlane.f32.xlu0 %v4707
      %v4709 = vpop.xlane.xlu0 %4708
      %v4710 = vsel %vm384, %v4036, -inf
      %4711 = vmax.xlane.f32.xlu0 %v4710
      %v4712 = vpop.xlane.xlu0 %4711
      %v4713 = vsel %vm384, %v4062, -inf
      %4714 = vmax.xlane.f32.xlu0 %v4713
      %v4715 = vpop.xlane.xlu0 %4714
      %v4716 = vsel %vm384, %v4088, -inf
      %4717 = vmax.xlane.f32.xlu0 %v4716
      %v4718 = vpop.xlane.xlu0 %4717
      %v4719 = vsel %vm384, %v4114, -inf
      %4720 = vmax.xlane.f32.xlu0 %v4719
      %v4721 = vpop.xlane.xlu0 %4720
      %v4722 = vsel %vm384, %v4140, -inf
      %4723 = vmax.xlane.f32.xlu0 %v4722
      %v4724 = vpop.xlane.xlu0 %4723
      %v4725 = vsel %vm384, %v4166, -inf
      %4726 = vmax.xlane.f32.xlu0 %v4725
      %v4727 = vpop.xlane.xlu0 %4726
      %v4728 = vsel %vm384, %v4192, -inf
      %4729 = vmax.xlane.f32.xlu0 %v4728
      %v4730 = vpop.xlane.xlu0 %4729
      %v4731 = vsel %vm384, %v4218, -inf
      %4732 = vmax.xlane.f32.xlu0 %v4731
      %v4733 = vpop.xlane.xlu0 %4732
      %v4734 = vsel %vm384, %v4244, -inf
      %4735 = vmax.xlane.f32.xlu0 %v4734
      %v4736 = vpop.xlane.xlu0 %4735
      %v4737 = vsel %vm384, %v4270, -inf
      %4738 = vmax.xlane.f32.xlu0 %v4737
      %v4739 = vpop.xlane.xlu0 %4738
      %v4740 = vsel %vm384, %v4296, -inf
      %4741 = vmax.xlane.f32.xlu0 %v4740
      %v4742 = vpop.xlane.xlu0 %4741
      %v4743 = vsel %vm384, %v4322, -inf
      %4744 = vmax.xlane.f32.xlu0 %v4743
      %v4745 = vpop.xlane.xlu0 %4744
      %v4746 = vsel %vm384, %v4348, -inf
      %4747 = vmax.xlane.f32.xlu0 %v4746
      %v4748 = vpop.xlane.xlu0 %4747
      %v4749 = vsel %vm384, %v4374, -inf
      %4750 = vmax.xlane.f32.xlu0 %v4749
      %v4751 = vpop.xlane.xlu0 %4750
      %v4752 = vsel %vm384, %v4400, -inf
      %4753 = vmax.xlane.f32.xlu0 %v4752
      %v4754 = vpop.xlane.xlu0 %4753
      %v4755 = vsel %vm384, %v4426, -inf
      %4756 = vmax.xlane.f32.xlu0 %v4755
      %v4757 = vpop.xlane.xlu0 %4756
      %v4758 = vsel %vm384, %v4452, -inf
      %4759 = vmax.xlane.f32.xlu0 %v4758
      %v4760 = vpop.xlane.xlu0 %4759
      %v4761 = vsel %vm384, %v4478, -inf
      %4762 = vmax.xlane.f32.xlu0 %v4761
      %v4763 = vpop.xlane.xlu0 %4762
      %v4764 = vsel %vm384, %v4504, -inf
      %4765 = vmax.xlane.f32.xlu0 %v4764
      %v4766 = vpop.xlane.xlu0 %4765
      %v4767 = vsel %vm384, %v4530, -inf
      %4768 = vmax.xlane.f32.xlu0 %v4767
      %v4769 = vpop.xlane.xlu0 %4768
      %v4770 = vsel %vm384, %v4556, -inf
      %4771 = vmax.xlane.f32.xlu0 %v4770
      %v4772 = vpop.xlane.xlu0 %4771
      %v4773 = vsel %vm384, %v4582, -inf
      %4774 = vmax.xlane.f32.xlu0 %v4773
      %v4775 = vpop.xlane.xlu0 %4774
      %v4776 = vsub.f32 %v2944, %v4586
      %v4777 = vsub.f32 %v2970, %v4589
      %v4778 = vsub.f32 %v2996, %v4592
      %v4779 = vsub.f32 %v3022, %v4595
      %v4780 = vsub.f32 %v3048, %v4598
      %v4781 = vsub.f32 %v3074, %v4601
      %v4782 = vsub.f32 %v3100, %v4604
      %v4783 = vsub.f32 %v3126, %v4607
      %v4784 = vsub.f32 %v3152, %v4610
      %v4785 = vsub.f32 %v3178, %v4613
      %v4786 = vsub.f32 %v3204, %v4616
      %v4787 = vsub.f32 %v3230, %v4619
      %v4788 = vsub.f32 %v3256, %v4622
      %v4789 = vsub.f32 %v3282, %v4625
      %v4790 = vsub.f32 %v3308, %v4628
      %v4791 = vsub.f32 %v3334, %v4631
      %v4792 = vsub.f32 %v3360, %v4634
      %v4793 = vsub.f32 %v3386, %v4637
      %v4794 = vsub.f32 %v3412, %v4640
      %v4795 = vsub.f32 %v3438, %v4643
      %v4796 = vsub.f32 %v3464, %v4646
      %v4797 = vsub.f32 %v3490, %v4649
      %v4798 = vsub.f32 %v3516, %v4652
      %v4799 = vsub.f32 %v3542, %v4655
      %v4800 = vsub.f32 %v3568, %v4658
      %v4801 = vsub.f32 %v3594, %v4661
      %v4802 = vsub.f32 %v3620, %v4664
      %v4803 = vsub.f32 %v3646, %v4667
      %v4804 = vsub.f32 %v3672, %v4670
      %v4805 = vsub.f32 %v3698, %v4673
      %v4806 = vsub.f32 %v3724, %v4676
      %v4807 = vsub.f32 %v3750, %v4679
      %v4808 = vsub.f32 %v3776, %v4682
      %v4809 = vsub.f32 %v3802, %v4685
      %v4810 = vsub.f32 %v3828, %v4688
      %v4811 = vsub.f32 %v3854, %v4691
      %v4812 = vsub.f32 %v3880, %v4694
      %v4813 = vsub.f32 %v3906, %v4697
      %v4814 = vsub.f32 %v3932, %v4700
      %v4815 = vsub.f32 %v3958, %v4703
      %v4816 = vsub.f32 %v3984, %v4706
      %v4817 = vsub.f32 %v4010, %v4709
      %v4818 = vsub.f32 %v4036, %v4712
      %v4819 = vsub.f32 %v4062, %v4715
      %v4820 = vsub.f32 %v4088, %v4718
      %v4821 = vsub.f32 %v4114, %v4721
      %v4822 = vsub.f32 %v4140, %v4724
      %v4823 = vsub.f32 %v4166, %v4727
      %v4824 = vsub.f32 %v4192, %v4730
      %v4825 = vsub.f32 %v4218, %v4733
      %v4826 = vsub.f32 %v4244, %v4736
      %v4827 = vsub.f32 %v4270, %v4739
      %v4828 = vsub.f32 %v4296, %v4742
      %v4829 = vsub.f32 %v4322, %v4745
      %v4830 = vsub.f32 %v4348, %v4748
      %v4831 = vsub.f32 %v4374, %v4751
      %v4832 = vsub.f32 %v4400, %v4754
      %v4833 = vsub.f32 %v4426, %v4757
      %v4834 = vsub.f32 %v4452, %v4760
      %v4835 = vsub.f32 %v4478, %v4763
      %v4836 = vsub.f32 %v4504, %v4766
      %v4837 = vsub.f32 %v4530, %v4769
      %v4838 = vsub.f32 %v4556, %v4772
      %v4839 = vsub.f32 %v4582, %v4775
      %v4840 = vmul.f32 %v4776, 1.442695
      %v4841 = vpow.pop %v4840
      %v4842 = vmul.f32 %v4777, 1.442695
      %v4843 = vpow.pop %v4842
      %v4844 = vmul.f32 %v4778, 1.442695
      %v4845 = vpow.pop %v4844
      %v4846 = vmul.f32 %v4779, 1.442695
      %v4847 = vpow.pop %v4846
      %v4848 = vmul.f32 %v4780, 1.442695
      %v4849 = vpow.pop %v4848
      %v4850 = vmul.f32 %v4781, 1.442695
      %v4851 = vpow.pop %v4850
      %v4852 = vmul.f32 %v4782, 1.442695
      %v4853 = vpow.pop %v4852
      %v4854 = vmul.f32 %v4783, 1.442695
      %v4855 = vpow.pop %v4854
      %v4856 = vmul.f32 %v4784, 1.442695
      %v4857 = vpow.pop %v4856
      %v4858 = vmul.f32 %v4785, 1.442695
      %v4859 = vpow.pop %v4858
      %v4860 = vmul.f32 %v4786, 1.442695
      %v4861 = vpow.pop %v4860
      %v4862 = vmul.f32 %v4787, 1.442695
      %v4863 = vpow.pop %v4862
      %v4864 = vmul.f32 %v4788, 1.442695
      %v4865 = vpow.pop %v4864
      %v4866 = vmul.f32 %v4789, 1.442695
      %v4867 = vpow.pop %v4866
      %v4868 = vmul.f32 %v4790, 1.442695
      %v4869 = vpow.pop %v4868
      %v4870 = vmul.f32 %v4791, 1.442695
      %v4871 = vpow.pop %v4870
      %v4872 = vmul.f32 %v4792, 1.442695
      %v4873 = vpow.pop %v4872
      %v4874 = vmul.f32 %v4793, 1.442695
      %v4875 = vpow.pop %v4874
      %v4876 = vmul.f32 %v4794, 1.442695
      %v4877 = vpow.pop %v4876
      %v4878 = vmul.f32 %v4795, 1.442695
      %v4879 = vpow.pop %v4878
      %v4880 = vmul.f32 %v4796, 1.442695
      %v4881 = vpow.pop %v4880
      %v4882 = vmul.f32 %v4797, 1.442695
      %v4883 = vpow.pop %v4882
      %v4884 = vmul.f32 %v4798, 1.442695
      %v4885 = vpow.pop %v4884
      %v4886 = vmul.f32 %v4799, 1.442695
      %v4887 = vpow.pop %v4886
      %v4888 = vmul.f32 %v4800, 1.442695
      %v4889 = vpow.pop %v4888
      %v4890 = vmul.f32 %v4801, 1.442695
      %v4891 = vpow.pop %v4890
      %v4892 = vmul.f32 %v4802, 1.442695
      %v4893 = vpow.pop %v4892
      %v4894 = vmul.f32 %v4803, 1.442695
      %v4895 = vpow.pop %v4894
      %v4896 = vmul.f32 %v4804, 1.442695
      %v4897 = vpow.pop %v4896
      %v4898 = vmul.f32 %v4805, 1.442695
      %v4899 = vpow.pop %v4898
      %v4900 = vmul.f32 %v4806, 1.442695
      %v4901 = vpow.pop %v4900
      %v4902 = vmul.f32 %v4807, 1.442695
      %v4903 = vpow.pop %v4902
      %v4904 = vmul.f32 %v4808, 1.442695
      %v4905 = vpow.pop %v4904
      %v4906 = vmul.f32 %v4809, 1.442695
      %v4907 = vpow.pop %v4906
      %v4908 = vmul.f32 %v4810, 1.442695
      %v4909 = vpow.pop %v4908
      %v4910 = vmul.f32 %v4811, 1.442695
      %v4911 = vpow.pop %v4910
      %v4912 = vmul.f32 %v4812, 1.442695
      %v4913 = vpow.pop %v4912
      %v4914 = vmul.f32 %v4813, 1.442695
      %v4915 = vpow.pop %v4914
      %v4916 = vmul.f32 %v4814, 1.442695
      %v4917 = vpow.pop %v4916
      %v4918 = vmul.f32 %v4815, 1.442695
      %v4919 = vpow.pop %v4918
      %v4920 = vmul.f32 %v4816, 1.442695
      %v4921 = vpow.pop %v4920
      %v4922 = vmul.f32 %v4817, 1.442695
      %v4923 = vpow.pop %v4922
      %v4924 = vmul.f32 %v4818, 1.442695
      %v4925 = vpow.pop %v4924
      %v4926 = vmul.f32 %v4819, 1.442695
      %v4927 = vpow.pop %v4926
      %v4928 = vmul.f32 %v4820, 1.442695
      %v4929 = vpow.pop %v4928
      %v4930 = vmul.f32 %v4821, 1.442695
      %v4931 = vpow.pop %v4930
      %v4932 = vmul.f32 %v4822, 1.442695
      %v4933 = vpow.pop %v4932
      %v4934 = vmul.f32 %v4823, 1.442695
      %v4935 = vpow.pop %v4934
      %v4936 = vmul.f32 %v4824, 1.442695
      %v4937 = vpow.pop %v4936
      %v4938 = vmul.f32 %v4825, 1.442695
      %v4939 = vpow.pop %v4938
      %v4940 = vmul.f32 %v4826, 1.442695
      %v4941 = vpow.pop %v4940
      %v4942 = vmul.f32 %v4827, 1.442695
      %v4943 = vpow.pop %v4942
      %v4944 = vmul.f32 %v4828, 1.442695
      %v4945 = vpow.pop %v4944
      %v4946 = vmul.f32 %v4829, 1.442695
      %v4947 = vpow.pop %v4946
      %v4948 = vmul.f32 %v4830, 1.442695
      %v4949 = vpow.pop %v4948
      %v4950 = vmul.f32 %v4831, 1.442695
      %v4951 = vpow.pop %v4950
      %v4952 = vmul.f32 %v4832, 1.442695
      %v4953 = vpow.pop %v4952
      %v4954 = vmul.f32 %v4833, 1.442695
      %v4955 = vpow.pop %v4954
      %v4956 = vmul.f32 %v4834, 1.442695
      %v4957 = vpow.pop %v4956
      %v4958 = vmul.f32 %v4835, 1.442695
      %v4959 = vpow.pop %v4958
      %v4960 = vmul.f32 %v4836, 1.442695
      %v4961 = vpow.pop %v4960
      %v4962 = vmul.f32 %v4837, 1.442695
      %v4963 = vpow.pop %v4962
      %v4964 = vmul.f32 %v4838, 1.442695
      %v4965 = vpow.pop %v4964
      %v4966 = vmul.f32 %v4839, 1.442695
      %v4967 = vpow.pop %v4966
      %v4968 = vsel %vm384, %v4841, 0.0
      %4969 = vadd.xlane.f32.xlu0 %v4968
      %v4970 = vpop.xlane.xlu0 %4969
      %v4971 = vsel %vm384, %v4843, 0.0
      %4972 = vadd.xlane.f32.xlu0 %v4971
      %v4973 = vpop.xlane.xlu0 %4972
      %v4974 = vsel %vm384, %v4845, 0.0
      %4975 = vadd.xlane.f32.xlu0 %v4974
      %v4976 = vpop.xlane.xlu0 %4975
      %v4977 = vsel %vm384, %v4847, 0.0
      %4978 = vadd.xlane.f32.xlu0 %v4977
      %v4979 = vpop.xlane.xlu0 %4978
      %v4980 = vsel %vm384, %v4849, 0.0
      %4981 = vadd.xlane.f32.xlu0 %v4980
      %v4982 = vpop.xlane.xlu0 %4981
      %v4983 = vsel %vm384, %v4851, 0.0
      %4984 = vadd.xlane.f32.xlu0 %v4983
      %v4985 = vpop.xlane.xlu0 %4984
      %v4986 = vsel %vm384, %v4853, 0.0
      %4987 = vadd.xlane.f32.xlu0 %v4986
      %v4988 = vpop.xlane.xlu0 %4987
      %v4989 = vsel %vm384, %v4855, 0.0
      %4990 = vadd.xlane.f32.xlu0 %v4989
      %v4991 = vpop.xlane.xlu0 %4990
      %v4992 = vsel %vm384, %v4857, 0.0
      %4993 = vadd.xlane.f32.xlu0 %v4992
      %v4994 = vpop.xlane.xlu0 %4993
      %v4995 = vsel %vm384, %v4859, 0.0
      %4996 = vadd.xlane.f32.xlu0 %v4995
      %v4997 = vpop.xlane.xlu0 %4996
      %v4998 = vsel %vm384, %v4861, 0.0
      %4999 = vadd.xlane.f32.xlu0 %v4998
      %v5000 = vpop.xlane.xlu0 %4999
      %v5001 = vsel %vm384, %v4863, 0.0
      %5002 = vadd.xlane.f32.xlu0 %v5001
      %v5003 = vpop.xlane.xlu0 %5002
      %v5004 = vsel %vm384, %v4865, 0.0
      %5005 = vadd.xlane.f32.xlu0 %v5004
      %v5006 = vpop.xlane.xlu0 %5005
      %v5007 = vsel %vm384, %v4867, 0.0
      %5008 = vadd.xlane.f32.xlu0 %v5007
      %v5009 = vpop.xlane.xlu0 %5008
      %v5010 = vsel %vm384, %v4869, 0.0
      %5011 = vadd.xlane.f32.xlu0 %v5010
      %v5012 = vpop.xlane.xlu0 %5011
      %v5013 = vsel %vm384, %v4871, 0.0
      %5014 = vadd.xlane.f32.xlu0 %v5013
      %v5015 = vpop.xlane.xlu0 %5014
      %v5016 = vsel %vm384, %v4873, 0.0
      %5017 = vadd.xlane.f32.xlu0 %v5016
      %v5018 = vpop.xlane.xlu0 %5017
      %v5019 = vsel %vm384, %v4875, 0.0
      %5020 = vadd.xlane.f32.xlu0 %v5019
      %v5021 = vpop.xlane.xlu0 %5020
      %v5022 = vsel %vm384, %v4877, 0.0
      %5023 = vadd.xlane.f32.xlu0 %v5022
      %v5024 = vpop.xlane.xlu0 %5023
      %v5025 = vsel %vm384, %v4879, 0.0
      %5026 = vadd.xlane.f32.xlu0 %v5025
      %v5027 = vpop.xlane.xlu0 %5026
      %v5028 = vsel %vm384, %v4881, 0.0
      %5029 = vadd.xlane.f32.xlu0 %v5028
      %v5030 = vpop.xlane.xlu0 %5029
      %v5031 = vsel %vm384, %v4883, 0.0
      %5032 = vadd.xlane.f32.xlu0 %v5031
      %v5033 = vpop.xlane.xlu0 %5032
      %v5034 = vsel %vm384, %v4885, 0.0
      %5035 = vadd.xlane.f32.xlu0 %v5034
      %v5036 = vpop.xlane.xlu0 %5035
      %v5037 = vsel %vm384, %v4887, 0.0
      %5038 = vadd.xlane.f32.xlu0 %v5037
      %v5039 = vpop.xlane.xlu0 %5038
      %v5040 = vsel %vm384, %v4889, 0.0
      %5041 = vadd.xlane.f32.xlu0 %v5040
      %v5042 = vpop.xlane.xlu0 %5041
      %v5043 = vsel %vm384, %v4891, 0.0
      %5044 = vadd.xlane.f32.xlu0 %v5043
      %v5045 = vpop.xlane.xlu0 %5044
      %v5046 = vsel %vm384, %v4893, 0.0
      %5047 = vadd.xlane.f32.xlu0 %v5046
      %v5048 = vpop.xlane.xlu0 %5047
      %v5049 = vsel %vm384, %v4895, 0.0
      %5050 = vadd.xlane.f32.xlu0 %v5049
      %v5051 = vpop.xlane.xlu0 %5050
      %v5052 = vsel %vm384, %v4897, 0.0
      %5053 = vadd.xlane.f32.xlu0 %v5052
      %v5054 = vpop.xlane.xlu0 %5053
      %v5055 = vsel %vm384, %v4899, 0.0
      %5056 = vadd.xlane.f32.xlu0 %v5055
      %v5057 = vpop.xlane.xlu0 %5056
      %v5058 = vsel %vm384, %v4901, 0.0
      %5059 = vadd.xlane.f32.xlu0 %v5058
      %v5060 = vpop.xlane.xlu0 %5059
      %v5061 = vsel %vm384, %v4903, 0.0
      %5062 = vadd.xlane.f32.xlu0 %v5061
      %v5063 = vpop.xlane.xlu0 %5062
      %v5064 = vsel %vm384, %v4905, 0.0
      %5065 = vadd.xlane.f32.xlu0 %v5064
      %v5066 = vpop.xlane.xlu0 %5065
      %v5067 = vsel %vm384, %v4907, 0.0
      %5068 = vadd.xlane.f32.xlu0 %v5067
      %v5069 = vpop.xlane.xlu0 %5068
      %v5070 = vsel %vm384, %v4909, 0.0
      %5071 = vadd.xlane.f32.xlu0 %v5070
      %v5072 = vpop.xlane.xlu0 %5071
      %v5073 = vsel %vm384, %v4911, 0.0
      %5074 = vadd.xlane.f32.xlu0 %v5073
      %v5075 = vpop.xlane.xlu0 %5074
      %v5076 = vsel %vm384, %v4913, 0.0
      %5077 = vadd.xlane.f32.xlu0 %v5076
      %v5078 = vpop.xlane.xlu0 %5077
      %v5079 = vsel %vm384, %v4915, 0.0
      %5080 = vadd.xlane.f32.xlu0 %v5079
      %v5081 = vpop.xlane.xlu0 %5080
      %v5082 = vsel %vm384, %v4917, 0.0
      %5083 = vadd.xlane.f32.xlu0 %v5082
      %v5084 = vpop.xlane.xlu0 %5083
      %v5085 = vsel %vm384, %v4919, 0.0
      %5086 = vadd.xlane.f32.xlu0 %v5085
      %v5087 = vpop.xlane.xlu0 %5086
      %v5088 = vsel %vm384, %v4921, 0.0
      %5089 = vadd.xlane.f32.xlu0 %v5088
      %v5090 = vpop.xlane.xlu0 %5089
      %v5091 = vsel %vm384, %v4923, 0.0
      %5092 = vadd.xlane.f32.xlu0 %v5091
      %v5093 = vpop.xlane.xlu0 %5092
      %v5094 = vsel %vm384, %v4925, 0.0
      %5095 = vadd.xlane.f32.xlu0 %v5094
      %v5096 = vpop.xlane.xlu0 %5095
      %v5097 = vsel %vm384, %v4927, 0.0
      %5098 = vadd.xlane.f32.xlu0 %v5097
      %v5099 = vpop.xlane.xlu0 %5098
      %v5100 = vsel %vm384, %v4929, 0.0
      %5101 = vadd.xlane.f32.xlu0 %v5100
      %v5102 = vpop.xlane.xlu0 %5101
      %v5103 = vsel %vm384, %v4931, 0.0
      %5104 = vadd.xlane.f32.xlu0 %v5103
      %v5105 = vpop.xlane.xlu0 %5104
      %v5106 = vsel %vm384, %v4933, 0.0
      %5107 = vadd.xlane.f32.xlu0 %v5106
      %v5108 = vpop.xlane.xlu0 %5107
      %v5109 = vsel %vm384, %v4935, 0.0
      %5110 = vadd.xlane.f32.xlu0 %v5109
      %v5111 = vpop.xlane.xlu0 %5110
      %v5112 = vsel %vm384, %v4937, 0.0
      %5113 = vadd.xlane.f32.xlu0 %v5112
      %v5114 = vpop.xlane.xlu0 %5113
      %v5115 = vsel %vm384, %v4939, 0.0
      %5116 = vadd.xlane.f32.xlu0 %v5115
      %v5117 = vpop.xlane.xlu0 %5116
      %v5118 = vsel %vm384, %v4941, 0.0
      %5119 = vadd.xlane.f32.xlu0 %v5118
      %v5120 = vpop.xlane.xlu0 %5119
      %v5121 = vsel %vm384, %v4943, 0.0
      %5122 = vadd.xlane.f32.xlu0 %v5121
      %v5123 = vpop.xlane.xlu0 %5122
      %v5124 = vsel %vm384, %v4945, 0.0
      %5125 = vadd.xlane.f32.xlu0 %v5124
      %v5126 = vpop.xlane.xlu0 %5125
      %v5127 = vsel %vm384, %v4947, 0.0
      %5128 = vadd.xlane.f32.xlu0 %v5127
      %v5129 = vpop.xlane.xlu0 %5128
      %v5130 = vsel %vm384, %v4949, 0.0
      %5131 = vadd.xlane.f32.xlu0 %v5130
      %v5132 = vpop.xlane.xlu0 %5131
      %v5133 = vsel %vm384, %v4951, 0.0
      %5134 = vadd.xlane.f32.xlu0 %v5133
      %v5135 = vpop.xlane.xlu0 %5134
      %v5136 = vsel %vm384, %v4953, 0.0
      %5137 = vadd.xlane.f32.xlu0 %v5136
      %v5138 = vpop.xlane.xlu0 %5137
      %v5139 = vsel %vm384, %v4955, 0.0
      %5140 = vadd.xlane.f32.xlu0 %v5139
      %v5141 = vpop.xlane.xlu0 %5140
      %v5142 = vsel %vm384, %v4957, 0.0
      %5143 = vadd.xlane.f32.xlu0 %v5142
      %v5144 = vpop.xlane.xlu0 %5143
      %v5145 = vsel %vm384, %v4959, 0.0
      %5146 = vadd.xlane.f32.xlu0 %v5145
      %v5147 = vpop.xlane.xlu0 %5146
      %v5148 = vsel %vm384, %v4961, 0.0
      %5149 = vadd.xlane.f32.xlu0 %v5148
      %v5150 = vpop.xlane.xlu0 %5149
      %v5151 = vsel %vm384, %v4963, 0.0
      %5152 = vadd.xlane.f32.xlu0 %v5151
      %v5153 = vpop.xlane.xlu0 %5152
      %v5154 = vsel %vm384, %v4965, 0.0
      %5155 = vadd.xlane.f32.xlu0 %v5154
      %v5156 = vpop.xlane.xlu0 %5155
      %v5157 = vsel %vm384, %v4967, 0.0
      %5158 = vadd.xlane.f32.xlu0 %v5157
      %v5159 = vpop.xlane.xlu0 %5158
      %v5160 = vrcp.pop %v4970
      %v5161 = vmul.f32 %v4970, %v5160
      %v5162 = vsub.f32 1.0, %v5161
      %v5163 = vmul.f32 %v5160, %v5162
      %v5164 = vadd.f32 %v5160, %v5163
      %vm5165 = vweird.f32 %v4970
      %vm5166 = vweird.f32 %v5160
      %vm5167 = vmor %vm5165, %vm5166
      %v5168 = vsel %vm5167, %v5160, %v5164
      %v5169 = vand.u32 2147483647, %v4970
      %vm5170 = vcmp.eq.f32.partialorder %v5169, 8.507059e+37
      %v5171 = vand.u32 %v4970, 2147483648
      %v5172 = vor.u32 1.1754944e-38, %v5171
      %v5173 = vsel %vm5170, %v5172, %v5168
      %v5174 = vmul.f32 %v4841, %v5173
      %v5175 = vrcp.pop %v4973
      %v5176 = vmul.f32 %v4973, %v5175
      %v5177 = vsub.f32 1.0, %v5176
      %v5178 = vmul.f32 %v5175, %v5177
      %v5179 = vadd.f32 %v5175, %v5178
      %vm5180 = vweird.f32 %v4973
      %vm5181 = vweird.f32 %v5175
      %vm5182 = vmor %vm5180, %vm5181
      %v5183 = vsel %vm5182, %v5175, %v5179
      %v5184 = vand.u32 2147483647, %v4973
      %vm5185 = vcmp.eq.f32.partialorder %v5184, 8.507059e+37
      %v5186 = vand.u32 %v4973, 2147483648
      %v5187 = vor.u32 1.1754944e-38, %v5186
      %v5188 = vsel %vm5185, %v5187, %v5183
      %v5189 = vmul.f32 %v4843, %v5188
      %v5190 = vrcp.pop %v4976
      %v5191 = vmul.f32 %v4976, %v5190
      %v5192 = vsub.f32 1.0, %v5191
      %v5193 = vmul.f32 %v5190, %v5192
      %v5194 = vadd.f32 %v5190, %v5193
      %vm5195 = vweird.f32 %v4976
      %vm5196 = vweird.f32 %v5190
      %vm5197 = vmor %vm5195, %vm5196
      %v5198 = vsel %vm5197, %v5190, %v5194
      %v5199 = vand.u32 2147483647, %v4976
      %vm5200 = vcmp.eq.f32.partialorder %v5199, 8.507059e+37
      %v5201 = vand.u32 %v4976, 2147483648
      %v5202 = vor.u32 1.1754944e-38, %v5201
      %v5203 = vsel %vm5200, %v5202, %v5198
      %v5204 = vmul.f32 %v4845, %v5203
      %v5205 = vrcp.pop %v4979
      %v5206 = vmul.f32 %v4979, %v5205
      %v5207 = vsub.f32 1.0, %v5206
      %v5208 = vmul.f32 %v5205, %v5207
      %v5209 = vadd.f32 %v5205, %v5208
      %vm5210 = vweird.f32 %v4979
      %vm5211 = vweird.f32 %v5205
      %vm5212 = vmor %vm5210, %vm5211
      %v5213 = vsel %vm5212, %v5205, %v5209
      %v5214 = vand.u32 2147483647, %v4979
      %vm5215 = vcmp.eq.f32.partialorder %v5214, 8.507059e+37
      %v5216 = vand.u32 %v4979, 2147483648
      %v5217 = vor.u32 1.1754944e-38, %v5216
      %v5218 = vsel %vm5215, %v5217, %v5213
      %v5219 = vmul.f32 %v4847, %v5218
      %v5220 = vrcp.pop %v4982
      %v5221 = vmul.f32 %v4982, %v5220
      %v5222 = vsub.f32 1.0, %v5221
      %v5223 = vmul.f32 %v5220, %v5222
      %v5224 = vadd.f32 %v5220, %v5223
      %vm5225 = vweird.f32 %v4982
      %vm5226 = vweird.f32 %v5220
      %vm5227 = vmor %vm5225, %vm5226
      %v5228 = vsel %vm5227, %v5220, %v5224
      %v5229 = vand.u32 2147483647, %v4982
      %vm5230 = vcmp.eq.f32.partialorder %v5229, 8.507059e+37
      %v5231 = vand.u32 %v4982, 2147483648
      %v5232 = vor.u32 1.1754944e-38, %v5231
      %v5233 = vsel %vm5230, %v5232, %v5228
      %v5234 = vmul.f32 %v4849, %v5233
      %v5235 = vrcp.pop %v4985
      %v5236 = vmul.f32 %v4985, %v5235
      %v5237 = vsub.f32 1.0, %v5236
      %v5238 = vmul.f32 %v5235, %v5237
      %v5239 = vadd.f32 %v5235, %v5238
      %vm5240 = vweird.f32 %v4985
      %vm5241 = vweird.f32 %v5235
      %vm5242 = vmor %vm5240, %vm5241
      %v5243 = vsel %vm5242, %v5235, %v5239
      %v5244 = vand.u32 2147483647, %v4985
      %vm5245 = vcmp.eq.f32.partialorder %v5244, 8.507059e+37
      %v5246 = vand.u32 %v4985, 2147483648
      %v5247 = vor.u32 1.1754944e-38, %v5246
      %v5248 = vsel %vm5245, %v5247, %v5243
      %v5249 = vmul.f32 %v4851, %v5248
      %v5250 = vrcp.pop %v4988
      %v5251 = vmul.f32 %v4988, %v5250
      %v5252 = vsub.f32 1.0, %v5251
      %v5253 = vmul.f32 %v5250, %v5252
      %v5254 = vadd.f32 %v5250, %v5253
      %vm5255 = vweird.f32 %v4988
      %vm5256 = vweird.f32 %v5250
      %vm5257 = vmor %vm5255, %vm5256
      %v5258 = vsel %vm5257, %v5250, %v5254
      %v5259 = vand.u32 2147483647, %v4988
      %vm5260 = vcmp.eq.f32.partialorder %v5259, 8.507059e+37
      %v5261 = vand.u32 %v4988, 2147483648
      %v5262 = vor.u32 1.1754944e-38, %v5261
      %v5263 = vsel %vm5260, %v5262, %v5258
      %v5264 = vmul.f32 %v4853, %v5263
      %v5265 = vrcp.pop %v4991
      %v5266 = vmul.f32 %v4991, %v5265
      %v5267 = vsub.f32 1.0, %v5266
      %v5268 = vmul.f32 %v5265, %v5267
      %v5269 = vadd.f32 %v5265, %v5268
      %vm5270 = vweird.f32 %v4991
      %vm5271 = vweird.f32 %v5265
      %vm5272 = vmor %vm5270, %vm5271
      %v5273 = vsel %vm5272, %v5265, %v5269
      %v5274 = vand.u32 2147483647, %v4991
      %vm5275 = vcmp.eq.f32.partialorder %v5274, 8.507059e+37
      %v5276 = vand.u32 %v4991, 2147483648
      %v5277 = vor.u32 1.1754944e-38, %v5276
      %v5278 = vsel %vm5275, %v5277, %v5273
      %v5279 = vmul.f32 %v4855, %v5278
      %v5280 = vrcp.pop %v4994
      %v5281 = vmul.f32 %v4994, %v5280
      %v5282 = vsub.f32 1.0, %v5281
      %v5283 = vmul.f32 %v5280, %v5282
      %v5284 = vadd.f32 %v5280, %v5283
      %vm5285 = vweird.f32 %v4994
      %vm5286 = vweird.f32 %v5280
      %vm5287 = vmor %vm5285, %vm5286
      %v5288 = vsel %vm5287, %v5280, %v5284
      %v5289 = vand.u32 2147483647, %v4994
      %vm5290 = vcmp.eq.f32.partialorder %v5289, 8.507059e+37
      %v5291 = vand.u32 %v4994, 2147483648
      %v5292 = vor.u32 1.1754944e-38, %v5291
      %v5293 = vsel %vm5290, %v5292, %v5288
      %v5294 = vmul.f32 %v4857, %v5293
      %v5295 = vrcp.pop %v4997
      %v5296 = vmul.f32 %v4997, %v5295
      %v5297 = vsub.f32 1.0, %v5296
      %v5298 = vmul.f32 %v5295, %v5297
      %v5299 = vadd.f32 %v5295, %v5298
      %vm5300 = vweird.f32 %v4997
      %vm5301 = vweird.f32 %v5295
      %vm5302 = vmor %vm5300, %vm5301
      %v5303 = vsel %vm5302, %v5295, %v5299
      %v5304 = vand.u32 2147483647, %v4997
      %vm5305 = vcmp.eq.f32.partialorder %v5304, 8.507059e+37
      %v5306 = vand.u32 %v4997, 2147483648
      %v5307 = vor.u32 1.1754944e-38, %v5306
      %v5308 = vsel %vm5305, %v5307, %v5303
      %v5309 = vmul.f32 %v4859, %v5308
      %v5310 = vrcp.pop %v5000
      %v5311 = vmul.f32 %v5000, %v5310
      %v5312 = vsub.f32 1.0, %v5311
      %v5313 = vmul.f32 %v5310, %v5312
      %v5314 = vadd.f32 %v5310, %v5313
      %vm5315 = vweird.f32 %v5000
      %vm5316 = vweird.f32 %v5310
      %vm5317 = vmor %vm5315, %vm5316
      %v5318 = vsel %vm5317, %v5310, %v5314
      %v5319 = vand.u32 2147483647, %v5000
      %vm5320 = vcmp.eq.f32.partialorder %v5319, 8.507059e+37
      %v5321 = vand.u32 %v5000, 2147483648
      %v5322 = vor.u32 1.1754944e-38, %v5321
      %v5323 = vsel %vm5320, %v5322, %v5318
      %v5324 = vmul.f32 %v4861, %v5323
      %v5325 = vrcp.pop %v5003
      %v5326 = vmul.f32 %v5003, %v5325
      %v5327 = vsub.f32 1.0, %v5326
      %v5328 = vmul.f32 %v5325, %v5327
      %v5329 = vadd.f32 %v5325, %v5328
      %vm5330 = vweird.f32 %v5003
      %vm5331 = vweird.f32 %v5325
      %vm5332 = vmor %vm5330, %vm5331
      %v5333 = vsel %vm5332, %v5325, %v5329
      %v5334 = vand.u32 2147483647, %v5003
      %vm5335 = vcmp.eq.f32.partialorder %v5334, 8.507059e+37
      %v5336 = vand.u32 %v5003, 2147483648
      %v5337 = vor.u32 1.1754944e-38, %v5336
      %v5338 = vsel %vm5335, %v5337, %v5333
      %v5339 = vmul.f32 %v4863, %v5338
      %v5340 = vrcp.pop %v5006
      %v5341 = vmul.f32 %v5006, %v5340
      %v5342 = vsub.f32 1.0, %v5341
      %v5343 = vmul.f32 %v5340, %v5342
      %v5344 = vadd.f32 %v5340, %v5343
      %vm5345 = vweird.f32 %v5006
      %vm5346 = vweird.f32 %v5340
      %vm5347 = vmor %vm5345, %vm5346
      %v5348 = vsel %vm5347, %v5340, %v5344
      %v5349 = vand.u32 2147483647, %v5006
      %vm5350 = vcmp.eq.f32.partialorder %v5349, 8.507059e+37
      %v5351 = vand.u32 %v5006, 2147483648
      %v5352 = vor.u32 1.1754944e-38, %v5351
      %v5353 = vsel %vm5350, %v5352, %v5348
      %v5354 = vmul.f32 %v4865, %v5353
      %v5355 = vrcp.pop %v5009
      %v5356 = vmul.f32 %v5009, %v5355
      %v5357 = vsub.f32 1.0, %v5356
      %v5358 = vmul.f32 %v5355, %v5357
      %v5359 = vadd.f32 %v5355, %v5358
      %vm5360 = vweird.f32 %v5009
      %vm5361 = vweird.f32 %v5355
      %vm5362 = vmor %vm5360, %vm5361
      %v5363 = vsel %vm5362, %v5355, %v5359
      %v5364 = vand.u32 2147483647, %v5009
      %vm5365 = vcmp.eq.f32.partialorder %v5364, 8.507059e+37
      %v5366 = vand.u32 %v5009, 2147483648
      %v5367 = vor.u32 1.1754944e-38, %v5366
      %v5368 = vsel %vm5365, %v5367, %v5363
      %v5369 = vmul.f32 %v4867, %v5368
      %v5370 = vrcp.pop %v5012
      %v5371 = vmul.f32 %v5012, %v5370
      %v5372 = vsub.f32 1.0, %v5371
      %v5373 = vmul.f32 %v5370, %v5372
      %v5374 = vadd.f32 %v5370, %v5373
      %vm5375 = vweird.f32 %v5012
      %vm5376 = vweird.f32 %v5370
      %vm5377 = vmor %vm5375, %vm5376
      %v5378 = vsel %vm5377, %v5370, %v5374
      %v5379 = vand.u32 2147483647, %v5012
      %vm5380 = vcmp.eq.f32.partialorder %v5379, 8.507059e+37
      %v5381 = vand.u32 %v5012, 2147483648
      %v5382 = vor.u32 1.1754944e-38, %v5381
      %v5383 = vsel %vm5380, %v5382, %v5378
      %v5384 = vmul.f32 %v4869, %v5383
      %v5385 = vrcp.pop %v5015
      %v5386 = vmul.f32 %v5015, %v5385
      %v5387 = vsub.f32 1.0, %v5386
      %v5388 = vmul.f32 %v5385, %v5387
      %v5389 = vadd.f32 %v5385, %v5388
      %vm5390 = vweird.f32 %v5015
      %vm5391 = vweird.f32 %v5385
      %vm5392 = vmor %vm5390, %vm5391
      %v5393 = vsel %vm5392, %v5385, %v5389
      %v5394 = vand.u32 2147483647, %v5015
      %vm5395 = vcmp.eq.f32.partialorder %v5394, 8.507059e+37
      %v5396 = vand.u32 %v5015, 2147483648
      %v5397 = vor.u32 1.1754944e-38, %v5396
      %v5398 = vsel %vm5395, %v5397, %v5393
      %v5399 = vmul.f32 %v4871, %v5398
      %v5400 = vrcp.pop %v5018
      %v5401 = vmul.f32 %v5018, %v5400
      %v5402 = vsub.f32 1.0, %v5401
      %v5403 = vmul.f32 %v5400, %v5402
      %v5404 = vadd.f32 %v5400, %v5403
      %vm5405 = vweird.f32 %v5018
      %vm5406 = vweird.f32 %v5400
      %vm5407 = vmor %vm5405, %vm5406
      %v5408 = vsel %vm5407, %v5400, %v5404
      %v5409 = vand.u32 2147483647, %v5018
      %vm5410 = vcmp.eq.f32.partialorder %v5409, 8.507059e+37
      %v5411 = vand.u32 %v5018, 2147483648
      %v5412 = vor.u32 1.1754944e-38, %v5411
      %v5413 = vsel %vm5410, %v5412, %v5408
      %v5414 = vmul.f32 %v4873, %v5413
      %v5415 = vrcp.pop %v5021
      %v5416 = vmul.f32 %v5021, %v5415
      %v5417 = vsub.f32 1.0, %v5416
      %v5418 = vmul.f32 %v5415, %v5417
      %v5419 = vadd.f32 %v5415, %v5418
      %vm5420 = vweird.f32 %v5021
      %vm5421 = vweird.f32 %v5415
      %vm5422 = vmor %vm5420, %vm5421
      %v5423 = vsel %vm5422, %v5415, %v5419
      %v5424 = vand.u32 2147483647, %v5021
      %vm5425 = vcmp.eq.f32.partialorder %v5424, 8.507059e+37
      %v5426 = vand.u32 %v5021, 2147483648
      %v5427 = vor.u32 1.1754944e-38, %v5426
      %v5428 = vsel %vm5425, %v5427, %v5423
      %v5429 = vmul.f32 %v4875, %v5428
      %v5430 = vrcp.pop %v5024
      %v5431 = vmul.f32 %v5024, %v5430
      %v5432 = vsub.f32 1.0, %v5431
      %v5433 = vmul.f32 %v5430, %v5432
      %v5434 = vadd.f32 %v5430, %v5433
      %vm5435 = vweird.f32 %v5024
      %vm5436 = vweird.f32 %v5430
      %vm5437 = vmor %vm5435, %vm5436
      %v5438 = vsel %vm5437, %v5430, %v5434
      %v5439 = vand.u32 2147483647, %v5024
      %vm5440 = vcmp.eq.f32.partialorder %v5439, 8.507059e+37
      %v5441 = vand.u32 %v5024, 2147483648
      %v5442 = vor.u32 1.1754944e-38, %v5441
      %v5443 = vsel %vm5440, %v5442, %v5438
      %v5444 = vmul.f32 %v4877, %v5443
      %v5445 = vrcp.pop %v5027
      %v5446 = vmul.f32 %v5027, %v5445
      %v5447 = vsub.f32 1.0, %v5446
      %v5448 = vmul.f32 %v5445, %v5447
      %v5449 = vadd.f32 %v5445, %v5448
      %vm5450 = vweird.f32 %v5027
      %vm5451 = vweird.f32 %v5445
      %vm5452 = vmor %vm5450, %vm5451
      %v5453 = vsel %vm5452, %v5445, %v5449
      %v5454 = vand.u32 2147483647, %v5027
      %vm5455 = vcmp.eq.f32.partialorder %v5454, 8.507059e+37
      %v5456 = vand.u32 %v5027, 2147483648
      %v5457 = vor.u32 1.1754944e-38, %v5456
      %v5458 = vsel %vm5455, %v5457, %v5453
      %v5459 = vmul.f32 %v4879, %v5458
      %v5460 = vrcp.pop %v5030
      %v5461 = vmul.f32 %v5030, %v5460
      %v5462 = vsub.f32 1.0, %v5461
      %v5463 = vmul.f32 %v5460, %v5462
      %v5464 = vadd.f32 %v5460, %v5463
      %vm5465 = vweird.f32 %v5030
      %vm5466 = vweird.f32 %v5460
      %vm5467 = vmor %vm5465, %vm5466
      %v5468 = vsel %vm5467, %v5460, %v5464
      %v5469 = vand.u32 2147483647, %v5030
      %vm5470 = vcmp.eq.f32.partialorder %v5469, 8.507059e+37
      %v5471 = vand.u32 %v5030, 2147483648
      %v5472 = vor.u32 1.1754944e-38, %v5471
      %v5473 = vsel %vm5470, %v5472, %v5468
      %v5474 = vmul.f32 %v4881, %v5473
      %v5475 = vrcp.pop %v5033
      %v5476 = vmul.f32 %v5033, %v5475
      %v5477 = vsub.f32 1.0, %v5476
      %v5478 = vmul.f32 %v5475, %v5477
      %v5479 = vadd.f32 %v5475, %v5478
      %vm5480 = vweird.f32 %v5033
      %vm5481 = vweird.f32 %v5475
      %vm5482 = vmor %vm5480, %vm5481
      %v5483 = vsel %vm5482, %v5475, %v5479
      %v5484 = vand.u32 2147483647, %v5033
      %vm5485 = vcmp.eq.f32.partialorder %v5484, 8.507059e+37
      %v5486 = vand.u32 %v5033, 2147483648
      %v5487 = vor.u32 1.1754944e-38, %v5486
      %v5488 = vsel %vm5485, %v5487, %v5483
      %v5489 = vmul.f32 %v4883, %v5488
      %v5490 = vrcp.pop %v5036
      %v5491 = vmul.f32 %v5036, %v5490
      %v5492 = vsub.f32 1.0, %v5491
      %v5493 = vmul.f32 %v5490, %v5492
      %v5494 = vadd.f32 %v5490, %v5493
      %vm5495 = vweird.f32 %v5036
      %vm5496 = vweird.f32 %v5490
      %vm5497 = vmor %vm5495, %vm5496
      %v5498 = vsel %vm5497, %v5490, %v5494
      %v5499 = vand.u32 2147483647, %v5036
      %vm5500 = vcmp.eq.f32.partialorder %v5499, 8.507059e+37
      %v5501 = vand.u32 %v5036, 2147483648
      %v5502 = vor.u32 1.1754944e-38, %v5501
      %v5503 = vsel %vm5500, %v5502, %v5498
      %v5504 = vmul.f32 %v4885, %v5503
      %v5505 = vrcp.pop %v5039
      %v5506 = vmul.f32 %v5039, %v5505
      %v5507 = vsub.f32 1.0, %v5506
      %v5508 = vmul.f32 %v5505, %v5507
      %v5509 = vadd.f32 %v5505, %v5508
      %vm5510 = vweird.f32 %v5039
      %vm5511 = vweird.f32 %v5505
      %vm5512 = vmor %vm5510, %vm5511
      %v5513 = vsel %vm5512, %v5505, %v5509
      %v5514 = vand.u32 2147483647, %v5039
      %vm5515 = vcmp.eq.f32.partialorder %v5514, 8.507059e+37
      %v5516 = vand.u32 %v5039, 2147483648
      %v5517 = vor.u32 1.1754944e-38, %v5516
      %v5518 = vsel %vm5515, %v5517, %v5513
      %v5519 = vmul.f32 %v4887, %v5518
      %v5520 = vrcp.pop %v5042
      %v5521 = vmul.f32 %v5042, %v5520
      %v5522 = vsub.f32 1.0, %v5521
      %v5523 = vmul.f32 %v5520, %v5522
      %v5524 = vadd.f32 %v5520, %v5523
      %vm5525 = vweird.f32 %v5042
      %vm5526 = vweird.f32 %v5520
      %vm5527 = vmor %vm5525, %vm5526
      %v5528 = vsel %vm5527, %v5520, %v5524
      %v5529 = vand.u32 2147483647, %v5042
      %vm5530 = vcmp.eq.f32.partialorder %v5529, 8.507059e+37
      %v5531 = vand.u32 %v5042, 2147483648
      %v5532 = vor.u32 1.1754944e-38, %v5531
      %v5533 = vsel %vm5530, %v5532, %v5528
      %v5534 = vmul.f32 %v4889, %v5533
      %v5535 = vrcp.pop %v5045
      %v5536 = vmul.f32 %v5045, %v5535
      %v5537 = vsub.f32 1.0, %v5536
      %v5538 = vmul.f32 %v5535, %v5537
      %v5539 = vadd.f32 %v5535, %v5538
      %vm5540 = vweird.f32 %v5045
      %vm5541 = vweird.f32 %v5535
      %vm5542 = vmor %vm5540, %vm5541
      %v5543 = vsel %vm5542, %v5535, %v5539
      %v5544 = vand.u32 2147483647, %v5045
      %vm5545 = vcmp.eq.f32.partialorder %v5544, 8.507059e+37
      %v5546 = vand.u32 %v5045, 2147483648
      %v5547 = vor.u32 1.1754944e-38, %v5546
      %v5548 = vsel %vm5545, %v5547, %v5543
      %v5549 = vmul.f32 %v4891, %v5548
      %v5550 = vrcp.pop %v5048
      %v5551 = vmul.f32 %v5048, %v5550
      %v5552 = vsub.f32 1.0, %v5551
      %v5553 = vmul.f32 %v5550, %v5552
      %v5554 = vadd.f32 %v5550, %v5553
      %vm5555 = vweird.f32 %v5048
      %vm5556 = vweird.f32 %v5550
      %vm5557 = vmor %vm5555, %vm5556
      %v5558 = vsel %vm5557, %v5550, %v5554
      %v5559 = vand.u32 2147483647, %v5048
      %vm5560 = vcmp.eq.f32.partialorder %v5559, 8.507059e+37
      %v5561 = vand.u32 %v5048, 2147483648
      %v5562 = vor.u32 1.1754944e-38, %v5561
      %v5563 = vsel %vm5560, %v5562, %v5558
      %v5564 = vmul.f32 %v4893, %v5563
      %v5565 = vrcp.pop %v5051
      %v5566 = vmul.f32 %v5051, %v5565
      %v5567 = vsub.f32 1.0, %v5566
      %v5568 = vmul.f32 %v5565, %v5567
      %v5569 = vadd.f32 %v5565, %v5568
      %vm5570 = vweird.f32 %v5051
      %vm5571 = vweird.f32 %v5565
      %vm5572 = vmor %vm5570, %vm5571
      %v5573 = vsel %vm5572, %v5565, %v5569
      %v5574 = vand.u32 2147483647, %v5051
      %vm5575 = vcmp.eq.f32.partialorder %v5574, 8.507059e+37
      %v5576 = vand.u32 %v5051, 2147483648
      %v5577 = vor.u32 1.1754944e-38, %v5576
      %v5578 = vsel %vm5575, %v5577, %v5573
      %v5579 = vmul.f32 %v4895, %v5578
      %v5580 = vrcp.pop %v5054
      %v5581 = vmul.f32 %v5054, %v5580
      %v5582 = vsub.f32 1.0, %v5581
      %v5583 = vmul.f32 %v5580, %v5582
      %v5584 = vadd.f32 %v5580, %v5583
      %vm5585 = vweird.f32 %v5054
      %vm5586 = vweird.f32 %v5580
      %vm5587 = vmor %vm5585, %vm5586
      %v5588 = vsel %vm5587, %v5580, %v5584
      %v5589 = vand.u32 2147483647, %v5054
      %vm5590 = vcmp.eq.f32.partialorder %v5589, 8.507059e+37
      %v5591 = vand.u32 %v5054, 2147483648
      %v5592 = vor.u32 1.1754944e-38, %v5591
      %v5593 = vsel %vm5590, %v5592, %v5588
      %v5594 = vmul.f32 %v4897, %v5593
      %v5595 = vrcp.pop %v5057
      %v5596 = vmul.f32 %v5057, %v5595
      %v5597 = vsub.f32 1.0, %v5596
      %v5598 = vmul.f32 %v5595, %v5597
      %v5599 = vadd.f32 %v5595, %v5598
      %vm5600 = vweird.f32 %v5057
      %vm5601 = vweird.f32 %v5595
      %vm5602 = vmor %vm5600, %vm5601
      %v5603 = vsel %vm5602, %v5595, %v5599
      %v5604 = vand.u32 2147483647, %v5057
      %vm5605 = vcmp.eq.f32.partialorder %v5604, 8.507059e+37
      %v5606 = vand.u32 %v5057, 2147483648
      %v5607 = vor.u32 1.1754944e-38, %v5606
      %v5608 = vsel %vm5605, %v5607, %v5603
      %v5609 = vmul.f32 %v4899, %v5608
      %v5610 = vrcp.pop %v5060
      %v5611 = vmul.f32 %v5060, %v5610
      %v5612 = vsub.f32 1.0, %v5611
      %v5613 = vmul.f32 %v5610, %v5612
      %v5614 = vadd.f32 %v5610, %v5613
      %vm5615 = vweird.f32 %v5060
      %vm5616 = vweird.f32 %v5610
      %vm5617 = vmor %vm5615, %vm5616
      %v5618 = vsel %vm5617, %v5610, %v5614
      %v5619 = vand.u32 2147483647, %v5060
      %vm5620 = vcmp.eq.f32.partialorder %v5619, 8.507059e+37
      %v5621 = vand.u32 %v5060, 2147483648
      %v5622 = vor.u32 1.1754944e-38, %v5621
      %v5623 = vsel %vm5620, %v5622, %v5618
      %v5624 = vmul.f32 %v4901, %v5623
      %v5625 = vrcp.pop %v5063
      %v5626 = vmul.f32 %v5063, %v5625
      %v5627 = vsub.f32 1.0, %v5626
      %v5628 = vmul.f32 %v5625, %v5627
      %v5629 = vadd.f32 %v5625, %v5628
      %vm5630 = vweird.f32 %v5063
      %vm5631 = vweird.f32 %v5625
      %vm5632 = vmor %vm5630, %vm5631
      %v5633 = vsel %vm5632, %v5625, %v5629
      %v5634 = vand.u32 2147483647, %v5063
      %vm5635 = vcmp.eq.f32.partialorder %v5634, 8.507059e+37
      %v5636 = vand.u32 %v5063, 2147483648
      %v5637 = vor.u32 1.1754944e-38, %v5636
      %v5638 = vsel %vm5635, %v5637, %v5633
      %v5639 = vmul.f32 %v4903, %v5638
      %v5640 = vrcp.pop %v5066
      %v5641 = vmul.f32 %v5066, %v5640
      %v5642 = vsub.f32 1.0, %v5641
      %v5643 = vmul.f32 %v5640, %v5642
      %v5644 = vadd.f32 %v5640, %v5643
      %vm5645 = vweird.f32 %v5066
      %vm5646 = vweird.f32 %v5640
      %vm5647 = vmor %vm5645, %vm5646
      %v5648 = vsel %vm5647, %v5640, %v5644
      %v5649 = vand.u32 2147483647, %v5066
      %vm5650 = vcmp.eq.f32.partialorder %v5649, 8.507059e+37
      %v5651 = vand.u32 %v5066, 2147483648
      %v5652 = vor.u32 1.1754944e-38, %v5651
      %v5653 = vsel %vm5650, %v5652, %v5648
      %v5654 = vmul.f32 %v4905, %v5653
      %v5655 = vrcp.pop %v5069
      %v5656 = vmul.f32 %v5069, %v5655
      %v5657 = vsub.f32 1.0, %v5656
      %v5658 = vmul.f32 %v5655, %v5657
      %v5659 = vadd.f32 %v5655, %v5658
      %vm5660 = vweird.f32 %v5069
      %vm5661 = vweird.f32 %v5655
      %vm5662 = vmor %vm5660, %vm5661
      %v5663 = vsel %vm5662, %v5655, %v5659
      %v5664 = vand.u32 2147483647, %v5069
      %vm5665 = vcmp.eq.f32.partialorder %v5664, 8.507059e+37
      %v5666 = vand.u32 %v5069, 2147483648
      %v5667 = vor.u32 1.1754944e-38, %v5666
      %v5668 = vsel %vm5665, %v5667, %v5663
      %v5669 = vmul.f32 %v4907, %v5668
      %v5670 = vrcp.pop %v5072
      %v5671 = vmul.f32 %v5072, %v5670
      %v5672 = vsub.f32 1.0, %v5671
      %v5673 = vmul.f32 %v5670, %v5672
      %v5674 = vadd.f32 %v5670, %v5673
      %vm5675 = vweird.f32 %v5072
      %vm5676 = vweird.f32 %v5670
      %vm5677 = vmor %vm5675, %vm5676
      %v5678 = vsel %vm5677, %v5670, %v5674
      %v5679 = vand.u32 2147483647, %v5072
      %vm5680 = vcmp.eq.f32.partialorder %v5679, 8.507059e+37
      %v5681 = vand.u32 %v5072, 2147483648
      %v5682 = vor.u32 1.1754944e-38, %v5681
      %v5683 = vsel %vm5680, %v5682, %v5678
      %v5684 = vmul.f32 %v4909, %v5683
      %v5685 = vrcp.pop %v5075
      %v5686 = vmul.f32 %v5075, %v5685
      %v5687 = vsub.f32 1.0, %v5686
      %v5688 = vmul.f32 %v5685, %v5687
      %v5689 = vadd.f32 %v5685, %v5688
      %vm5690 = vweird.f32 %v5075
      %vm5691 = vweird.f32 %v5685
      %vm5692 = vmor %vm5690, %vm5691
      %v5693 = vsel %vm5692, %v5685, %v5689
      %v5694 = vand.u32 2147483647, %v5075
      %vm5695 = vcmp.eq.f32.partialorder %v5694, 8.507059e+37
      %v5696 = vand.u32 %v5075, 2147483648
      %v5697 = vor.u32 1.1754944e-38, %v5696
      %v5698 = vsel %vm5695, %v5697, %v5693
      %v5699 = vmul.f32 %v4911, %v5698
      %v5700 = vrcp.pop %v5078
      %v5701 = vmul.f32 %v5078, %v5700
      %v5702 = vsub.f32 1.0, %v5701
      %v5703 = vmul.f32 %v5700, %v5702
      %v5704 = vadd.f32 %v5700, %v5703
      %vm5705 = vweird.f32 %v5078
      %vm5706 = vweird.f32 %v5700
      %vm5707 = vmor %vm5705, %vm5706
      %v5708 = vsel %vm5707, %v5700, %v5704
      %v5709 = vand.u32 2147483647, %v5078
      %vm5710 = vcmp.eq.f32.partialorder %v5709, 8.507059e+37
      %v5711 = vand.u32 %v5078, 2147483648
      %v5712 = vor.u32 1.1754944e-38, %v5711
      %v5713 = vsel %vm5710, %v5712, %v5708
      %v5714 = vmul.f32 %v4913, %v5713
      %v5715 = vrcp.pop %v5081
      %v5716 = vmul.f32 %v5081, %v5715
      %v5717 = vsub.f32 1.0, %v5716
      %v5718 = vmul.f32 %v5715, %v5717
      %v5719 = vadd.f32 %v5715, %v5718
      %vm5720 = vweird.f32 %v5081
      %vm5721 = vweird.f32 %v5715
      %vm5722 = vmor %vm5720, %vm5721
      %v5723 = vsel %vm5722, %v5715, %v5719
      %v5724 = vand.u32 2147483647, %v5081
      %vm5725 = vcmp.eq.f32.partialorder %v5724, 8.507059e+37
      %v5726 = vand.u32 %v5081, 2147483648
      %v5727 = vor.u32 1.1754944e-38, %v5726
      %v5728 = vsel %vm5725, %v5727, %v5723
      %v5729 = vmul.f32 %v4915, %v5728
      %v5730 = vrcp.pop %v5084
      %v5731 = vmul.f32 %v5084, %v5730
      %v5732 = vsub.f32 1.0, %v5731
      %v5733 = vmul.f32 %v5730, %v5732
      %v5734 = vadd.f32 %v5730, %v5733
      %vm5735 = vweird.f32 %v5084
      %vm5736 = vweird.f32 %v5730
      %vm5737 = vmor %vm5735, %vm5736
      %v5738 = vsel %vm5737, %v5730, %v5734
      %v5739 = vand.u32 2147483647, %v5084
      %vm5740 = vcmp.eq.f32.partialorder %v5739, 8.507059e+37
      %v5741 = vand.u32 %v5084, 2147483648
      %v5742 = vor.u32 1.1754944e-38, %v5741
      %v5743 = vsel %vm5740, %v5742, %v5738
      %v5744 = vmul.f32 %v4917, %v5743
      %v5745 = vrcp.pop %v5087
      %v5746 = vmul.f32 %v5087, %v5745
      %v5747 = vsub.f32 1.0, %v5746
      %v5748 = vmul.f32 %v5745, %v5747
      %v5749 = vadd.f32 %v5745, %v5748
      %vm5750 = vweird.f32 %v5087
      %vm5751 = vweird.f32 %v5745
      %vm5752 = vmor %vm5750, %vm5751
      %v5753 = vsel %vm5752, %v5745, %v5749
      %v5754 = vand.u32 2147483647, %v5087
      %vm5755 = vcmp.eq.f32.partialorder %v5754, 8.507059e+37
      %v5756 = vand.u32 %v5087, 2147483648
      %v5757 = vor.u32 1.1754944e-38, %v5756
      %v5758 = vsel %vm5755, %v5757, %v5753
      %v5759 = vmul.f32 %v4919, %v5758
      %v5760 = vrcp.pop %v5090
      %v5761 = vmul.f32 %v5090, %v5760
      %v5762 = vsub.f32 1.0, %v5761
      %v5763 = vmul.f32 %v5760, %v5762
      %v5764 = vadd.f32 %v5760, %v5763
      %vm5765 = vweird.f32 %v5090
      %vm5766 = vweird.f32 %v5760
      %vm5767 = vmor %vm5765, %vm5766
      %v5768 = vsel %vm5767, %v5760, %v5764
      %v5769 = vand.u32 2147483647, %v5090
      %vm5770 = vcmp.eq.f32.partialorder %v5769, 8.507059e+37
      %v5771 = vand.u32 %v5090, 2147483648
      %v5772 = vor.u32 1.1754944e-38, %v5771
      %v5773 = vsel %vm5770, %v5772, %v5768
      %v5774 = vmul.f32 %v4921, %v5773
      %v5775 = vrcp.pop %v5093
      %v5776 = vmul.f32 %v5093, %v5775
      %v5777 = vsub.f32 1.0, %v5776
      %v5778 = vmul.f32 %v5775, %v5777
      %v5779 = vadd.f32 %v5775, %v5778
      %vm5780 = vweird.f32 %v5093
      %vm5781 = vweird.f32 %v5775
      %vm5782 = vmor %vm5780, %vm5781
      %v5783 = vsel %vm5782, %v5775, %v5779
      %v5784 = vand.u32 2147483647, %v5093
      %vm5785 = vcmp.eq.f32.partialorder %v5784, 8.507059e+37
      %v5786 = vand.u32 %v5093, 2147483648
      %v5787 = vor.u32 1.1754944e-38, %v5786
      %v5788 = vsel %vm5785, %v5787, %v5783
      %v5789 = vmul.f32 %v4923, %v5788
      %v5790 = vrcp.pop %v5096
      %v5791 = vmul.f32 %v5096, %v5790
      %v5792 = vsub.f32 1.0, %v5791
      %v5793 = vmul.f32 %v5790, %v5792
      %v5794 = vadd.f32 %v5790, %v5793
      %vm5795 = vweird.f32 %v5096
      %vm5796 = vweird.f32 %v5790
      %vm5797 = vmor %vm5795, %vm5796
      %v5798 = vsel %vm5797, %v5790, %v5794
      %v5799 = vand.u32 2147483647, %v5096
      %vm5800 = vcmp.eq.f32.partialorder %v5799, 8.507059e+37
      %v5801 = vand.u32 %v5096, 2147483648
      %v5802 = vor.u32 1.1754944e-38, %v5801
      %v5803 = vsel %vm5800, %v5802, %v5798
      %v5804 = vmul.f32 %v4925, %v5803
      %v5805 = vrcp.pop %v5099
      %v5806 = vmul.f32 %v5099, %v5805
      %v5807 = vsub.f32 1.0, %v5806
      %v5808 = vmul.f32 %v5805, %v5807
      %v5809 = vadd.f32 %v5805, %v5808
      %vm5810 = vweird.f32 %v5099
      %vm5811 = vweird.f32 %v5805
      %vm5812 = vmor %vm5810, %vm5811
      %v5813 = vsel %vm5812, %v5805, %v5809
      %v5814 = vand.u32 2147483647, %v5099
      %vm5815 = vcmp.eq.f32.partialorder %v5814, 8.507059e+37
      %v5816 = vand.u32 %v5099, 2147483648
      %v5817 = vor.u32 1.1754944e-38, %v5816
      %v5818 = vsel %vm5815, %v5817, %v5813
      %v5819 = vmul.f32 %v4927, %v5818
      %v5820 = vrcp.pop %v5102
      %v5821 = vmul.f32 %v5102, %v5820
      %v5822 = vsub.f32 1.0, %v5821
      %v5823 = vmul.f32 %v5820, %v5822
      %v5824 = vadd.f32 %v5820, %v5823
      %vm5825 = vweird.f32 %v5102
      %vm5826 = vweird.f32 %v5820
      %vm5827 = vmor %vm5825, %vm5826
      %v5828 = vsel %vm5827, %v5820, %v5824
      %v5829 = vand.u32 2147483647, %v5102
      %vm5830 = vcmp.eq.f32.partialorder %v5829, 8.507059e+37
      %v5831 = vand.u32 %v5102, 2147483648
      %v5832 = vor.u32 1.1754944e-38, %v5831
      %v5833 = vsel %vm5830, %v5832, %v5828
      %v5834 = vmul.f32 %v4929, %v5833
      %v5835 = vrcp.pop %v5105
      %v5836 = vmul.f32 %v5105, %v5835
      %v5837 = vsub.f32 1.0, %v5836
      %v5838 = vmul.f32 %v5835, %v5837
      %v5839 = vadd.f32 %v5835, %v5838
      %vm5840 = vweird.f32 %v5105
      %vm5841 = vweird.f32 %v5835
      %vm5842 = vmor %vm5840, %vm5841
      %v5843 = vsel %vm5842, %v5835, %v5839
      %v5844 = vand.u32 2147483647, %v5105
      %vm5845 = vcmp.eq.f32.partialorder %v5844, 8.507059e+37
      %v5846 = vand.u32 %v5105, 2147483648
      %v5847 = vor.u32 1.1754944e-38, %v5846
      %v5848 = vsel %vm5845, %v5847, %v5843
      %v5849 = vmul.f32 %v4931, %v5848
      %v5850 = vrcp.pop %v5108
      %v5851 = vmul.f32 %v5108, %v5850
      %v5852 = vsub.f32 1.0, %v5851
      %v5853 = vmul.f32 %v5850, %v5852
      %v5854 = vadd.f32 %v5850, %v5853
      %vm5855 = vweird.f32 %v5108
      %vm5856 = vweird.f32 %v5850
      %vm5857 = vmor %vm5855, %vm5856
      %v5858 = vsel %vm5857, %v5850, %v5854
      %v5859 = vand.u32 2147483647, %v5108
      %vm5860 = vcmp.eq.f32.partialorder %v5859, 8.507059e+37
      %v5861 = vand.u32 %v5108, 2147483648
      %v5862 = vor.u32 1.1754944e-38, %v5861
      %v5863 = vsel %vm5860, %v5862, %v5858
      %v5864 = vmul.f32 %v4933, %v5863
      %v5865 = vrcp.pop %v5111
      %v5866 = vmul.f32 %v5111, %v5865
      %v5867 = vsub.f32 1.0, %v5866
      %v5868 = vmul.f32 %v5865, %v5867
      %v5869 = vadd.f32 %v5865, %v5868
      %vm5870 = vweird.f32 %v5111
      %vm5871 = vweird.f32 %v5865
      %vm5872 = vmor %vm5870, %vm5871
      %v5873 = vsel %vm5872, %v5865, %v5869
      %v5874 = vand.u32 2147483647, %v5111
      %vm5875 = vcmp.eq.f32.partialorder %v5874, 8.507059e+37
      %v5876 = vand.u32 %v5111, 2147483648
      %v5877 = vor.u32 1.1754944e-38, %v5876
      %v5878 = vsel %vm5875, %v5877, %v5873
      %v5879 = vmul.f32 %v4935, %v5878
      %v5880 = vrcp.pop %v5114
      %v5881 = vmul.f32 %v5114, %v5880
      %v5882 = vsub.f32 1.0, %v5881
      %v5883 = vmul.f32 %v5880, %v5882
      %v5884 = vadd.f32 %v5880, %v5883
      %vm5885 = vweird.f32 %v5114
      %vm5886 = vweird.f32 %v5880
      %vm5887 = vmor %vm5885, %vm5886
      %v5888 = vsel %vm5887, %v5880, %v5884
      %v5889 = vand.u32 2147483647, %v5114
      %vm5890 = vcmp.eq.f32.partialorder %v5889, 8.507059e+37
      %v5891 = vand.u32 %v5114, 2147483648
      %v5892 = vor.u32 1.1754944e-38, %v5891
      %v5893 = vsel %vm5890, %v5892, %v5888
      %v5894 = vmul.f32 %v4937, %v5893
      %v5895 = vrcp.pop %v5117
      %v5896 = vmul.f32 %v5117, %v5895
      %v5897 = vsub.f32 1.0, %v5896
      %v5898 = vmul.f32 %v5895, %v5897
      %v5899 = vadd.f32 %v5895, %v5898
      %vm5900 = vweird.f32 %v5117
      %vm5901 = vweird.f32 %v5895
      %vm5902 = vmor %vm5900, %vm5901
      %v5903 = vsel %vm5902, %v5895, %v5899
      %v5904 = vand.u32 2147483647, %v5117
      %vm5905 = vcmp.eq.f32.partialorder %v5904, 8.507059e+37
      %v5906 = vand.u32 %v5117, 2147483648
      %v5907 = vor.u32 1.1754944e-38, %v5906
      %v5908 = vsel %vm5905, %v5907, %v5903
      %v5909 = vmul.f32 %v4939, %v5908
      %v5910 = vrcp.pop %v5120
      %v5911 = vmul.f32 %v5120, %v5910
      %v5912 = vsub.f32 1.0, %v5911
      %v5913 = vmul.f32 %v5910, %v5912
      %v5914 = vadd.f32 %v5910, %v5913
      %vm5915 = vweird.f32 %v5120
      %vm5916 = vweird.f32 %v5910
      %vm5917 = vmor %vm5915, %vm5916
      %v5918 = vsel %vm5917, %v5910, %v5914
      %v5919 = vand.u32 2147483647, %v5120
      %vm5920 = vcmp.eq.f32.partialorder %v5919, 8.507059e+37
      %v5921 = vand.u32 %v5120, 2147483648
      %v5922 = vor.u32 1.1754944e-38, %v5921
      %v5923 = vsel %vm5920, %v5922, %v5918
      %v5924 = vmul.f32 %v4941, %v5923
      %v5925 = vrcp.pop %v5123
      %v5926 = vmul.f32 %v5123, %v5925
      %v5927 = vsub.f32 1.0, %v5926
      %v5928 = vmul.f32 %v5925, %v5927
      %v5929 = vadd.f32 %v5925, %v5928
      %vm5930 = vweird.f32 %v5123
      %vm5931 = vweird.f32 %v5925
      %vm5932 = vmor %vm5930, %vm5931
      %v5933 = vsel %vm5932, %v5925, %v5929
      %v5934 = vand.u32 2147483647, %v5123
      %vm5935 = vcmp.eq.f32.partialorder %v5934, 8.507059e+37
      %v5936 = vand.u32 %v5123, 2147483648
      %v5937 = vor.u32 1.1754944e-38, %v5936
      %v5938 = vsel %vm5935, %v5937, %v5933
      %v5939 = vmul.f32 %v4943, %v5938
      %v5940 = vrcp.pop %v5126
      %v5941 = vmul.f32 %v5126, %v5940
      %v5942 = vsub.f32 1.0, %v5941
      %v5943 = vmul.f32 %v5940, %v5942
      %v5944 = vadd.f32 %v5940, %v5943
      %vm5945 = vweird.f32 %v5126
      %vm5946 = vweird.f32 %v5940
      %vm5947 = vmor %vm5945, %vm5946
      %v5948 = vsel %vm5947, %v5940, %v5944
      %v5949 = vand.u32 2147483647, %v5126
      %vm5950 = vcmp.eq.f32.partialorder %v5949, 8.507059e+37
      %v5951 = vand.u32 %v5126, 2147483648
      %v5952 = vor.u32 1.1754944e-38, %v5951
      %v5953 = vsel %vm5950, %v5952, %v5948
      %v5954 = vmul.f32 %v4945, %v5953
      %v5955 = vrcp.pop %v5129
      %v5956 = vmul.f32 %v5129, %v5955
      %v5957 = vsub.f32 1.0, %v5956
      %v5958 = vmul.f32 %v5955, %v5957
      %v5959 = vadd.f32 %v5955, %v5958
      %vm5960 = vweird.f32 %v5129
      %vm5961 = vweird.f32 %v5955
      %vm5962 = vmor %vm5960, %vm5961
      %v5963 = vsel %vm5962, %v5955, %v5959
      %v5964 = vand.u32 2147483647, %v5129
      %vm5965 = vcmp.eq.f32.partialorder %v5964, 8.507059e+37
      %v5966 = vand.u32 %v5129, 2147483648
      %v5967 = vor.u32 1.1754944e-38, %v5966
      %v5968 = vsel %vm5965, %v5967, %v5963
      %v5969 = vmul.f32 %v4947, %v5968
      %v5970 = vrcp.pop %v5132
      %v5971 = vmul.f32 %v5132, %v5970
      %v5972 = vsub.f32 1.0, %v5971
      %v5973 = vmul.f32 %v5970, %v5972
      %v5974 = vadd.f32 %v5970, %v5973
      %vm5975 = vweird.f32 %v5132
      %vm5976 = vweird.f32 %v5970
      %vm5977 = vmor %vm5975, %vm5976
      %v5978 = vsel %vm5977, %v5970, %v5974
      %v5979 = vand.u32 2147483647, %v5132
      %vm5980 = vcmp.eq.f32.partialorder %v5979, 8.507059e+37
      %v5981 = vand.u32 %v5132, 2147483648
      %v5982 = vor.u32 1.1754944e-38, %v5981
      %v5983 = vsel %vm5980, %v5982, %v5978
      %v5984 = vmul.f32 %v4949, %v5983
      %v5985 = vrcp.pop %v5135
      %v5986 = vmul.f32 %v5135, %v5985
      %v5987 = vsub.f32 1.0, %v5986
      %v5988 = vmul.f32 %v5985, %v5987
      %v5989 = vadd.f32 %v5985, %v5988
      %vm5990 = vweird.f32 %v5135
      %vm5991 = vweird.f32 %v5985
      %vm5992 = vmor %vm5990, %vm5991
      %v5993 = vsel %vm5992, %v5985, %v5989
      %v5994 = vand.u32 2147483647, %v5135
      %vm5995 = vcmp.eq.f32.partialorder %v5994, 8.507059e+37
      %v5996 = vand.u32 %v5135, 2147483648
      %v5997 = vor.u32 1.1754944e-38, %v5996
      %v5998 = vsel %vm5995, %v5997, %v5993
      %v5999 = vmul.f32 %v4951, %v5998
      %v6000 = vrcp.pop %v5138
      %v6001 = vmul.f32 %v5138, %v6000
      %v6002 = vsub.f32 1.0, %v6001
      %v6003 = vmul.f32 %v6000, %v6002
      %v6004 = vadd.f32 %v6000, %v6003
      %vm6005 = vweird.f32 %v5138
      %vm6006 = vweird.f32 %v6000
      %vm6007 = vmor %vm6005, %vm6006
      %v6008 = vsel %vm6007, %v6000, %v6004
      %v6009 = vand.u32 2147483647, %v5138
      %vm6010 = vcmp.eq.f32.partialorder %v6009, 8.507059e+37
      %v6011 = vand.u32 %v5138, 2147483648
      %v6012 = vor.u32 1.1754944e-38, %v6011
      %v6013 = vsel %vm6010, %v6012, %v6008
      %v6014 = vmul.f32 %v4953, %v6013
      %v6015 = vrcp.pop %v5141
      %v6016 = vmul.f32 %v5141, %v6015
      %v6017 = vsub.f32 1.0, %v6016
      %v6018 = vmul.f32 %v6015, %v6017
      %v6019 = vadd.f32 %v6015, %v6018
      %vm6020 = vweird.f32 %v5141
      %vm6021 = vweird.f32 %v6015
      %vm6022 = vmor %vm6020, %vm6021
      %v6023 = vsel %vm6022, %v6015, %v6019
      %v6024 = vand.u32 2147483647, %v5141
      %vm6025 = vcmp.eq.f32.partialorder %v6024, 8.507059e+37
      %v6026 = vand.u32 %v5141, 2147483648
      %v6027 = vor.u32 1.1754944e-38, %v6026
      %v6028 = vsel %vm6025, %v6027, %v6023
      %v6029 = vmul.f32 %v4955, %v6028
      %v6030 = vrcp.pop %v5144
      %v6031 = vmul.f32 %v5144, %v6030
      %v6032 = vsub.f32 1.0, %v6031
      %v6033 = vmul.f32 %v6030, %v6032
      %v6034 = vadd.f32 %v6030, %v6033
      %vm6035 = vweird.f32 %v5144
      %vm6036 = vweird.f32 %v6030
      %vm6037 = vmor %vm6035, %vm6036
      %v6038 = vsel %vm6037, %v6030, %v6034
      %v6039 = vand.u32 2147483647, %v5144
      %vm6040 = vcmp.eq.f32.partialorder %v6039, 8.507059e+37
      %v6041 = vand.u32 %v5144, 2147483648
      %v6042 = vor.u32 1.1754944e-38, %v6041
      %v6043 = vsel %vm6040, %v6042, %v6038
      %v6044 = vmul.f32 %v4957, %v6043
      %v6045 = vrcp.pop %v5147
      %v6046 = vmul.f32 %v5147, %v6045
      %v6047 = vsub.f32 1.0, %v6046
      %v6048 = vmul.f32 %v6045, %v6047
      %v6049 = vadd.f32 %v6045, %v6048
      %vm6050 = vweird.f32 %v5147
      %vm6051 = vweird.f32 %v6045
      %vm6052 = vmor %vm6050, %vm6051
      %v6053 = vsel %vm6052, %v6045, %v6049
      %v6054 = vand.u32 2147483647, %v5147
      %vm6055 = vcmp.eq.f32.partialorder %v6054, 8.507059e+37
      %v6056 = vand.u32 %v5147, 2147483648
      %v6057 = vor.u32 1.1754944e-38, %v6056
      %v6058 = vsel %vm6055, %v6057, %v6053
      %v6059 = vmul.f32 %v4959, %v6058
      %v6060 = vrcp.pop %v5150
      %v6061 = vmul.f32 %v5150, %v6060
      %v6062 = vsub.f32 1.0, %v6061
      %v6063 = vmul.f32 %v6060, %v6062
      %v6064 = vadd.f32 %v6060, %v6063
      %vm6065 = vweird.f32 %v5150
      %vm6066 = vweird.f32 %v6060
      %vm6067 = vmor %vm6065, %vm6066
      %v6068 = vsel %vm6067, %v6060, %v6064
      %v6069 = vand.u32 2147483647, %v5150
      %vm6070 = vcmp.eq.f32.partialorder %v6069, 8.507059e+37
      %v6071 = vand.u32 %v5150, 2147483648
      %v6072 = vor.u32 1.1754944e-38, %v6071
      %v6073 = vsel %vm6070, %v6072, %v6068
      %v6074 = vmul.f32 %v4961, %v6073
      %v6075 = vrcp.pop %v5153
      %v6076 = vmul.f32 %v5153, %v6075
      %v6077 = vsub.f32 1.0, %v6076
      %v6078 = vmul.f32 %v6075, %v6077
      %v6079 = vadd.f32 %v6075, %v6078
      %vm6080 = vweird.f32 %v5153
      %vm6081 = vweird.f32 %v6075
      %vm6082 = vmor %vm6080, %vm6081
      %v6083 = vsel %vm6082, %v6075, %v6079
      %v6084 = vand.u32 2147483647, %v5153
      %vm6085 = vcmp.eq.f32.partialorder %v6084, 8.507059e+37
      %v6086 = vand.u32 %v5153, 2147483648
      %v6087 = vor.u32 1.1754944e-38, %v6086
      %v6088 = vsel %vm6085, %v6087, %v6083
      %v6089 = vmul.f32 %v4963, %v6088
      %v6090 = vrcp.pop %v5156
      %v6091 = vmul.f32 %v5156, %v6090
      %v6092 = vsub.f32 1.0, %v6091
      %v6093 = vmul.f32 %v6090, %v6092
      %v6094 = vadd.f32 %v6090, %v6093
      %vm6095 = vweird.f32 %v5156
      %vm6096 = vweird.f32 %v6090
      %vm6097 = vmor %vm6095, %vm6096
      %v6098 = vsel %vm6097, %v6090, %v6094
      %v6099 = vand.u32 2147483647, %v5156
      %vm6100 = vcmp.eq.f32.partialorder %v6099, 8.507059e+37
      %v6101 = vand.u32 %v5156, 2147483648
      %v6102 = vor.u32 1.1754944e-38, %v6101
      %v6103 = vsel %vm6100, %v6102, %v6098
      %v6104 = vmul.f32 %v4965, %v6103
      %v6105 = vrcp.pop %v5159
      %v6106 = vmul.f32 %v5159, %v6105
      %v6107 = vsub.f32 1.0, %v6106
      %v6108 = vmul.f32 %v6105, %v6107
      %v6109 = vadd.f32 %v6105, %v6108
      %vm6110 = vweird.f32 %v5159
      %vm6111 = vweird.f32 %v6105
      %vm6112 = vmor %vm6110, %vm6111
      %v6113 = vsel %vm6112, %v6105, %v6109
      %v6114 = vand.u32 2147483647, %v5159
      %vm6115 = vcmp.eq.f32.partialorder %v6114, 8.507059e+37
      %v6116 = vand.u32 %v5159, 2147483648
      %v6117 = vor.u32 1.1754944e-38, %v6116
      %v6118 = vsel %vm6115, %v6117, %v6113
      %v6119 = vmul.f32 %v4967, %v6118
      %v6121 = vsel %vm384, %v5174, 0
      %6123 = vmatpush.msra.mxu0 0.0
      %6124 = vmatpush.msra.mxu0 0.0
      %6125 = vmatpush.msra.mxu0 0.0
      %6126 = vmatpush.msra.mxu0 0.0
      %6127 = vmatpush.msra.mxu0 0.0
      %6128 = vmatpush.msra.mxu0 0.0
      %6129 = vmatpush.msra.mxu0 0.0
      %6130 = vmatpush.msra.mxu0 0.0
      %6131 = vmatpush.msra.mxu0 0.0
      %6132 = vmatpush.msra.mxu0 0.0
      %6133 = vmatpush.msra.mxu0 0.0
      %6134 = vmatpush.msra.mxu0 0.0
      %6135 = vmatpush.msra.mxu0 0.0
      %6136 = vmatpush.msra.mxu0 0.0
      %6137 = vmatpush.msra.mxu0 0.0
      %6138 = vmatpush.msra.mxu0 %v253
      %6139 = vmatmul.f32.gmra.mxu0 %v6121
      %v6140 = vpop.f32.mrf.mxu0
      %v6141 = vadd.f32 0.0, %v6140
      %6142 = vdwg.mxu0
      %v6144 = vsel %vm384, %v5189, 0
      %6146 = vmatpush.msra.mxu0 0.0
      %6147 = vmatpush.msra.mxu0 0.0
      %6148 = vmatpush.msra.mxu0 0.0
      %6149 = vmatpush.msra.mxu0 0.0
      %6150 = vmatpush.msra.mxu0 0.0
      %6151 = vmatpush.msra.mxu0 0.0
      %6152 = vmatpush.msra.mxu0 0.0
      %6153 = vmatpush.msra.mxu0 0.0
      %6154 = vmatpush.msra.mxu0 0.0
      %6155 = vmatpush.msra.mxu0 0.0
      %6156 = vmatpush.msra.mxu0 0.0
      %6157 = vmatpush.msra.mxu0 0.0
      %6158 = vmatpush.msra.mxu0 0.0
      %6159 = vmatpush.msra.mxu0 0.0
      %6160 = vmatpush.msra.mxu0 0.0
      %6161 = vmatpush.msra.mxu0 %v254
      %6162 = vmatmul.f32.gmra.mxu0 %v6144
      %v6163 = vpop.f32.mrf.mxu0
      %v6164 = vadd.f32 0.0, %v6163
      %6165 = vdwg.mxu0
      %v6167 = vsel %vm384, %v5204, 0
      %6169 = vmatpush.msra.mxu0 0.0
      %6170 = vmatpush.msra.mxu0 0.0
      %6171 = vmatpush.msra.mxu0 0.0
      %6172 = vmatpush.msra.mxu0 0.0
      %6173 = vmatpush.msra.mxu0 0.0
      %6174 = vmatpush.msra.mxu0 0.0
      %6175 = vmatpush.msra.mxu0 0.0
      %6176 = vmatpush.msra.mxu0 0.0
      %6177 = vmatpush.msra.mxu0 0.0
      %6178 = vmatpush.msra.mxu0 0.0
      %6179 = vmatpush.msra.mxu0 0.0
      %6180 = vmatpush.msra.mxu0 0.0
      %6181 = vmatpush.msra.mxu0 0.0
      %6182 = vmatpush.msra.mxu0 0.0
      %6183 = vmatpush.msra.mxu0 0.0
      %6184 = vmatpush.msra.mxu0 %v255
      %6185 = vmatmul.f32.gmra.mxu0 %v6167
      %v6186 = vpop.f32.mrf.mxu0
      %v6187 = vadd.f32 0.0, %v6186
      %6188 = vdwg.mxu0
      %v6190 = vsel %vm384, %v5219, 0
      %6192 = vmatpush.msra.mxu0 0.0
      %6193 = vmatpush.msra.mxu0 0.0
      %6194 = vmatpush.msra.mxu0 0.0
      %6195 = vmatpush.msra.mxu0 0.0
      %6196 = vmatpush.msra.mxu0 0.0
      %6197 = vmatpush.msra.mxu0 0.0
      %6198 = vmatpush.msra.mxu0 0.0
      %6199 = vmatpush.msra.mxu0 0.0
      %6200 = vmatpush.msra.mxu0 0.0
      %6201 = vmatpush.msra.mxu0 0.0
      %6202 = vmatpush.msra.mxu0 0.0
      %6203 = vmatpush.msra.mxu0 0.0
      %6204 = vmatpush.msra.mxu0 0.0
      %6205 = vmatpush.msra.mxu0 0.0
      %6206 = vmatpush.msra.mxu0 0.0
      %6207 = vmatpush.msra.mxu0 %v256
      %6208 = vmatmul.f32.gmra.mxu0 %v6190
      %v6209 = vpop.f32.mrf.mxu0
      %v6210 = vadd.f32 0.0, %v6209
      %6211 = vdwg.mxu0
      %v6213 = vsel %vm384, %v5234, 0
      %6215 = vmatpush.msra.mxu0 0.0
      %6216 = vmatpush.msra.mxu0 0.0
      %6217 = vmatpush.msra.mxu0 0.0
      %6218 = vmatpush.msra.mxu0 0.0
      %6219 = vmatpush.msra.mxu0 0.0
      %6220 = vmatpush.msra.mxu0 0.0
      %6221 = vmatpush.msra.mxu0 0.0
      %6222 = vmatpush.msra.mxu0 0.0
      %6223 = vmatpush.msra.mxu0 0.0
      %6224 = vmatpush.msra.mxu0 0.0
      %6225 = vmatpush.msra.mxu0 0.0
      %6226 = vmatpush.msra.mxu0 0.0
      %6227 = vmatpush.msra.mxu0 0.0
      %6228 = vmatpush.msra.mxu0 0.0
      %6229 = vmatpush.msra.mxu0 0.0
      %6230 = vmatpush.msra.mxu0 %v257
      %6231 = vmatmul.f32.gmra.mxu0 %v6213
      %v6232 = vpop.f32.mrf.mxu0
      %v6233 = vadd.f32 0.0, %v6232
      %6234 = vdwg.mxu0
      %v6236 = vsel %vm384, %v5249, 0
      %6238 = vmatpush.msra.mxu0 0.0
      %6239 = vmatpush.msra.mxu0 0.0
      %6240 = vmatpush.msra.mxu0 0.0
      %6241 = vmatpush.msra.mxu0 0.0
      %6242 = vmatpush.msra.mxu0 0.0
      %6243 = vmatpush.msra.mxu0 0.0
      %6244 = vmatpush.msra.mxu0 0.0
      %6245 = vmatpush.msra.mxu0 0.0
      %6246 = vmatpush.msra.mxu0 0.0
      %6247 = vmatpush.msra.mxu0 0.0
      %6248 = vmatpush.msra.mxu0 0.0
      %6249 = vmatpush.msra.mxu0 0.0
      %6250 = vmatpush.msra.mxu0 0.0
      %6251 = vmatpush.msra.mxu0 0.0
      %6252 = vmatpush.msra.mxu0 0.0
      %6253 = vmatpush.msra.mxu0 %v258
      %6254 = vmatmul.f32.gmra.mxu0 %v6236
      %v6255 = vpop.f32.mrf.mxu0
      %v6256 = vadd.f32 0.0, %v6255
      %6257 = vdwg.mxu0
      %v6259 = vsel %vm384, %v5264, 0
      %6261 = vmatpush.msra.mxu0 0.0
      %6262 = vmatpush.msra.mxu0 0.0
      %6263 = vmatpush.msra.mxu0 0.0
      %6264 = vmatpush.msra.mxu0 0.0
      %6265 = vmatpush.msra.mxu0 0.0
      %6266 = vmatpush.msra.mxu0 0.0
      %6267 = vmatpush.msra.mxu0 0.0
      %6268 = vmatpush.msra.mxu0 0.0
      %6269 = vmatpush.msra.mxu0 0.0
      %6270 = vmatpush.msra.mxu0 0.0
      %6271 = vmatpush.msra.mxu0 0.0
      %6272 = vmatpush.msra.mxu0 0.0
      %6273 = vmatpush.msra.mxu0 0.0
      %6274 = vmatpush.msra.mxu0 0.0
      %6275 = vmatpush.msra.mxu0 0.0
      %6276 = vmatpush.msra.mxu0 %v259
      %6277 = vmatmul.f32.gmra.mxu0 %v6259
      %v6278 = vpop.f32.mrf.mxu0
      %v6279 = vadd.f32 0.0, %v6278
      %6280 = vdwg.mxu0
      %v6282 = vsel %vm384, %v5279, 0
      %6284 = vmatpush.msra.mxu0 0.0
      %6285 = vmatpush.msra.mxu0 0.0
      %6286 = vmatpush.msra.mxu0 0.0
      %6287 = vmatpush.msra.mxu0 0.0
      %6288 = vmatpush.msra.mxu0 0.0
      %6289 = vmatpush.msra.mxu0 0.0
      %6290 = vmatpush.msra.mxu0 0.0
      %6291 = vmatpush.msra.mxu0 0.0
      %6292 = vmatpush.msra.mxu0 0.0
      %6293 = vmatpush.msra.mxu0 0.0
      %6294 = vmatpush.msra.mxu0 0.0
      %6295 = vmatpush.msra.mxu0 0.0
      %6296 = vmatpush.msra.mxu0 0.0
      %6297 = vmatpush.msra.mxu0 0.0
      %6298 = vmatpush.msra.mxu0 0.0
      %6299 = vmatpush.msra.mxu0 %v260
      %6300 = vmatmul.f32.gmra.mxu0 %v6282
      %v6301 = vpop.f32.mrf.mxu0
      %v6302 = vadd.f32 0.0, %v6301
      %6303 = vdwg.mxu0
      %v6305 = vsel %vm384, %v5294, 0
      %6307 = vmatpush.msra.mxu0 0.0
      %6308 = vmatpush.msra.mxu0 0.0
      %6309 = vmatpush.msra.mxu0 0.0
      %6310 = vmatpush.msra.mxu0 0.0
      %6311 = vmatpush.msra.mxu0 0.0
      %6312 = vmatpush.msra.mxu0 0.0
      %6313 = vmatpush.msra.mxu0 0.0
      %6314 = vmatpush.msra.mxu0 0.0
      %6315 = vmatpush.msra.mxu0 0.0
      %6316 = vmatpush.msra.mxu0 0.0
      %6317 = vmatpush.msra.mxu0 0.0
      %6318 = vmatpush.msra.mxu0 0.0
      %6319 = vmatpush.msra.mxu0 0.0
      %6320 = vmatpush.msra.mxu0 0.0
      %6321 = vmatpush.msra.mxu0 0.0
      %6322 = vmatpush.msra.mxu0 %v261
      %6323 = vmatmul.f32.gmra.mxu0 %v6305
      %v6324 = vpop.f32.mrf.mxu0
      %v6325 = vadd.f32 0.0, %v6324
      %6326 = vdwg.mxu0
      %v6328 = vsel %vm384, %v5309, 0
      %6330 = vmatpush.msra.mxu0 0.0
      %6331 = vmatpush.msra.mxu0 0.0
      %6332 = vmatpush.msra.mxu0 0.0
      %6333 = vmatpush.msra.mxu0 0.0
      %6334 = vmatpush.msra.mxu0 0.0
      %6335 = vmatpush.msra.mxu0 0.0
      %6336 = vmatpush.msra.mxu0 0.0
      %6337 = vmatpush.msra.mxu0 0.0
      %6338 = vmatpush.msra.mxu0 0.0
      %6339 = vmatpush.msra.mxu0 0.0
      %6340 = vmatpush.msra.mxu0 0.0
      %6341 = vmatpush.msra.mxu0 0.0
      %6342 = vmatpush.msra.mxu0 0.0
      %6343 = vmatpush.msra.mxu0 0.0
      %6344 = vmatpush.msra.mxu0 0.0
      %6345 = vmatpush.msra.mxu0 %v262
      %6346 = vmatmul.f32.gmra.mxu0 %v6328
      %v6347 = vpop.f32.mrf.mxu0
      %v6348 = vadd.f32 0.0, %v6347
      %6349 = vdwg.mxu0
      %v6351 = vsel %vm384, %v5324, 0
      %6353 = vmatpush.msra.mxu0 0.0
      %6354 = vmatpush.msra.mxu0 0.0
      %6355 = vmatpush.msra.mxu0 0.0
      %6356 = vmatpush.msra.mxu0 0.0
      %6357 = vmatpush.msra.mxu0 0.0
      %6358 = vmatpush.msra.mxu0 0.0
      %6359 = vmatpush.msra.mxu0 0.0
      %6360 = vmatpush.msra.mxu0 0.0
      %6361 = vmatpush.msra.mxu0 0.0
      %6362 = vmatpush.msra.mxu0 0.0
      %6363 = vmatpush.msra.mxu0 0.0
      %6364 = vmatpush.msra.mxu0 0.0
      %6365 = vmatpush.msra.mxu0 0.0
      %6366 = vmatpush.msra.mxu0 0.0
      %6367 = vmatpush.msra.mxu0 0.0
      %6368 = vmatpush.msra.mxu0 %v263
      %6369 = vmatmul.f32.gmra.mxu0 %v6351
      %v6370 = vpop.f32.mrf.mxu0
      %v6371 = vadd.f32 0.0, %v6370
      %6372 = vdwg.mxu0
      %v6374 = vsel %vm384, %v5339, 0
      %6376 = vmatpush.msra.mxu0 0.0
      %6377 = vmatpush.msra.mxu0 0.0
      %6378 = vmatpush.msra.mxu0 0.0
      %6379 = vmatpush.msra.mxu0 0.0
      %6380 = vmatpush.msra.mxu0 0.0
      %6381 = vmatpush.msra.mxu0 0.0
      %6382 = vmatpush.msra.mxu0 0.0
      %6383 = vmatpush.msra.mxu0 0.0
      %6384 = vmatpush.msra.mxu0 0.0
      %6385 = vmatpush.msra.mxu0 0.0
      %6386 = vmatpush.msra.mxu0 0.0
      %6387 = vmatpush.msra.mxu0 0.0
      %6388 = vmatpush.msra.mxu0 0.0
      %6389 = vmatpush.msra.mxu0 0.0
      %6390 = vmatpush.msra.mxu0 0.0
      %6391 = vmatpush.msra.mxu0 %v264
      %6392 = vmatmul.f32.gmra.mxu0 %v6374
      %v6393 = vpop.f32.mrf.mxu0
      %v6394 = vadd.f32 0.0, %v6393
      %6395 = vdwg.mxu0
      %v6397 = vsel %vm384, %v5354, 0
      %6399 = vmatpush.msra.mxu0 0.0
      %6400 = vmatpush.msra.mxu0 0.0
      %6401 = vmatpush.msra.mxu0 0.0
      %6402 = vmatpush.msra.mxu0 0.0
      %6403 = vmatpush.msra.mxu0 0.0
      %6404 = vmatpush.msra.mxu0 0.0
      %6405 = vmatpush.msra.mxu0 0.0
      %6406 = vmatpush.msra.mxu0 0.0
      %6407 = vmatpush.msra.mxu0 0.0
      %6408 = vmatpush.msra.mxu0 0.0
      %6409 = vmatpush.msra.mxu0 0.0
      %6410 = vmatpush.msra.mxu0 0.0
      %6411 = vmatpush.msra.mxu0 0.0
      %6412 = vmatpush.msra.mxu0 0.0
      %6413 = vmatpush.msra.mxu0 0.0
      %6414 = vmatpush.msra.mxu0 %v265
      %6415 = vmatmul.f32.gmra.mxu0 %v6397
      %v6416 = vpop.f32.mrf.mxu0
      %v6417 = vadd.f32 0.0, %v6416
      %6418 = vdwg.mxu0
      %v6420 = vsel %vm384, %v5369, 0
      %6422 = vmatpush.msra.mxu0 0.0
      %6423 = vmatpush.msra.mxu0 0.0
      %6424 = vmatpush.msra.mxu0 0.0
      %6425 = vmatpush.msra.mxu0 0.0
      %6426 = vmatpush.msra.mxu0 0.0
      %6427 = vmatpush.msra.mxu0 0.0
      %6428 = vmatpush.msra.mxu0 0.0
      %6429 = vmatpush.msra.mxu0 0.0
      %6430 = vmatpush.msra.mxu0 0.0
      %6431 = vmatpush.msra.mxu0 0.0
      %6432 = vmatpush.msra.mxu0 0.0
      %6433 = vmatpush.msra.mxu0 0.0
      %6434 = vmatpush.msra.mxu0 0.0
      %6435 = vmatpush.msra.mxu0 0.0
      %6436 = vmatpush.msra.mxu0 0.0
      %6437 = vmatpush.msra.mxu0 %v266
      %6438 = vmatmul.f32.gmra.mxu0 %v6420
      %v6439 = vpop.f32.mrf.mxu0
      %v6440 = vadd.f32 0.0, %v6439
      %6441 = vdwg.mxu0
      %v6443 = vsel %vm384, %v5384, 0
      %6445 = vmatpush.msra.mxu0 0.0
      %6446 = vmatpush.msra.mxu0 0.0
      %6447 = vmatpush.msra.mxu0 0.0
      %6448 = vmatpush.msra.mxu0 0.0
      %6449 = vmatpush.msra.mxu0 0.0
      %6450 = vmatpush.msra.mxu0 0.0
      %6451 = vmatpush.msra.mxu0 0.0
      %6452 = vmatpush.msra.mxu0 0.0
      %6453 = vmatpush.msra.mxu0 0.0
      %6454 = vmatpush.msra.mxu0 0.0
      %6455 = vmatpush.msra.mxu0 0.0
      %6456 = vmatpush.msra.mxu0 0.0
      %6457 = vmatpush.msra.mxu0 0.0
      %6458 = vmatpush.msra.mxu0 0.0
      %6459 = vmatpush.msra.mxu0 0.0
      %6460 = vmatpush.msra.mxu0 %v267
      %6461 = vmatmul.f32.gmra.mxu0 %v6443
      %v6462 = vpop.f32.mrf.mxu0
      %v6463 = vadd.f32 0.0, %v6462
      %6464 = vdwg.mxu0
      %v6466 = vsel %vm384, %v5399, 0
      %6468 = vmatpush.msra.mxu0 0.0
      %6469 = vmatpush.msra.mxu0 0.0
      %6470 = vmatpush.msra.mxu0 0.0
      %6471 = vmatpush.msra.mxu0 0.0
      %6472 = vmatpush.msra.mxu0 0.0
      %6473 = vmatpush.msra.mxu0 0.0
      %6474 = vmatpush.msra.mxu0 0.0
      %6475 = vmatpush.msra.mxu0 0.0
      %6476 = vmatpush.msra.mxu0 0.0
      %6477 = vmatpush.msra.mxu0 0.0
      %6478 = vmatpush.msra.mxu0 0.0
      %6479 = vmatpush.msra.mxu0 0.0
      %6480 = vmatpush.msra.mxu0 0.0
      %6481 = vmatpush.msra.mxu0 0.0
      %6482 = vmatpush.msra.mxu0 0.0
      %6483 = vmatpush.msra.mxu0 %v268
      %6484 = vmatmul.f32.gmra.mxu0 %v6466
      %v6485 = vpop.f32.mrf.mxu0
      %v6486 = vadd.f32 0.0, %v6485
      %6487 = vdwg.mxu0
      %v6489 = vsel %vm384, %v5414, 0
      %6491 = vmatpush.msra.mxu0 0.0
      %6492 = vmatpush.msra.mxu0 0.0
      %6493 = vmatpush.msra.mxu0 0.0
      %6494 = vmatpush.msra.mxu0 0.0
      %6495 = vmatpush.msra.mxu0 0.0
      %6496 = vmatpush.msra.mxu0 0.0
      %6497 = vmatpush.msra.mxu0 0.0
      %6498 = vmatpush.msra.mxu0 0.0
      %6499 = vmatpush.msra.mxu0 0.0
      %6500 = vmatpush.msra.mxu0 0.0
      %6501 = vmatpush.msra.mxu0 0.0
      %6502 = vmatpush.msra.mxu0 0.0
      %6503 = vmatpush.msra.mxu0 0.0
      %6504 = vmatpush.msra.mxu0 0.0
      %6505 = vmatpush.msra.mxu0 0.0
      %6506 = vmatpush.msra.mxu0 %v269
      %6507 = vmatmul.f32.gmra.mxu0 %v6489
      %v6508 = vpop.f32.mrf.mxu0
      %v6509 = vadd.f32 0.0, %v6508
      %6510 = vdwg.mxu0
      %v6512 = vsel %vm384, %v5429, 0
      %6514 = vmatpush.msra.mxu0 0.0
      %6515 = vmatpush.msra.mxu0 0.0
      %6516 = vmatpush.msra.mxu0 0.0
      %6517 = vmatpush.msra.mxu0 0.0
      %6518 = vmatpush.msra.mxu0 0.0
      %6519 = vmatpush.msra.mxu0 0.0
      %6520 = vmatpush.msra.mxu0 0.0
      %6521 = vmatpush.msra.mxu0 0.0
      %6522 = vmatpush.msra.mxu0 0.0
      %6523 = vmatpush.msra.mxu0 0.0
      %6524 = vmatpush.msra.mxu0 0.0
      %6525 = vmatpush.msra.mxu0 0.0
      %6526 = vmatpush.msra.mxu0 0.0
      %6527 = vmatpush.msra.mxu0 0.0
      %6528 = vmatpush.msra.mxu0 0.0
      %6529 = vmatpush.msra.mxu0 %v270
      %6530 = vmatmul.f32.gmra.mxu0 %v6512
      %v6531 = vpop.f32.mrf.mxu0
      %v6532 = vadd.f32 0.0, %v6531
      %6533 = vdwg.mxu0
      %v6535 = vsel %vm384, %v5444, 0
      %6537 = vmatpush.msra.mxu0 0.0
      %6538 = vmatpush.msra.mxu0 0.0
      %6539 = vmatpush.msra.mxu0 0.0
      %6540 = vmatpush.msra.mxu0 0.0
      %6541 = vmatpush.msra.mxu0 0.0
      %6542 = vmatpush.msra.mxu0 0.0
      %6543 = vmatpush.msra.mxu0 0.0
      %6544 = vmatpush.msra.mxu0 0.0
      %6545 = vmatpush.msra.mxu0 0.0
      %6546 = vmatpush.msra.mxu0 0.0
      %6547 = vmatpush.msra.mxu0 0.0
      %6548 = vmatpush.msra.mxu0 0.0
      %6549 = vmatpush.msra.mxu0 0.0
      %6550 = vmatpush.msra.mxu0 0.0
      %6551 = vmatpush.msra.mxu0 0.0
      %6552 = vmatpush.msra.mxu0 %v271
      %6553 = vmatmul.f32.gmra.mxu0 %v6535
      %v6554 = vpop.f32.mrf.mxu0
      %v6555 = vadd.f32 0.0, %v6554
      %6556 = vdwg.mxu0
      %v6558 = vsel %vm384, %v5459, 0
      %6560 = vmatpush.msra.mxu0 0.0
      %6561 = vmatpush.msra.mxu0 0.0
      %6562 = vmatpush.msra.mxu0 0.0
      %6563 = vmatpush.msra.mxu0 0.0
      %6564 = vmatpush.msra.mxu0 0.0
      %6565 = vmatpush.msra.mxu0 0.0
      %6566 = vmatpush.msra.mxu0 0.0
      %6567 = vmatpush.msra.mxu0 0.0
      %6568 = vmatpush.msra.mxu0 0.0
      %6569 = vmatpush.msra.mxu0 0.0
      %6570 = vmatpush.msra.mxu0 0.0
      %6571 = vmatpush.msra.mxu0 0.0
      %6572 = vmatpush.msra.mxu0 0.0
      %6573 = vmatpush.msra.mxu0 0.0
      %6574 = vmatpush.msra.mxu0 0.0
      %6575 = vmatpush.msra.mxu0 %v272
      %6576 = vmatmul.f32.gmra.mxu0 %v6558
      %v6577 = vpop.f32.mrf.mxu0
      %v6578 = vadd.f32 0.0, %v6577
      %6579 = vdwg.mxu0
      %v6581 = vsel %vm384, %v5474, 0
      %6583 = vmatpush.msra.mxu0 0.0
      %6584 = vmatpush.msra.mxu0 0.0
      %6585 = vmatpush.msra.mxu0 0.0
      %6586 = vmatpush.msra.mxu0 0.0
      %6587 = vmatpush.msra.mxu0 0.0
      %6588 = vmatpush.msra.mxu0 0.0
      %6589 = vmatpush.msra.mxu0 0.0
      %6590 = vmatpush.msra.mxu0 0.0
      %6591 = vmatpush.msra.mxu0 0.0
      %6592 = vmatpush.msra.mxu0 0.0
      %6593 = vmatpush.msra.mxu0 0.0
      %6594 = vmatpush.msra.mxu0 0.0
      %6595 = vmatpush.msra.mxu0 0.0
      %6596 = vmatpush.msra.mxu0 0.0
      %6597 = vmatpush.msra.mxu0 0.0
      %6598 = vmatpush.msra.mxu0 %v273
      %6599 = vmatmul.f32.gmra.mxu0 %v6581
      %v6600 = vpop.f32.mrf.mxu0
      %v6601 = vadd.f32 0.0, %v6600
      %6602 = vdwg.mxu0
      %v6604 = vsel %vm384, %v5489, 0
      %6606 = vmatpush.msra.mxu0 0.0
      %6607 = vmatpush.msra.mxu0 0.0
      %6608 = vmatpush.msra.mxu0 0.0
      %6609 = vmatpush.msra.mxu0 0.0
      %6610 = vmatpush.msra.mxu0 0.0
      %6611 = vmatpush.msra.mxu0 0.0
      %6612 = vmatpush.msra.mxu0 0.0
      %6613 = vmatpush.msra.mxu0 0.0
      %6614 = vmatpush.msra.mxu0 0.0
      %6615 = vmatpush.msra.mxu0 0.0
      %6616 = vmatpush.msra.mxu0 0.0
      %6617 = vmatpush.msra.mxu0 0.0
      %6618 = vmatpush.msra.mxu0 0.0
      %6619 = vmatpush.msra.mxu0 0.0
      %6620 = vmatpush.msra.mxu0 0.0
      %6621 = vmatpush.msra.mxu0 %v274
      %6622 = vmatmul.f32.gmra.mxu0 %v6604
      %v6623 = vpop.f32.mrf.mxu0
      %v6624 = vadd.f32 0.0, %v6623
      %6625 = vdwg.mxu0
      %v6627 = vsel %vm384, %v5504, 0
      %6629 = vmatpush.msra.mxu0 0.0
      %6630 = vmatpush.msra.mxu0 0.0
      %6631 = vmatpush.msra.mxu0 0.0
      %6632 = vmatpush.msra.mxu0 0.0
      %6633 = vmatpush.msra.mxu0 0.0
      %6634 = vmatpush.msra.mxu0 0.0
      %6635 = vmatpush.msra.mxu0 0.0
      %6636 = vmatpush.msra.mxu0 0.0
      %6637 = vmatpush.msra.mxu0 0.0
      %6638 = vmatpush.msra.mxu0 0.0
      %6639 = vmatpush.msra.mxu0 0.0
      %6640 = vmatpush.msra.mxu0 0.0
      %6641 = vmatpush.msra.mxu0 0.0
      %6642 = vmatpush.msra.mxu0 0.0
      %6643 = vmatpush.msra.mxu0 0.0
      %6644 = vmatpush.msra.mxu0 %v275
      %6645 = vmatmul.f32.gmra.mxu0 %v6627
      %v6646 = vpop.f32.mrf.mxu0
      %v6647 = vadd.f32 0.0, %v6646
      %6648 = vdwg.mxu0
      %v6650 = vsel %vm384, %v5519, 0
      %6652 = vmatpush.msra.mxu0 0.0
      %6653 = vmatpush.msra.mxu0 0.0
      %6654 = vmatpush.msra.mxu0 0.0
      %6655 = vmatpush.msra.mxu0 0.0
      %6656 = vmatpush.msra.mxu0 0.0
      %6657 = vmatpush.msra.mxu0 0.0
      %6658 = vmatpush.msra.mxu0 0.0
      %6659 = vmatpush.msra.mxu0 0.0
      %6660 = vmatpush.msra.mxu0 0.0
      %6661 = vmatpush.msra.mxu0 0.0
      %6662 = vmatpush.msra.mxu0 0.0
      %6663 = vmatpush.msra.mxu0 0.0
      %6664 = vmatpush.msra.mxu0 0.0
      %6665 = vmatpush.msra.mxu0 0.0
      %6666 = vmatpush.msra.mxu0 0.0
      %6667 = vmatpush.msra.mxu0 %v276
      %6668 = vmatmul.f32.gmra.mxu0 %v6650
      %v6669 = vpop.f32.mrf.mxu0
      %v6670 = vadd.f32 0.0, %v6669
      %6671 = vdwg.mxu0
      %v6673 = vsel %vm384, %v5534, 0
      %6675 = vmatpush.msra.mxu0 0.0
      %6676 = vmatpush.msra.mxu0 0.0
      %6677 = vmatpush.msra.mxu0 0.0
      %6678 = vmatpush.msra.mxu0 0.0
      %6679 = vmatpush.msra.mxu0 0.0
      %6680 = vmatpush.msra.mxu0 0.0
      %6681 = vmatpush.msra.mxu0 0.0
      %6682 = vmatpush.msra.mxu0 0.0
      %6683 = vmatpush.msra.mxu0 0.0
      %6684 = vmatpush.msra.mxu0 0.0
      %6685 = vmatpush.msra.mxu0 0.0
      %6686 = vmatpush.msra.mxu0 0.0
      %6687 = vmatpush.msra.mxu0 0.0
      %6688 = vmatpush.msra.mxu0 0.0
      %6689 = vmatpush.msra.mxu0 0.0
      %6690 = vmatpush.msra.mxu0 %v277
      %6691 = vmatmul.f32.gmra.mxu0 %v6673
      %v6692 = vpop.f32.mrf.mxu0
      %v6693 = vadd.f32 0.0, %v6692
      %6694 = vdwg.mxu0
      %v6696 = vsel %vm384, %v5549, 0
      %6698 = vmatpush.msra.mxu0 0.0
      %6699 = vmatpush.msra.mxu0 0.0
      %6700 = vmatpush.msra.mxu0 0.0
      %6701 = vmatpush.msra.mxu0 0.0
      %6702 = vmatpush.msra.mxu0 0.0
      %6703 = vmatpush.msra.mxu0 0.0
      %6704 = vmatpush.msra.mxu0 0.0
      %6705 = vmatpush.msra.mxu0 0.0
      %6706 = vmatpush.msra.mxu0 0.0
      %6707 = vmatpush.msra.mxu0 0.0
      %6708 = vmatpush.msra.mxu0 0.0
      %6709 = vmatpush.msra.mxu0 0.0
      %6710 = vmatpush.msra.mxu0 0.0
      %6711 = vmatpush.msra.mxu0 0.0
      %6712 = vmatpush.msra.mxu0 0.0
      %6713 = vmatpush.msra.mxu0 %v278
      %6714 = vmatmul.f32.gmra.mxu0 %v6696
      %v6715 = vpop.f32.mrf.mxu0
      %v6716 = vadd.f32 0.0, %v6715
      %6717 = vdwg.mxu0
      %v6719 = vsel %vm384, %v5564, 0
      %6721 = vmatpush.msra.mxu0 0.0
      %6722 = vmatpush.msra.mxu0 0.0
      %6723 = vmatpush.msra.mxu0 0.0
      %6724 = vmatpush.msra.mxu0 0.0
      %6725 = vmatpush.msra.mxu0 0.0
      %6726 = vmatpush.msra.mxu0 0.0
      %6727 = vmatpush.msra.mxu0 0.0
      %6728 = vmatpush.msra.mxu0 0.0
      %6729 = vmatpush.msra.mxu0 0.0
      %6730 = vmatpush.msra.mxu0 0.0
      %6731 = vmatpush.msra.mxu0 0.0
      %6732 = vmatpush.msra.mxu0 0.0
      %6733 = vmatpush.msra.mxu0 0.0
      %6734 = vmatpush.msra.mxu0 0.0
      %6735 = vmatpush.msra.mxu0 0.0
      %6736 = vmatpush.msra.mxu0 %v279
      %6737 = vmatmul.f32.gmra.mxu0 %v6719
      %v6738 = vpop.f32.mrf.mxu0
      %v6739 = vadd.f32 0.0, %v6738
      %6740 = vdwg.mxu0
      %v6742 = vsel %vm384, %v5579, 0
      %6744 = vmatpush.msra.mxu0 0.0
      %6745 = vmatpush.msra.mxu0 0.0
      %6746 = vmatpush.msra.mxu0 0.0
      %6747 = vmatpush.msra.mxu0 0.0
      %6748 = vmatpush.msra.mxu0 0.0
      %6749 = vmatpush.msra.mxu0 0.0
      %6750 = vmatpush.msra.mxu0 0.0
      %6751 = vmatpush.msra.mxu0 0.0
      %6752 = vmatpush.msra.mxu0 0.0
      %6753 = vmatpush.msra.mxu0 0.0
      %6754 = vmatpush.msra.mxu0 0.0
      %6755 = vmatpush.msra.mxu0 0.0
      %6756 = vmatpush.msra.mxu0 0.0
      %6757 = vmatpush.msra.mxu0 0.0
      %6758 = vmatpush.msra.mxu0 0.0
      %6759 = vmatpush.msra.mxu0 %v280
      %6760 = vmatmul.f32.gmra.mxu0 %v6742
      %v6761 = vpop.f32.mrf.mxu0
      %v6762 = vadd.f32 0.0, %v6761
      %6763 = vdwg.mxu0
      %v6765 = vsel %vm384, %v5594, 0
      %6767 = vmatpush.msra.mxu0 0.0
      %6768 = vmatpush.msra.mxu0 0.0
      %6769 = vmatpush.msra.mxu0 0.0
      %6770 = vmatpush.msra.mxu0 0.0
      %6771 = vmatpush.msra.mxu0 0.0
      %6772 = vmatpush.msra.mxu0 0.0
      %6773 = vmatpush.msra.mxu0 0.0
      %6774 = vmatpush.msra.mxu0 0.0
      %6775 = vmatpush.msra.mxu0 0.0
      %6776 = vmatpush.msra.mxu0 0.0
      %6777 = vmatpush.msra.mxu0 0.0
      %6778 = vmatpush.msra.mxu0 0.0
      %6779 = vmatpush.msra.mxu0 0.0
      %6780 = vmatpush.msra.mxu0 0.0
      %6781 = vmatpush.msra.mxu0 0.0
      %6782 = vmatpush.msra.mxu0 %v281
      %6783 = vmatmul.f32.gmra.mxu0 %v6765
      %v6784 = vpop.f32.mrf.mxu0
      %v6785 = vadd.f32 0.0, %v6784
      %6786 = vdwg.mxu0
      %v6788 = vsel %vm384, %v5609, 0
      %6790 = vmatpush.msra.mxu0 0.0
      %6791 = vmatpush.msra.mxu0 0.0
      %6792 = vmatpush.msra.mxu0 0.0
      %6793 = vmatpush.msra.mxu0 0.0
      %6794 = vmatpush.msra.mxu0 0.0
      %6795 = vmatpush.msra.mxu0 0.0
      %6796 = vmatpush.msra.mxu0 0.0
      %6797 = vmatpush.msra.mxu0 0.0
      %6798 = vmatpush.msra.mxu0 0.0
      %6799 = vmatpush.msra.mxu0 0.0
      %6800 = vmatpush.msra.mxu0 0.0
      %6801 = vmatpush.msra.mxu0 0.0
      %6802 = vmatpush.msra.mxu0 0.0
      %6803 = vmatpush.msra.mxu0 0.0
      %6804 = vmatpush.msra.mxu0 0.0
      %6805 = vmatpush.msra.mxu0 %v282
      %6806 = vmatmul.f32.gmra.mxu0 %v6788
      %v6807 = vpop.f32.mrf.mxu0
      %v6808 = vadd.f32 0.0, %v6807
      %6809 = vdwg.mxu0
      %v6811 = vsel %vm384, %v5624, 0
      %6813 = vmatpush.msra.mxu0 0.0
      %6814 = vmatpush.msra.mxu0 0.0
      %6815 = vmatpush.msra.mxu0 0.0
      %6816 = vmatpush.msra.mxu0 0.0
      %6817 = vmatpush.msra.mxu0 0.0
      %6818 = vmatpush.msra.mxu0 0.0
      %6819 = vmatpush.msra.mxu0 0.0
      %6820 = vmatpush.msra.mxu0 0.0
      %6821 = vmatpush.msra.mxu0 0.0
      %6822 = vmatpush.msra.mxu0 0.0
      %6823 = vmatpush.msra.mxu0 0.0
      %6824 = vmatpush.msra.mxu0 0.0
      %6825 = vmatpush.msra.mxu0 0.0
      %6826 = vmatpush.msra.mxu0 0.0
      %6827 = vmatpush.msra.mxu0 0.0
      %6828 = vmatpush.msra.mxu0 %v283
      %6829 = vmatmul.f32.gmra.mxu0 %v6811
      %v6830 = vpop.f32.mrf.mxu0
      %v6831 = vadd.f32 0.0, %v6830
      %6832 = vdwg.mxu0
      %v6834 = vsel %vm384, %v5639, 0
      %6836 = vmatpush.msra.mxu0 0.0
      %6837 = vmatpush.msra.mxu0 0.0
      %6838 = vmatpush.msra.mxu0 0.0
      %6839 = vmatpush.msra.mxu0 0.0
      %6840 = vmatpush.msra.mxu0 0.0
      %6841 = vmatpush.msra.mxu0 0.0
      %6842 = vmatpush.msra.mxu0 0.0
      %6843 = vmatpush.msra.mxu0 0.0
      %6844 = vmatpush.msra.mxu0 0.0
      %6845 = vmatpush.msra.mxu0 0.0
      %6846 = vmatpush.msra.mxu0 0.0
      %6847 = vmatpush.msra.mxu0 0.0
      %6848 = vmatpush.msra.mxu0 0.0
      %6849 = vmatpush.msra.mxu0 0.0
      %6850 = vmatpush.msra.mxu0 0.0
      %6851 = vmatpush.msra.mxu0 %v284
      %6852 = vmatmul.f32.gmra.mxu0 %v6834
      %v6853 = vpop.f32.mrf.mxu0
      %v6854 = vadd.f32 0.0, %v6853
      %6855 = vdwg.mxu0
      %v6857 = vsel %vm384, %v5654, 0
      %6859 = vmatpush.msra.mxu0 0.0
      %6860 = vmatpush.msra.mxu0 0.0
      %6861 = vmatpush.msra.mxu0 0.0
      %6862 = vmatpush.msra.mxu0 0.0
      %6863 = vmatpush.msra.mxu0 0.0
      %6864 = vmatpush.msra.mxu0 0.0
      %6865 = vmatpush.msra.mxu0 0.0
      %6866 = vmatpush.msra.mxu0 0.0
      %6867 = vmatpush.msra.mxu0 0.0
      %6868 = vmatpush.msra.mxu0 0.0
      %6869 = vmatpush.msra.mxu0 0.0
      %6870 = vmatpush.msra.mxu0 0.0
      %6871 = vmatpush.msra.mxu0 0.0
      %6872 = vmatpush.msra.mxu0 0.0
      %6873 = vmatpush.msra.mxu0 0.0
      %6874 = vmatpush.msra.mxu0 %v285
      %6875 = vmatmul.f32.gmra.mxu0 %v6857
      %v6876 = vpop.f32.mrf.mxu0
      %v6877 = vadd.f32 0.0, %v6876
      %6878 = vdwg.mxu0
      %v6880 = vsel %vm384, %v5669, 0
      %6882 = vmatpush.msra.mxu0 0.0
      %6883 = vmatpush.msra.mxu0 0.0
      %6884 = vmatpush.msra.mxu0 0.0
      %6885 = vmatpush.msra.mxu0 0.0
      %6886 = vmatpush.msra.mxu0 0.0
      %6887 = vmatpush.msra.mxu0 0.0
      %6888 = vmatpush.msra.mxu0 0.0
      %6889 = vmatpush.msra.mxu0 0.0
      %6890 = vmatpush.msra.mxu0 0.0
      %6891 = vmatpush.msra.mxu0 0.0
      %6892 = vmatpush.msra.mxu0 0.0
      %6893 = vmatpush.msra.mxu0 0.0
      %6894 = vmatpush.msra.mxu0 0.0
      %6895 = vmatpush.msra.mxu0 0.0
      %6896 = vmatpush.msra.mxu0 0.0
      %6897 = vmatpush.msra.mxu0 %v286
      %6898 = vmatmul.f32.gmra.mxu0 %v6880
      %v6899 = vpop.f32.mrf.mxu0
      %v6900 = vadd.f32 0.0, %v6899
      %6901 = vdwg.mxu0
      %v6903 = vsel %vm384, %v5684, 0
      %6905 = vmatpush.msra.mxu0 0.0
      %6906 = vmatpush.msra.mxu0 0.0
      %6907 = vmatpush.msra.mxu0 0.0
      %6908 = vmatpush.msra.mxu0 0.0
      %6909 = vmatpush.msra.mxu0 0.0
      %6910 = vmatpush.msra.mxu0 0.0
      %6911 = vmatpush.msra.mxu0 0.0
      %6912 = vmatpush.msra.mxu0 0.0
      %6913 = vmatpush.msra.mxu0 0.0
      %6914 = vmatpush.msra.mxu0 0.0
      %6915 = vmatpush.msra.mxu0 0.0
      %6916 = vmatpush.msra.mxu0 0.0
      %6917 = vmatpush.msra.mxu0 0.0
      %6918 = vmatpush.msra.mxu0 0.0
      %6919 = vmatpush.msra.mxu0 0.0
      %6920 = vmatpush.msra.mxu0 %v287
      %6921 = vmatmul.f32.gmra.mxu0 %v6903
      %v6922 = vpop.f32.mrf.mxu0
      %v6923 = vadd.f32 0.0, %v6922
      %6924 = vdwg.mxu0
      %v6926 = vsel %vm384, %v5699, 0
      %6928 = vmatpush.msra.mxu0 0.0
      %6929 = vmatpush.msra.mxu0 0.0
      %6930 = vmatpush.msra.mxu0 0.0
      %6931 = vmatpush.msra.mxu0 0.0
      %6932 = vmatpush.msra.mxu0 0.0
      %6933 = vmatpush.msra.mxu0 0.0
      %6934 = vmatpush.msra.mxu0 0.0
      %6935 = vmatpush.msra.mxu0 0.0
      %6936 = vmatpush.msra.mxu0 0.0
      %6937 = vmatpush.msra.mxu0 0.0
      %6938 = vmatpush.msra.mxu0 0.0
      %6939 = vmatpush.msra.mxu0 0.0
      %6940 = vmatpush.msra.mxu0 0.0
      %6941 = vmatpush.msra.mxu0 0.0
      %6942 = vmatpush.msra.mxu0 0.0
      %6943 = vmatpush.msra.mxu0 %v288
      %6944 = vmatmul.f32.gmra.mxu0 %v6926
      %v6945 = vpop.f32.mrf.mxu0
      %v6946 = vadd.f32 0.0, %v6945
      %6947 = vdwg.mxu0
      %v6949 = vsel %vm384, %v5714, 0
      %6951 = vmatpush.msra.mxu0 0.0
      %6952 = vmatpush.msra.mxu0 0.0
      %6953 = vmatpush.msra.mxu0 0.0
      %6954 = vmatpush.msra.mxu0 0.0
      %6955 = vmatpush.msra.mxu0 0.0
      %6956 = vmatpush.msra.mxu0 0.0
      %6957 = vmatpush.msra.mxu0 0.0
      %6958 = vmatpush.msra.mxu0 0.0
      %6959 = vmatpush.msra.mxu0 0.0
      %6960 = vmatpush.msra.mxu0 0.0
      %6961 = vmatpush.msra.mxu0 0.0
      %6962 = vmatpush.msra.mxu0 0.0
      %6963 = vmatpush.msra.mxu0 0.0
      %6964 = vmatpush.msra.mxu0 0.0
      %6965 = vmatpush.msra.mxu0 0.0
      %6966 = vmatpush.msra.mxu0 %v289
      %6967 = vmatmul.f32.gmra.mxu0 %v6949
      %v6968 = vpop.f32.mrf.mxu0
      %v6969 = vadd.f32 0.0, %v6968
      %6970 = vdwg.mxu0
      %v6972 = vsel %vm384, %v5729, 0
      %6974 = vmatpush.msra.mxu0 0.0
      %6975 = vmatpush.msra.mxu0 0.0
      %6976 = vmatpush.msra.mxu0 0.0
      %6977 = vmatpush.msra.mxu0 0.0
      %6978 = vmatpush.msra.mxu0 0.0
      %6979 = vmatpush.msra.mxu0 0.0
      %6980 = vmatpush.msra.mxu0 0.0
      %6981 = vmatpush.msra.mxu0 0.0
      %6982 = vmatpush.msra.mxu0 0.0
      %6983 = vmatpush.msra.mxu0 0.0
      %6984 = vmatpush.msra.mxu0 0.0
      %6985 = vmatpush.msra.mxu0 0.0
      %6986 = vmatpush.msra.mxu0 0.0
      %6987 = vmatpush.msra.mxu0 0.0
      %6988 = vmatpush.msra.mxu0 0.0
      %6989 = vmatpush.msra.mxu0 %v290
      %6990 = vmatmul.f32.gmra.mxu0 %v6972
      %v6991 = vpop.f32.mrf.mxu0
      %v6992 = vadd.f32 0.0, %v6991
      %6993 = vdwg.mxu0
      %v6995 = vsel %vm384, %v5744, 0
      %6997 = vmatpush.msra.mxu0 0.0
      %6998 = vmatpush.msra.mxu0 0.0
      %6999 = vmatpush.msra.mxu0 0.0
      %7000 = vmatpush.msra.mxu0 0.0
      %7001 = vmatpush.msra.mxu0 0.0
      %7002 = vmatpush.msra.mxu0 0.0
      %7003 = vmatpush.msra.mxu0 0.0
      %7004 = vmatpush.msra.mxu0 0.0
      %7005 = vmatpush.msra.mxu0 0.0
      %7006 = vmatpush.msra.mxu0 0.0
      %7007 = vmatpush.msra.mxu0 0.0
      %7008 = vmatpush.msra.mxu0 0.0
      %7009 = vmatpush.msra.mxu0 0.0
      %7010 = vmatpush.msra.mxu0 0.0
      %7011 = vmatpush.msra.mxu0 0.0
      %7012 = vmatpush.msra.mxu0 %v291
      %7013 = vmatmul.f32.gmra.mxu0 %v6995
      %v7014 = vpop.f32.mrf.mxu0
      %v7015 = vadd.f32 0.0, %v7014
      %7016 = vdwg.mxu0
      %v7018 = vsel %vm384, %v5759, 0
      %7020 = vmatpush.msra.mxu0 0.0
      %7021 = vmatpush.msra.mxu0 0.0
      %7022 = vmatpush.msra.mxu0 0.0
      %7023 = vmatpush.msra.mxu0 0.0
      %7024 = vmatpush.msra.mxu0 0.0
      %7025 = vmatpush.msra.mxu0 0.0
      %7026 = vmatpush.msra.mxu0 0.0
      %7027 = vmatpush.msra.mxu0 0.0
      %7028 = vmatpush.msra.mxu0 0.0
      %7029 = vmatpush.msra.mxu0 0.0
      %7030 = vmatpush.msra.mxu0 0.0
      %7031 = vmatpush.msra.mxu0 0.0
      %7032 = vmatpush.msra.mxu0 0.0
      %7033 = vmatpush.msra.mxu0 0.0
      %7034 = vmatpush.msra.mxu0 0.0
      %7035 = vmatpush.msra.mxu0 %v292
      %7036 = vmatmul.f32.gmra.mxu0 %v7018
      %v7037 = vpop.f32.mrf.mxu0
      %v7038 = vadd.f32 0.0, %v7037
      %7039 = vdwg.mxu0
      %v7041 = vsel %vm384, %v5774, 0
      %7043 = vmatpush.msra.mxu0 0.0
      %7044 = vmatpush.msra.mxu0 0.0
      %7045 = vmatpush.msra.mxu0 0.0
      %7046 = vmatpush.msra.mxu0 0.0
      %7047 = vmatpush.msra.mxu0 0.0
      %7048 = vmatpush.msra.mxu0 0.0
      %7049 = vmatpush.msra.mxu0 0.0
      %7050 = vmatpush.msra.mxu0 0.0
      %7051 = vmatpush.msra.mxu0 0.0
      %7052 = vmatpush.msra.mxu0 0.0
      %7053 = vmatpush.msra.mxu0 0.0
      %7054 = vmatpush.msra.mxu0 0.0
      %7055 = vmatpush.msra.mxu0 0.0
      %7056 = vmatpush.msra.mxu0 0.0
      %7057 = vmatpush.msra.mxu0 0.0
      %7058 = vmatpush.msra.mxu0 %v293
      %7059 = vmatmul.f32.gmra.mxu0 %v7041
      %v7060 = vpop.f32.mrf.mxu0
      %v7061 = vadd.f32 0.0, %v7060
      %7062 = vdwg.mxu0
      %v7064 = vsel %vm384, %v5789, 0
      %7066 = vmatpush.msra.mxu0 0.0
      %7067 = vmatpush.msra.mxu0 0.0
      %7068 = vmatpush.msra.mxu0 0.0
      %7069 = vmatpush.msra.mxu0 0.0
      %7070 = vmatpush.msra.mxu0 0.0
      %7071 = vmatpush.msra.mxu0 0.0
      %7072 = vmatpush.msra.mxu0 0.0
      %7073 = vmatpush.msra.mxu0 0.0
      %7074 = vmatpush.msra.mxu0 0.0
      %7075 = vmatpush.msra.mxu0 0.0
      %7076 = vmatpush.msra.mxu0 0.0
      %7077 = vmatpush.msra.mxu0 0.0
      %7078 = vmatpush.msra.mxu0 0.0
      %7079 = vmatpush.msra.mxu0 0.0
      %7080 = vmatpush.msra.mxu0 0.0
      %7081 = vmatpush.msra.mxu0 %v294
      %7082 = vmatmul.f32.gmra.mxu0 %v7064
      %v7083 = vpop.f32.mrf.mxu0
      %v7084 = vadd.f32 0.0, %v7083
      %7085 = vdwg.mxu0
      %v7087 = vsel %vm384, %v5804, 0
      %7089 = vmatpush.msra.mxu0 0.0
      %7090 = vmatpush.msra.mxu0 0.0
      %7091 = vmatpush.msra.mxu0 0.0
      %7092 = vmatpush.msra.mxu0 0.0
      %7093 = vmatpush.msra.mxu0 0.0
      %7094 = vmatpush.msra.mxu0 0.0
      %7095 = vmatpush.msra.mxu0 0.0
      %7096 = vmatpush.msra.mxu0 0.0
      %7097 = vmatpush.msra.mxu0 0.0
      %7098 = vmatpush.msra.mxu0 0.0
      %7099 = vmatpush.msra.mxu0 0.0
      %7100 = vmatpush.msra.mxu0 0.0
      %7101 = vmatpush.msra.mxu0 0.0
      %7102 = vmatpush.msra.mxu0 0.0
      %7103 = vmatpush.msra.mxu0 0.0
      %7104 = vmatpush.msra.mxu0 %v295
      %7105 = vmatmul.f32.gmra.mxu0 %v7087
      %v7106 = vpop.f32.mrf.mxu0
      %v7107 = vadd.f32 0.0, %v7106
      %7108 = vdwg.mxu0
      %v7110 = vsel %vm384, %v5819, 0
      %7112 = vmatpush.msra.mxu0 0.0
      %7113 = vmatpush.msra.mxu0 0.0
      %7114 = vmatpush.msra.mxu0 0.0
      %7115 = vmatpush.msra.mxu0 0.0
      %7116 = vmatpush.msra.mxu0 0.0
      %7117 = vmatpush.msra.mxu0 0.0
      %7118 = vmatpush.msra.mxu0 0.0
      %7119 = vmatpush.msra.mxu0 0.0
      %7120 = vmatpush.msra.mxu0 0.0
      %7121 = vmatpush.msra.mxu0 0.0
      %7122 = vmatpush.msra.mxu0 0.0
      %7123 = vmatpush.msra.mxu0 0.0
      %7124 = vmatpush.msra.mxu0 0.0
      %7125 = vmatpush.msra.mxu0 0.0
      %7126 = vmatpush.msra.mxu0 0.0
      %7127 = vmatpush.msra.mxu0 %v296
      %7128 = vmatmul.f32.gmra.mxu0 %v7110
      %v7129 = vpop.f32.mrf.mxu0
      %v7130 = vadd.f32 0.0, %v7129
      %7131 = vdwg.mxu0
      %v7133 = vsel %vm384, %v5834, 0
      %7135 = vmatpush.msra.mxu0 0.0
      %7136 = vmatpush.msra.mxu0 0.0
      %7137 = vmatpush.msra.mxu0 0.0
      %7138 = vmatpush.msra.mxu0 0.0
      %7139 = vmatpush.msra.mxu0 0.0
      %7140 = vmatpush.msra.mxu0 0.0
      %7141 = vmatpush.msra.mxu0 0.0
      %7142 = vmatpush.msra.mxu0 0.0
      %7143 = vmatpush.msra.mxu0 0.0
      %7144 = vmatpush.msra.mxu0 0.0
      %7145 = vmatpush.msra.mxu0 0.0
      %7146 = vmatpush.msra.mxu0 0.0
      %7147 = vmatpush.msra.mxu0 0.0
      %7148 = vmatpush.msra.mxu0 0.0
      %7149 = vmatpush.msra.mxu0 0.0
      %7150 = vmatpush.msra.mxu0 %v297
      %7151 = vmatmul.f32.gmra.mxu0 %v7133
      %v7152 = vpop.f32.mrf.mxu0
      %v7153 = vadd.f32 0.0, %v7152
      %7154 = vdwg.mxu0
      %v7156 = vsel %vm384, %v5849, 0
      %7158 = vmatpush.msra.mxu0 0.0
      %7159 = vmatpush.msra.mxu0 0.0
      %7160 = vmatpush.msra.mxu0 0.0
      %7161 = vmatpush.msra.mxu0 0.0
      %7162 = vmatpush.msra.mxu0 0.0
      %7163 = vmatpush.msra.mxu0 0.0
      %7164 = vmatpush.msra.mxu0 0.0
      %7165 = vmatpush.msra.mxu0 0.0
      %7166 = vmatpush.msra.mxu0 0.0
      %7167 = vmatpush.msra.mxu0 0.0
      %7168 = vmatpush.msra.mxu0 0.0
      %7169 = vmatpush.msra.mxu0 0.0
      %7170 = vmatpush.msra.mxu0 0.0
      %7171 = vmatpush.msra.mxu0 0.0
      %7172 = vmatpush.msra.mxu0 0.0
      %7173 = vmatpush.msra.mxu0 %v298
      %7174 = vmatmul.f32.gmra.mxu0 %v7156
      %v7175 = vpop.f32.mrf.mxu0
      %v7176 = vadd.f32 0.0, %v7175
      %7177 = vdwg.mxu0
      %v7179 = vsel %vm384, %v5864, 0
      %7181 = vmatpush.msra.mxu0 0.0
      %7182 = vmatpush.msra.mxu0 0.0
      %7183 = vmatpush.msra.mxu0 0.0
      %7184 = vmatpush.msra.mxu0 0.0
      %7185 = vmatpush.msra.mxu0 0.0
      %7186 = vmatpush.msra.mxu0 0.0
      %7187 = vmatpush.msra.mxu0 0.0
      %7188 = vmatpush.msra.mxu0 0.0
      %7189 = vmatpush.msra.mxu0 0.0
      %7190 = vmatpush.msra.mxu0 0.0
      %7191 = vmatpush.msra.mxu0 0.0
      %7192 = vmatpush.msra.mxu0 0.0
      %7193 = vmatpush.msra.mxu0 0.0
      %7194 = vmatpush.msra.mxu0 0.0
      %7195 = vmatpush.msra.mxu0 0.0
      %7196 = vmatpush.msra.mxu0 %v299
      %7197 = vmatmul.f32.gmra.mxu0 %v7179
      %v7198 = vpop.f32.mrf.mxu0
      %v7199 = vadd.f32 0.0, %v7198
      %7200 = vdwg.mxu0
      %v7202 = vsel %vm384, %v5879, 0
      %7204 = vmatpush.msra.mxu0 0.0
      %7205 = vmatpush.msra.mxu0 0.0
      %7206 = vmatpush.msra.mxu0 0.0
      %7207 = vmatpush.msra.mxu0 0.0
      %7208 = vmatpush.msra.mxu0 0.0
      %7209 = vmatpush.msra.mxu0 0.0
      %7210 = vmatpush.msra.mxu0 0.0
      %7211 = vmatpush.msra.mxu0 0.0
      %7212 = vmatpush.msra.mxu0 0.0
      %7213 = vmatpush.msra.mxu0 0.0
      %7214 = vmatpush.msra.mxu0 0.0
      %7215 = vmatpush.msra.mxu0 0.0
      %7216 = vmatpush.msra.mxu0 0.0
      %7217 = vmatpush.msra.mxu0 0.0
      %7218 = vmatpush.msra.mxu0 0.0
      %7219 = vmatpush.msra.mxu0 %v300
      %7220 = vmatmul.f32.gmra.mxu0 %v7202
      %v7221 = vpop.f32.mrf.mxu0
      %v7222 = vadd.f32 0.0, %v7221
      %7223 = vdwg.mxu0
      %v7225 = vsel %vm384, %v5894, 0
      %7227 = vmatpush.msra.mxu0 0.0
      %7228 = vmatpush.msra.mxu0 0.0
      %7229 = vmatpush.msra.mxu0 0.0
      %7230 = vmatpush.msra.mxu0 0.0
      %7231 = vmatpush.msra.mxu0 0.0
      %7232 = vmatpush.msra.mxu0 0.0
      %7233 = vmatpush.msra.mxu0 0.0
      %7234 = vmatpush.msra.mxu0 0.0
      %7235 = vmatpush.msra.mxu0 0.0
      %7236 = vmatpush.msra.mxu0 0.0
      %7237 = vmatpush.msra.mxu0 0.0
      %7238 = vmatpush.msra.mxu0 0.0
      %7239 = vmatpush.msra.mxu0 0.0
      %7240 = vmatpush.msra.mxu0 0.0
      %7241 = vmatpush.msra.mxu0 0.0
      %7242 = vmatpush.msra.mxu0 %v301
      %7243 = vmatmul.f32.gmra.mxu0 %v7225
      %v7244 = vpop.f32.mrf.mxu0
      %v7245 = vadd.f32 0.0, %v7244
      %7246 = vdwg.mxu0
      %v7248 = vsel %vm384, %v5909, 0
      %7250 = vmatpush.msra.mxu0 0.0
      %7251 = vmatpush.msra.mxu0 0.0
      %7252 = vmatpush.msra.mxu0 0.0
      %7253 = vmatpush.msra.mxu0 0.0
      %7254 = vmatpush.msra.mxu0 0.0
      %7255 = vmatpush.msra.mxu0 0.0
      %7256 = vmatpush.msra.mxu0 0.0
      %7257 = vmatpush.msra.mxu0 0.0
      %7258 = vmatpush.msra.mxu0 0.0
      %7259 = vmatpush.msra.mxu0 0.0
      %7260 = vmatpush.msra.mxu0 0.0
      %7261 = vmatpush.msra.mxu0 0.0
      %7262 = vmatpush.msra.mxu0 0.0
      %7263 = vmatpush.msra.mxu0 0.0
      %7264 = vmatpush.msra.mxu0 0.0
      %7265 = vmatpush.msra.mxu0 %v302
      %7266 = vmatmul.f32.gmra.mxu0 %v7248
      %v7267 = vpop.f32.mrf.mxu0
      %v7268 = vadd.f32 0.0, %v7267
      %7269 = vdwg.mxu0
      %v7271 = vsel %vm384, %v5924, 0
      %7273 = vmatpush.msra.mxu0 0.0
      %7274 = vmatpush.msra.mxu0 0.0
      %7275 = vmatpush.msra.mxu0 0.0
      %7276 = vmatpush.msra.mxu0 0.0
      %7277 = vmatpush.msra.mxu0 0.0
      %7278 = vmatpush.msra.mxu0 0.0
      %7279 = vmatpush.msra.mxu0 0.0
      %7280 = vmatpush.msra.mxu0 0.0
      %7281 = vmatpush.msra.mxu0 0.0
      %7282 = vmatpush.msra.mxu0 0.0
      %7283 = vmatpush.msra.mxu0 0.0
      %7284 = vmatpush.msra.mxu0 0.0
      %7285 = vmatpush.msra.mxu0 0.0
      %7286 = vmatpush.msra.mxu0 0.0
      %7287 = vmatpush.msra.mxu0 0.0
      %7288 = vmatpush.msra.mxu0 %v303
      %7289 = vmatmul.f32.gmra.mxu0 %v7271
      %v7290 = vpop.f32.mrf.mxu0
      %v7291 = vadd.f32 0.0, %v7290
      %7292 = vdwg.mxu0
      %v7294 = vsel %vm384, %v5939, 0
      %7296 = vmatpush.msra.mxu0 0.0
      %7297 = vmatpush.msra.mxu0 0.0
      %7298 = vmatpush.msra.mxu0 0.0
      %7299 = vmatpush.msra.mxu0 0.0
      %7300 = vmatpush.msra.mxu0 0.0
      %7301 = vmatpush.msra.mxu0 0.0
      %7302 = vmatpush.msra.mxu0 0.0
      %7303 = vmatpush.msra.mxu0 0.0
      %7304 = vmatpush.msra.mxu0 0.0
      %7305 = vmatpush.msra.mxu0 0.0
      %7306 = vmatpush.msra.mxu0 0.0
      %7307 = vmatpush.msra.mxu0 0.0
      %7308 = vmatpush.msra.mxu0 0.0
      %7309 = vmatpush.msra.mxu0 0.0
      %7310 = vmatpush.msra.mxu0 0.0
      %7311 = vmatpush.msra.mxu0 %v304
      %7312 = vmatmul.f32.gmra.mxu0 %v7294
      %v7313 = vpop.f32.mrf.mxu0
      %v7314 = vadd.f32 0.0, %v7313
      %7315 = vdwg.mxu0
      %v7317 = vsel %vm384, %v5954, 0
      %7319 = vmatpush.msra.mxu0 0.0
      %7320 = vmatpush.msra.mxu0 0.0
      %7321 = vmatpush.msra.mxu0 0.0
      %7322 = vmatpush.msra.mxu0 0.0
      %7323 = vmatpush.msra.mxu0 0.0
      %7324 = vmatpush.msra.mxu0 0.0
      %7325 = vmatpush.msra.mxu0 0.0
      %7326 = vmatpush.msra.mxu0 0.0
      %7327 = vmatpush.msra.mxu0 0.0
      %7328 = vmatpush.msra.mxu0 0.0
      %7329 = vmatpush.msra.mxu0 0.0
      %7330 = vmatpush.msra.mxu0 0.0
      %7331 = vmatpush.msra.mxu0 0.0
      %7332 = vmatpush.msra.mxu0 0.0
      %7333 = vmatpush.msra.mxu0 0.0
      %7334 = vmatpush.msra.mxu0 %v305
      %7335 = vmatmul.f32.gmra.mxu0 %v7317
      %v7336 = vpop.f32.mrf.mxu0
      %v7337 = vadd.f32 0.0, %v7336
      %7338 = vdwg.mxu0
      %v7340 = vsel %vm384, %v5969, 0
      %7342 = vmatpush.msra.mxu0 0.0
      %7343 = vmatpush.msra.mxu0 0.0
      %7344 = vmatpush.msra.mxu0 0.0
      %7345 = vmatpush.msra.mxu0 0.0
      %7346 = vmatpush.msra.mxu0 0.0
      %7347 = vmatpush.msra.mxu0 0.0
      %7348 = vmatpush.msra.mxu0 0.0
      %7349 = vmatpush.msra.mxu0 0.0
      %7350 = vmatpush.msra.mxu0 0.0
      %7351 = vmatpush.msra.mxu0 0.0
      %7352 = vmatpush.msra.mxu0 0.0
      %7353 = vmatpush.msra.mxu0 0.0
      %7354 = vmatpush.msra.mxu0 0.0
      %7355 = vmatpush.msra.mxu0 0.0
      %7356 = vmatpush.msra.mxu0 0.0
      %7357 = vmatpush.msra.mxu0 %v306
      %7358 = vmatmul.f32.gmra.mxu0 %v7340
      %v7359 = vpop.f32.mrf.mxu0
      %v7360 = vadd.f32 0.0, %v7359
      %7361 = vdwg.mxu0
      %v7363 = vsel %vm384, %v5984, 0
      %7365 = vmatpush.msra.mxu0 0.0
      %7366 = vmatpush.msra.mxu0 0.0
      %7367 = vmatpush.msra.mxu0 0.0
      %7368 = vmatpush.msra.mxu0 0.0
      %7369 = vmatpush.msra.mxu0 0.0
      %7370 = vmatpush.msra.mxu0 0.0
      %7371 = vmatpush.msra.mxu0 0.0
      %7372 = vmatpush.msra.mxu0 0.0
      %7373 = vmatpush.msra.mxu0 0.0
      %7374 = vmatpush.msra.mxu0 0.0
      %7375 = vmatpush.msra.mxu0 0.0
      %7376 = vmatpush.msra.mxu0 0.0
      %7377 = vmatpush.msra.mxu0 0.0
      %7378 = vmatpush.msra.mxu0 0.0
      %7379 = vmatpush.msra.mxu0 0.0
      %7380 = vmatpush.msra.mxu0 %v307
      %7381 = vmatmul.f32.gmra.mxu0 %v7363
      %v7382 = vpop.f32.mrf.mxu0
      %v7383 = vadd.f32 0.0, %v7382
      %7384 = vdwg.mxu0
      %v7386 = vsel %vm384, %v5999, 0
      %7388 = vmatpush.msra.mxu0 0.0
      %7389 = vmatpush.msra.mxu0 0.0
      %7390 = vmatpush.msra.mxu0 0.0
      %7391 = vmatpush.msra.mxu0 0.0
      %7392 = vmatpush.msra.mxu0 0.0
      %7393 = vmatpush.msra.mxu0 0.0
      %7394 = vmatpush.msra.mxu0 0.0
      %7395 = vmatpush.msra.mxu0 0.0
      %7396 = vmatpush.msra.mxu0 0.0
      %7397 = vmatpush.msra.mxu0 0.0
      %7398 = vmatpush.msra.mxu0 0.0
      %7399 = vmatpush.msra.mxu0 0.0
      %7400 = vmatpush.msra.mxu0 0.0
      %7401 = vmatpush.msra.mxu0 0.0
      %7402 = vmatpush.msra.mxu0 0.0
      %7403 = vmatpush.msra.mxu0 %v308
      %7404 = vmatmul.f32.gmra.mxu0 %v7386
      %v7405 = vpop.f32.mrf.mxu0
      %v7406 = vadd.f32 0.0, %v7405
      %7407 = vdwg.mxu0
      %v7409 = vsel %vm384, %v6014, 0
      %7411 = vmatpush.msra.mxu0 0.0
      %7412 = vmatpush.msra.mxu0 0.0
      %7413 = vmatpush.msra.mxu0 0.0
      %7414 = vmatpush.msra.mxu0 0.0
      %7415 = vmatpush.msra.mxu0 0.0
      %7416 = vmatpush.msra.mxu0 0.0
      %7417 = vmatpush.msra.mxu0 0.0
      %7418 = vmatpush.msra.mxu0 0.0
      %7419 = vmatpush.msra.mxu0 0.0
      %7420 = vmatpush.msra.mxu0 0.0
      %7421 = vmatpush.msra.mxu0 0.0
      %7422 = vmatpush.msra.mxu0 0.0
      %7423 = vmatpush.msra.mxu0 0.0
      %7424 = vmatpush.msra.mxu0 0.0
      %7425 = vmatpush.msra.mxu0 0.0
      %7426 = vmatpush.msra.mxu0 %v309
      %7427 = vmatmul.f32.gmra.mxu0 %v7409
      %v7428 = vpop.f32.mrf.mxu0
      %v7429 = vadd.f32 0.0, %v7428
      %7430 = vdwg.mxu0
      %v7432 = vsel %vm384, %v6029, 0
      %7434 = vmatpush.msra.mxu0 0.0
      %7435 = vmatpush.msra.mxu0 0.0
      %7436 = vmatpush.msra.mxu0 0.0
      %7437 = vmatpush.msra.mxu0 0.0
      %7438 = vmatpush.msra.mxu0 0.0
      %7439 = vmatpush.msra.mxu0 0.0
      %7440 = vmatpush.msra.mxu0 0.0
      %7441 = vmatpush.msra.mxu0 0.0
      %7442 = vmatpush.msra.mxu0 0.0
      %7443 = vmatpush.msra.mxu0 0.0
      %7444 = vmatpush.msra.mxu0 0.0
      %7445 = vmatpush.msra.mxu0 0.0
      %7446 = vmatpush.msra.mxu0 0.0
      %7447 = vmatpush.msra.mxu0 0.0
      %7448 = vmatpush.msra.mxu0 0.0
      %7449 = vmatpush.msra.mxu0 %v310
      %7450 = vmatmul.f32.gmra.mxu0 %v7432
      %v7451 = vpop.f32.mrf.mxu0
      %v7452 = vadd.f32 0.0, %v7451
      %7453 = vdwg.mxu0
      %v7455 = vsel %vm384, %v6044, 0
      %7457 = vmatpush.msra.mxu0 0.0
      %7458 = vmatpush.msra.mxu0 0.0
      %7459 = vmatpush.msra.mxu0 0.0
      %7460 = vmatpush.msra.mxu0 0.0
      %7461 = vmatpush.msra.mxu0 0.0
      %7462 = vmatpush.msra.mxu0 0.0
      %7463 = vmatpush.msra.mxu0 0.0
      %7464 = vmatpush.msra.mxu0 0.0
      %7465 = vmatpush.msra.mxu0 0.0
      %7466 = vmatpush.msra.mxu0 0.0
      %7467 = vmatpush.msra.mxu0 0.0
      %7468 = vmatpush.msra.mxu0 0.0
      %7469 = vmatpush.msra.mxu0 0.0
      %7470 = vmatpush.msra.mxu0 0.0
      %7471 = vmatpush.msra.mxu0 0.0
      %7472 = vmatpush.msra.mxu0 %v311
      %7473 = vmatmul.f32.gmra.mxu0 %v7455
      %v7474 = vpop.f32.mrf.mxu0
      %v7475 = vadd.f32 0.0, %v7474
      %7476 = vdwg.mxu0
      %v7478 = vsel %vm384, %v6059, 0
      %7480 = vmatpush.msra.mxu0 0.0
      %7481 = vmatpush.msra.mxu0 0.0
      %7482 = vmatpush.msra.mxu0 0.0
      %7483 = vmatpush.msra.mxu0 0.0
      %7484 = vmatpush.msra.mxu0 0.0
      %7485 = vmatpush.msra.mxu0 0.0
      %7486 = vmatpush.msra.mxu0 0.0
      %7487 = vmatpush.msra.mxu0 0.0
      %7488 = vmatpush.msra.mxu0 0.0
      %7489 = vmatpush.msra.mxu0 0.0
      %7490 = vmatpush.msra.mxu0 0.0
      %7491 = vmatpush.msra.mxu0 0.0
      %7492 = vmatpush.msra.mxu0 0.0
      %7493 = vmatpush.msra.mxu0 0.0
      %7494 = vmatpush.msra.mxu0 0.0
      %7495 = vmatpush.msra.mxu0 %v312
      %7496 = vmatmul.f32.gmra.mxu0 %v7478
      %v7497 = vpop.f32.mrf.mxu0
      %v7498 = vadd.f32 0.0, %v7497
      %7499 = vdwg.mxu0
      %v7501 = vsel %vm384, %v6074, 0
      %7503 = vmatpush.msra.mxu0 0.0
      %7504 = vmatpush.msra.mxu0 0.0
      %7505 = vmatpush.msra.mxu0 0.0
      %7506 = vmatpush.msra.mxu0 0.0
      %7507 = vmatpush.msra.mxu0 0.0
      %7508 = vmatpush.msra.mxu0 0.0
      %7509 = vmatpush.msra.mxu0 0.0
      %7510 = vmatpush.msra.mxu0 0.0
      %7511 = vmatpush.msra.mxu0 0.0
      %7512 = vmatpush.msra.mxu0 0.0
      %7513 = vmatpush.msra.mxu0 0.0
      %7514 = vmatpush.msra.mxu0 0.0
      %7515 = vmatpush.msra.mxu0 0.0
      %7516 = vmatpush.msra.mxu0 0.0
      %7517 = vmatpush.msra.mxu0 0.0
      %7518 = vmatpush.msra.mxu0 %v313
      %7519 = vmatmul.f32.gmra.mxu0 %v7501
      %v7520 = vpop.f32.mrf.mxu0
      %v7521 = vadd.f32 0.0, %v7520
      %7522 = vdwg.mxu0
      %v7524 = vsel %vm384, %v6089, 0
      %7526 = vmatpush.msra.mxu0 0.0
      %7527 = vmatpush.msra.mxu0 0.0
      %7528 = vmatpush.msra.mxu0 0.0
      %7529 = vmatpush.msra.mxu0 0.0
      %7530 = vmatpush.msra.mxu0 0.0
      %7531 = vmatpush.msra.mxu0 0.0
      %7532 = vmatpush.msra.mxu0 0.0
      %7533 = vmatpush.msra.mxu0 0.0
      %7534 = vmatpush.msra.mxu0 0.0
      %7535 = vmatpush.msra.mxu0 0.0
      %7536 = vmatpush.msra.mxu0 0.0
      %7537 = vmatpush.msra.mxu0 0.0
      %7538 = vmatpush.msra.mxu0 0.0
      %7539 = vmatpush.msra.mxu0 0.0
      %7540 = vmatpush.msra.mxu0 0.0
      %7541 = vmatpush.msra.mxu0 %v314
      %7542 = vmatmul.f32.gmra.mxu0 %v7524
      %v7543 = vpop.f32.mrf.mxu0
      %v7544 = vadd.f32 0.0, %v7543
      %7545 = vdwg.mxu0
      %v7547 = vsel %vm384, %v6104, 0
      %7549 = vmatpush.msra.mxu0 0.0
      %7550 = vmatpush.msra.mxu0 0.0
      %7551 = vmatpush.msra.mxu0 0.0
      %7552 = vmatpush.msra.mxu0 0.0
      %7553 = vmatpush.msra.mxu0 0.0
      %7554 = vmatpush.msra.mxu0 0.0
      %7555 = vmatpush.msra.mxu0 0.0
      %7556 = vmatpush.msra.mxu0 0.0
      %7557 = vmatpush.msra.mxu0 0.0
      %7558 = vmatpush.msra.mxu0 0.0
      %7559 = vmatpush.msra.mxu0 0.0
      %7560 = vmatpush.msra.mxu0 0.0
      %7561 = vmatpush.msra.mxu0 0.0
      %7562 = vmatpush.msra.mxu0 0.0
      %7563 = vmatpush.msra.mxu0 0.0
      %7564 = vmatpush.msra.mxu0 %v315
      %7565 = vmatmul.f32.gmra.mxu0 %v7547
      %v7566 = vpop.f32.mrf.mxu0
      %v7567 = vadd.f32 0.0, %v7566
      %7568 = vdwg.mxu0
      %v7570 = vsel %vm384, %v6119, 0
      %7572 = vmatpush.msra.mxu0 0.0
      %7573 = vmatpush.msra.mxu0 0.0
      %7574 = vmatpush.msra.mxu0 0.0
      %7575 = vmatpush.msra.mxu0 0.0
      %7576 = vmatpush.msra.mxu0 0.0
      %7577 = vmatpush.msra.mxu0 0.0
      %7578 = vmatpush.msra.mxu0 0.0
      %7579 = vmatpush.msra.mxu0 0.0
      %7580 = vmatpush.msra.mxu0 0.0
      %7581 = vmatpush.msra.mxu0 0.0
      %7582 = vmatpush.msra.mxu0 0.0
      %7583 = vmatpush.msra.mxu0 0.0
      %7584 = vmatpush.msra.mxu0 0.0
      %7585 = vmatpush.msra.mxu0 0.0
      %7586 = vmatpush.msra.mxu0 0.0
      %7587 = vmatpush.msra.mxu0 %v316
      %7588 = vmatmul.f32.gmra.mxu0 %v7570
      %v7589 = vpop.f32.mrf.mxu0
      %v7590 = vadd.f32 0.0, %v7589
      %7591 = vdwg.mxu0
      %v7593 = vsel %vm2515, %v6141, 0
      %v7596 = vsel %vm2515, %v6164, 0
      %v7599 = vsel %vm2515, %v6187, 0
      %v7602 = vsel %vm2515, %v6210, 0
      %v7605 = vsel %vm2515, %v6233, 0
      %v7608 = vsel %vm2515, %v6256, 0
      %v7611 = vsel %vm2515, %v6279, 0
      %v7614 = vsel %vm2515, %v6302, 0
      %v7617 = vsel %vm2515, %v6325, 0
      %v7620 = vsel %vm2515, %v6348, 0
      %v7623 = vsel %vm2515, %v6371, 0
      %v7626 = vsel %vm2515, %v6394, 0
      %v7629 = vsel %vm2515, %v6417, 0
      %v7632 = vsel %vm2515, %v6440, 0
      %v7635 = vsel %vm2515, %v6463, 0
      %v7638 = vsel %vm2515, %v6486, 0
      %v7641 = vsel %vm2515, %v6509, 0
      %v7644 = vsel %vm2515, %v6532, 0
      %v7647 = vsel %vm2515, %v6555, 0
      %v7650 = vsel %vm2515, %v6578, 0
      %v7653 = vsel %vm2515, %v6601, 0
      %v7656 = vsel %vm2515, %v6624, 0
      %v7659 = vsel %vm2515, %v6647, 0
      %v7662 = vsel %vm2515, %v6670, 0
      %v7665 = vsel %vm2515, %v6693, 0
      %v7668 = vsel %vm2515, %v6716, 0
      %v7671 = vsel %vm2515, %v6739, 0
      %v7674 = vsel %vm2515, %v6762, 0
      %v7677 = vsel %vm2515, %v6785, 0
      %v7680 = vsel %vm2515, %v6808, 0
      %v7683 = vsel %vm2515, %v6831, 0
      %v7686 = vsel %vm2515, %v6854, 0
      %v7689 = vsel %vm2515, %v6877, 0
      %v7692 = vsel %vm2515, %v6900, 0
      %v7695 = vsel %vm2515, %v6923, 0
      %v7698 = vsel %vm2515, %v6946, 0
      %v7701 = vsel %vm2515, %v6969, 0
      %v7704 = vsel %vm2515, %v6992, 0
      %v7707 = vsel %vm2515, %v7015, 0
      %v7710 = vsel %vm2515, %v7038, 0
      %v7713 = vsel %vm2515, %v7061, 0
      %v7716 = vsel %vm2515, %v7084, 0
      %v7719 = vsel %vm2515, %v7107, 0
      %v7722 = vsel %vm2515, %v7130, 0
      %v7725 = vsel %vm2515, %v7153, 0
      %v7728 = vsel %vm2515, %v7176, 0
      %v7731 = vsel %vm2515, %v7199, 0
      %v7734 = vsel %vm2515, %v7222, 0
      %v7737 = vsel %vm2515, %v7245, 0
      %v7740 = vsel %vm2515, %v7268, 0
      %v7743 = vsel %vm2515, %v7291, 0
      %v7746 = vsel %vm2515, %v7314, 0
      %v7749 = vsel %vm2515, %v7337, 0
      %v7752 = vsel %vm2515, %v7360, 0
      %v7755 = vsel %vm2515, %v7383, 0
      %v7758 = vsel %vm2515, %v7406, 0
      %v7761 = vsel %vm2515, %v7429, 0
      %v7764 = vsel %vm2515, %v7452, 0
      %v7767 = vsel %vm2515, %v7475, 0
      %v7770 = vsel %vm2515, %v7498, 0
      %v7773 = vsel %vm2515, %v7521, 0
      %v7776 = vsel %vm2515, %v7544, 0
      %v7779 = vsel %vm2515, %v7567, 0
      %v7782 = vsel %vm2515, %v7590, 0
      %v7785 = vsel %vm2060, %v383, 0
      %7787 = vmatpush.msra.mxu0 0.0
      %7788 = vmatpush.msra.mxu0 0.0
      %7789 = vmatpush.msra.mxu0 0.0
      %7790 = vmatpush.msra.mxu0 0.0
      %7791 = vmatpush.msra.mxu0 0.0
      %7792 = vmatpush.msra.mxu0 0.0
      %7793 = vmatpush.msra.mxu0 0.0
      %7794 = vmatpush.msra.mxu0 0.0
      %7795 = vmatpush.msra.mxu0 0.0
      %7796 = vmatpush.msra.mxu0 0.0
      %7797 = vmatpush.msra.mxu0 0.0
      %7798 = vmatpush.msra.mxu0 %v7785
      %7799 = vmatpush.msra.mxu0 %v382
      %7800 = vmatpush.msra.mxu0 %v381
      %7801 = vmatpush.msra.mxu0 %v380
      %7802 = vmatpush.msra.mxu0 %v379
      %7803 = vmatmul.f32.gmra.mxu0 %v7593
      %v7804 = vpop.f32.mrf.mxu0
      %v7805 = vadd.f32 0.0, %v7804
      %7806 = vmatmul.f32.gmra.mxu0 %v7596
      %v7807 = vpop.f32.mrf.mxu0
      %v7808 = vadd.f32 0.0, %v7807
      %7809 = vmatmul.f32.gmra.mxu0 %v7599
      %v7810 = vpop.f32.mrf.mxu0
      %v7811 = vadd.f32 0.0, %v7810
      %7812 = vmatmul.f32.gmra.mxu0 %v7602
      %v7813 = vpop.f32.mrf.mxu0
      %v7814 = vadd.f32 0.0, %v7813
      %7815 = vmatmul.f32.gmra.mxu0 %v7605
      %v7816 = vpop.f32.mrf.mxu0
      %v7817 = vadd.f32 0.0, %v7816
      %7818 = vmatmul.f32.gmra.mxu0 %v7608
      %v7819 = vpop.f32.mrf.mxu0
      %v7820 = vadd.f32 0.0, %v7819
      %7821 = vmatmul.f32.gmra.mxu0 %v7611
      %v7822 = vpop.f32.mrf.mxu0
      %v7823 = vadd.f32 0.0, %v7822
      %7824 = vmatmul.f32.gmra.mxu0 %v7614
      %v7825 = vpop.f32.mrf.mxu0
      %v7826 = vadd.f32 0.0, %v7825
      %7827 = vmatmul.f32.gmra.mxu0 %v7617
      %v7828 = vpop.f32.mrf.mxu0
      %v7829 = vadd.f32 0.0, %v7828
      %7830 = vmatmul.f32.gmra.mxu0 %v7620
      %v7831 = vpop.f32.mrf.mxu0
      %v7832 = vadd.f32 0.0, %v7831
      %7833 = vmatmul.f32.gmra.mxu0 %v7623
      %v7834 = vpop.f32.mrf.mxu0
      %v7835 = vadd.f32 0.0, %v7834
      %7836 = vmatmul.f32.gmra.mxu0 %v7626
      %v7837 = vpop.f32.mrf.mxu0
      %v7838 = vadd.f32 0.0, %v7837
      %7839 = vmatmul.f32.gmra.mxu0 %v7629
      %v7840 = vpop.f32.mrf.mxu0
      %v7841 = vadd.f32 0.0, %v7840
      %7842 = vmatmul.f32.gmra.mxu0 %v7632
      %v7843 = vpop.f32.mrf.mxu0
      %v7844 = vadd.f32 0.0, %v7843
      %7845 = vmatmul.f32.gmra.mxu0 %v7635
      %v7846 = vpop.f32.mrf.mxu0
      %v7847 = vadd.f32 0.0, %v7846
      %7848 = vmatmul.f32.gmra.mxu0 %v7638
      %v7849 = vpop.f32.mrf.mxu0
      %v7850 = vadd.f32 0.0, %v7849
      %7851 = vmatmul.f32.gmra.mxu0 %v7641
      %v7852 = vpop.f32.mrf.mxu0
      %v7853 = vadd.f32 0.0, %v7852
      %7854 = vmatmul.f32.gmra.mxu0 %v7644
      %v7855 = vpop.f32.mrf.mxu0
      %v7856 = vadd.f32 0.0, %v7855
      %7857 = vmatmul.f32.gmra.mxu0 %v7647
      %v7858 = vpop.f32.mrf.mxu0
      %v7859 = vadd.f32 0.0, %v7858
      %7860 = vmatmul.f32.gmra.mxu0 %v7650
      %v7861 = vpop.f32.mrf.mxu0
      %v7862 = vadd.f32 0.0, %v7861
      %7863 = vmatmul.f32.gmra.mxu0 %v7653
      %v7864 = vpop.f32.mrf.mxu0
      %v7865 = vadd.f32 0.0, %v7864
      %7866 = vmatmul.f32.gmra.mxu0 %v7656
      %v7867 = vpop.f32.mrf.mxu0
      %v7868 = vadd.f32 0.0, %v7867
      %7869 = vmatmul.f32.gmra.mxu0 %v7659
      %v7870 = vpop.f32.mrf.mxu0
      %v7871 = vadd.f32 0.0, %v7870
      %7872 = vmatmul.f32.gmra.mxu0 %v7662
      %v7873 = vpop.f32.mrf.mxu0
      %v7874 = vadd.f32 0.0, %v7873
      %7875 = vmatmul.f32.gmra.mxu0 %v7665
      %v7876 = vpop.f32.mrf.mxu0
      %v7877 = vadd.f32 0.0, %v7876
      %7878 = vmatmul.f32.gmra.mxu0 %v7668
      %v7879 = vpop.f32.mrf.mxu0
      %v7880 = vadd.f32 0.0, %v7879
      %7881 = vmatmul.f32.gmra.mxu0 %v7671
      %v7882 = vpop.f32.mrf.mxu0
      %v7883 = vadd.f32 0.0, %v7882
      %7884 = vmatmul.f32.gmra.mxu0 %v7674
      %v7885 = vpop.f32.mrf.mxu0
      %v7886 = vadd.f32 0.0, %v7885
      %7887 = vmatmul.f32.gmra.mxu0 %v7677
      %v7888 = vpop.f32.mrf.mxu0
      %v7889 = vadd.f32 0.0, %v7888
      %7890 = vmatmul.f32.gmra.mxu0 %v7680
      %v7891 = vpop.f32.mrf.mxu0
      %v7892 = vadd.f32 0.0, %v7891
      %7893 = vmatmul.f32.gmra.mxu0 %v7683
      %v7894 = vpop.f32.mrf.mxu0
      %v7895 = vadd.f32 0.0, %v7894
      %7896 = vmatmul.f32.gmra.mxu0 %v7686
      %v7897 = vpop.f32.mrf.mxu0
      %v7898 = vadd.f32 0.0, %v7897
      %7899 = vmatmul.f32.gmra.mxu0 %v7689
      %v7900 = vpop.f32.mrf.mxu0
      %v7901 = vadd.f32 0.0, %v7900
      %7902 = vmatmul.f32.gmra.mxu0 %v7692
      %v7903 = vpop.f32.mrf.mxu0
      %v7904 = vadd.f32 0.0, %v7903
      %7905 = vmatmul.f32.gmra.mxu0 %v7695
      %v7906 = vpop.f32.mrf.mxu0
      %v7907 = vadd.f32 0.0, %v7906
      %7908 = vmatmul.f32.gmra.mxu0 %v7698
      %v7909 = vpop.f32.mrf.mxu0
      %v7910 = vadd.f32 0.0, %v7909
      %7911 = vmatmul.f32.gmra.mxu0 %v7701
      %v7912 = vpop.f32.mrf.mxu0
      %v7913 = vadd.f32 0.0, %v7912
      %7914 = vmatmul.f32.gmra.mxu0 %v7704
      %v7915 = vpop.f32.mrf.mxu0
      %v7916 = vadd.f32 0.0, %v7915
      %7917 = vmatmul.f32.gmra.mxu0 %v7707
      %v7918 = vpop.f32.mrf.mxu0
      %v7919 = vadd.f32 0.0, %v7918
      %7920 = vmatmul.f32.gmra.mxu0 %v7710
      %v7921 = vpop.f32.mrf.mxu0
      %v7922 = vadd.f32 0.0, %v7921
      %7923 = vmatmul.f32.gmra.mxu0 %v7713
      %v7924 = vpop.f32.mrf.mxu0
      %v7925 = vadd.f32 0.0, %v7924
      %7926 = vmatmul.f32.gmra.mxu0 %v7716
      %v7927 = vpop.f32.mrf.mxu0
      %v7928 = vadd.f32 0.0, %v7927
      %7929 = vmatmul.f32.gmra.mxu0 %v7719
      %v7930 = vpop.f32.mrf.mxu0
      %v7931 = vadd.f32 0.0, %v7930
      %7932 = vmatmul.f32.gmra.mxu0 %v7722
      %v7933 = vpop.f32.mrf.mxu0
      %v7934 = vadd.f32 0.0, %v7933
      %7935 = vmatmul.f32.gmra.mxu0 %v7725
      %v7936 = vpop.f32.mrf.mxu0
      %v7937 = vadd.f32 0.0, %v7936
      %7938 = vmatmul.f32.gmra.mxu0 %v7728
      %v7939 = vpop.f32.mrf.mxu0
      %v7940 = vadd.f32 0.0, %v7939
      %7941 = vmatmul.f32.gmra.mxu0 %v7731
      %v7942 = vpop.f32.mrf.mxu0
      %v7943 = vadd.f32 0.0, %v7942
      %7944 = vmatmul.f32.gmra.mxu0 %v7734
      %v7945 = vpop.f32.mrf.mxu0
      %v7946 = vadd.f32 0.0, %v7945
      %7947 = vmatmul.f32.gmra.mxu0 %v7737
      %v7948 = vpop.f32.mrf.mxu0
      %v7949 = vadd.f32 0.0, %v7948
      %7950 = vmatmul.f32.gmra.mxu0 %v7740
      %v7951 = vpop.f32.mrf.mxu0
      %v7952 = vadd.f32 0.0, %v7951
      %7953 = vmatmul.f32.gmra.mxu0 %v7743
      %v7954 = vpop.f32.mrf.mxu0
      %v7955 = vadd.f32 0.0, %v7954
      %7956 = vmatmul.f32.gmra.mxu0 %v7746
      %v7957 = vpop.f32.mrf.mxu0
      %v7958 = vadd.f32 0.0, %v7957
      %7959 = vmatmul.f32.gmra.mxu0 %v7749
      %v7960 = vpop.f32.mrf.mxu0
      %v7961 = vadd.f32 0.0, %v7960
      %7962 = vmatmul.f32.gmra.mxu0 %v7752
      %v7963 = vpop.f32.mrf.mxu0
      %v7964 = vadd.f32 0.0, %v7963
      %7965 = vmatmul.f32.gmra.mxu0 %v7755
      %v7966 = vpop.f32.mrf.mxu0
      %v7967 = vadd.f32 0.0, %v7966
      %7968 = vmatmul.f32.gmra.mxu0 %v7758
      %v7969 = vpop.f32.mrf.mxu0
      %v7970 = vadd.f32 0.0, %v7969
      %7971 = vmatmul.f32.gmra.mxu0 %v7761
      %v7972 = vpop.f32.mrf.mxu0
      %v7973 = vadd.f32 0.0, %v7972
      %7974 = vmatmul.f32.gmra.mxu0 %v7764
      %v7975 = vpop.f32.mrf.mxu0
      %v7976 = vadd.f32 0.0, %v7975
      %7977 = vmatmul.f32.gmra.mxu0 %v7767
      %v7978 = vpop.f32.mrf.mxu0
      %v7979 = vadd.f32 0.0, %v7978
      %7980 = vmatmul.f32.gmra.mxu0 %v7770
      %v7981 = vpop.f32.mrf.mxu0
      %v7982 = vadd.f32 0.0, %v7981
      %7983 = vmatmul.f32.gmra.mxu0 %v7773
      %v7984 = vpop.f32.mrf.mxu0
      %v7985 = vadd.f32 0.0, %v7984
      %7986 = vmatmul.f32.gmra.mxu0 %v7776
      %v7987 = vpop.f32.mrf.mxu0
      %v7988 = vadd.f32 0.0, %v7987
      %7989 = vmatmul.f32.gmra.mxu0 %v7779
      %v7990 = vpop.f32.mrf.mxu0
      %v7991 = vadd.f32 0.0, %v7990
      %7992 = vmatmul.f32.gmra.mxu0 %v7782
      %v7993 = vpop.f32.mrf.mxu0
      %v7994 = vadd.f32 0.0, %v7993
      %7995 = vdwg.mxu0
      %v7996 = vlaneseq
      %v7997 = vand.u32 %v7996, 127
      %vm7998 = vcmp.eq.s32.totalorder %v7997, 5
      %v7999 = vsel %vm7998, 0.0, 1.0
      %vm8000 = vcmp.lt.s32.totalorder %v7997, 4
      %v8001 = vsel %vm7998, 1.0, 0.0
      %v8002 = vsel %vm8000, -1.0, %v8001
      %v8003 = vmul.f32 %v7805, %v7999
      %v8004 = vmul.f32 %v7808, %v7999
      %v8005 = vmul.f32 %v7811, %v7999
      %v8006 = vmul.f32 %v7814, %v7999
      %v8007 = vmul.f32 %v7817, %v7999
      %v8008 = vmul.f32 %v7820, %v7999
      %v8009 = vmul.f32 %v7823, %v7999
      %v8010 = vmul.f32 %v7826, %v7999
      %v8011 = vmul.f32 %v7829, %v7999
      %v8012 = vmul.f32 %v7832, %v7999
      %v8013 = vmul.f32 %v7835, %v7999
      %v8014 = vmul.f32 %v7838, %v7999
      %v8015 = vmul.f32 %v7841, %v7999
      %v8016 = vmul.f32 %v7844, %v7999
      %v8017 = vmul.f32 %v7847, %v7999
      %v8018 = vmul.f32 %v7850, %v7999
      %v8019 = vmul.f32 %v7853, %v7999
      %v8020 = vmul.f32 %v7856, %v7999
      %v8021 = vmul.f32 %v7859, %v7999
      %v8022 = vmul.f32 %v7862, %v7999
      %v8023 = vmul.f32 %v7865, %v7999
      %v8024 = vmul.f32 %v7868, %v7999
      %v8025 = vmul.f32 %v7871, %v7999
      %v8026 = vmul.f32 %v7874, %v7999
      %v8027 = vmul.f32 %v7877, %v7999
      %v8028 = vmul.f32 %v7880, %v7999
      %v8029 = vmul.f32 %v7883, %v7999
      %v8030 = vmul.f32 %v7886, %v7999
      %v8031 = vmul.f32 %v7889, %v7999
      %v8032 = vmul.f32 %v7892, %v7999
      %v8033 = vmul.f32 %v7895, %v7999
      %v8034 = vmul.f32 %v7898, %v7999
      %v8035 = vmul.f32 %v7901, %v7999
      %v8036 = vmul.f32 %v7904, %v7999
      %v8037 = vmul.f32 %v7907, %v7999
      %v8038 = vmul.f32 %v7910, %v7999
      %v8039 = vmul.f32 %v7913, %v7999
      %v8040 = vmul.f32 %v7916, %v7999
      %v8041 = vmul.f32 %v7919, %v7999
      %v8042 = vmul.f32 %v7922, %v7999
      %v8043 = vmul.f32 %v7925, %v7999
      %v8044 = vmul.f32 %v7928, %v7999
      %v8045 = vmul.f32 %v7931, %v7999
      %v8046 = vmul.f32 %v7934, %v7999
      %v8047 = vmul.f32 %v7937, %v7999
      %v8048 = vmul.f32 %v7940, %v7999
      %v8049 = vmul.f32 %v7943, %v7999
      %v8050 = vmul.f32 %v7946, %v7999
      %v8051 = vmul.f32 %v7949, %v7999
      %v8052 = vmul.f32 %v7952, %v7999
      %v8053 = vmul.f32 %v7955, %v7999
      %v8054 = vmul.f32 %v7958, %v7999
      %v8055 = vmul.f32 %v7961, %v7999
      %v8056 = vmul.f32 %v7964, %v7999
      %v8057 = vmul.f32 %v7967, %v7999
      %v8058 = vmul.f32 %v7970, %v7999
      %v8059 = vmul.f32 %v7973, %v7999
      %v8060 = vmul.f32 %v7976, %v7999
      %v8061 = vmul.f32 %v7979, %v7999
      %v8062 = vmul.f32 %v7982, %v7999
      %v8063 = vmul.f32 %v7985, %v7999
      %v8064 = vmul.f32 %v7988, %v7999
      %v8065 = vmul.f32 %v7991, %v7999
      %v8066 = vmul.f32 %v7994, %v7999
      %v8067 = vmul.f32 %v7805, %v8002
      %v8068 = vmul.f32 %v7808, %v8002
      %v8069 = vmul.f32 %v7811, %v8002
      %v8070 = vmul.f32 %v7814, %v8002
      %v8071 = vmul.f32 %v7817, %v8002
      %v8072 = vmul.f32 %v7820, %v8002
      %v8073 = vmul.f32 %v7823, %v8002
      %v8074 = vmul.f32 %v7826, %v8002
      %v8075 = vmul.f32 %v7829, %v8002
      %v8076 = vmul.f32 %v7832, %v8002
      %v8077 = vmul.f32 %v7835, %v8002
      %v8078 = vmul.f32 %v7838, %v8002
      %v8079 = vmul.f32 %v7841, %v8002
      %v8080 = vmul.f32 %v7844, %v8002
      %v8081 = vmul.f32 %v7847, %v8002
      %v8082 = vmul.f32 %v7850, %v8002
      %v8083 = vmul.f32 %v7853, %v8002
      %v8084 = vmul.f32 %v7856, %v8002
      %v8085 = vmul.f32 %v7859, %v8002
      %v8086 = vmul.f32 %v7862, %v8002
      %v8087 = vmul.f32 %v7865, %v8002
      %v8088 = vmul.f32 %v7868, %v8002
      %v8089 = vmul.f32 %v7871, %v8002
      %v8090 = vmul.f32 %v7874, %v8002
      %v8091 = vmul.f32 %v7877, %v8002
      %v8092 = vmul.f32 %v7880, %v8002
      %v8093 = vmul.f32 %v7883, %v8002
      %v8094 = vmul.f32 %v7886, %v8002
      %v8095 = vmul.f32 %v7889, %v8002
      %v8096 = vmul.f32 %v7892, %v8002
      %v8097 = vmul.f32 %v7895, %v8002
      %v8098 = vmul.f32 %v7898, %v8002
      %v8099 = vmul.f32 %v7901, %v8002
      %v8100 = vmul.f32 %v7904, %v8002
      %v8101 = vmul.f32 %v7907, %v8002
      %v8102 = vmul.f32 %v7910, %v8002
      %v8103 = vmul.f32 %v7913, %v8002
      %v8104 = vmul.f32 %v7916, %v8002
      %v8105 = vmul.f32 %v7919, %v8002
      %v8106 = vmul.f32 %v7922, %v8002
      %v8107 = vmul.f32 %v7925, %v8002
      %v8108 = vmul.f32 %v7928, %v8002
      %v8109 = vmul.f32 %v7931, %v8002
      %v8110 = vmul.f32 %v7934, %v8002
      %v8111 = vmul.f32 %v7937, %v8002
      %v8112 = vmul.f32 %v7940, %v8002
      %v8113 = vmul.f32 %v7943, %v8002
      %v8114 = vmul.f32 %v7946, %v8002
      %v8115 = vmul.f32 %v7949, %v8002
      %v8116 = vmul.f32 %v7952, %v8002
      %v8117 = vmul.f32 %v7955, %v8002
      %v8118 = vmul.f32 %v7958, %v8002
      %v8119 = vmul.f32 %v7961, %v8002
      %v8120 = vmul.f32 %v7964, %v8002
      %v8121 = vmul.f32 %v7967, %v8002
      %v8122 = vmul.f32 %v7970, %v8002
      %v8123 = vmul.f32 %v7973, %v8002
      %v8124 = vmul.f32 %v7976, %v8002
      %v8125 = vmul.f32 %v7979, %v8002
      %v8126 = vmul.f32 %v7982, %v8002
      %v8127 = vmul.f32 %v7985, %v8002
      %v8128 = vmul.f32 %v7988, %v8002
      %v8129 = vmul.f32 %v7991, %v8002
      %v8130 = vmul.f32 %v7994, %v8002
      %v8195 = vrot.slane %v8067, 4
      %v8196 = vrot.slane %v8068, 4
      %v8197 = vrot.slane %v8069, 4
      %v8198 = vrot.slane %v8070, 4
      %v8199 = vrot.slane %v8071, 4
      %v8200 = vrot.slane %v8072, 4
      %v8201 = vrot.slane %v8073, 4
      %v8202 = vrot.slane %v8074, 4
      %v8203 = vrot.slane %v8075, 4
      %v8204 = vrot.slane %v8076, 4
      %v8205 = vrot.slane %v8077, 4
      %v8206 = vrot.slane %v8078, 4
      %v8207 = vrot.slane %v8079, 4
      %v8208 = vrot.slane %v8080, 4
      %v8209 = vrot.slane %v8081, 4
      %v8210 = vrot.slane %v8082, 4
      %v8211 = vrot.slane %v8083, 4
      %v8212 = vrot.slane %v8084, 4
      %v8213 = vrot.slane %v8085, 4
      %v8214 = vrot.slane %v8086, 4
      %v8215 = vrot.slane %v8087, 4
      %v8216 = vrot.slane %v8088, 4
      %v8217 = vrot.slane %v8089, 4
      %v8218 = vrot.slane %v8090, 4
      %v8219 = vrot.slane %v8091, 4
      %v8220 = vrot.slane %v8092, 4
      %v8221 = vrot.slane %v8093, 4
      %v8222 = vrot.slane %v8094, 4
      %v8223 = vrot.slane %v8095, 4
      %v8224 = vrot.slane %v8096, 4
      %v8225 = vrot.slane %v8097, 4
      %v8226 = vrot.slane %v8098, 4
      %v8227 = vrot.slane %v8099, 4
      %v8228 = vrot.slane %v8100, 4
      %v8229 = vrot.slane %v8101, 4
      %v8230 = vrot.slane %v8102, 4
      %v8231 = vrot.slane %v8103, 4
      %v8232 = vrot.slane %v8104, 4
      %v8233 = vrot.slane %v8105, 4
      %v8234 = vrot.slane %v8106, 4
      %v8235 = vrot.slane %v8107, 4
      %v8236 = vrot.slane %v8108, 4
      %v8237 = vrot.slane %v8109, 4
      %v8238 = vrot.slane %v8110, 4
      %v8239 = vrot.slane %v8111, 4
      %v8240 = vrot.slane %v8112, 4
      %v8241 = vrot.slane %v8113, 4
      %v8242 = vrot.slane %v8114, 4
      %v8243 = vrot.slane %v8115, 4
      %v8244 = vrot.slane %v8116, 4
      %v8245 = vrot.slane %v8117, 4
      %v8246 = vrot.slane %v8118, 4
      %v8247 = vrot.slane %v8119, 4
      %v8248 = vrot.slane %v8120, 4
      %v8249 = vrot.slane %v8121, 4
      %v8250 = vrot.slane %v8122, 4
      %v8251 = vrot.slane %v8123, 4
      %v8252 = vrot.slane %v8124, 4
      %v8253 = vrot.slane %v8125, 4
      %v8254 = vrot.slane %v8126, 4
      %v8255 = vrot.slane %v8127, 4
      %v8256 = vrot.slane %v8128, 4
      %v8257 = vrot.slane %v8129, 4
      %v8258 = vrot.slane %v8130, 4
      %v8323 = vadd.f32 %v8003, %v8195
      %v8324 = vadd.f32 %v8004, %v8196
      %v8325 = vadd.f32 %v8005, %v8197
      %v8326 = vadd.f32 %v8006, %v8198
      %v8327 = vadd.f32 %v8007, %v8199
      %v8328 = vadd.f32 %v8008, %v8200
      %v8329 = vadd.f32 %v8009, %v8201
      %v8330 = vadd.f32 %v8010, %v8202
      %v8331 = vadd.f32 %v8011, %v8203
      %v8332 = vadd.f32 %v8012, %v8204
      %v8333 = vadd.f32 %v8013, %v8205
      %v8334 = vadd.f32 %v8014, %v8206
      %v8335 = vadd.f32 %v8015, %v8207
      %v8336 = vadd.f32 %v8016, %v8208
      %v8337 = vadd.f32 %v8017, %v8209
      %v8338 = vadd.f32 %v8018, %v8210
      %v8339 = vadd.f32 %v8019, %v8211
      %v8340 = vadd.f32 %v8020, %v8212
      %v8341 = vadd.f32 %v8021, %v8213
      %v8342 = vadd.f32 %v8022, %v8214
      %v8343 = vadd.f32 %v8023, %v8215
      %v8344 = vadd.f32 %v8024, %v8216
      %v8345 = vadd.f32 %v8025, %v8217
      %v8346 = vadd.f32 %v8026, %v8218
      %v8347 = vadd.f32 %v8027, %v8219
      %v8348 = vadd.f32 %v8028, %v8220
      %v8349 = vadd.f32 %v8029, %v8221
      %v8350 = vadd.f32 %v8030, %v8222
      %v8351 = vadd.f32 %v8031, %v8223
      %v8352 = vadd.f32 %v8032, %v8224
      %v8353 = vadd.f32 %v8033, %v8225
      %v8354 = vadd.f32 %v8034, %v8226
      %v8355 = vadd.f32 %v8035, %v8227
      %v8356 = vadd.f32 %v8036, %v8228
      %v8357 = vadd.f32 %v8037, %v8229
      %v8358 = vadd.f32 %v8038, %v8230
      %v8359 = vadd.f32 %v8039, %v8231
      %v8360 = vadd.f32 %v8040, %v8232
      %v8361 = vadd.f32 %v8041, %v8233
      %v8362 = vadd.f32 %v8042, %v8234
      %v8363 = vadd.f32 %v8043, %v8235
      %v8364 = vadd.f32 %v8044, %v8236
      %v8365 = vadd.f32 %v8045, %v8237
      %v8366 = vadd.f32 %v8046, %v8238
      %v8367 = vadd.f32 %v8047, %v8239
      %v8368 = vadd.f32 %v8048, %v8240
      %v8369 = vadd.f32 %v8049, %v8241
      %v8370 = vadd.f32 %v8050, %v8242
      %v8371 = vadd.f32 %v8051, %v8243
      %v8372 = vadd.f32 %v8052, %v8244
      %v8373 = vadd.f32 %v8053, %v8245
      %v8374 = vadd.f32 %v8054, %v8246
      %v8375 = vadd.f32 %v8055, %v8247
      %v8376 = vadd.f32 %v8056, %v8248
      %v8377 = vadd.f32 %v8057, %v8249
      %v8378 = vadd.f32 %v8058, %v8250
      %v8379 = vadd.f32 %v8059, %v8251
      %v8380 = vadd.f32 %v8060, %v8252
      %v8381 = vadd.f32 %v8061, %v8253
      %v8382 = vadd.f32 %v8062, %v8254
      %v8383 = vadd.f32 %v8063, %v8255
      %v8384 = vadd.f32 %v8064, %v8256
      %v8385 = vadd.f32 %v8065, %v8257
      %v8386 = vadd.f32 %v8066, %v8258
      %vm8387 = vcmask 44032
      %8388 = vst.msk [vmem:[%s251] sm:$0xf] %vm8387, %v8323
      %8389 = vst.msk [vmem:[%s251 + $0x4] sm:$0xf] %vm8387, %v8324
      %8390 = vst.msk [vmem:[%s251 + $0x8] sm:$0xf] %vm8387, %v8325
      %8391 = vst.msk [vmem:[%s251 + $0xc] sm:$0xf] %vm8387, %v8326
      %8392 = vst.msk [vmem:[%s251 + $0x10] sm:$0xf] %vm8387, %v8327
      %8393 = vst.msk [vmem:[%s251 + $0x14] sm:$0xf] %vm8387, %v8328
      %8394 = vst.msk [vmem:[%s251 + $0x18] sm:$0xf] %vm8387, %v8329
      %8395 = vst.msk [vmem:[%s251 + $0x1c] sm:$0xf] %vm8387, %v8330
      %8396 = vst.msk [vmem:[%s251 + $0x20] sm:$0xf] %vm8387, %v8331
      %8397 = vst.msk [vmem:[%s251 + $0x24] sm:$0xf] %vm8387, %v8332
      %8398 = vst.msk [vmem:[%s251 + $0x28] sm:$0xf] %vm8387, %v8333
      %8399 = vst.msk [vmem:[%s251 + $0x2c] sm:$0xf] %vm8387, %v8334
      %8400 = vst.msk [vmem:[%s251 + $0x30] sm:$0xf] %vm8387, %v8335
      %8401 = vst.msk [vmem:[%s251 + $0x34] sm:$0xf] %vm8387, %v8336
      %8402 = vst.msk [vmem:[%s251 + $0x38] sm:$0xf] %vm8387, %v8337
      %8403 = vst.msk [vmem:[%s251 + $0x3c] sm:$0xf] %vm8387, %v8338
      %8404 = vst.msk [vmem:[%s251 + $0x40] sm:$0xf] %vm8387, %v8339
      %8405 = vst.msk [vmem:[%s251 + $0x44] sm:$0xf] %vm8387, %v8340
      %8406 = vst.msk [vmem:[%s251 + $0x48] sm:$0xf] %vm8387, %v8341
      %8407 = vst.msk [vmem:[%s251 + $0x4c] sm:$0xf] %vm8387, %v8342
      %8408 = vst.msk [vmem:[%s251 + $0x50] sm:$0xf] %vm8387, %v8343
      %8409 = vst.msk [vmem:[%s251 + $0x54] sm:$0xf] %vm8387, %v8344
      %8410 = vst.msk [vmem:[%s251 + $0x58] sm:$0xf] %vm8387, %v8345
      %8411 = vst.msk [vmem:[%s251 + $0x5c] sm:$0xf] %vm8387, %v8346
      %8412 = vst.msk [vmem:[%s251 + $0x60] sm:$0xf] %vm8387, %v8347
      %8413 = vst.msk [vmem:[%s251 + $0x64] sm:$0xf] %vm8387, %v8348
      %8414 = vst.msk [vmem:[%s251 + $0x68] sm:$0xf] %vm8387, %v8349
      %8415 = vst.msk [vmem:[%s251 + $0x6c] sm:$0xf] %vm8387, %v8350
      %8416 = vst.msk [vmem:[%s251 + $0x70] sm:$0xf] %vm8387, %v8351
      %8417 = vst.msk [vmem:[%s251 + $0x74] sm:$0xf] %vm8387, %v8352
      %8418 = vst.msk [vmem:[%s251 + $0x78] sm:$0xf] %vm8387, %v8353
      %8419 = vst.msk [vmem:[%s251 + $0x7c] sm:$0xf] %vm8387, %v8354
      %8420 = vst.msk [vmem:[%s251 + $0x80] sm:$0xf] %vm8387, %v8355
      %8421 = vst.msk [vmem:[%s251 + $0x84] sm:$0xf] %vm8387, %v8356
      %8422 = vst.msk [vmem:[%s251 + $0x88] sm:$0xf] %vm8387, %v8357
      %8423 = vst.msk [vmem:[%s251 + $0x8c] sm:$0xf] %vm8387, %v8358
      %8424 = vst.msk [vmem:[%s251 + $0x90] sm:$0xf] %vm8387, %v8359
      %8425 = vst.msk [vmem:[%s251 + $0x94] sm:$0xf] %vm8387, %v8360
      %8426 = vst.msk [vmem:[%s251 + $0x98] sm:$0xf] %vm8387, %v8361
      %8427 = vst.msk [vmem:[%s251 + $0x9c] sm:$0xf] %vm8387, %v8362
      %8428 = vst.msk [vmem:[%s251 + $0xa0] sm:$0xf] %vm8387, %v8363
      %8429 = vst.msk [vmem:[%s251 + $0xa4] sm:$0xf] %vm8387, %v8364
      %8430 = vst.msk [vmem:[%s251 + $0xa8] sm:$0xf] %vm8387, %v8365
      %8431 = vst.msk [vmem:[%s251 + $0xac] sm:$0xf] %vm8387, %v8366
      %8432 = vst.msk [vmem:[%s251 + $0xb0] sm:$0xf] %vm8387, %v8367
      %8433 = vst.msk [vmem:[%s251 + $0xb4] sm:$0xf] %vm8387, %v8368
      %8434 = vst.msk [vmem:[%s251 + $0xb8] sm:$0xf] %vm8387, %v8369
      %8435 = vst.msk [vmem:[%s251 + $0xbc] sm:$0xf] %vm8387, %v8370
      %8436 = vst.msk [vmem:[%s251 + $0xc0] sm:$0xf] %vm8387, %v8371
      %8437 = vst.msk [vmem:[%s251 + $0xc4] sm:$0xf] %vm8387, %v8372
      %8438 = vst.msk [vmem:[%s251 + $0xc8] sm:$0xf] %vm8387, %v8373
      %8439 = vst.msk [vmem:[%s251 + $0xcc] sm:$0xf] %vm8387, %v8374
      %8440 = vst.msk [vmem:[%s251 + $0xd0] sm:$0xf] %vm8387, %v8375
      %8441 = vst.msk [vmem:[%s251 + $0xd4] sm:$0xf] %vm8387, %v8376
      %8442 = vst.msk [vmem:[%s251 + $0xd8] sm:$0xf] %vm8387, %v8377
      %8443 = vst.msk [vmem:[%s251 + $0xdc] sm:$0xf] %vm8387, %v8378
      %8444 = vst.msk [vmem:[%s251 + $0xe0] sm:$0xf] %vm8387, %v8379
      %8445 = vst.msk [vmem:[%s251 + $0xe4] sm:$0xf] %vm8387, %v8380
      %8446 = vst.msk [vmem:[%s251 + $0xe8] sm:$0xf] %vm8387, %v8381
      %8447 = vst.msk [vmem:[%s251 + $0xec] sm:$0xf] %vm8387, %v8382
      %8448 = vst.msk [vmem:[%s251 + $0xf0] sm:$0xf] %vm8387, %v8383
      %8449 = vst.msk [vmem:[%s251 + $0xf4] sm:$0xf] %vm8387, %v8384
      %8450 = vst.msk [vmem:[%s251 + $0xf8] sm:$0xf] %vm8387, %v8385
      %8451 = vst.msk [vmem:[%s251 + $0xfc] sm:$0xf] %vm8387, %v8386
      %s8452 = smul.u32 64, %s16
      %p8453 = scmp.lt.s32.totalorder %s8452, 127
      %s8454 = scalar_select %p8453, %s8452, 127
      %s8455 = smul.addr %s8454, 4
      %s8456 = scalar_lea.vmem %s5, %s8455
      // Predicated region
      $region41: #{tpu_custom_call.1} parent=39 // pred_check
        %p8457 = pneg %p149
      $region42: #{tpu_custom_call.1} parent=39 // pred_check_branch
        %8459 = sbr.rel (%p8457) target = $region44
      $region43: #{tpu_custom_call.1} parent=39 // pred_region
        %s8460 = smul.u32 64, %s16
      $region44: #{tpu_custom_call.1} parent=39 // pred_fallthru
        _
    $region40: #{tpu_custom_call.1} parent=5 // pred_fallthru
      _
    %p8461 = scmp.le.s32.totalorder 2, %s11
    // Predicated region
    $region45: #{tpu_custom_call.1} parent=5 // pred_check
      %p8462 = pneg %p8461
    $region46: #{tpu_custom_call.1} parent=5 // pred_check_branch
      %8464 = sbr.rel (%p8462) target = $region48
    $region47: #{tpu_custom_call.1} parent=5 // pred_region
      %s8465 = ssub.s32 %s11, 2
      // Predicated region
      $region49: #{tpu_custom_call.1} parent=47 // pred_check
        %p8466 = pneg %p155
      $region50: #{tpu_custom_call.1} parent=47 // pred_check_branch
        %8468 = sbr.rel (%p8466) target = $region52
      $region51: #{tpu_custom_call.1} parent=47 // pred_region
        %s8469 = smul.u32 64, %s17
        %p8470 = scmp.lt.s32.totalorder %s8469, 127
        %s8471 = scalar_select %p8470, %s8469, 127
        %s8472 = smul.addr %s8471, 4
        %s8473 = scalar_lea.vmem %s5, %s8472
      $region52: #{tpu_custom_call.1} parent=47 // pred_fallthru
        _
    $region48: #{tpu_custom_call.1} parent=5 // pred_fallthru
      _
  $region6: #{tpu_custom_call.1} parent=0 // loop_footer
    %s15 = sadd.s32 1, %s11
  $region7: #{tpu_custom_call.1} parent=0 // loop_footer_branch
    %10 = sbr.rel target = $region3
  $region8: #{tpu_custom_call.1} parent=0 // loop_exit
    _

</llo_original>
